<compile_context>
chip_gen: v7x
topology: tpu7x:2x2x1
jax: 0.10.0
libtpu: 0.0.40
codegen_flags: <defaults>
</compile_context>

<pallas_src>
import functools

import jax
import jax.numpy as jnp
from jax import lax
from jax.experimental import pallas as pl
from jax.experimental.pallas import tpu as pltpu


# ------------------------------------------------------------------
# Pallas kernel: one (batch, query-tile) step, all heads fused.
# ------------------------------------------------------------------
def _vqgan_attn_kernel(x_ref, gamma_ref, wq_ref, wkv_ref, wout_ref, bias_ref,
                       o_ref, xn_scr, kv_scr, *, tq, heads, dim_head, eps):
    qt = pl.program_id(1)
    inner = heads * dim_head

    # ---- once per batch element: channel LayerNorm + fused K/V projection ----
    @pl.when(qt == 0)
    def _():
        x = x_ref[0]                                              # (N, C) f32
        mean = jnp.mean(x, axis=-1, keepdims=True)                # (N, 1)
        var = jnp.mean((x - mean) ** 2, axis=-1, keepdims=True)   # unbiased=False
        xn = (x - mean) * lax.rsqrt(var + eps) * gamma_ref[...]   # (N, C) f32
        xn_bf = xn.astype(xn_scr.dtype)
        xn_scr[...] = xn_bf
        # head-fused K/V projection: one (N,C)x(C,2*inner) MXU-wide matmul
        kv_scr[...] = jnp.dot(xn_bf, wkv_ref[...],
                              preferred_element_type=jnp.float32
                              ).astype(kv_scr.dtype)              # (N, 2*inner)

    # ---- every step: one query tile, all heads ----
    row0 = pl.multiple_of(qt * tq, tq)
    xn_q = xn_scr[pl.ds(row0, tq), :]                             # (tq, C) bf16
    # head-fused Q projection (scale folded into wq in the wrapper)
    q_all = jnp.dot(xn_q, wq_ref[...],
                    preferred_element_type=jnp.float32
                    ).astype(jnp.bfloat16)                        # (tq, inner)
    kv = kv_scr[...]                                              # (N, 2*inner)

    outs = []
    for h in range(heads):                                        # static unroll
        q_h = q_all[:, h * dim_head:(h + 1) * dim_head]           # (tq, Dh)
        k_h = kv[:, h * dim_head:(h + 1) * dim_head]              # (N, Dh)
        v_h = kv[:, inner + h * dim_head: inner + (h + 1) * dim_head]

        # sim[i, j] = sum_d q[i, d] * k[j, d]  (+ continuous position bias)
        sim = lax.dot_general(q_h, k_h, (((1,), (1,)), ((), ())),
                              preferred_element_type=jnp.float32)  # (tq, N)
        sim = sim + bias_ref[h].astype(jnp.float32)

        # stable_softmax(sim, dim=-1) == softmax(sim - rowmax(sim)) exactly
        sim = sim - jnp.max(sim, axis=-1, keepdims=True)
        p = jnp.exp(sim)
        attn = p * pl.reciprocal(jnp.sum(p, axis=-1, keepdims=True), approx=True)

        outs.append(jnp.dot(attn.astype(kv.dtype), v_h,
                            preferred_element_type=jnp.float32))   # (tq, Dh)

    # single head-fused output projection + residual, full tile written once
    out_all = jnp.concatenate(outs, axis=-1).astype(jnp.bfloat16)  # (tq, inner)
    proj = jnp.dot(out_all, wout_ref[...],
                   preferred_element_type=jnp.float32)             # (tq, C) f32
    o_ref[0] = x_ref[0, pl.ds(row0, tq), :] + proj


# ------------------------------------------------------------------
# Continuous position bias (tiny MLP over relative log-coordinates).
# Plain-JAX glue: pure positional parameter setup, computed once.
# ------------------------------------------------------------------
def continuous_position_bias(fmap_size, cpb_params):
    pos = jnp.arange(fmap_size)
    gi, gj = jnp.meshgrid(pos, pos, indexing="ij")
    grid = jnp.stack([gi, gj], axis=0).reshape(2, -1).T                # (N, 2)
    rel = grid[:, None, :] - grid[None, :, :]                          # (N, N, 2)
    rel = jnp.sign(rel) * jnp.log(jnp.abs(rel) + 1.0)
    rel = rel.astype(jnp.float32)

    (w1, b1), (w2, b2), (w3, b3) = cpb_params
    h = jax.nn.leaky_relu(rel @ w1.T + b1, 0.1)
    h = jax.nn.leaky_relu(h @ w2.T + b2, 0.1)
    h = h @ w3.T + b3                                                  # (N, N, heads)
    return jnp.transpose(h, (2, 0, 1))                                 # (heads, N, N)


# ------------------------------------------------------------------
# VMEM budgeting helpers.
# ------------------------------------------------------------------
def _vmem_capacity_bytes():
    try:
        return int(pltpu.get_tpu_info().vmem_capacity_bytes)
    except Exception:
        return 64 * 1024 * 1024       # conservative (v7x per-TC size)


def _vmem_bytes_estimate(N, C, heads, dim_head, tq):
    inner = heads * dim_head
    dbl = 2                           # pipeline double-buffering
    blocks = (dbl * N * C * 4                               # x block (f32)
              + dbl * tq * C * 4                            # out block (f32)
              + dbl * heads * tq * N * 2                    # bias block (bf16)
              + dbl * (C * inner + C * 2 * inner + inner * C) * 2   # weights
              + dbl * C * 4)                                # gamma
    scratch = N * C * 2 + N * 2 * inner * 2                 # xn + kv scratch
    temps = 4 * tq * N * 4 + 4 * tq * inner * 4             # sim/attn/q/out
    return blocks + scratch + temps


def _pick_tq(N, C, heads, dim_head, budget):
    cands = [N] + [d for d in range(min(N - 8, 1024), 7, -8) if N % d == 0]
    for tq in cands:
        if _vmem_bytes_estimate(N, C, heads, dim_head, tq) <= budget:
            return tq
    return cands[-1]


# ------------------------------------------------------------------
# Wrapper.
# ------------------------------------------------------------------
def vqgan_attention(x_nchw, params, *, heads, dim_head, eps=1e-5):
    B, C, H, W = x_nchw.shape
    assert H == W, "ContinuousPositionBias assumes a square feature map"
    N = H * W
    assert N % 8 == 0
    inner = heads * dim_head
    scale = dim_head ** (-0.5)

    budget = int(0.75 * _vmem_capacity_bytes())
    tq = _pick_tq(N, C, heads, dim_head, budget)
    n_qt = N // tq

    # (B, C, H, W) -> (B, N, C): spatial on sublanes, channels on lanes
    # (lane-dense output block; residual / LayerNorm stay in exact f32).
    x = jnp.transpose(x_nchw, (0, 2, 3, 1)).reshape(B, N, C).astype(jnp.float32)
    gamma = params["gamma"].reshape(1, C).astype(jnp.float32)

    # Head-fused, pre-transposed projection weights (resident in VMEM).
    w_qkv = params["w_qkv"].astype(jnp.float32)                        # (3*inner, C)
    wq = (w_qkv[:inner].T * scale).astype(jnp.bfloat16)                # (C, inner), scale folded
    wk = w_qkv[inner:2 * inner].T
    wv = w_qkv[2 * inner:3 * inner].T
    wkv = jnp.concatenate([wk, wv], axis=1).astype(jnp.bfloat16)       # (C, 2*inner)
    wout = params["w_out"].astype(jnp.float32).T.astype(jnp.bfloat16)  # (inner, C)

    # Continuous position bias table (resident when tq == N).
    bias = continuous_position_bias(H, params["cpb"]).astype(jnp.bfloat16)

    kernel = functools.partial(_vqgan_attn_kernel, tq=tq, heads=heads,
                               dim_head=dim_head, eps=eps)

    est = _vmem_bytes_estimate(N, C, heads, dim_head, tq)
    vmem_limit = int(min(budget, max(est + (16 << 20), 24 << 20)))

    flops = int(B * (6 * N * C                          # layernorm + residual
                     + 2 * N * C * 3 * inner            # q/k/v projections
                     + 2 * 2 * N * N * inner            # sim + attn@v (all heads)
                     + 6 * heads * N * N                # bias add / softmax arith
                     + 2 * N * inner * C))              # output projection
    transcendentals = int(B * (heads * N * N + heads * N + N))
    bias_bytes = heads * N * N * 2 * (1 if n_qt == 1 else B)
    bytes_accessed = int(B * 2 * N * C * 4              # x in, out
                         + bias_bytes                   # bias table
                         + (3 * C * inner + inner * C) * 2   # weights (once)
                         + C * 4)                       # gamma

    out = pl.pallas_call(
        kernel,
        out_shape=jax.ShapeDtypeStruct((B, N, C), jnp.float32),
        grid_spec=pltpu.PrefetchScalarGridSpec(
            num_scalar_prefetch=0,
            grid=(B, n_qt),
            in_specs=[
                pl.BlockSpec((1, N, C), lambda b, t: (b, 0, 0)),            # x
                pl.BlockSpec((1, C), lambda b, t: (0, 0)),                  # gamma
                pl.BlockSpec((C, inner), lambda b, t: (0, 0)),              # wq
                pl.BlockSpec((C, 2 * inner), lambda b, t: (0, 0)),          # wkv
                pl.BlockSpec((inner, C), lambda b, t: (0, 0)),              # wout
                pl.BlockSpec((heads, tq, N), lambda b, t: (0, t, 0)),       # cpb bias
            ],
            out_specs=pl.BlockSpec((1, tq, C), lambda b, t: (b, t, 0)),
            scratch_shapes=[
                pltpu.VMEM((N, C), jnp.bfloat16),            # x_norm (per batch)
                pltpu.VMEM((N, 2 * inner), jnp.bfloat16),    # fused K|V (per batch)
            ],
        ),
        compiler_params=pltpu.CompilerParams(
            dimension_semantics=("parallel",
                                 "parallel" if n_qt == 1 else "arbitrary"),
            vmem_limit_bytes=vmem_limit),
        cost_estimate=pl.CostEstimate(flops=flops,
                                      transcendentals=transcendentals,
                                      bytes_accessed=bytes_accessed),
    )(x, gamma, wq, wkv, wout, bias)

    # (B, N, C) -> (B, C, H, W)
    return jnp.transpose(out.reshape(B, H, W, C), (0, 3, 1, 2))


# ------------------------------------------------------------------
# Pure-JAX reference (mirrors the PyTorch forward op-for-op, in f32).
# ------------------------------------------------------------------
def vqgan_attention_ref(x_nchw, params, *, heads, dim_head, eps=1e-5):
    B, C, H, W = x_nchw.shape
    N = H * W
    inner = heads * dim_head
    scale = dim_head ** (-0.5)

    residual = x_nchw
    mean = jnp.mean(x_nchw, axis=1, keepdims=True)
    var = jnp.mean((x_nchw - mean) ** 2, axis=1, keepdims=True)
    xn = (x_nchw - mean) / jnp.sqrt(var + eps) * params["gamma"].reshape(1, C, 1, 1)

    xn_flat = xn.reshape(B, C, N)
    qkv = jnp.einsum("oc,bcn->bon", params["w_qkv"], xn_flat)          # (B, 3*inner, N)
    q, k, v = jnp.split(qkv, 3, axis=1)
    reshape_heads = lambda t: t.reshape(B, heads, dim_head, N)
    q, k, v = map(reshape_heads, (q, k, v))

    sim = jnp.einsum("bhci,bhcj->bhij", q, k) * scale
    sim = sim + continuous_position_bias(H, params["cpb"])[None]
    sim = sim - jnp.max(sim, axis=-1, keepdims=True)
    attn = jax.nn.softmax(sim, axis=-1)
    out = jnp.einsum("bhij,bhcj->bhci", attn, v).reshape(B, inner, N)
    out = jnp.einsum("oc,bcn->bon", params["w_out"], out).reshape(B, C, H, W)
    return out + residual


# ------------------------------------------------------------------
# Deterministic parameter construction.
# ------------------------------------------------------------------
def make_params(key, dim, heads, dim_head):
    inner = heads * dim_head
    dim_cpb = dim // 4
    keys = jax.random.split(key, 8)
    s = 0.1
    params = {
        "gamma": jnp.ones((dim,), jnp.float32),
        "w_qkv": s * jax.random.normal(keys[0], (3 * inner, dim), jnp.float32),
        "w_out": s * jax.random.normal(keys[1], (dim, inner), jnp.float32),
        "cpb": (
            (s * jax.random.normal(keys[2], (dim_cpb, 2), jnp.float32),
             s * jax.random.normal(keys[3], (dim_cpb,), jnp.float32)),
            (s * jax.random.normal(keys[4], (dim_cpb, dim_cpb), jnp.float32),
             s * jax.random.normal(keys[5], (dim_cpb,), jnp.float32)),
            (s * jax.random.normal(keys[6], (heads, dim_cpb), jnp.float32),
             s * jax.random.normal(keys[7], (heads,), jnp.float32)),
        ),
    }
    return params


if __name__ == "__main__":
    # Small but lane-dense shapes: B=2, dim=128 (lane-dense output / LN),
    # H=W=16 -> N=256 (one full-sequence query tile per batch element),
    # heads=4, dim_head=32 -> inner_dim=128, cpb dim = dim//4 = 32.
    B, DIM, H, W = 2, 128, 16, 16
    HEADS, DIM_HEAD = 4, 32
    # TODO(synk): nn.Dropout(0.0) is an identity at these settings; no RNG dropout emitted.

    key = jax.random.PRNGKey(0)
    k_x, k_p = jax.random.split(key)
    x = jax.random.normal(k_x, (B, DIM, H, W), jnp.float32)
    params = make_params(k_p, DIM, HEADS, DIM_HEAD)

    out = vqgan_attention(x, params, heads=HEADS, dim_head=DIM_HEAD)
    out = jax.block_until_ready(out)

    ref = vqgan_attention_ref(x, params, heads=HEADS, dim_head=DIM_HEAD)
    assert out.shape == (B, DIM, H, W)
    assert jnp.all(jnp.isfinite(out))
    # bf16 matmul operands (f32 accumulation) + approx reciprocal: tolerance
    # is 2e-2 instead of bit-exact f32.
    assert jnp.allclose(out, ref, rtol=2e-2, atol=2e-2), (
        float(jnp.max(jnp.abs(out - ref))))

    print("KERNEL_OK")
</pallas_src>

<mosaic_0001>
module attributes {stable_mosaic.version = 11 : i64} {
  func.func @_vqgan_attn_kernel(%arg0: i32, %arg1: i32, %arg2: memref<1x256x128xf32, #tpu.memory_space<vmem>>, %arg3: memref<1x128xf32, #tpu.memory_space<vmem>>, %arg4: memref<128x128xbf16, #tpu.memory_space<vmem>>, %arg5: memref<128x256xbf16, #tpu.memory_space<vmem>>, %arg6: memref<128x128xbf16, #tpu.memory_space<vmem>>, %arg7: memref<4x256x256xbf16, #tpu.memory_space<vmem>>, %arg8: memref<1x256x128xf32, #tpu.memory_space<vmem>>, %arg9: memref<256x128xbf16, #tpu.memory_space<vmem>>, %arg10: memref<256x256xbf16, #tpu.memory_space<vmem>>) attributes {dimension_semantics = [#tpu.dimension_semantics<parallel>, #tpu.dimension_semantics<parallel>], iteration_bounds = array<i64: 2, 1>, scalar_prefetch = 0 : i64, scratch_operands = 2 : i64, tpu.core_type = #tpu.core_type<tc>, window_params = [{transform_indices = @transform_0, window_bounds = array<i64: 1, 256, 128>}, {pipeline_mode = #tpu.pipeline_mode<synchronous>, transform_indices = @transform_1, window_bounds = array<i64: 1, 128>}, {pipeline_mode = #tpu.pipeline_mode<synchronous>, transform_indices = @transform_2, window_bounds = array<i64: 128, 128>}, {pipeline_mode = #tpu.pipeline_mode<synchronous>, transform_indices = @transform_3, window_bounds = array<i64: 128, 256>}, {pipeline_mode = #tpu.pipeline_mode<synchronous>, transform_indices = @transform_4, window_bounds = array<i64: 128, 128>}, {transform_indices = @transform_5, window_bounds = array<i64: 4, 256, 256>}, {transform_indices = @transform_6, window_bounds = array<i64: 1, 256, 128>}]} {
    %c0_i32 = arith.constant 0 : i32
    %0 = arith.cmpi eq, %arg1, %c0_i32 : i32
    %1 = arith.extui %0 : i1 to i32
    %c0_i32_0 = arith.constant 0 : i32
    %2 = arith.cmpi ne, %1, %c0_i32_0 : i32
    scf.if %2 {
      %c0_38 = arith.constant 0 : index
      %c0_39 = arith.constant 0 : index
      %c0_40 = arith.constant 0 : index
      %102 = vector.load %arg2[%c0_38, %c0_39, %c0_40] : memref<1x256x128xf32, #tpu.memory_space<vmem>>, vector<1x256x128xf32>
      %103 = vector.shape_cast %102 : vector<1x256x128xf32> to vector<256x128xf32>
      %cst_41 = arith.constant dense<0.000000e+00> : vector<256xf32>
      %104 = vector.multi_reduction <add>, %103, %cst_41 [1] : vector<256x128xf32> to vector<256xf32>
      %105 = vector.shape_cast %104 : vector<256xf32> to vector<256x1xf32>
      %cst_42 = arith.constant 1.280000e+02 : f32
      %106 = vector.broadcast %cst_42 : f32 to vector<256x1xf32>
      %107 = arith.divf %105, %106 : vector<256x1xf32>
      %108 = vector.broadcast %107 : vector<256x1xf32> to vector<256x128xf32>
      %109 = arith.subf %103, %108 : vector<256x128xf32>
      %110 = arith.mulf %109, %109 : vector<256x128xf32>
      %cst_43 = arith.constant dense<0.000000e+00> : vector<256xf32>
      %111 = vector.multi_reduction <add>, %110, %cst_43 [1] : vector<256x128xf32> to vector<256xf32>
      %112 = vector.shape_cast %111 : vector<256xf32> to vector<256x1xf32>
      %cst_44 = arith.constant 1.280000e+02 : f32
      %113 = vector.broadcast %cst_44 : f32 to vector<256x1xf32>
      %114 = arith.divf %112, %113 : vector<256x1xf32>
      %115 = vector.broadcast %107 : vector<256x1xf32> to vector<256x128xf32>
      %116 = arith.subf %103, %115 : vector<256x128xf32>
      %cst_45 = arith.constant 9.99999974E-6 : f32
      %117 = vector.broadcast %cst_45 : f32 to vector<256x1xf32>
      %118 = arith.addf %114, %117 : vector<256x1xf32>
      %119 = math.rsqrt %118 : vector<256x1xf32>
      %120 = vector.broadcast %119 : vector<256x1xf32> to vector<256x128xf32>
      %121 = arith.mulf %116, %120 : vector<256x128xf32>
      %c0_46 = arith.constant 0 : index
      %c0_47 = arith.constant 0 : index
      %122 = vector.load %arg3[%c0_46, %c0_47] : memref<1x128xf32, #tpu.memory_space<vmem>>, vector<1x128xf32>
      %123 = vector.broadcast %122 : vector<1x128xf32> to vector<256x128xf32>
      %124 = arith.mulf %121, %123 : vector<256x128xf32>
      %125 = arith.truncf %124 : vector<256x128xf32> to vector<256x128xbf16>
      %c0_48 = arith.constant 0 : index
      %c0_49 = arith.constant 0 : index
      %126 = vector.load %arg9[%c0_48, %c0_49] : memref<256x128xbf16, #tpu.memory_space<vmem>>, vector<256x128xbf16>
      tpu.vector_store %arg9[%c0_48, %c0_49], %125 {strides = array<i32>} : memref<256x128xbf16, #tpu.memory_space<vmem>>, vector<256x128xbf16>,
      %c0_50 = arith.constant 0 : index
      %c0_51 = arith.constant 0 : index
      %127 = vector.load %arg5[%c0_50, %c0_51] : memref<128x256xbf16, #tpu.memory_space<vmem>>, vector<128x256xbf16>
      %cst_52 = arith.constant dense<0.000000e+00> : vector<256x256xf32>
      %128 = tpu.matmul %125, %127, %cst_52 {dimension_numbers = #tpu.dot_dimension_numbers<[1], [0], [0], [1], [0, 0, 1, 1], [], []>} : vector<256x128xbf16>, vector<128x256xbf16>, vector<256x256xf32> -> vector<256x256xf32>
      %129 = arith.truncf %128 : vector<256x256xf32> to vector<256x256xbf16>
      %c0_53 = arith.constant 0 : index
      %c0_54 = arith.constant 0 : index
      %130 = vector.load %arg10[%c0_53, %c0_54] : memref<256x256xbf16, #tpu.memory_space<vmem>>, vector<256x256xbf16>
      tpu.vector_store %arg10[%c0_53, %c0_54], %129 {strides = array<i32>} : memref<256x256xbf16, #tpu.memory_space<vmem>>, vector<256x256xbf16>,
    } else {
    }
    %c256_i32 = arith.constant 256 : i32
    %3 = arith.muli %arg1, %c256_i32 : i32
    %4 = tpu.assume_multiple %3, 256 : i32
    %5 = arith.index_cast %4 : i32 to index
    %c0 = arith.constant 0 : index
    %6 = vector.load %arg9[%5, %c0] : memref<256x128xbf16, #tpu.memory_space<vmem>>, vector<256x128xbf16>
    %c0_1 = arith.constant 0 : index
    %c0_2 = arith.constant 0 : index
    %7 = vector.load %arg4[%c0_1, %c0_2] : memref<128x128xbf16, #tpu.memory_space<vmem>>, vector<128x128xbf16>
    %cst = arith.constant dense<0.000000e+00> : vector<256x128xf32>
    %8 = tpu.matmul %6, %7, %cst {dimension_numbers = #tpu.dot_dimension_numbers<[1], [0], [0], [1], [0, 0, 1, 1], [], []>} : vector<256x128xbf16>, vector<128x128xbf16>, vector<256x128xf32> -> vector<256x128xf32>
    %9 = arith.truncf %8 : vector<256x128xf32> to vector<256x128xbf16>
    %c0_3 = arith.constant 0 : index
    %c0_4 = arith.constant 0 : index
    %10 = vector.load %arg10[%c0_3, %c0_4] : memref<256x256xbf16, #tpu.memory_space<vmem>>, vector<256x256xbf16>
    %11 = vector.extract_strided_slice %9 {offsets = [0, 0], sizes = [256, 32], strides = [1, 1]} : vector<256x128xbf16> to vector<256x32xbf16>
    %12 = vector.extract_strided_slice %10 {offsets = [0, 0], sizes = [256, 32], strides = [1, 1]} : vector<256x256xbf16> to vector<256x32xbf16>
    %13 = vector.extract_strided_slice %10 {offsets = [0, 128], sizes = [256, 32], strides = [1, 1]} : vector<256x256xbf16> to vector<256x32xbf16>
    %cst_5 = arith.constant dense<0.000000e+00> : vector<256x256xf32>
    %14 = tpu.matmul %11, %12, %cst_5 {dimension_numbers = #tpu.dot_dimension_numbers<[1], [1], [0], [0], [0, 0, 1, 0], [], []>} : vector<256x32xbf16>, vector<256x32xbf16>, vector<256x256xf32> -> vector<256x256xf32>
    %c0_6 = arith.constant 0 : index
    %c0_7 = arith.constant 0 : index
    %c0_8 = arith.constant 0 : index
    %15 = vector.load %arg7[%c0_6, %c0_7, %c0_8] : memref<4x256x256xbf16, #tpu.memory_space<vmem>>, vector<1x256x256xbf16>
    %16 = vector.shape_cast %15 : vector<1x256x256xbf16> to vector<256x256xbf16>
    %17 = arith.extf %16 : vector<256x256xbf16> to vector<256x256xf32>
    %18 = arith.addf %14, %17 : vector<256x256xf32>
    %cst_9 = arith.constant dense<0xFF800000> : vector<256xf32>
    %19 = vector.multi_reduction <maximumf>, %18, %cst_9 [1] : vector<256x256xf32> to vector<256xf32>
    %20 = vector.shape_cast %19 : vector<256xf32> to vector<256x1xf32>
    %21 = vector.broadcast %20 : vector<256x1xf32> to vector<256x256xf32>
    %22 = arith.subf %18, %21 : vector<256x256xf32>
    %23 = math.exp %22 : vector<256x256xf32>
    %cst_10 = arith.constant dense<0.000000e+00> : vector<256xf32>
    %24 = vector.multi_reduction <add>, %23, %cst_10 [1] : vector<256x256xf32> to vector<256xf32>
    %25 = vector.shape_cast %24 : vector<256xf32> to vector<256x1xf32>
    %26 = tpu.reciprocal %25 {approx = true} : vector<256x1xf32> -> vector<256x1xf32>
    %27 = vector.broadcast %26 : vector<256x1xf32> to vector<256x256xf32>
    %28 = arith.mulf %23, %27 : vector<256x256xf32>
    %29 = arith.truncf %28 : vector<256x256xf32> to vector<256x256xbf16>
    %cst_11 = arith.constant dense<0.000000e+00> : vector<256x32xf32>
    %30 = tpu.matmul %29, %13, %cst_11 {dimension_numbers = #tpu.dot_dimension_numbers<[1], [0], [0], [1], [0, 0, 1, 1], [], []>} : vector<256x256xbf16>, vector<256x32xbf16>, vector<256x32xf32> -> vector<256x32xf32>
    %31 = vector.extract_strided_slice %9 {offsets = [0, 32], sizes = [256, 32], strides = [1, 1]} : vector<256x128xbf16> to vector<256x32xbf16>
    %32 = vector.extract_strided_slice %10 {offsets = [0, 32], sizes = [256, 32], strides = [1, 1]} : vector<256x256xbf16> to vector<256x32xbf16>
    %33 = vector.extract_strided_slice %10 {offsets = [0, 160], sizes = [256, 32], strides = [1, 1]} : vector<256x256xbf16> to vector<256x32xbf16>
    %cst_12 = arith.constant dense<0.000000e+00> : vector<256x256xf32>
    %34 = tpu.matmul %31, %32, %cst_12 {dimension_numbers = #tpu.dot_dimension_numbers<[1], [1], [0], [0], [0, 0, 1, 0], [], []>} : vector<256x32xbf16>, vector<256x32xbf16>, vector<256x256xf32> -> vector<256x256xf32>
    %c1 = arith.constant 1 : index
    %c0_13 = arith.constant 0 : index
    %c0_14 = arith.constant 0 : index
    %35 = vector.load %arg7[%c1, %c0_13, %c0_14] : memref<4x256x256xbf16, #tpu.memory_space<vmem>>, vector<1x256x256xbf16>
    %36 = vector.shape_cast %35 : vector<1x256x256xbf16> to vector<256x256xbf16>
    %37 = arith.extf %36 : vector<256x256xbf16> to vector<256x256xf32>
    %38 = arith.addf %34, %37 : vector<256x256xf32>
    %cst_15 = arith.constant dense<0xFF800000> : vector<256xf32>
    %39 = vector.multi_reduction <maximumf>, %38, %cst_15 [1] : vector<256x256xf32> to vector<256xf32>
    %40 = vector.shape_cast %39 : vector<256xf32> to vector<256x1xf32>
    %41 = vector.broadcast %40 : vector<256x1xf32> to vector<256x256xf32>
    %42 = arith.subf %38, %41 : vector<256x256xf32>
    %43 = math.exp %42 : vector<256x256xf32>
    %cst_16 = arith.constant dense<0.000000e+00> : vector<256xf32>
    %44 = vector.multi_reduction <add>, %43, %cst_16 [1] : vector<256x256xf32> to vector<256xf32>
    %45 = vector.shape_cast %44 : vector<256xf32> to vector<256x1xf32>
    %46 = tpu.reciprocal %45 {approx = true} : vector<256x1xf32> -> vector<256x1xf32>
    %47 = vector.broadcast %46 : vector<256x1xf32> to vector<256x256xf32>
    %48 = arith.mulf %43, %47 : vector<256x256xf32>
    %49 = arith.truncf %48 : vector<256x256xf32> to vector<256x256xbf16>
    %cst_17 = arith.constant dense<0.000000e+00> : vector<256x32xf32>
    %50 = tpu.matmul %49, %33, %cst_17 {dimension_numbers = #tpu.dot_dimension_numbers<[1], [0], [0], [1], [0, 0, 1, 1], [], []>} : vector<256x256xbf16>, vector<256x32xbf16>, vector<256x32xf32> -> vector<256x32xf32>
    %51 = vector.extract_strided_slice %9 {offsets = [0, 64], sizes = [256, 32], strides = [1, 1]} : vector<256x128xbf16> to vector<256x32xbf16>
    %52 = vector.extract_strided_slice %10 {offsets = [0, 64], sizes = [256, 32], strides = [1, 1]} : vector<256x256xbf16> to vector<256x32xbf16>
    %53 = vector.extract_strided_slice %10 {offsets = [0, 192], sizes = [256, 32], strides = [1, 1]} : vector<256x256xbf16> to vector<256x32xbf16>
    %cst_18 = arith.constant dense<0.000000e+00> : vector<256x256xf32>
    %54 = tpu.matmul %51, %52, %cst_18 {dimension_numbers = #tpu.dot_dimension_numbers<[1], [1], [0], [0], [0, 0, 1, 0], [], []>} : vector<256x32xbf16>, vector<256x32xbf16>, vector<256x256xf32> -> vector<256x256xf32>
    %c2 = arith.constant 2 : index
    %c0_19 = arith.constant 0 : index
    %c0_20 = arith.constant 0 : index
    %55 = vector.load %arg7[%c2, %c0_19, %c0_20] : memref<4x256x256xbf16, #tpu.memory_space<vmem>>, vector<1x256x256xbf16>
    %56 = vector.shape_cast %55 : vector<1x256x256xbf16> to vector<256x256xbf16>
    %57 = arith.extf %56 : vector<256x256xbf16> to vector<256x256xf32>
    %58 = arith.addf %54, %57 : vector<256x256xf32>
    %cst_21 = arith.constant dense<0xFF800000> : vector<256xf32>
    %59 = vector.multi_reduction <maximumf>, %58, %cst_21 [1] : vector<256x256xf32> to vector<256xf32>
    %60 = vector.shape_cast %59 : vector<256xf32> to vector<256x1xf32>
    %61 = vector.broadcast %60 : vector<256x1xf32> to vector<256x256xf32>
    %62 = arith.subf %58, %61 : vector<256x256xf32>
    %63 = math.exp %62 : vector<256x256xf32>
    %cst_22 = arith.constant dense<0.000000e+00> : vector<256xf32>
    %64 = vector.multi_reduction <add>, %63, %cst_22 [1] : vector<256x256xf32> to vector<256xf32>
    %65 = vector.shape_cast %64 : vector<256xf32> to vector<256x1xf32>
    %66 = tpu.reciprocal %65 {approx = true} : vector<256x1xf32> -> vector<256x1xf32>
    %67 = vector.broadcast %66 : vector<256x1xf32> to vector<256x256xf32>
    %68 = arith.mulf %63, %67 : vector<256x256xf32>
    %69 = arith.truncf %68 : vector<256x256xf32> to vector<256x256xbf16>
    %cst_23 = arith.constant dense<0.000000e+00> : vector<256x32xf32>
    %70 = tpu.matmul %69, %53, %cst_23 {dimension_numbers = #tpu.dot_dimension_numbers<[1], [0], [0], [1], [0, 0, 1, 1], [], []>} : vector<256x256xbf16>, vector<256x32xbf16>, vector<256x32xf32> -> vector<256x32xf32>
    %71 = vector.extract_strided_slice %9 {offsets = [0, 96], sizes = [256, 32], strides = [1, 1]} : vector<256x128xbf16> to vector<256x32xbf16>
    %72 = vector.extract_strided_slice %10 {offsets = [0, 96], sizes = [256, 32], strides = [1, 1]} : vector<256x256xbf16> to vector<256x32xbf16>
    %73 = vector.extract_strided_slice %10 {offsets = [0, 224], sizes = [256, 32], strides = [1, 1]} : vector<256x256xbf16> to vector<256x32xbf16>
    %cst_24 = arith.constant dense<0.000000e+00> : vector<256x256xf32>
    %74 = tpu.matmul %71, %72, %cst_24 {dimension_numbers = #tpu.dot_dimension_numbers<[1], [1], [0], [0], [0, 0, 1, 0], [], []>} : vector<256x32xbf16>, vector<256x32xbf16>, vector<256x256xf32> -> vector<256x256xf32>
    %c3 = arith.constant 3 : index
    %c0_25 = arith.constant 0 : index
    %c0_26 = arith.constant 0 : index
    %75 = vector.load %arg7[%c3, %c0_25, %c0_26] : memref<4x256x256xbf16, #tpu.memory_space<vmem>>, vector<1x256x256xbf16>
    %76 = vector.shape_cast %75 : vector<1x256x256xbf16> to vector<256x256xbf16>
    %77 = arith.extf %76 : vector<256x256xbf16> to vector<256x256xf32>
    %78 = arith.addf %74, %77 : vector<256x256xf32>
    %cst_27 = arith.constant dense<0xFF800000> : vector<256xf32>
    %79 = vector.multi_reduction <maximumf>, %78, %cst_27 [1] : vector<256x256xf32> to vector<256xf32>
    %80 = vector.shape_cast %79 : vector<256xf32> to vector<256x1xf32>
    %81 = vector.broadcast %80 : vector<256x1xf32> to vector<256x256xf32>
    %82 = arith.subf %78, %81 : vector<256x256xf32>
    %83 = math.exp %82 : vector<256x256xf32>
    %cst_28 = arith.constant dense<0.000000e+00> : vector<256xf32>
    %84 = vector.multi_reduction <add>, %83, %cst_28 [1] : vector<256x256xf32> to vector<256xf32>
    %85 = vector.shape_cast %84 : vector<256xf32> to vector<256x1xf32>
    %86 = tpu.reciprocal %85 {approx = true} : vector<256x1xf32> -> vector<256x1xf32>
    %87 = vector.broadcast %86 : vector<256x1xf32> to vector<256x256xf32>
    %88 = arith.mulf %83, %87 : vector<256x256xf32>
    %89 = arith.truncf %88 : vector<256x256xf32> to vector<256x256xbf16>
    %cst_29 = arith.constant dense<0.000000e+00> : vector<256x32xf32>
    %90 = tpu.matmul %89, %73, %cst_29 {dimension_numbers = #tpu.dot_dimension_numbers<[1], [0], [0], [1], [0, 0, 1, 1], [], []>} : vector<256x256xbf16>, vector<256x32xbf16>, vector<256x32xf32> -> vector<256x32xf32>
    %91 = tpu.concatenate %30, %50, %70, %90 in 1 : vector<256x32xf32>, vector<256x32xf32>, vector<256x32xf32>, vector<256x32xf32> -> vector<256x128xf32>
    %92 = arith.truncf %91 : vector<256x128xf32> to vector<256x128xbf16>
    %c0_30 = arith.constant 0 : index
    %c0_31 = arith.constant 0 : index
    %93 = vector.load %arg6[%c0_30, %c0_31] : memref<128x128xbf16, #tpu.memory_space<vmem>>, vector<128x128xbf16>
    %cst_32 = arith.constant dense<0.000000e+00> : vector<256x128xf32>
    %94 = tpu.matmul %92, %93, %cst_32 {dimension_numbers = #tpu.dot_dimension_numbers<[1], [0], [0], [1], [0, 0, 1, 1], [], []>} : vector<256x128xbf16>, vector<128x128xbf16>, vector<256x128xf32> -> vector<256x128xf32>
    %c0_33 = arith.constant 0 : index
    %95 = arith.index_cast %4 : i32 to index
    %c0_34 = arith.constant 0 : index
    %96 = vector.load %arg2[%c0_33, %95, %c0_34] : memref<1x256x128xf32, #tpu.memory_space<vmem>>, vector<1x256x128xf32>
    %97 = vector.shape_cast %96 : vector<1x256x128xf32> to vector<256x128xf32>
    %98 = arith.addf %97, %94 : vector<256x128xf32>
    %c0_35 = arith.constant 0 : index
    %c0_36 = arith.constant 0 : index
    %c0_37 = arith.constant 0 : index
    %99 = vector.load %arg8[%c0_35, %c0_36, %c0_37] : memref<1x256x128xf32, #tpu.memory_space<vmem>>, vector<1x256x128xf32>
    %100 = vector.shape_cast %99 : vector<1x256x128xf32> to vector<256x128xf32>
    %101 = vector.shape_cast %98 : vector<256x128xf32> to vector<1x256x128xf32>
    tpu.vector_store %arg8[%c0_35, %c0_36, %c0_37], %101 {strides = array<i32>} : memref<1x256x128xf32, #tpu.memory_space<vmem>>, vector<1x256x128xf32>,
    return
  }
  func.func @transform_0(%arg0: i32, %arg1: i32) -> (i32, i32, i32) {
    %c0_i32 = arith.constant 0 : i32
    %c0_i32_0 = arith.constant 0 : i32
    %c0_i32_1 = arith.constant 0 : i32
    return %arg0, %c0_i32, %c0_i32_0 : i32, i32, i32
  }
  func.func @transform_1(%arg0: i32, %arg1: i32) -> (i32, i32) {
    %c0_i32 = arith.constant 0 : i32
    %c0_i32_0 = arith.constant 0 : i32
    %c0_i32_1 = arith.constant 0 : i32
    return %c0_i32, %c0_i32_0 : i32, i32
  }
  func.func @transform_2(%arg0: i32, %arg1: i32) -> (i32, i32) {
    %c0_i32 = arith.constant 0 : i32
    %c0_i32_0 = arith.constant 0 : i32
    %c0_i32_1 = arith.constant 0 : i32
    return %c0_i32, %c0_i32_0 : i32, i32
  }
  func.func @transform_3(%arg0: i32, %arg1: i32) -> (i32, i32) {
    %c0_i32 = arith.constant 0 : i32
    %c0_i32_0 = arith.constant 0 : i32
    %c0_i32_1 = arith.constant 0 : i32
    return %c0_i32, %c0_i32_0 : i32, i32
  }
  func.func @transform_4(%arg0: i32, %arg1: i32) -> (i32, i32) {
    %c0_i32 = arith.constant 0 : i32
    %c0_i32_0 = arith.constant 0 : i32
    %c0_i32_1 = arith.constant 0 : i32
    return %c0_i32, %c0_i32_0 : i32, i32
  }
  func.func @transform_5(%arg0: i32, %arg1: i32) -> (i32, i32, i32) {
    %c0_i32 = arith.constant 0 : i32
    %c0_i32_0 = arith.constant 0 : i32
    %c0_i32_1 = arith.constant 0 : i32
    return %c0_i32, %arg1, %c0_i32_0 : i32, i32, i32
  }
  func.func @transform_6(%arg0: i32, %arg1: i32) -> (i32, i32, i32) {
    %c0_i32 = arith.constant 0 : i32
    %c0_i32_0 = arith.constant 0 : i32
    return %arg0, %arg1, %c0_i32 : i32, i32, i32
  }
}

</mosaic_0001>

<llo_original>
// kernel: tpu_custom_call.1
$region0: #{tpu_custom_call.1}
  #allocation0 [shape = 'u32[]', space=smem, size = 0x4, offset = 0x4, fixed_abs, tag = 'smem constant byte address 0x4 - core index']
  #allocation1 [shape = 'u32[144,128]{1,0:T(1,128)}', space=vmem, size = 0x12000, scoped, tag = 'internal scratch']
  #allocation2 [shape = 'bf16[256,128]{1,0:T(16,128)(2,1)}', space=vmem, size = 0x10000, scoped, tag = 'scratch operand']
  #allocation3 [shape = 'bf16[256,256]{1,0:T(16,128)(2,1)}', space=vmem, size = 0x20000, scoped, tag = 'scratch operand']
  %s0 = inlined_call_operand.hbm [shape: f32[2,256,128], index: 0, kind: input, shape index: {}]
  %s1 = inlined_call_operand.vmem [shape: f32[1,128], index: 1, kind: input, shape index: {}]
  %s2 = inlined_call_operand.hbm [shape: bf16[128,128], index: 2, kind: input, shape index: {}]
  %s3 = inlined_call_operand.hbm [shape: bf16[128,256], index: 3, kind: input, shape index: {}]
  %s4 = inlined_call_operand.hbm [shape: bf16[128,128], index: 4, kind: input, shape index: {}]
  %s5 = inlined_call_operand.hbm [shape: bf16[4,256,256], index: 5, kind: input, shape index: {}]
  %s6 = inlined_call_operand.hbm [shape: f32[2,256,128], index: 6, kind: output, shape index: {}]
  %s7 = sld [smem:[#allocation0]]
  $region81: #{tpu_custom_call.1} parent=0
    _
  %s9 = ssub.s32 1, %s7
  %s10 = scalar_select 0, %s9, %s7
  $region1: #{tpu_custom_call.1} parent=0
    #allocation4 [shape = 'u8[262144]{0}', space=vmem, size = 0x40000, scoped, tag = 'input window, operand 0']
    #allocation5 [shape = 's32[2]{0}', space=sflag, size = 0x8, scoped, tag = 'scoped memory for tpu_custom_call.1']
    #allocation6 [shape = 's32[2]{0}', space=sflag, size = 0x8, scoped, tag = 'scoped memory for tpu_custom_call.1']
    #allocation7 [shape = 'u8[32768]{0}', space=vmem, size = 0x8000, scoped, tag = 'input window, operand 2, single buffered']
    #allocation8 [shape = 's32[1]{0}', space=sflag, size = 0x4, scoped, tag = 'scoped memory for tpu_custom_call.1']
    #allocation9 [shape = 'u8[65536]{0}', space=vmem, size = 0x10000, scoped, tag = 'input window, operand 3, single buffered']
    #allocation10 [shape = 'u8[32768]{0}', space=vmem, size = 0x8000, scoped, tag = 'input window, operand 4, single buffered']
    #allocation11 [shape = 's32[1]{0}', space=sflag, size = 0x4, scoped, tag = 'scoped memory for tpu_custom_call.1']
    #allocation12 [shape = 'u8[524288]{0}', space=vmem, size = 0x80000, scoped, tag = 'input window, operand 5, single buffered']
    #allocation13 [shape = 'u8[262144]{0}', space=vmem, size = 0x40000, scoped, tag = 'output window, operand 0']
    %11 = vsyncpa [#allocation5], 0
    %s12 = scalar_lea.sflag [#allocation5], 1
    %13 = vsyncpa %s12, 0
    %14 = vsyncpa [#allocation8], 0
    %15 = vsyncpa [#allocation11], 0
    %16 = vsyncpa [#allocation6], 0
    %s17 = scalar_lea.sflag [#allocation6], 1
    %18 = vsyncpa %s17, 0
    loop: start=0, step=1, limit=4
    $region2: #{tpu_custom_call.1} parent=1 // loop_pre_header
      _
    $region3: #{tpu_custom_call.1} parent=1 // loop_header
      %s20 = sphi 0, %s24
      %p21 = scmp.ge.s32.totalorder %s20, 4
      %s27 = sphi 0, %s39
      %s28 = sphi 0, %s35
      %s29 = sphi 0, %s27
      %s30 = sphi 0, %s28
      %s31 = sphi 0, %s29
      %s32 = sphi 0, %s30
      %s42 = sphi 0, %s44
      %s45 = sphi 0, %s42
      %s46 = sphi 0, %s45
      %s62 = sphi 0, %s46
      %s66 = sphi 0, %s66
      %s68 = sphi 0, %s66
      %s69 = sphi 0, %s68
      %s83 = sphi 0, %s69
      %s87 = sphi 0, %s87
      %s89 = sphi 0, %s87
      %s90 = sphi 0, %s89
      %s104 = sphi 0, %s90
      %s108 = sphi 0, %s108
      %s110 = sphi 0, %s108
      %s111 = sphi 0, %s110
      %s125 = sphi 0, %s111
      %s129 = sphi 0, %s129
      %s131 = sphi 0, %s129
      %s132 = sphi 0, %s131
      %s146 = sphi 0, %s132
      %s152 = sphi 0, %s154
      %s155 = sphi 0, %s152
      %s156 = sphi 0, %s155
      %s172 = sphi 0, %s156
      %s180 = sphi 0, %s182
      %s183 = sphi 0, %s180
      %s184 = sphi 0, %s183
      %s200 = sphi 0, %s184
    $region4: #{tpu_custom_call.1} parent=1 // loop_header_branch
      %23 = sbr.rel (%p21) target = $region8
    $region5: #{tpu_custom_call.1} parent=1 // loop_body
      %s25 = ssub.s32 %s20, 1
      %s26 = ssub.s32 %s20, 2
      %s33 = sadd.s32 1, %s28
      %p34 = scmp.ge.s32.totalorder %s33, 1
      %s35 = scalar_select %p34, 0, %s33
      %s36 = sadd.s32 1, %s27
      %s37 = scalar_select %p34, %s36, %s27
      %p38 = scmp.ge.s32.totalorder %s37, 2
      %s39 = scalar_select %p38, 0, %s37
      %s40 = ssub.s32 %s27, %s39
      %p41 = scmp.eq.s32.totalorder %s40, 0
      %s43 = sadd.s32 %s42, 1
      %s44 = scalar_select %p41, %s42, %s43
      %p47 = pneg %p41
      %p48 = scmp.eq.s32.totalorder %s20, 1
      %p49 = por %p47, %p48
      %p50 = scmp.ne.s32.totalorder %s42, %s45
      %p51 = scmp.eq.s32.totalorder %s20, 0
      %p52 = por %p50, %p51
      %p53 = scmp.ne.s32.totalorder %s42, %s45
      %p54 = scmp.eq.s32.totalorder %s25, 1
      %p55 = por %p53, %p54
      %p56 = scmp.ne.s32.totalorder %s45, %s46
      %p57 = scmp.eq.s32.totalorder %s25, 0
      %p58 = por %p56, %p57
      %p59 = scmp.ne.s32.totalorder %s45, %s46
      %p60 = scmp.eq.s32.totalorder %s26, 1
      %p61 = por %p59, %p60
      %p63 = scmp.ne.s32.totalorder %s46, %s62
      %p64 = scmp.eq.s32.totalorder %s26, 0
      %p65 = por %p63, %p64
      %s67 = sadd.s32 %s66, 1
      %p70 = scmp.eq.s32.totalorder %s20, 1
      %p71 = scmp.ne.s32.totalorder %s66, %s68
      %p72 = scmp.eq.s32.totalorder %s20, 0
      %p73 = por %p71, %p72
      %p74 = scmp.ne.s32.totalorder %s66, %s68
      %p75 = scmp.eq.s32.totalorder %s25, 1
      %p76 = por %p74, %p75
      %p77 = scmp.ne.s32.totalorder %s68, %s69
      %p78 = scmp.eq.s32.totalorder %s25, 0
      %p79 = por %p77, %p78
      %p80 = scmp.ne.s32.totalorder %s68, %s69
      %p81 = scmp.eq.s32.totalorder %s26, 1
      %p82 = por %p80, %p81
      %p84 = scmp.ne.s32.totalorder %s69, %s83
      %p85 = scmp.eq.s32.totalorder %s26, 0
      %p86 = por %p84, %p85
      %s88 = sadd.s32 %s87, 1
      %p91 = scmp.eq.s32.totalorder %s20, 1
      %p92 = scmp.ne.s32.totalorder %s87, %s89
      %p93 = scmp.eq.s32.totalorder %s20, 0
      %p94 = por %p92, %p93
      %p95 = scmp.ne.s32.totalorder %s87, %s89
      %p96 = scmp.eq.s32.totalorder %s25, 1
      %p97 = por %p95, %p96
      %p98 = scmp.ne.s32.totalorder %s89, %s90
      %p99 = scmp.eq.s32.totalorder %s25, 0
      %p100 = por %p98, %p99
      %p101 = scmp.ne.s32.totalorder %s89, %s90
      %p102 = scmp.eq.s32.totalorder %s26, 1
      %p103 = por %p101, %p102
      %p105 = scmp.ne.s32.totalorder %s90, %s104
      %p106 = scmp.eq.s32.totalorder %s26, 0
      %p107 = por %p105, %p106
      %s109 = sadd.s32 %s108, 1
      %p112 = scmp.eq.s32.totalorder %s20, 1
      %p113 = scmp.ne.s32.totalorder %s108, %s110
      %p114 = scmp.eq.s32.totalorder %s20, 0
      %p115 = por %p113, %p114
      %p116 = scmp.ne.s32.totalorder %s108, %s110
      %p117 = scmp.eq.s32.totalorder %s25, 1
      %p118 = por %p116, %p117
      %p119 = scmp.ne.s32.totalorder %s110, %s111
      %p120 = scmp.eq.s32.totalorder %s25, 0
      %p121 = por %p119, %p120
      %p122 = scmp.ne.s32.totalorder %s110, %s111
      %p123 = scmp.eq.s32.totalorder %s26, 1
      %p124 = por %p122, %p123
      %p126 = scmp.ne.s32.totalorder %s111, %s125
      %p127 = scmp.eq.s32.totalorder %s26, 0
      %p128 = por %p126, %p127
      %s130 = sadd.s32 %s129, 1
      %p133 = scmp.eq.s32.totalorder %s20, 1
      %p134 = scmp.ne.s32.totalorder %s129, %s131
      %p135 = scmp.eq.s32.totalorder %s20, 0
      %p136 = por %p134, %p135
      %p137 = scmp.ne.s32.totalorder %s129, %s131
      %p138 = scmp.eq.s32.totalorder %s25, 1
      %p139 = por %p137, %p138
      %p140 = scmp.ne.s32.totalorder %s131, %s132
      %p141 = scmp.eq.s32.totalorder %s25, 0
      %p142 = por %p140, %p141
      %p143 = scmp.ne.s32.totalorder %s131, %s132
      %p144 = scmp.eq.s32.totalorder %s26, 1
      %p145 = por %p143, %p144
      %p147 = scmp.ne.s32.totalorder %s132, %s146
      %p148 = scmp.eq.s32.totalorder %s26, 0
      %p149 = por %p147, %p148
      %s150 = ssub.s32 %s28, %s35
      %p151 = scmp.eq.s32.totalorder %s150, 0
      %s153 = sadd.s32 %s152, 1
      %s154 = scalar_select %p151, %s152, %s153
      %p157 = pneg %p151
      %p158 = scmp.eq.s32.totalorder %s20, 1
      %p159 = por %p157, %p158
      %p160 = scmp.ne.s32.totalorder %s152, %s155
      %p161 = scmp.eq.s32.totalorder %s20, 0
      %p162 = por %p160, %p161
      %p163 = scmp.ne.s32.totalorder %s152, %s155
      %p164 = scmp.eq.s32.totalorder %s25, 1
      %p165 = por %p163, %p164
      %p166 = scmp.ne.s32.totalorder %s155, %s156
      %p167 = scmp.eq.s32.totalorder %s25, 0
      %p168 = por %p166, %p167
      %p169 = scmp.ne.s32.totalorder %s155, %s156
      %p170 = scmp.eq.s32.totalorder %s26, 1
      %p171 = por %p169, %p170
      %p173 = scmp.ne.s32.totalorder %s156, %s172
      %p174 = scmp.eq.s32.totalorder %s26, 0
      %p175 = por %p173, %p174
      %s176 = ssub.s32 %s27, %s39
      %s177 = ssub.s32 %s28, %s35
      %s178 = sor.u32 %s176, %s177
      %p179 = scmp.eq.s32.totalorder %s178, 0
      %s181 = sadd.s32 %s180, 1
      %s182 = scalar_select %p179, %s180, %s181
      %p185 = pneg %p179
      %p186 = scmp.eq.s32.totalorder %s20, 1
      %p187 = por %p185, %p186
      %p188 = scmp.ne.s32.totalorder %s180, %s183
      %p189 = scmp.eq.s32.totalorder %s20, 0
      %p190 = por %p188, %p189
      %p191 = scmp.ne.s32.totalorder %s180, %s183
      %p192 = scmp.eq.s32.totalorder %s25, 1
      %p193 = por %p191, %p192
      %p194 = scmp.ne.s32.totalorder %s183, %s184
      %p195 = scmp.eq.s32.totalorder %s25, 0
      %p196 = por %p194, %p195
      %p197 = scmp.ne.s32.totalorder %s183, %s184
      %p198 = scmp.eq.s32.totalorder %s26, 1
      %p199 = por %p197, %p198
      %p201 = scmp.ne.s32.totalorder %s184, %s200
      %p202 = scmp.eq.s32.totalorder %s26, 0
      %p203 = por %p201, %p202
      %p204 = scmp.le.s32.totalorder 1, %s20
      %p205 = scmp.lt.s32.totalorder %s20, 3
      %p206 = pnand %p204, %p205
      %p207 = pneg %p206
      // Predicated region
      $region9: #{tpu_custom_call.1} parent=5 // pred_check
        _
      $region10: #{tpu_custom_call.1} parent=5 // pred_check_branch
        %209 = sbr.rel (%p206) target = $region12
      $region11: #{tpu_custom_call.1} parent=5 // pred_region
        %s210 = ssub.s32 %s20, 1
        // Predicated region
        $region13: #{tpu_custom_call.1} parent=11 // pred_check
          %p211 = pneg %p79
        $region14: #{tpu_custom_call.1} parent=11 // pred_check_branch
          %213 = sbr.rel (%p211) target = $region16
        $region15: #{tpu_custom_call.1} parent=11 // pred_region
          _
        $region16: #{tpu_custom_call.1} parent=11 // pred_fallthru
          _
        // Predicated region
        $region17: #{tpu_custom_call.1} parent=11 // pred_check
          %p214 = pneg %p100
        $region18: #{tpu_custom_call.1} parent=11 // pred_check_branch
          %216 = sbr.rel (%p214) target = $region20
        $region19: #{tpu_custom_call.1} parent=11 // pred_region
          %s218 = ssub.s32 1024, 1024
          %219 = vsyncadd [#allocation8], %s218
          %s220 = sshll.u32 [#allocation7], 4
          %s221 = int_to_ptr.vmem [resolvable:$true] %s220
          %226 = dma.hbm_to_vmem [thread:$0]  %s2, 1024, %s221, [#allocation8], 64, 64, 4
        $region20: #{tpu_custom_call.1} parent=11 // pred_fallthru
          _
        // Predicated region
        $region21: #{tpu_custom_call.1} parent=11 // pred_check
          %p227 = pneg %p121
        $region22: #{tpu_custom_call.1} parent=11 // pred_check_branch
          %229 = sbr.rel (%p227) target = $region24
        $region23: #{tpu_custom_call.1} parent=11 // pred_region
          %s231 = ssub.s32 2048, 2048
          %232 = vsyncadd [#allocation8], %s231
          %s233 = sshll.u32 [#allocation9], 4
          %s234 = int_to_ptr.vmem [resolvable:$true] %s233
          %239 = dma.hbm_to_vmem [thread:$0]  %s3, 2048, %s234, [#allocation8], 128, 128, 8
        $region24: #{tpu_custom_call.1} parent=11 // pred_fallthru
          _
        // Predicated region
        $region25: #{tpu_custom_call.1} parent=11 // pred_check
          %p240 = pneg %p142
        $region26: #{tpu_custom_call.1} parent=11 // pred_check_branch
          %242 = sbr.rel (%p240) target = $region28
        $region27: #{tpu_custom_call.1} parent=11 // pred_region
          %s244 = ssub.s32 1024, 1024
          %245 = vsyncadd [#allocation11], %s244
          %s246 = sshll.u32 [#allocation10], 4
          %s247 = int_to_ptr.vmem [resolvable:$true] %s246
          %252 = dma.hbm_to_vmem [thread:$0]  %s4, 1024, %s247, [#allocation11], 64, 64, 4
        $region28: #{tpu_custom_call.1} parent=11 // pred_fallthru
          _
        // Predicated region
        $region29: #{tpu_custom_call.1} parent=11 // pred_check
          %p253 = pneg %p168
        $region30: #{tpu_custom_call.1} parent=11 // pred_check_branch
          %255 = sbr.rel (%p253) target = $region32
        $region31: #{tpu_custom_call.1} parent=11 // pred_region
          %s256 = smul.u32 32, %s30
          %s258 = ssub.s32 16384, 16384
          %259 = vsyncadd [#allocation11], %s258
          %s260 = smul.addr %s256, 2
          %s261 = smul.addr %s260, 64
          %s262 = scalar_lea.hbm %s5, %s261
          %s263 = sshll.u32 [#allocation12], 4
          %s264 = int_to_ptr.vmem [resolvable:$true] %s263
          %269 = dma.hbm_to_vmem [thread:$0]  %s262, 16384, %s264, [#allocation11], 128, 128, 8
        $region32: #{tpu_custom_call.1} parent=11 // pred_fallthru
          _
      $region12: #{tpu_custom_call.1} parent=5 // pred_fallthru
        _
      %p270 = scmp.lt.s32.totalorder %s20, 2
      // Predicated region
      $region33: #{tpu_custom_call.1} parent=5 // pred_check
        %p271 = pneg %p270
      $region34: #{tpu_custom_call.1} parent=5 // pred_check_branch
        %273 = sbr.rel (%p271) target = $region36
      $region35: #{tpu_custom_call.1} parent=5 // pred_region
        // Predicated region
        $region37: #{tpu_custom_call.1} parent=35 // pred_check
          %p274 = pneg %p52
        $region38: #{tpu_custom_call.1} parent=35 // pred_check_branch
          %276 = sbr.rel (%p274) target = $region40
        $region39: #{tpu_custom_call.1} parent=35 // pred_region
          %s277 = sand.u32 %s42, 1
          %s278 = scalar_lea.sflag [#allocation5], %s277
          %s279 = sand.u32 %s42, 1
          %s280 = smul.addr %s279, 256
          %s281 = scalar_lea.vmem [#allocation4], %s280
          %s283 = ssub.s32 4096, 4096
          %284 = vsyncadd %s278, %s283
          %s285 = smul.addr %s27, 32
          %s286 = smul.addr %s285, 128
          %s287 = scalar_lea.hbm %s0, %s286
          %s288 = sshll.u32 %s281, 4
          %s289 = int_to_ptr.vmem [resolvable:$true] %s288
          %294 = dma.hbm_to_vmem [thread:$0]  %s287, 4096, %s289, %s278, 128, 128, 8
        $region40: #{tpu_custom_call.1} parent=35 // pred_fallthru
          _
      $region36: #{tpu_custom_call.1} parent=5 // pred_fallthru
        _
      %p295 = scmp.le.s32.totalorder 1, %s20
      %p296 = scmp.lt.s32.totalorder %s20, 3
      %p297 = pnand %p295, %p296
      %p298 = pneg %p297
      // Predicated region
      $region41: #{tpu_custom_call.1} parent=5 // pred_check
        _
      $region42: #{tpu_custom_call.1} parent=5 // pred_check_branch
        %300 = sbr.rel (%p297) target = $region44
      $region43: #{tpu_custom_call.1} parent=5 // pred_region
        %s301 = ssub.s32 %s20, 1
        %s302 = sand.u32 %s45, 1
        %s303 = scalar_lea.sflag [#allocation5], %s302
        %s304 = sand.u32 %s45, 1
        %s305 = smul.addr %s304, 256
        %s306 = scalar_lea.vmem [#allocation4], %s305
        // Predicated region
        $region45: #{tpu_custom_call.1} parent=43 // pred_check
          %p307 = pneg %p58
        $region46: #{tpu_custom_call.1} parent=43 // pred_check_branch
          %309 = sbr.rel (%p307) target = $region48
        $region47: #{tpu_custom_call.1} parent=43 // pred_region
          %310 = dma.done %s303, 4096
        $region48: #{tpu_custom_call.1} parent=43 // pred_fallthru
          _
        // Predicated region
        $region49: #{tpu_custom_call.1} parent=43 // pred_check
          %p311 = pneg %p100
        $region50: #{tpu_custom_call.1} parent=43 // pred_check_branch
          %313 = sbr.rel (%p311) target = $region52
        $region51: #{tpu_custom_call.1} parent=43 // pred_region
          %314 = dma.done [#allocation8], 1024
        $region52: #{tpu_custom_call.1} parent=43 // pred_fallthru
          _
        // Predicated region
        $region53: #{tpu_custom_call.1} parent=43 // pred_check
          %p315 = pneg %p121
        $region54: #{tpu_custom_call.1} parent=43 // pred_check_branch
          %317 = sbr.rel (%p315) target = $region56
        $region55: #{tpu_custom_call.1} parent=43 // pred_region
          %318 = dma.done [#allocation8], 2048
        $region56: #{tpu_custom_call.1} parent=43 // pred_fallthru
          _
        // Predicated region
        $region57: #{tpu_custom_call.1} parent=43 // pred_check
          %p319 = pneg %p142
        $region58: #{tpu_custom_call.1} parent=43 // pred_check_branch
          %321 = sbr.rel (%p319) target = $region60
        $region59: #{tpu_custom_call.1} parent=43 // pred_region
          %322 = dma.done [#allocation11], 1024
        $region60: #{tpu_custom_call.1} parent=43 // pred_fallthru
          _
        // Predicated region
        $region61: #{tpu_custom_call.1} parent=43 // pred_check
          %p323 = pneg %p168
        $region62: #{tpu_custom_call.1} parent=43 // pred_check_branch
          %325 = sbr.rel (%p323) target = $region64
        $region63: #{tpu_custom_call.1} parent=43 // pred_region
          %326 = dma.done [#allocation11], 16384
        $region64: #{tpu_custom_call.1} parent=43 // pred_fallthru
          _
        %s327 = sand.u32 %s45, 1
        %s328 = scalar_lea.sflag [#allocation5], %s327
        %s329 = sand.u32 %s45, 1
        %s330 = smul.addr %s329, 256
        %s331 = scalar_lea.vmem [#allocation4], %s330
        %p332 = pneg %p58
        %p333 = pneg %p55
        %p334 = pneg %p79
        %p335 = pneg %p76
        %p336 = pneg %p100
        %p337 = pneg %p97
        %p338 = pneg %p121
        %p339 = pneg %p118
        %p340 = pneg %p142
        %p341 = pneg %p139
        %p342 = pneg %p168
        %p343 = pneg %p165
        %p344 = pneg %p196
        %p345 = pneg %p193
        %s346 = sand.u32 %s183, 1
        %s347 = scalar_lea.sflag [#allocation6], %s346
        %s348 = sand.u32 %s183, 1
        %s349 = smul.addr %s348, 256
        %s350 = scalar_lea.vmem [#allocation13], %s349
        %s351 = smul.u32 32, %s30
        %s352 = smul.u32 32, %s30
        %p354 = scmp.eq.s32.totalorder %s30, 0
        // Predicated region
        $region65: #{tpu_custom_call.1} parent=43 // pred_check
          %p355 = pneg %p354
        $region66: #{tpu_custom_call.1} parent=43 // pred_check_branch
          %357 = sbr.rel (%p355) target = $region68
        $region67: #{tpu_custom_call.1} parent=43 // pred_region
          %v358 = vld [vmem:[%s306] sm:$0xff]
          %v359 = vld [vmem:[%s306 + $0x8] sm:$0xff]
          %v360 = vld [vmem:[%s306 + $0x10] sm:$0xff]
          %v361 = vld [vmem:[%s306 + $0x18] sm:$0xff]
          %v362 = vld [vmem:[%s306 + $0x20] sm:$0xff]
          %v363 = vld [vmem:[%s306 + $0x28] sm:$0xff]
          %v364 = vld [vmem:[%s306 + $0x30] sm:$0xff]
          %v365 = vld [vmem:[%s306 + $0x38] sm:$0xff]
          %v366 = vld [vmem:[%s306 + $0x40] sm:$0xff]
          %v367 = vld [vmem:[%s306 + $0x48] sm:$0xff]
          %v368 = vld [vmem:[%s306 + $0x50] sm:$0xff]
          %v369 = vld [vmem:[%s306 + $0x58] sm:$0xff]
          %v370 = vld [vmem:[%s306 + $0x60] sm:$0xff]
          %v371 = vld [vmem:[%s306 + $0x68] sm:$0xff]
          %v372 = vld [vmem:[%s306 + $0x70] sm:$0xff]
          %v373 = vld [vmem:[%s306 + $0x78] sm:$0xff]
          %v374 = vld [vmem:[%s306 + $0x80] sm:$0xff]
          %v375 = vld [vmem:[%s306 + $0x88] sm:$0xff]
          %v376 = vld [vmem:[%s306 + $0x90] sm:$0xff]
          %v377 = vld [vmem:[%s306 + $0x98] sm:$0xff]
          %v378 = vld [vmem:[%s306 + $0xa0] sm:$0xff]
          %v379 = vld [vmem:[%s306 + $0xa8] sm:$0xff]
          %v380 = vld [vmem:[%s306 + $0xb0] sm:$0xff]
          %v381 = vld [vmem:[%s306 + $0xb8] sm:$0xff]
          %v382 = vld [vmem:[%s306 + $0xc0] sm:$0xff]
          %v383 = vld [vmem:[%s306 + $0xc8] sm:$0xff]
          %v384 = vld [vmem:[%s306 + $0xd0] sm:$0xff]
          %v385 = vld [vmem:[%s306 + $0xd8] sm:$0xff]
          %v386 = vld [vmem:[%s306 + $0xe0] sm:$0xff]
          %v387 = vld [vmem:[%s306 + $0xe8] sm:$0xff]
          %v388 = vld [vmem:[%s306 + $0xf0] sm:$0xff]
          %v389 = vld [vmem:[%s306 + $0xf8] sm:$0xff]
          %390 = vadd.xlane.f32.xlu0 %v358
          %v391 = vpop.xlane.xlu0 %390
          %392 = vadd.xlane.f32.xlu0 %v359
          %v393 = vpop.xlane.xlu0 %392
          %394 = vadd.xlane.f32.xlu0 %v360
          %v395 = vpop.xlane.xlu0 %394
          %396 = vadd.xlane.f32.xlu0 %v361
          %v397 = vpop.xlane.xlu0 %396
          %398 = vadd.xlane.f32.xlu0 %v362
          %v399 = vpop.xlane.xlu0 %398
          %400 = vadd.xlane.f32.xlu0 %v363
          %v401 = vpop.xlane.xlu0 %400
          %402 = vadd.xlane.f32.xlu0 %v364
          %v403 = vpop.xlane.xlu0 %402
          %404 = vadd.xlane.f32.xlu0 %v365
          %v405 = vpop.xlane.xlu0 %404
          %406 = vadd.xlane.f32.xlu0 %v366
          %v407 = vpop.xlane.xlu0 %406
          %408 = vadd.xlane.f32.xlu0 %v367
          %v409 = vpop.xlane.xlu0 %408
          %410 = vadd.xlane.f32.xlu0 %v368
          %v411 = vpop.xlane.xlu0 %410
          %412 = vadd.xlane.f32.xlu0 %v369
          %v413 = vpop.xlane.xlu0 %412
          %414 = vadd.xlane.f32.xlu0 %v370
          %v415 = vpop.xlane.xlu0 %414
          %416 = vadd.xlane.f32.xlu0 %v371
          %v417 = vpop.xlane.xlu0 %416
          %418 = vadd.xlane.f32.xlu0 %v372
          %v419 = vpop.xlane.xlu0 %418
          %420 = vadd.xlane.f32.xlu0 %v373
          %v421 = vpop.xlane.xlu0 %420
          %422 = vadd.xlane.f32.xlu0 %v374
          %v423 = vpop.xlane.xlu0 %422
          %424 = vadd.xlane.f32.xlu0 %v375
          %v425 = vpop.xlane.xlu0 %424
          %426 = vadd.xlane.f32.xlu0 %v376
          %v427 = vpop.xlane.xlu0 %426
          %428 = vadd.xlane.f32.xlu0 %v377
          %v429 = vpop.xlane.xlu0 %428
          %430 = vadd.xlane.f32.xlu0 %v378
          %v431 = vpop.xlane.xlu0 %430
          %432 = vadd.xlane.f32.xlu0 %v379
          %v433 = vpop.xlane.xlu0 %432
          %434 = vadd.xlane.f32.xlu0 %v380
          %v435 = vpop.xlane.xlu0 %434
          %436 = vadd.xlane.f32.xlu0 %v381
          %v437 = vpop.xlane.xlu0 %436
          %438 = vadd.xlane.f32.xlu0 %v382
          %v439 = vpop.xlane.xlu0 %438
          %440 = vadd.xlane.f32.xlu0 %v383
          %v441 = vpop.xlane.xlu0 %440
          %442 = vadd.xlane.f32.xlu0 %v384
          %v443 = vpop.xlane.xlu0 %442
          %444 = vadd.xlane.f32.xlu0 %v385
          %v445 = vpop.xlane.xlu0 %444
          %446 = vadd.xlane.f32.xlu0 %v386
          %v447 = vpop.xlane.xlu0 %446
          %448 = vadd.xlane.f32.xlu0 %v387
          %v449 = vpop.xlane.xlu0 %448
          %450 = vadd.xlane.f32.xlu0 %v388
          %v451 = vpop.xlane.xlu0 %450
          %452 = vadd.xlane.f32.xlu0 %v389
          %v453 = vpop.xlane.xlu0 %452
          %v454 = vrcp.pop 128.0
          %v455 = vmul.f32 %v391, %v454
          %v456 = vmul.f32 %v393, %v454
          %v457 = vmul.f32 %v395, %v454
          %v458 = vmul.f32 %v397, %v454
          %v459 = vmul.f32 %v399, %v454
          %v460 = vmul.f32 %v401, %v454
          %v461 = vmul.f32 %v403, %v454
          %v462 = vmul.f32 %v405, %v454
          %v463 = vmul.f32 %v407, %v454
          %v464 = vmul.f32 %v409, %v454
          %v465 = vmul.f32 %v411, %v454
          %v466 = vmul.f32 %v413, %v454
          %v467 = vmul.f32 %v415, %v454
          %v468 = vmul.f32 %v417, %v454
          %v469 = vmul.f32 %v419, %v454
          %v470 = vmul.f32 %v421, %v454
          %v471 = vmul.f32 %v423, %v454
          %v472 = vmul.f32 %v425, %v454
          %v473 = vmul.f32 %v427, %v454
          %v474 = vmul.f32 %v429, %v454
          %v475 = vmul.f32 %v431, %v454
          %v476 = vmul.f32 %v433, %v454
          %v477 = vmul.f32 %v435, %v454
          %v478 = vmul.f32 %v437, %v454
          %v479 = vmul.f32 %v439, %v454
          %v480 = vmul.f32 %v441, %v454
          %v481 = vmul.f32 %v443, %v454
          %v482 = vmul.f32 %v445, %v454
          %v483 = vmul.f32 %v447, %v454
          %v484 = vmul.f32 %v449, %v454
          %v485 = vmul.f32 %v451, %v454
          %v486 = vmul.f32 %v453, %v454
          %v487 = vsub.f32 %v358, %v455
          %v488 = vsub.f32 %v359, %v456
          %v489 = vsub.f32 %v360, %v457
          %v490 = vsub.f32 %v361, %v458
          %v491 = vsub.f32 %v362, %v459
          %v492 = vsub.f32 %v363, %v460
          %v493 = vsub.f32 %v364, %v461
          %v494 = vsub.f32 %v365, %v462
          %v495 = vsub.f32 %v366, %v463
          %v496 = vsub.f32 %v367, %v464
          %v497 = vsub.f32 %v368, %v465
          %v498 = vsub.f32 %v369, %v466
          %v499 = vsub.f32 %v370, %v467
          %v500 = vsub.f32 %v371, %v468
          %v501 = vsub.f32 %v372, %v469
          %v502 = vsub.f32 %v373, %v470
          %v503 = vsub.f32 %v374, %v471
          %v504 = vsub.f32 %v375, %v472
          %v505 = vsub.f32 %v376, %v473
          %v506 = vsub.f32 %v377, %v474
          %v507 = vsub.f32 %v378, %v475
          %v508 = vsub.f32 %v379, %v476
          %v509 = vsub.f32 %v380, %v477
          %v510 = vsub.f32 %v381, %v478
          %v511 = vsub.f32 %v382, %v479
          %v512 = vsub.f32 %v383, %v480
          %v513 = vsub.f32 %v384, %v481
          %v514 = vsub.f32 %v385, %v482
          %v515 = vsub.f32 %v386, %v483
          %v516 = vsub.f32 %v387, %v484
          %v517 = vsub.f32 %v388, %v485
          %v518 = vsub.f32 %v389, %v486
          %v519 = vmul.f32 %v487, %v487
          %v520 = vmul.f32 %v488, %v488
          %v521 = vmul.f32 %v489, %v489
          %v522 = vmul.f32 %v490, %v490
          %v523 = vmul.f32 %v491, %v491
          %v524 = vmul.f32 %v492, %v492
          %v525 = vmul.f32 %v493, %v493
          %v526 = vmul.f32 %v494, %v494
          %v527 = vmul.f32 %v495, %v495
          %v528 = vmul.f32 %v496, %v496
          %v529 = vmul.f32 %v497, %v497
          %v530 = vmul.f32 %v498, %v498
          %v531 = vmul.f32 %v499, %v499
          %v532 = vmul.f32 %v500, %v500
          %v533 = vmul.f32 %v501, %v501
          %v534 = vmul.f32 %v502, %v502
          %v535 = vmul.f32 %v503, %v503
          %v536 = vmul.f32 %v504, %v504
          %v537 = vmul.f32 %v505, %v505
          %v538 = vmul.f32 %v506, %v506
          %v539 = vmul.f32 %v507, %v507
          %v540 = vmul.f32 %v508, %v508
          %v541 = vmul.f32 %v509, %v509
          %v542 = vmul.f32 %v510, %v510
          %v543 = vmul.f32 %v511, %v511
          %v544 = vmul.f32 %v512, %v512
          %v545 = vmul.f32 %v513, %v513
          %v546 = vmul.f32 %v514, %v514
          %v547 = vmul.f32 %v515, %v515
          %v548 = vmul.f32 %v516, %v516
          %v549 = vmul.f32 %v517, %v517
          %v550 = vmul.f32 %v518, %v518
          %551 = vadd.xlane.f32.xlu0 %v519
          %v552 = vpop.xlane.xlu0 %551
          %553 = vadd.xlane.f32.xlu0 %v520
          %v554 = vpop.xlane.xlu0 %553
          %555 = vadd.xlane.f32.xlu0 %v521
          %v556 = vpop.xlane.xlu0 %555
          %557 = vadd.xlane.f32.xlu0 %v522
          %v558 = vpop.xlane.xlu0 %557
          %559 = vadd.xlane.f32.xlu0 %v523
          %v560 = vpop.xlane.xlu0 %559
          %561 = vadd.xlane.f32.xlu0 %v524
          %v562 = vpop.xlane.xlu0 %561
          %563 = vadd.xlane.f32.xlu0 %v525
          %v564 = vpop.xlane.xlu0 %563
          %565 = vadd.xlane.f32.xlu0 %v526
          %v566 = vpop.xlane.xlu0 %565
          %567 = vadd.xlane.f32.xlu0 %v527
          %v568 = vpop.xlane.xlu0 %567
          %569 = vadd.xlane.f32.xlu0 %v528
          %v570 = vpop.xlane.xlu0 %569
          %571 = vadd.xlane.f32.xlu0 %v529
          %v572 = vpop.xlane.xlu0 %571
          %573 = vadd.xlane.f32.xlu0 %v530
          %v574 = vpop.xlane.xlu0 %573
          %575 = vadd.xlane.f32.xlu0 %v531
          %v576 = vpop.xlane.xlu0 %575
          %577 = vadd.xlane.f32.xlu0 %v532
          %v578 = vpop.xlane.xlu0 %577
          %579 = vadd.xlane.f32.xlu0 %v533
          %v580 = vpop.xlane.xlu0 %579
          %581 = vadd.xlane.f32.xlu0 %v534
          %v582 = vpop.xlane.xlu0 %581
          %583 = vadd.xlane.f32.xlu0 %v535
          %v584 = vpop.xlane.xlu0 %583
          %585 = vadd.xlane.f32.xlu0 %v536
          %v586 = vpop.xlane.xlu0 %585
          %587 = vadd.xlane.f32.xlu0 %v537
          %v588 = vpop.xlane.xlu0 %587
          %589 = vadd.xlane.f32.xlu0 %v538
          %v590 = vpop.xlane.xlu0 %589
          %591 = vadd.xlane.f32.xlu0 %v539
          %v592 = vpop.xlane.xlu0 %591
          %593 = vadd.xlane.f32.xlu0 %v540
          %v594 = vpop.xlane.xlu0 %593
          %595 = vadd.xlane.f32.xlu0 %v541
          %v596 = vpop.xlane.xlu0 %595
          %597 = vadd.xlane.f32.xlu0 %v542
          %v598 = vpop.xlane.xlu0 %597
          %599 = vadd.xlane.f32.xlu0 %v543
          %v600 = vpop.xlane.xlu0 %599
          %601 = vadd.xlane.f32.xlu0 %v544
          %v602 = vpop.xlane.xlu0 %601
          %603 = vadd.xlane.f32.xlu0 %v545
          %v604 = vpop.xlane.xlu0 %603
          %605 = vadd.xlane.f32.xlu0 %v546
          %v606 = vpop.xlane.xlu0 %605
          %607 = vadd.xlane.f32.xlu0 %v547
          %v608 = vpop.xlane.xlu0 %607
          %609 = vadd.xlane.f32.xlu0 %v548
          %v610 = vpop.xlane.xlu0 %609
          %611 = vadd.xlane.f32.xlu0 %v549
          %v612 = vpop.xlane.xlu0 %611
          %613 = vadd.xlane.f32.xlu0 %v550
          %v614 = vpop.xlane.xlu0 %613
          %v615 = vmul.f32 %v552, %v454
          %v616 = vmul.f32 %v554, %v454
          %v617 = vmul.f32 %v556, %v454
          %v618 = vmul.f32 %v558, %v454
          %v619 = vmul.f32 %v560, %v454
          %v620 = vmul.f32 %v562, %v454
          %v621 = vmul.f32 %v564, %v454
          %v622 = vmul.f32 %v566, %v454
          %v623 = vmul.f32 %v568, %v454
          %v624 = vmul.f32 %v570, %v454
          %v625 = vmul.f32 %v572, %v454
          %v626 = vmul.f32 %v574, %v454
          %v627 = vmul.f32 %v576, %v454
          %v628 = vmul.f32 %v578, %v454
          %v629 = vmul.f32 %v580, %v454
          %v630 = vmul.f32 %v582, %v454
          %v631 = vmul.f32 %v584, %v454
          %v632 = vmul.f32 %v586, %v454
          %v633 = vmul.f32 %v588, %v454
          %v634 = vmul.f32 %v590, %v454
          %v635 = vmul.f32 %v592, %v454
          %v636 = vmul.f32 %v594, %v454
          %v637 = vmul.f32 %v596, %v454
          %v638 = vmul.f32 %v598, %v454
          %v639 = vmul.f32 %v600, %v454
          %v640 = vmul.f32 %v602, %v454
          %v641 = vmul.f32 %v604, %v454
          %v642 = vmul.f32 %v606, %v454
          %v643 = vmul.f32 %v608, %v454
          %v644 = vmul.f32 %v610, %v454
          %v645 = vmul.f32 %v612, %v454
          %v646 = vmul.f32 %v614, %v454
          %v647 = vadd.f32 %v615, 1e-05
          %v648 = vadd.f32 %v616, 1e-05
          %v649 = vadd.f32 %v617, 1e-05
          %v650 = vadd.f32 %v618, 1e-05
          %v651 = vadd.f32 %v619, 1e-05
          %v652 = vadd.f32 %v620, 1e-05
          %v653 = vadd.f32 %v621, 1e-05
          %v654 = vadd.f32 %v622, 1e-05
          %v655 = vadd.f32 %v623, 1e-05
          %v656 = vadd.f32 %v624, 1e-05
          %v657 = vadd.f32 %v625, 1e-05
          %v658 = vadd.f32 %v626, 1e-05
          %v659 = vadd.f32 %v627, 1e-05
          %v660 = vadd.f32 %v628, 1e-05
          %v661 = vadd.f32 %v629, 1e-05
          %v662 = vadd.f32 %v630, 1e-05
          %v663 = vadd.f32 %v631, 1e-05
          %v664 = vadd.f32 %v632, 1e-05
          %v665 = vadd.f32 %v633, 1e-05
          %v666 = vadd.f32 %v634, 1e-05
          %v667 = vadd.f32 %v635, 1e-05
          %v668 = vadd.f32 %v636, 1e-05
          %v669 = vadd.f32 %v637, 1e-05
          %v670 = vadd.f32 %v638, 1e-05
          %v671 = vadd.f32 %v639, 1e-05
          %v672 = vadd.f32 %v640, 1e-05
          %v673 = vadd.f32 %v641, 1e-05
          %v674 = vadd.f32 %v642, 1e-05
          %v675 = vadd.f32 %v643, 1e-05
          %v676 = vadd.f32 %v644, 1e-05
          %v677 = vadd.f32 %v645, 1e-05
          %v678 = vadd.f32 %v646, 1e-05
          %v679 = vrsqrt.pop %v647
          %v680 = vrsqrt.pop %v648
          %v681 = vrsqrt.pop %v649
          %v682 = vrsqrt.pop %v650
          %v683 = vrsqrt.pop %v651
          %v684 = vrsqrt.pop %v652
          %v685 = vrsqrt.pop %v653
          %v686 = vrsqrt.pop %v654
          %v687 = vrsqrt.pop %v655
          %v688 = vrsqrt.pop %v656
          %v689 = vrsqrt.pop %v657
          %v690 = vrsqrt.pop %v658
          %v691 = vrsqrt.pop %v659
          %v692 = vrsqrt.pop %v660
          %v693 = vrsqrt.pop %v661
          %v694 = vrsqrt.pop %v662
          %v695 = vrsqrt.pop %v663
          %v696 = vrsqrt.pop %v664
          %v697 = vrsqrt.pop %v665
          %v698 = vrsqrt.pop %v666
          %v699 = vrsqrt.pop %v667
          %v700 = vrsqrt.pop %v668
          %v701 = vrsqrt.pop %v669
          %v702 = vrsqrt.pop %v670
          %v703 = vrsqrt.pop %v671
          %v704 = vrsqrt.pop %v672
          %v705 = vrsqrt.pop %v673
          %v706 = vrsqrt.pop %v674
          %v707 = vrsqrt.pop %v675
          %v708 = vrsqrt.pop %v676
          %v709 = vrsqrt.pop %v677
          %v710 = vrsqrt.pop %v678
          %v711 = vmul.f32 %v487, %v679
          %v712 = vmul.f32 %v488, %v680
          %v713 = vmul.f32 %v489, %v681
          %v714 = vmul.f32 %v490, %v682
          %v715 = vmul.f32 %v491, %v683
          %v716 = vmul.f32 %v492, %v684
          %v717 = vmul.f32 %v493, %v685
          %v718 = vmul.f32 %v494, %v686
          %v719 = vmul.f32 %v495, %v687
          %v720 = vmul.f32 %v496, %v688
          %v721 = vmul.f32 %v497, %v689
          %v722 = vmul.f32 %v498, %v690
          %v723 = vmul.f32 %v499, %v691
          %v724 = vmul.f32 %v500, %v692
          %v725 = vmul.f32 %v501, %v693
          %v726 = vmul.f32 %v502, %v694
          %v727 = vmul.f32 %v503, %v695
          %v728 = vmul.f32 %v504, %v696
          %v729 = vmul.f32 %v505, %v697
          %v730 = vmul.f32 %v506, %v698
          %v731 = vmul.f32 %v507, %v699
          %v732 = vmul.f32 %v508, %v700
          %v733 = vmul.f32 %v509, %v701
          %v734 = vmul.f32 %v510, %v702
          %v735 = vmul.f32 %v511, %v703
          %v736 = vmul.f32 %v512, %v704
          %v737 = vmul.f32 %v513, %v705
          %v738 = vmul.f32 %v514, %v706
          %v739 = vmul.f32 %v515, %v707
          %v740 = vmul.f32 %v516, %v708
          %v741 = vmul.f32 %v517, %v709
          %v742 = vmul.f32 %v518, %v710
          %v743 = vld [vmem:[%s1] sm:$0x1]
          %v745 = vlaneseq
          %v746 = vshrl.u32 %v745, 7
          %v747 = vsub.s32 0, %v746
          %v748 = vrot.slane %v743, %v747
          %v750 = vmul.f32 %v711, %v748
          %v751 = vmul.f32 %v712, %v748
          %v752 = vmul.f32 %v713, %v748
          %v753 = vmul.f32 %v714, %v748
          %v754 = vmul.f32 %v715, %v748
          %v755 = vmul.f32 %v716, %v748
          %v756 = vmul.f32 %v717, %v748
          %v757 = vmul.f32 %v718, %v748
          %v758 = vmul.f32 %v719, %v748
          %v759 = vmul.f32 %v720, %v748
          %v760 = vmul.f32 %v721, %v748
          %v761 = vmul.f32 %v722, %v748
          %v762 = vmul.f32 %v723, %v748
          %v763 = vmul.f32 %v724, %v748
          %v764 = vmul.f32 %v725, %v748
          %v765 = vmul.f32 %v726, %v748
          %v766 = vmul.f32 %v727, %v748
          %v767 = vmul.f32 %v728, %v748
          %v768 = vmul.f32 %v729, %v748
          %v769 = vmul.f32 %v730, %v748
          %v770 = vmul.f32 %v731, %v748
          %v771 = vmul.f32 %v732, %v748
          %v772 = vmul.f32 %v733, %v748
          %v773 = vmul.f32 %v734, %v748
          %v774 = vmul.f32 %v735, %v748
          %v775 = vmul.f32 %v736, %v748
          %v776 = vmul.f32 %v737, %v748
          %v777 = vmul.f32 %v738, %v748
          %v778 = vmul.f32 %v739, %v748
          %v779 = vmul.f32 %v740, %v748
          %v780 = vmul.f32 %v741, %v748
          %v781 = vmul.f32 %v742, %v748
          %v782 = vpack.c.bf16 %v751, %v750
          %v783 = vpack.c.bf16 %v753, %v752
          %v784 = vpack.c.bf16 %v755, %v754
          %v785 = vpack.c.bf16 %v757, %v756
          %v786 = vpack.c.bf16 %v759, %v758
          %v787 = vpack.c.bf16 %v761, %v760
          %v788 = vpack.c.bf16 %v763, %v762
          %v789 = vpack.c.bf16 %v765, %v764
          %v790 = vpack.c.bf16 %v767, %v766
          %v791 = vpack.c.bf16 %v769, %v768
          %v792 = vpack.c.bf16 %v771, %v770
          %v793 = vpack.c.bf16 %v773, %v772
          %v794 = vpack.c.bf16 %v775, %v774
          %v795 = vpack.c.bf16 %v777, %v776
          %v796 = vpack.c.bf16 %v779, %v778
          %v797 = vpack.c.bf16 %v781, %v780
          %798 = vst [vmem:[#allocation2] sm:$0xff] %v782
          %799 = vst [vmem:[#allocation2 + $0x8] sm:$0xff] %v783
          %800 = vst [vmem:[#allocation2 + $0x10] sm:$0xff] %v784
          %801 = vst [vmem:[#allocation2 + $0x18] sm:$0xff] %v785
          %802 = vst [vmem:[#allocation2 + $0x20] sm:$0xff] %v786
          %803 = vst [vmem:[#allocation2 + $0x28] sm:$0xff] %v787
          %804 = vst [vmem:[#allocation2 + $0x30] sm:$0xff] %v788
          %805 = vst [vmem:[#allocation2 + $0x38] sm:$0xff] %v789
          %806 = vst [vmem:[#allocation2 + $0x40] sm:$0xff] %v790
          %807 = vst [vmem:[#allocation2 + $0x48] sm:$0xff] %v791
          %808 = vst [vmem:[#allocation2 + $0x50] sm:$0xff] %v792
          %809 = vst [vmem:[#allocation2 + $0x58] sm:$0xff] %v793
          %810 = vst [vmem:[#allocation2 + $0x60] sm:$0xff] %v794
          %811 = vst [vmem:[#allocation2 + $0x68] sm:$0xff] %v795
          %812 = vst [vmem:[#allocation2 + $0x70] sm:$0xff] %v796
          %813 = vst [vmem:[#allocation2 + $0x78] sm:$0xff] %v797
          %v814 = vld [vmem:[#allocation9] sm:$0xff]
          %v815 = vld [vmem:[#allocation9 + $0x8] sm:$0xff]
          %v816 = vld [vmem:[#allocation9 + $0x10] sm:$0xff]
          %v817 = vld [vmem:[#allocation9 + $0x18] sm:$0xff]
          %v818 = vld [vmem:[#allocation9 + $0x20] sm:$0xff]
          %v819 = vld [vmem:[#allocation9 + $0x28] sm:$0xff]
          %v820 = vld [vmem:[#allocation9 + $0x30] sm:$0xff]
          %v821 = vld [vmem:[#allocation9 + $0x38] sm:$0xff]
          %v822 = vld [vmem:[#allocation9 + $0x40] sm:$0xff]
          %v823 = vld [vmem:[#allocation9 + $0x48] sm:$0xff]
          %v824 = vld [vmem:[#allocation9 + $0x50] sm:$0xff]
          %v825 = vld [vmem:[#allocation9 + $0x58] sm:$0xff]
          %v826 = vld [vmem:[#allocation9 + $0x60] sm:$0xff]
          %v827 = vld [vmem:[#allocation9 + $0x68] sm:$0xff]
          %v828 = vld [vmem:[#allocation9 + $0x70] sm:$0xff]
          %v829 = vld [vmem:[#allocation9 + $0x78] sm:$0xff]
          %v846 = vunpack.c.l.b16 %v814
          %v847 = vunpack.c.h.b16 %v814
          %v848 = vunpack.c.l.b16 %v815
          %v849 = vunpack.c.h.b16 %v815
          %v850 = vunpack.c.l.b16 %v816
          %v851 = vunpack.c.h.b16 %v816
          %v852 = vunpack.c.l.b16 %v817
          %v853 = vunpack.c.h.b16 %v817
          %v854 = vunpack.c.l.b16 %v818
          %v855 = vunpack.c.h.b16 %v818
          %v856 = vunpack.c.l.b16 %v819
          %v857 = vunpack.c.h.b16 %v819
          %v858 = vunpack.c.l.b16 %v820
          %v859 = vunpack.c.h.b16 %v820
          %v860 = vunpack.c.l.b16 %v821
          %v861 = vunpack.c.h.b16 %v821
          %v862 = vunpack.c.l.b16 %v822
          %v863 = vunpack.c.h.b16 %v822
          %v864 = vunpack.c.l.b16 %v823
          %v865 = vunpack.c.h.b16 %v823
          %v866 = vunpack.c.l.b16 %v824
          %v867 = vunpack.c.h.b16 %v824
          %v868 = vunpack.c.l.b16 %v825
          %v869 = vunpack.c.h.b16 %v825
          %v870 = vunpack.c.l.b16 %v826
          %v871 = vunpack.c.h.b16 %v826
          %v872 = vunpack.c.l.b16 %v827
          %v873 = vunpack.c.h.b16 %v827
          %v874 = vunpack.c.l.b16 %v828
          %v875 = vunpack.c.h.b16 %v828
          %v876 = vunpack.c.l.b16 %v829
          %v877 = vunpack.c.h.b16 %v829
          %v878 = vpack.c.b16 %v848, %v846
          %v879 = vpack.c.b16 %v849, %v847
          %v880 = vpack.c.b16 %v852, %v850
          %v881 = vpack.c.b16 %v853, %v851
          %v882 = vpack.c.b16 %v856, %v854
          %v883 = vpack.c.b16 %v857, %v855
          %v884 = vpack.c.b16 %v860, %v858
          %v885 = vpack.c.b16 %v861, %v859
          %v886 = vpack.c.b16 %v864, %v862
          %v887 = vpack.c.b16 %v865, %v863
          %v888 = vpack.c.b16 %v868, %v866
          %v889 = vpack.c.b16 %v869, %v867
          %v890 = vpack.c.b16 %v872, %v870
          %v891 = vpack.c.b16 %v873, %v871
          %v892 = vpack.c.b16 %v876, %v874
          %v893 = vpack.c.b16 %v877, %v875
          %910 = vmatprep.subr.bf16.mxu0 %v879
          %911 = vmatpush1.bf16.msra.mxu0 %v878
          %912 = vmatprep.subr.bf16.mxu0 %v881
          %913 = vmatpush1.bf16.msra.mxu0 %v880
          %914 = vmatprep.subr.bf16.mxu0 %v883
          %915 = vmatpush1.bf16.msra.mxu0 %v882
          %916 = vmatprep.subr.bf16.mxu0 %v885
          %917 = vmatpush1.bf16.msra.mxu0 %v884
          %918 = vmatprep.subr.bf16.mxu0 %v887
          %919 = vmatpush1.bf16.msra.mxu0 %v886
          %920 = vmatprep.subr.bf16.mxu0 %v889
          %921 = vmatpush1.bf16.msra.mxu0 %v888
          %922 = vmatprep.subr.bf16.mxu0 %v891
          %923 = vmatpush1.bf16.msra.mxu0 %v890
          %924 = vmatprep.subr.bf16.mxu0 %v893
          %925 = vmatpush1.bf16.msra.mxu0 %v892
          %926 = vmatprep.subr.bf16.mxu0 0
          %927 = vmatpush1.bf16.msra.mxu0 0
          %928 = vmatprep.subr.bf16.mxu0 0
          %929 = vmatpush1.bf16.msra.mxu0 0
          %930 = vmatprep.subr.bf16.mxu0 0
          %931 = vmatpush1.bf16.msra.mxu0 0
          %932 = vmatprep.subr.bf16.mxu0 0
          %933 = vmatpush1.bf16.msra.mxu0 0
          %934 = vmatprep.subr.bf16.mxu0 0
          %935 = vmatpush1.bf16.msra.mxu0 0
          %936 = vmatprep.subr.bf16.mxu0 0
          %937 = vmatpush1.bf16.msra.mxu0 0
          %938 = vmatprep.subr.bf16.mxu0 0
          %939 = vmatpush1.bf16.msra.mxu0 0
          %940 = vmatprep.subr.bf16.mxu0 0
          %941 = vmatpush1.bf16.msra.mxu0 0
          %942 = vmatprep.mubr.bf16.mxu0 0
          %943 = vmatmul.mubr.bf16.gmra.mrb[0].mxu0 %v782
          %v944 = vpop.f32.mrb[0].mxu0
          %v945 = vadd.f32 0.0, %v944
          %v946 = vpop.f32.mrb[0].mxu0
          %v947 = vadd.f32 0.0, %v946
          %v948 = vpop.f32.mrb[0].mxu0
          %v949 = vadd.f32 0.0, %v948
          %v950 = vpop.f32.mrb[0].mxu0
          %v951 = vadd.f32 0.0, %v950
          %952 = vmatprep.mubr.bf16.mxu0 0
          %953 = vmatmul.mubr.bf16.gmra.mrb[0].mxu0 %v783
          %v954 = vpop.f32.mrb[0].mxu0
          %v955 = vadd.f32 0.0, %v954
          %v956 = vpop.f32.mrb[0].mxu0
          %v957 = vadd.f32 0.0, %v956
          %v958 = vpop.f32.mrb[0].mxu0
          %v959 = vadd.f32 0.0, %v958
          %v960 = vpop.f32.mrb[0].mxu0
          %v961 = vadd.f32 0.0, %v960
          %962 = vmatprep.mubr.bf16.mxu0 0
          %963 = vmatmul.mubr.bf16.gmra.mrb[0].mxu0 %v784
          %v964 = vpop.f32.mrb[0].mxu0
          %v965 = vadd.f32 0.0, %v964
          %v966 = vpop.f32.mrb[0].mxu0
          %v967 = vadd.f32 0.0, %v966
          %v968 = vpop.f32.mrb[0].mxu0
          %v969 = vadd.f32 0.0, %v968
          %v970 = vpop.f32.mrb[0].mxu0
          %v971 = vadd.f32 0.0, %v970
          %972 = vmatprep.mubr.bf16.mxu0 0
          %973 = vmatmul.mubr.bf16.gmra.mrb[0].mxu0 %v785
          %v974 = vpop.f32.mrb[0].mxu0
          %v975 = vadd.f32 0.0, %v974
          %v976 = vpop.f32.mrb[0].mxu0
          %v977 = vadd.f32 0.0, %v976
          %v978 = vpop.f32.mrb[0].mxu0
          %v979 = vadd.f32 0.0, %v978
          %v980 = vpop.f32.mrb[0].mxu0
          %v981 = vadd.f32 0.0, %v980
          %982 = vmatprep.mubr.bf16.mxu0 0
          %983 = vmatmul.mubr.bf16.gmra.mrb[0].mxu0 %v786
          %v984 = vpop.f32.mrb[0].mxu0
          %v985 = vadd.f32 0.0, %v984
          %v986 = vpop.f32.mrb[0].mxu0
          %v987 = vadd.f32 0.0, %v986
          %v988 = vpop.f32.mrb[0].mxu0
          %v989 = vadd.f32 0.0, %v988
          %v990 = vpop.f32.mrb[0].mxu0
          %v991 = vadd.f32 0.0, %v990
          %992 = vmatprep.mubr.bf16.mxu0 0
          %993 = vmatmul.mubr.bf16.gmra.mrb[0].mxu0 %v787
          %v994 = vpop.f32.mrb[0].mxu0
          %v995 = vadd.f32 0.0, %v994
          %v996 = vpop.f32.mrb[0].mxu0
          %v997 = vadd.f32 0.0, %v996
          %v998 = vpop.f32.mrb[0].mxu0
          %v999 = vadd.f32 0.0, %v998
          %v1000 = vpop.f32.mrb[0].mxu0
          %v1001 = vadd.f32 0.0, %v1000
          %1002 = vmatprep.mubr.bf16.mxu0 0
          %1003 = vmatmul.mubr.bf16.gmra.mrb[0].mxu0 %v788
          %v1004 = vpop.f32.mrb[0].mxu0
          %v1005 = vadd.f32 0.0, %v1004
          %v1006 = vpop.f32.mrb[0].mxu0
          %v1007 = vadd.f32 0.0, %v1006
          %v1008 = vpop.f32.mrb[0].mxu0
          %v1009 = vadd.f32 0.0, %v1008
          %v1010 = vpop.f32.mrb[0].mxu0
          %v1011 = vadd.f32 0.0, %v1010
          %1012 = vmatprep.mubr.bf16.mxu0 0
          %1013 = vmatmul.mubr.bf16.gmra.mrb[0].mxu0 %v789
          %v1014 = vpop.f32.mrb[0].mxu0
          %v1015 = vadd.f32 0.0, %v1014
          %v1016 = vpop.f32.mrb[0].mxu0
          %v1017 = vadd.f32 0.0, %v1016
          %v1018 = vpop.f32.mrb[0].mxu0
          %v1019 = vadd.f32 0.0, %v1018
          %v1020 = vpop.f32.mrb[0].mxu0
          %v1021 = vadd.f32 0.0, %v1020
          %1022 = vmatprep.mubr.bf16.mxu0 0
          %1023 = vmatmul.mubr.bf16.gmra.mrb[0].mxu0 %v790
          %v1024 = vpop.f32.mrb[0].mxu0
          %v1025 = vadd.f32 0.0, %v1024
          %v1026 = vpop.f32.mrb[0].mxu0
          %v1027 = vadd.f32 0.0, %v1026
          %v1028 = vpop.f32.mrb[0].mxu0
          %v1029 = vadd.f32 0.0, %v1028
          %v1030 = vpop.f32.mrb[0].mxu0
          %v1031 = vadd.f32 0.0, %v1030
          %1032 = vmatprep.mubr.bf16.mxu0 0
          %1033 = vmatmul.mubr.bf16.gmra.mrb[0].mxu0 %v791
          %v1034 = vpop.f32.mrb[0].mxu0
          %v1035 = vadd.f32 0.0, %v1034
          %v1036 = vpop.f32.mrb[0].mxu0
          %v1037 = vadd.f32 0.0, %v1036
          %v1038 = vpop.f32.mrb[0].mxu0
          %v1039 = vadd.f32 0.0, %v1038
          %v1040 = vpop.f32.mrb[0].mxu0
          %v1041 = vadd.f32 0.0, %v1040
          %1042 = vmatprep.mubr.bf16.mxu0 0
          %1043 = vmatmul.mubr.bf16.gmra.mrb[0].mxu0 %v792
          %v1044 = vpop.f32.mrb[0].mxu0
          %v1045 = vadd.f32 0.0, %v1044
          %v1046 = vpop.f32.mrb[0].mxu0
          %v1047 = vadd.f32 0.0, %v1046
          %v1048 = vpop.f32.mrb[0].mxu0
          %v1049 = vadd.f32 0.0, %v1048
          %v1050 = vpop.f32.mrb[0].mxu0
          %v1051 = vadd.f32 0.0, %v1050
          %1052 = vmatprep.mubr.bf16.mxu0 0
          %1053 = vmatmul.mubr.bf16.gmra.mrb[0].mxu0 %v793
          %v1054 = vpop.f32.mrb[0].mxu0
          %v1055 = vadd.f32 0.0, %v1054
          %v1056 = vpop.f32.mrb[0].mxu0
          %v1057 = vadd.f32 0.0, %v1056
          %v1058 = vpop.f32.mrb[0].mxu0
          %v1059 = vadd.f32 0.0, %v1058
          %v1060 = vpop.f32.mrb[0].mxu0
          %v1061 = vadd.f32 0.0, %v1060
          %1062 = vmatprep.mubr.bf16.mxu0 0
          %1063 = vmatmul.mubr.bf16.gmra.mrb[0].mxu0 %v794
          %v1064 = vpop.f32.mrb[0].mxu0
          %v1065 = vadd.f32 0.0, %v1064
          %v1066 = vpop.f32.mrb[0].mxu0
          %v1067 = vadd.f32 0.0, %v1066
          %v1068 = vpop.f32.mrb[0].mxu0
          %v1069 = vadd.f32 0.0, %v1068
          %v1070 = vpop.f32.mrb[0].mxu0
          %v1071 = vadd.f32 0.0, %v1070
          %1072 = vmatprep.mubr.bf16.mxu0 0
          %1073 = vmatmul.mubr.bf16.gmra.mrb[0].mxu0 %v795
          %v1074 = vpop.f32.mrb[0].mxu0
          %v1075 = vadd.f32 0.0, %v1074
          %v1076 = vpop.f32.mrb[0].mxu0
          %v1077 = vadd.f32 0.0, %v1076
          %v1078 = vpop.f32.mrb[0].mxu0
          %v1079 = vadd.f32 0.0, %v1078
          %v1080 = vpop.f32.mrb[0].mxu0
          %v1081 = vadd.f32 0.0, %v1080
          %1082 = vmatprep.mubr.bf16.mxu0 0
          %1083 = vmatmul.mubr.bf16.gmra.mrb[0].mxu0 %v796
          %v1084 = vpop.f32.mrb[0].mxu0
          %v1085 = vadd.f32 0.0, %v1084
          %v1086 = vpop.f32.mrb[0].mxu0
          %v1087 = vadd.f32 0.0, %v1086
          %v1088 = vpop.f32.mrb[0].mxu0
          %v1089 = vadd.f32 0.0, %v1088
          %v1090 = vpop.f32.mrb[0].mxu0
          %v1091 = vadd.f32 0.0, %v1090
          %1092 = vmatprep.mubr.bf16.mxu0 0
          %1093 = vmatmul.mubr.bf16.gmra.mrb[0].mxu0 %v797
          %v1094 = vpop.f32.mrb[0].mxu0
          %v1095 = vadd.f32 0.0, %v1094
          %v1096 = vpop.f32.mrb[0].mxu0
          %v1097 = vadd.f32 0.0, %v1096
          %v1098 = vpop.f32.mrb[0].mxu0
          %v1099 = vadd.f32 0.0, %v1098
          %v1100 = vpop.f32.mrb[0].mxu0
          %v1101 = vadd.f32 0.0, %v1100
          %1102 = vdwg.mxu0
          %v1103 = vpack.c.bf16 %v949, %v945
          %v1104 = vpack.c.bf16 %v951, %v947
          %v1105 = vpack.c.bf16 %v959, %v955
          %v1106 = vpack.c.bf16 %v961, %v957
          %v1107 = vpack.c.bf16 %v969, %v965
          %v1108 = vpack.c.bf16 %v971, %v967
          %v1109 = vpack.c.bf16 %v979, %v975
          %v1110 = vpack.c.bf16 %v981, %v977
          %v1111 = vpack.c.bf16 %v989, %v985
          %v1112 = vpack.c.bf16 %v991, %v987
          %v1113 = vpack.c.bf16 %v999, %v995
          %v1114 = vpack.c.bf16 %v1001, %v997
          %v1115 = vpack.c.bf16 %v1009, %v1005
          %v1116 = vpack.c.bf16 %v1011, %v1007
          %v1117 = vpack.c.bf16 %v1019, %v1015
          %v1118 = vpack.c.bf16 %v1021, %v1017
          %v1119 = vpack.c.bf16 %v1029, %v1025
          %v1120 = vpack.c.bf16 %v1031, %v1027
          %v1121 = vpack.c.bf16 %v1039, %v1035
          %v1122 = vpack.c.bf16 %v1041, %v1037
          %v1123 = vpack.c.bf16 %v1049, %v1045
          %v1124 = vpack.c.bf16 %v1051, %v1047
          %v1125 = vpack.c.bf16 %v1059, %v1055
          %v1126 = vpack.c.bf16 %v1061, %v1057
          %v1127 = vpack.c.bf16 %v1069, %v1065
          %v1128 = vpack.c.bf16 %v1071, %v1067
          %v1129 = vpack.c.bf16 %v1079, %v1075
          %v1130 = vpack.c.bf16 %v1081, %v1077
          %v1131 = vpack.c.bf16 %v1089, %v1085
          %v1132 = vpack.c.bf16 %v1091, %v1087
          %v1133 = vpack.c.bf16 %v1099, %v1095
          %v1134 = vpack.c.bf16 %v1101, %v1097
          %1135 = vst [vmem:[#allocation3] sm:$0xff] %v1103
          %1136 = vst [vmem:[#allocation3 + $0x8] sm:$0xff] %v1104
          %1137 = vst [vmem:[#allocation3 + $0x10] sm:$0xff] %v1105
          %1138 = vst [vmem:[#allocation3 + $0x18] sm:$0xff] %v1106
          %1139 = vst [vmem:[#allocation3 + $0x20] sm:$0xff] %v1107
          %1140 = vst [vmem:[#allocation3 + $0x28] sm:$0xff] %v1108
          %1141 = vst [vmem:[#allocation3 + $0x30] sm:$0xff] %v1109
          %1142 = vst [vmem:[#allocation3 + $0x38] sm:$0xff] %v1110
          %1143 = vst [vmem:[#allocation3 + $0x40] sm:$0xff] %v1111
          %1144 = vst [vmem:[#allocation3 + $0x48] sm:$0xff] %v1112
          %1145 = vst [vmem:[#allocation3 + $0x50] sm:$0xff] %v1113
          %1146 = vst [vmem:[#allocation3 + $0x58] sm:$0xff] %v1114
          %1147 = vst [vmem:[#allocation3 + $0x60] sm:$0xff] %v1115
          %1148 = vst [vmem:[#allocation3 + $0x68] sm:$0xff] %v1116
          %1149 = vst [vmem:[#allocation3 + $0x70] sm:$0xff] %v1117
          %1150 = vst [vmem:[#allocation3 + $0x78] sm:$0xff] %v1118
          %1151 = vst [vmem:[#allocation3 + $0x80] sm:$0xff] %v1119
          %1152 = vst [vmem:[#allocation3 + $0x88] sm:$0xff] %v1120
          %1153 = vst [vmem:[#allocation3 + $0x90] sm:$0xff] %v1121
          %1154 = vst [vmem:[#allocation3 + $0x98] sm:$0xff] %v1122
          %1155 = vst [vmem:[#allocation3 + $0xa0] sm:$0xff] %v1123
          %1156 = vst [vmem:[#allocation3 + $0xa8] sm:$0xff] %v1124
          %1157 = vst [vmem:[#allocation3 + $0xb0] sm:$0xff] %v1125
          %1158 = vst [vmem:[#allocation3 + $0xb8] sm:$0xff] %v1126
          %1159 = vst [vmem:[#allocation3 + $0xc0] sm:$0xff] %v1127
          %1160 = vst [vmem:[#allocation3 + $0xc8] sm:$0xff] %v1128
          %1161 = vst [vmem:[#allocation3 + $0xd0] sm:$0xff] %v1129
          %1162 = vst [vmem:[#allocation3 + $0xd8] sm:$0xff] %v1130
          %1163 = vst [vmem:[#allocation3 + $0xe0] sm:$0xff] %v1131
          %1164 = vst [vmem:[#allocation3 + $0xe8] sm:$0xff] %v1132
          %1165 = vst [vmem:[#allocation3 + $0xf0] sm:$0xff] %v1133
          %1166 = vst [vmem:[#allocation3 + $0xf8] sm:$0xff] %v1134
        $region68: #{tpu_custom_call.1} parent=43 // pred_fallthru
          _
        %s1167 = smul.u32 %s30, 256
        %s1168 = sshra.s32 %s1167, 4
        %s1169 = sand.u32 %s1167, 15
        %s1170 = smul.addr %s1168, 8
        %s1171 = scalar_lea.vmem [#allocation2], %s1170
        %v1172 = vld [vmem:[%s1171] sm:$0xff]
        %v1173 = vld [vmem:[%s1171 + $0x8] sm:$0xff]
        %v1174 = vld [vmem:[%s1171 + $0x10] sm:$0xff]
        %v1175 = vld [vmem:[%s1171 + $0x18] sm:$0xff]
        %v1176 = vld [vmem:[%s1171 + $0x20] sm:$0xff]
        %v1177 = vld [vmem:[%s1171 + $0x28] sm:$0xff]
        %v1178 = vld [vmem:[%s1171 + $0x30] sm:$0xff]
        %v1179 = vld [vmem:[%s1171 + $0x38] sm:$0xff]
        %v1180 = vld [vmem:[%s1171 + $0x40] sm:$0xff]
        %v1181 = vld [vmem:[%s1171 + $0x48] sm:$0xff]
        %v1182 = vld [vmem:[%s1171 + $0x50] sm:$0xff]
        %v1183 = vld [vmem:[%s1171 + $0x58] sm:$0xff]
        %v1184 = vld [vmem:[%s1171 + $0x60] sm:$0xff]
        %v1185 = vld [vmem:[%s1171 + $0x68] sm:$0xff]
        %v1186 = vld [vmem:[%s1171 + $0x70] sm:$0xff]
        %v1187 = vld [vmem:[%s1171 + $0x78] sm:$0xff]
        %v1188 = vld [vmem:[#allocation7] sm:$0xf]
        %v1189 = vld [vmem:[#allocation7 + $0x4] sm:$0xf]
        %v1190 = vld [vmem:[#allocation7 + $0x8] sm:$0xf]
        %v1191 = vld [vmem:[#allocation7 + $0xc] sm:$0xf]
        %v1192 = vld [vmem:[#allocation7 + $0x10] sm:$0xf]
        %v1193 = vld [vmem:[#allocation7 + $0x14] sm:$0xf]
        %v1194 = vld [vmem:[#allocation7 + $0x18] sm:$0xf]
        %v1195 = vld [vmem:[#allocation7 + $0x1c] sm:$0xf]
        %v1196 = vld [vmem:[#allocation7 + $0x20] sm:$0xf]
        %v1197 = vld [vmem:[#allocation7 + $0x24] sm:$0xf]
        %v1198 = vld [vmem:[#allocation7 + $0x28] sm:$0xf]
        %v1199 = vld [vmem:[#allocation7 + $0x2c] sm:$0xf]
        %v1200 = vld [vmem:[#allocation7 + $0x30] sm:$0xf]
        %v1201 = vld [vmem:[#allocation7 + $0x34] sm:$0xf]
        %v1202 = vld [vmem:[#allocation7 + $0x38] sm:$0xf]
        %v1203 = vld [vmem:[#allocation7 + $0x3c] sm:$0xf]
        %v1220 = vunpack.c.l.b16 %v1188
        %v1221 = vunpack.c.l.b16 %v1189
        %v1222 = vunpack.c.l.b16 %v1190
        %v1223 = vunpack.c.l.b16 %v1191
        %v1224 = vunpack.c.l.b16 %v1192
        %v1225 = vunpack.c.l.b16 %v1193
        %v1226 = vunpack.c.l.b16 %v1194
        %v1227 = vunpack.c.l.b16 %v1195
        %v1228 = vunpack.c.l.b16 %v1196
        %v1229 = vunpack.c.l.b16 %v1197
        %v1230 = vunpack.c.l.b16 %v1198
        %v1231 = vunpack.c.l.b16 %v1199
        %v1232 = vunpack.c.l.b16 %v1200
        %v1233 = vunpack.c.l.b16 %v1201
        %v1234 = vunpack.c.l.b16 %v1202
        %v1235 = vunpack.c.l.b16 %v1203
        %v1236 = vpack.c.b16 %v1221, %v1220
        %v1237 = vpack.c.b16 %v1223, %v1222
        %v1238 = vpack.c.b16 %v1225, %v1224
        %v1239 = vpack.c.b16 %v1227, %v1226
        %v1240 = vpack.c.b16 %v1229, %v1228
        %v1241 = vpack.c.b16 %v1231, %v1230
        %v1242 = vpack.c.b16 %v1233, %v1232
        %v1243 = vpack.c.b16 %v1235, %v1234
        %1252 = vmatprep.subr.bf16.mxu0 0
        %1253 = vmatpush1.bf16.msra.mxu0 %v1236
        %1254 = vmatprep.subr.bf16.mxu0 0
        %1255 = vmatpush1.bf16.msra.mxu0 %v1237
        %1256 = vmatprep.subr.bf16.mxu0 0
        %1257 = vmatpush1.bf16.msra.mxu0 %v1238
        %1258 = vmatprep.subr.bf16.mxu0 0
        %1259 = vmatpush1.bf16.msra.mxu0 %v1239
        %1260 = vmatprep.subr.bf16.mxu0 0
        %1261 = vmatpush1.bf16.msra.mxu0 %v1240
        %1262 = vmatprep.subr.bf16.mxu0 0
        %1263 = vmatpush1.bf16.msra.mxu0 %v1241
        %1264 = vmatprep.subr.bf16.mxu0 0
        %1265 = vmatpush1.bf16.msra.mxu0 %v1242
        %1266 = vmatprep.subr.bf16.mxu0 0
        %1267 = vmatpush1.bf16.msra.mxu0 %v1243
        %1268 = vmatprep.subr.bf16.mxu0 0
        %1269 = vmatpush1.bf16.msra.mxu0 0
        %1270 = vmatprep.subr.bf16.mxu0 0
        %1271 = vmatpush1.bf16.msra.mxu0 0
        %1272 = vmatprep.subr.bf16.mxu0 0
        %1273 = vmatpush1.bf16.msra.mxu0 0
        %1274 = vmatprep.subr.bf16.mxu0 0
        %1275 = vmatpush1.bf16.msra.mxu0 0
        %1276 = vmatprep.subr.bf16.mxu0 0
        %1277 = vmatpush1.bf16.msra.mxu0 0
        %1278 = vmatprep.subr.bf16.mxu0 0
        %1279 = vmatpush1.bf16.msra.mxu0 0
        %1280 = vmatprep.subr.bf16.mxu0 0
        %1281 = vmatpush1.bf16.msra.mxu0 0
        %1282 = vmatprep.subr.bf16.mxu0 0
        %1283 = vmatpush1.bf16.msra.mxu0 0
        %1284 = vmatprep.mubr.bf16.mxu0 0
        %1285 = vmatmul.mubr.bf16.gmra.mrb[0].mxu0 %v1172
        %v1286 = vpop.f32.mrb[0].mxu0
        %v1287 = vadd.f32 0.0, %v1286
        %v1288 = vpop.f32.mrb[0].mxu0
        %v1289 = vpop.f32.mrb[0].mxu0
        %v1290 = vadd.f32 0.0, %v1289
        %v1291 = vpop.f32.mrb[0].mxu0
        %1292 = vmatprep.mubr.bf16.mxu0 0
        %1293 = vmatmul.mubr.bf16.gmra.mrb[0].mxu0 %v1173
        %v1294 = vpop.f32.mrb[0].mxu0
        %v1295 = vadd.f32 0.0, %v1294
        %v1296 = vpop.f32.mrb[0].mxu0
        %v1297 = vpop.f32.mrb[0].mxu0
        %v1298 = vadd.f32 0.0, %v1297
        %v1299 = vpop.f32.mrb[0].mxu0
        %1300 = vmatprep.mubr.bf16.mxu0 0
        %1301 = vmatmul.mubr.bf16.gmra.mrb[0].mxu0 %v1174
        %v1302 = vpop.f32.mrb[0].mxu0
        %v1303 = vadd.f32 0.0, %v1302
        %v1304 = vpop.f32.mrb[0].mxu0
        %v1305 = vpop.f32.mrb[0].mxu0
        %v1306 = vadd.f32 0.0, %v1305
        %v1307 = vpop.f32.mrb[0].mxu0
        %1308 = vmatprep.mubr.bf16.mxu0 0
        %1309 = vmatmul.mubr.bf16.gmra.mrb[0].mxu0 %v1175
        %v1310 = vpop.f32.mrb[0].mxu0
        %v1311 = vadd.f32 0.0, %v1310
        %v1312 = vpop.f32.mrb[0].mxu0
        %v1313 = vpop.f32.mrb[0].mxu0
        %v1314 = vadd.f32 0.0, %v1313
        %v1315 = vpop.f32.mrb[0].mxu0
        %1316 = vmatprep.mubr.bf16.mxu0 0
        %1317 = vmatmul.mubr.bf16.gmra.mrb[0].mxu0 %v1176
        %v1318 = vpop.f32.mrb[0].mxu0
        %v1319 = vadd.f32 0.0, %v1318
        %v1320 = vpop.f32.mrb[0].mxu0
        %v1321 = vpop.f32.mrb[0].mxu0
        %v1322 = vadd.f32 0.0, %v1321
        %v1323 = vpop.f32.mrb[0].mxu0
        %1324 = vmatprep.mubr.bf16.mxu0 0
        %1325 = vmatmul.mubr.bf16.gmra.mrb[0].mxu0 %v1177
        %v1326 = vpop.f32.mrb[0].mxu0
        %v1327 = vadd.f32 0.0, %v1326
        %v1328 = vpop.f32.mrb[0].mxu0
        %v1329 = vpop.f32.mrb[0].mxu0
        %v1330 = vadd.f32 0.0, %v1329
        %v1331 = vpop.f32.mrb[0].mxu0
        %1332 = vmatprep.mubr.bf16.mxu0 0
        %1333 = vmatmul.mubr.bf16.gmra.mrb[0].mxu0 %v1178
        %v1334 = vpop.f32.mrb[0].mxu0
        %v1335 = vadd.f32 0.0, %v1334
        %v1336 = vpop.f32.mrb[0].mxu0
        %v1337 = vpop.f32.mrb[0].mxu0
        %v1338 = vadd.f32 0.0, %v1337
        %v1339 = vpop.f32.mrb[0].mxu0
        %1340 = vmatprep.mubr.bf16.mxu0 0
        %1341 = vmatmul.mubr.bf16.gmra.mrb[0].mxu0 %v1179
        %v1342 = vpop.f32.mrb[0].mxu0
        %v1343 = vadd.f32 0.0, %v1342
        %v1344 = vpop.f32.mrb[0].mxu0
        %v1345 = vpop.f32.mrb[0].mxu0
        %v1346 = vadd.f32 0.0, %v1345
        %v1347 = vpop.f32.mrb[0].mxu0
        %1348 = vmatprep.mubr.bf16.mxu0 0
        %1349 = vmatmul.mubr.bf16.gmra.mrb[0].mxu0 %v1180
        %v1350 = vpop.f32.mrb[0].mxu0
        %v1351 = vadd.f32 0.0, %v1350
        %v1352 = vpop.f32.mrb[0].mxu0
        %v1353 = vpop.f32.mrb[0].mxu0
        %v1354 = vadd.f32 0.0, %v1353
        %v1355 = vpop.f32.mrb[0].mxu0
        %1356 = vmatprep.mubr.bf16.mxu0 0
        %1357 = vmatmul.mubr.bf16.gmra.mrb[0].mxu0 %v1181
        %v1358 = vpop.f32.mrb[0].mxu0
        %v1359 = vadd.f32 0.0, %v1358
        %v1360 = vpop.f32.mrb[0].mxu0
        %v1361 = vpop.f32.mrb[0].mxu0
        %v1362 = vadd.f32 0.0, %v1361
        %v1363 = vpop.f32.mrb[0].mxu0
        %1364 = vmatprep.mubr.bf16.mxu0 0
        %1365 = vmatmul.mubr.bf16.gmra.mrb[0].mxu0 %v1182
        %v1366 = vpop.f32.mrb[0].mxu0
        %v1367 = vadd.f32 0.0, %v1366
        %v1368 = vpop.f32.mrb[0].mxu0
        %v1369 = vpop.f32.mrb[0].mxu0
        %v1370 = vadd.f32 0.0, %v1369
        %v1371 = vpop.f32.mrb[0].mxu0
        %1372 = vmatprep.mubr.bf16.mxu0 0
        %1373 = vmatmul.mubr.bf16.gmra.mrb[0].mxu0 %v1183
        %v1374 = vpop.f32.mrb[0].mxu0
        %v1375 = vadd.f32 0.0, %v1374
        %v1376 = vpop.f32.mrb[0].mxu0
        %v1377 = vpop.f32.mrb[0].mxu0
        %v1378 = vadd.f32 0.0, %v1377
        %v1379 = vpop.f32.mrb[0].mxu0
        %1380 = vmatprep.mubr.bf16.mxu0 0
        %1381 = vmatmul.mubr.bf16.gmra.mrb[0].mxu0 %v1184
        %v1382 = vpop.f32.mrb[0].mxu0
        %v1383 = vadd.f32 0.0, %v1382
        %v1384 = vpop.f32.mrb[0].mxu0
        %v1385 = vpop.f32.mrb[0].mxu0
        %v1386 = vadd.f32 0.0, %v1385
        %v1387 = vpop.f32.mrb[0].mxu0
        %1388 = vmatprep.mubr.bf16.mxu0 0
        %1389 = vmatmul.mubr.bf16.gmra.mrb[0].mxu0 %v1185
        %v1390 = vpop.f32.mrb[0].mxu0
        %v1391 = vadd.f32 0.0, %v1390
        %v1392 = vpop.f32.mrb[0].mxu0
        %v1393 = vpop.f32.mrb[0].mxu0
        %v1394 = vadd.f32 0.0, %v1393
        %v1395 = vpop.f32.mrb[0].mxu0
        %1396 = vmatprep.mubr.bf16.mxu0 0
        %1397 = vmatmul.mubr.bf16.gmra.mrb[0].mxu0 %v1186
        %v1398 = vpop.f32.mrb[0].mxu0
        %v1399 = vadd.f32 0.0, %v1398
        %v1400 = vpop.f32.mrb[0].mxu0
        %v1401 = vpop.f32.mrb[0].mxu0
        %v1402 = vadd.f32 0.0, %v1401
        %v1403 = vpop.f32.mrb[0].mxu0
        %1404 = vmatprep.mubr.bf16.mxu0 0
        %1405 = vmatmul.mubr.bf16.gmra.mrb[0].mxu0 %v1187
        %v1406 = vpop.f32.mrb[0].mxu0
        %v1407 = vadd.f32 0.0, %v1406
        %v1408 = vpop.f32.mrb[0].mxu0
        %v1409 = vpop.f32.mrb[0].mxu0
        %v1410 = vadd.f32 0.0, %v1409
        %v1411 = vpop.f32.mrb[0].mxu0
        %1412 = vdwg.mxu0
        %v1413 = vpack.c.bf16 %v1290, %v1287
        %v1414 = vpack.c.bf16 %v1298, %v1295
        %v1415 = vpack.c.bf16 %v1306, %v1303
        %v1416 = vpack.c.bf16 %v1314, %v1311
        %v1417 = vpack.c.bf16 %v1322, %v1319
        %v1418 = vpack.c.bf16 %v1330, %v1327
        %v1419 = vpack.c.bf16 %v1338, %v1335
        %v1420 = vpack.c.bf16 %v1346, %v1343
        %v1421 = vpack.c.bf16 %v1354, %v1351
        %v1422 = vpack.c.bf16 %v1362, %v1359
        %v1423 = vpack.c.bf16 %v1370, %v1367
        %v1424 = vpack.c.bf16 %v1378, %v1375
        %v1425 = vpack.c.bf16 %v1386, %v1383
        %v1426 = vpack.c.bf16 %v1394, %v1391
        %v1427 = vpack.c.bf16 %v1402, %v1399
        %v1428 = vpack.c.bf16 %v1410, %v1407
        %v1429 = vld [vmem:[#allocation3] sm:$0xff]
        %v1430 = vld [vmem:[#allocation3 + $0x8] sm:$0xff]
        %v1431 = vld [vmem:[#allocation3 + $0x10] sm:$0xff]
        %v1432 = vld [vmem:[#allocation3 + $0x18] sm:$0xff]
        %v1433 = vld [vmem:[#allocation3 + $0x20] sm:$0xff]
        %v1434 = vld [vmem:[#allocation3 + $0x28] sm:$0xff]
        %v1435 = vld [vmem:[#allocation3 + $0x30] sm:$0xff]
        %v1436 = vld [vmem:[#allocation3 + $0x38] sm:$0xff]
        %v1437 = vld [vmem:[#allocation3 + $0x40] sm:$0xff]
        %v1438 = vld [vmem:[#allocation3 + $0x48] sm:$0xff]
        %v1439 = vld [vmem:[#allocation3 + $0x50] sm:$0xff]
        %v1440 = vld [vmem:[#allocation3 + $0x58] sm:$0xff]
        %v1441 = vld [vmem:[#allocation3 + $0x60] sm:$0xff]
        %v1442 = vld [vmem:[#allocation3 + $0x68] sm:$0xff]
        %v1443 = vld [vmem:[#allocation3 + $0x70] sm:$0xff]
        %v1444 = vld [vmem:[#allocation3 + $0x78] sm:$0xff]
        %v1445 = vld [vmem:[#allocation3 + $0x80] sm:$0xff]
        %v1446 = vld [vmem:[#allocation3 + $0x88] sm:$0xff]
        %v1447 = vld [vmem:[#allocation3 + $0x90] sm:$0xff]
        %v1448 = vld [vmem:[#allocation3 + $0x98] sm:$0xff]
        %v1449 = vld [vmem:[#allocation3 + $0xa0] sm:$0xff]
        %v1450 = vld [vmem:[#allocation3 + $0xa8] sm:$0xff]
        %v1451 = vld [vmem:[#allocation3 + $0xb0] sm:$0xff]
        %v1452 = vld [vmem:[#allocation3 + $0xb8] sm:$0xff]
        %v1453 = vld [vmem:[#allocation3 + $0xc0] sm:$0xff]
        %v1454 = vld [vmem:[#allocation3 + $0xc8] sm:$0xff]
        %v1455 = vld [vmem:[#allocation3 + $0xd0] sm:$0xff]
        %v1456 = vld [vmem:[#allocation3 + $0xd8] sm:$0xff]
        %v1457 = vld [vmem:[#allocation3 + $0xe0] sm:$0xff]
        %v1458 = vld [vmem:[#allocation3 + $0xe8] sm:$0xff]
        %v1459 = vld [vmem:[#allocation3 + $0xf0] sm:$0xff]
        %v1460 = vld [vmem:[#allocation3 + $0xf8] sm:$0xff]
        %v1461 = vld [vmem:[#allocation12] sm:$0xff]
        %v1462 = vld [vmem:[#allocation12 + $0x8] sm:$0xff]
        %v1463 = vld [vmem:[#allocation12 + $0x10] sm:$0xff]
        %v1464 = vld [vmem:[#allocation12 + $0x18] sm:$0xff]
        %v1465 = vld [vmem:[#allocation12 + $0x20] sm:$0xff]
        %v1466 = vld [vmem:[#allocation12 + $0x28] sm:$0xff]
        %v1467 = vld [vmem:[#allocation12 + $0x30] sm:$0xff]
        %v1468 = vld [vmem:[#allocation12 + $0x38] sm:$0xff]
        %v1469 = vld [vmem:[#allocation12 + $0x40] sm:$0xff]
        %v1470 = vld [vmem:[#allocation12 + $0x48] sm:$0xff]
        %v1471 = vld [vmem:[#allocation12 + $0x50] sm:$0xff]
        %v1472 = vld [vmem:[#allocation12 + $0x58] sm:$0xff]
        %v1473 = vld [vmem:[#allocation12 + $0x60] sm:$0xff]
        %v1474 = vld [vmem:[#allocation12 + $0x68] sm:$0xff]
        %v1475 = vld [vmem:[#allocation12 + $0x70] sm:$0xff]
        %v1476 = vld [vmem:[#allocation12 + $0x78] sm:$0xff]
        %v1477 = vld [vmem:[#allocation12 + $0x80] sm:$0xff]
        %v1478 = vld [vmem:[#allocation12 + $0x88] sm:$0xff]
        %v1479 = vld [vmem:[#allocation12 + $0x90] sm:$0xff]
        %v1480 = vld [vmem:[#allocation12 + $0x98] sm:$0xff]
        %v1481 = vld [vmem:[#allocation12 + $0xa0] sm:$0xff]
        %v1482 = vld [vmem:[#allocation12 + $0xa8] sm:$0xff]
        %v1483 = vld [vmem:[#allocation12 + $0xb0] sm:$0xff]
        %v1484 = vld [vmem:[#allocation12 + $0xb8] sm:$0xff]
        %v1485 = vld [vmem:[#allocation12 + $0xc0] sm:$0xff]
        %v1486 = vld [vmem:[#allocation12 + $0xc8] sm:$0xff]
        %v1487 = vld [vmem:[#allocation12 + $0xd0] sm:$0xff]
        %v1488 = vld [vmem:[#allocation12 + $0xd8] sm:$0xff]
        %v1489 = vld [vmem:[#allocation12 + $0xe0] sm:$0xff]
        %v1490 = vld [vmem:[#allocation12 + $0xe8] sm:$0xff]
        %v1491 = vld [vmem:[#allocation12 + $0xf0] sm:$0xff]
        %v1492 = vld [vmem:[#allocation12 + $0xf8] sm:$0xff]
        %v1493 = vunpack.c.l.bf16 %v1461
        %v1494 = vunpack.c.h.bf16 %v1461
        %v1495 = vunpack.c.l.bf16 %v1462
        %v1496 = vunpack.c.h.bf16 %v1462
        %v1497 = vunpack.c.l.bf16 %v1463
        %v1498 = vunpack.c.h.bf16 %v1463
        %v1499 = vunpack.c.l.bf16 %v1464
        %v1500 = vunpack.c.h.bf16 %v1464
        %v1501 = vunpack.c.l.bf16 %v1465
        %v1502 = vunpack.c.h.bf16 %v1465
        %v1503 = vunpack.c.l.bf16 %v1466
        %v1504 = vunpack.c.h.bf16 %v1466
        %v1505 = vunpack.c.l.bf16 %v1467
        %v1506 = vunpack.c.h.bf16 %v1467
        %v1507 = vunpack.c.l.bf16 %v1468
        %v1508 = vunpack.c.h.bf16 %v1468
        %v1509 = vunpack.c.l.bf16 %v1469
        %v1510 = vunpack.c.h.bf16 %v1469
        %v1511 = vunpack.c.l.bf16 %v1470
        %v1512 = vunpack.c.h.bf16 %v1470
        %v1513 = vunpack.c.l.bf16 %v1471
        %v1514 = vunpack.c.h.bf16 %v1471
        %v1515 = vunpack.c.l.bf16 %v1472
        %v1516 = vunpack.c.h.bf16 %v1472
        %v1517 = vunpack.c.l.bf16 %v1473
        %v1518 = vunpack.c.h.bf16 %v1473
        %v1519 = vunpack.c.l.bf16 %v1474
        %v1520 = vunpack.c.h.bf16 %v1474
        %v1521 = vunpack.c.l.bf16 %v1475
        %v1522 = vunpack.c.h.bf16 %v1475
        %v1523 = vunpack.c.l.bf16 %v1476
        %v1524 = vunpack.c.h.bf16 %v1476
        %v1525 = vunpack.c.l.bf16 %v1477
        %v1526 = vunpack.c.h.bf16 %v1477
        %v1527 = vunpack.c.l.bf16 %v1478
        %v1528 = vunpack.c.h.bf16 %v1478
        %v1529 = vunpack.c.l.bf16 %v1479
        %v1530 = vunpack.c.h.bf16 %v1479
        %v1531 = vunpack.c.l.bf16 %v1480
        %v1532 = vunpack.c.h.bf16 %v1480
        %v1533 = vunpack.c.l.bf16 %v1481
        %v1534 = vunpack.c.h.bf16 %v1481
        %v1535 = vunpack.c.l.bf16 %v1482
        %v1536 = vunpack.c.h.bf16 %v1482
        %v1537 = vunpack.c.l.bf16 %v1483
        %v1538 = vunpack.c.h.bf16 %v1483
        %v1539 = vunpack.c.l.bf16 %v1484
        %v1540 = vunpack.c.h.bf16 %v1484
        %v1541 = vunpack.c.l.bf16 %v1485
        %v1542 = vunpack.c.h.bf16 %v1485
        %v1543 = vunpack.c.l.bf16 %v1486
        %v1544 = vunpack.c.h.bf16 %v1486
        %v1545 = vunpack.c.l.bf16 %v1487
        %v1546 = vunpack.c.h.bf16 %v1487
        %v1547 = vunpack.c.l.bf16 %v1488
        %v1548 = vunpack.c.h.bf16 %v1488
        %v1549 = vunpack.c.l.bf16 %v1489
        %v1550 = vunpack.c.h.bf16 %v1489
        %v1551 = vunpack.c.l.bf16 %v1490
        %v1552 = vunpack.c.h.bf16 %v1490
        %v1553 = vunpack.c.l.bf16 %v1491
        %v1554 = vunpack.c.h.bf16 %v1491
        %v1555 = vunpack.c.l.bf16 %v1492
        %v1556 = vunpack.c.h.bf16 %v1492
        %vm1557 = vcmask 261120
        %v1559 = vsel %vm1557, %v1413, 0
        %v1562 = vsel %vm1557, %v1414, 0
        %v1565 = vsel %vm1557, %v1415, 0
        %v1568 = vsel %vm1557, %v1416, 0
        %v1571 = vsel %vm1557, %v1417, 0
        %v1574 = vsel %vm1557, %v1418, 0
        %v1577 = vsel %vm1557, %v1419, 0
        %v1580 = vsel %vm1557, %v1420, 0
        %v1583 = vsel %vm1557, %v1421, 0
        %v1586 = vsel %vm1557, %v1422, 0
        %v1589 = vsel %vm1557, %v1423, 0
        %v1592 = vsel %vm1557, %v1424, 0
        %v1595 = vsel %vm1557, %v1425, 0
        %v1598 = vsel %vm1557, %v1426, 0
        %v1601 = vsel %vm1557, %v1427, 0
        %v1604 = vsel %vm1557, %v1428, 0
        %v1607 = vsel %vm1557, %v1429, 0
        %v1610 = vsel %vm1557, %v1431, 0
        %v1613 = vsel %vm1557, %v1433, 0
        %v1616 = vsel %vm1557, %v1435, 0
        %v1619 = vsel %vm1557, %v1437, 0
        %v1622 = vsel %vm1557, %v1439, 0
        %v1625 = vsel %vm1557, %v1441, 0
        %v1628 = vsel %vm1557, %v1443, 0
        %v1631 = vsel %vm1557, %v1445, 0
        %v1634 = vsel %vm1557, %v1447, 0
        %v1637 = vsel %vm1557, %v1449, 0
        %v1640 = vsel %vm1557, %v1451, 0
        %v1643 = vsel %vm1557, %v1453, 0
        %v1646 = vsel %vm1557, %v1455, 0
        %v1649 = vsel %vm1557, %v1457, 0
        %v1652 = vsel %vm1557, %v1459, 0
        %1654 = vmatprep.subr.bf16.mxu0 0
        %1655 = vmatpush1.bf16.xpose.msra.mxu0 %v1607
        %1656 = vmatprep.subr.bf16.mxu0 0
        %1657 = vmatpush1.bf16.xpose.msra.mxu0 %v1610
        %1658 = vmatprep.subr.bf16.mxu0 0
        %1659 = vmatpush1.bf16.xpose.msra.mxu0 %v1613
        %1660 = vmatprep.subr.bf16.mxu0 0
        %1661 = vmatpush1.bf16.xpose.msra.mxu0 %v1616
        %1662 = vmatprep.subr.bf16.mxu0 0
        %1663 = vmatpush1.bf16.xpose.msra.mxu0 %v1619
        %1664 = vmatprep.subr.bf16.mxu0 0
        %1665 = vmatpush1.bf16.xpose.msra.mxu0 %v1622
        %1666 = vmatprep.subr.bf16.mxu0 0
        %1667 = vmatpush1.bf16.xpose.msra.mxu0 %v1625
        %1668 = vmatprep.subr.bf16.mxu0 0
        %1669 = vmatpush1.bf16.xpose.msra.mxu0 %v1628
        %1670 = vmatprep.subr.bf16.mxu0 0
        %1671 = vmatpush1.bf16.xpose.msra.mxu0 %v1631
        %1672 = vmatprep.subr.bf16.mxu0 0
        %1673 = vmatpush1.bf16.xpose.msra.mxu0 %v1634
        %1674 = vmatprep.subr.bf16.mxu0 0
        %1675 = vmatpush1.bf16.xpose.msra.mxu0 %v1637
        %1676 = vmatprep.subr.bf16.mxu0 0
        %1677 = vmatpush1.bf16.xpose.msra.mxu0 %v1640
        %1678 = vmatprep.subr.bf16.mxu0 0
        %1679 = vmatpush1.bf16.xpose.msra.mxu0 %v1643
        %1680 = vmatprep.subr.bf16.mxu0 0
        %1681 = vmatpush1.bf16.xpose.msra.mxu0 %v1646
        %1682 = vmatprep.subr.bf16.mxu0 0
        %1683 = vmatpush1.bf16.xpose.msra.mxu0 %v1649
        %1684 = vmatprep.subr.bf16.mxu0 0
        %1685 = vmatpush1.bf16.xpose.msra.mxu0 %v1652
        %1686 = vmatprep.mubr.bf16.mxu0 0
        %1687 = vmatmul.mubr.bf16.gmra.mrb[0].mxu0 %v1559
        %v1688 = vpop.f32.mrb[0].mxu0
        %v1689 = vadd.f32 %v1493, %v1688
        %v1690 = vpop.f32.mrb[0].mxu0
        %v1691 = vadd.f32 %v1494, %v1690
        %v1692 = vpop.f32.mrb[0].mxu0
        %v1693 = vadd.f32 %v1495, %v1692
        %v1694 = vpop.f32.mrb[0].mxu0
        %v1695 = vadd.f32 %v1496, %v1694
        %1696 = vmatprep.mubr.bf16.mxu0 0
        %1697 = vmatmul.mubr.bf16.gmra.mrb[0].mxu0 %v1562
        %v1698 = vpop.f32.mrb[0].mxu0
        %v1699 = vadd.f32 %v1497, %v1698
        %v1700 = vpop.f32.mrb[0].mxu0
        %v1701 = vadd.f32 %v1498, %v1700
        %v1702 = vpop.f32.mrb[0].mxu0
        %v1703 = vadd.f32 %v1499, %v1702
        %v1704 = vpop.f32.mrb[0].mxu0
        %v1705 = vadd.f32 %v1500, %v1704
        %1706 = vmatprep.mubr.bf16.mxu0 0
        %1707 = vmatmul.mubr.bf16.gmra.mrb[0].mxu0 %v1565
        %v1708 = vpop.f32.mrb[0].mxu0
        %v1709 = vadd.f32 %v1501, %v1708
        %v1710 = vpop.f32.mrb[0].mxu0
        %v1711 = vadd.f32 %v1502, %v1710
        %v1712 = vpop.f32.mrb[0].mxu0
        %v1713 = vadd.f32 %v1503, %v1712
        %v1714 = vpop.f32.mrb[0].mxu0
        %v1715 = vadd.f32 %v1504, %v1714
        %1716 = vmatprep.mubr.bf16.mxu0 0
        %1717 = vmatmul.mubr.bf16.gmra.mrb[0].mxu0 %v1568
        %v1718 = vpop.f32.mrb[0].mxu0
        %v1719 = vadd.f32 %v1505, %v1718
        %v1720 = vpop.f32.mrb[0].mxu0
        %v1721 = vadd.f32 %v1506, %v1720
        %v1722 = vpop.f32.mrb[0].mxu0
        %v1723 = vadd.f32 %v1507, %v1722
        %v1724 = vpop.f32.mrb[0].mxu0
        %v1725 = vadd.f32 %v1508, %v1724
        %1726 = vmatprep.mubr.bf16.mxu0 0
        %1727 = vmatmul.mubr.bf16.gmra.mrb[0].mxu0 %v1571
        %v1728 = vpop.f32.mrb[0].mxu0
        %v1729 = vadd.f32 %v1509, %v1728
        %v1730 = vpop.f32.mrb[0].mxu0
        %v1731 = vadd.f32 %v1510, %v1730
        %v1732 = vpop.f32.mrb[0].mxu0
        %v1733 = vadd.f32 %v1511, %v1732
        %v1734 = vpop.f32.mrb[0].mxu0
        %v1735 = vadd.f32 %v1512, %v1734
        %1736 = vmatprep.mubr.bf16.mxu0 0
        %1737 = vmatmul.mubr.bf16.gmra.mrb[0].mxu0 %v1574
        %v1738 = vpop.f32.mrb[0].mxu0
        %v1739 = vadd.f32 %v1513, %v1738
        %v1740 = vpop.f32.mrb[0].mxu0
        %v1741 = vadd.f32 %v1514, %v1740
        %v1742 = vpop.f32.mrb[0].mxu0
        %v1743 = vadd.f32 %v1515, %v1742
        %v1744 = vpop.f32.mrb[0].mxu0
        %v1745 = vadd.f32 %v1516, %v1744
        %1746 = vmatprep.mubr.bf16.mxu0 0
        %1747 = vmatmul.mubr.bf16.gmra.mrb[0].mxu0 %v1577
        %v1748 = vpop.f32.mrb[0].mxu0
        %v1749 = vadd.f32 %v1517, %v1748
        %v1750 = vpop.f32.mrb[0].mxu0
        %v1751 = vadd.f32 %v1518, %v1750
        %v1752 = vpop.f32.mrb[0].mxu0
        %v1753 = vadd.f32 %v1519, %v1752
        %v1754 = vpop.f32.mrb[0].mxu0
        %v1755 = vadd.f32 %v1520, %v1754
        %1756 = vmatprep.mubr.bf16.mxu0 0
        %1757 = vmatmul.mubr.bf16.gmra.mrb[0].mxu0 %v1580
        %v1758 = vpop.f32.mrb[0].mxu0
        %v1759 = vadd.f32 %v1521, %v1758
        %v1760 = vpop.f32.mrb[0].mxu0
        %v1761 = vadd.f32 %v1522, %v1760
        %v1762 = vpop.f32.mrb[0].mxu0
        %v1763 = vadd.f32 %v1523, %v1762
        %v1764 = vpop.f32.mrb[0].mxu0
        %v1765 = vadd.f32 %v1524, %v1764
        %1766 = vmatprep.mubr.bf16.mxu0 0
        %1767 = vmatmul.mubr.bf16.gmra.mrb[0].mxu0 %v1583
        %v1768 = vpop.f32.mrb[0].mxu0
        %v1769 = vadd.f32 %v1525, %v1768
        %v1770 = vpop.f32.mrb[0].mxu0
        %v1771 = vadd.f32 %v1526, %v1770
        %v1772 = vpop.f32.mrb[0].mxu0
        %v1773 = vadd.f32 %v1527, %v1772
        %v1774 = vpop.f32.mrb[0].mxu0
        %v1775 = vadd.f32 %v1528, %v1774
        %1776 = vmatprep.mubr.bf16.mxu0 0
        %1777 = vmatmul.mubr.bf16.gmra.mrb[0].mxu0 %v1586
        %v1778 = vpop.f32.mrb[0].mxu0
        %v1779 = vadd.f32 %v1529, %v1778
        %v1780 = vpop.f32.mrb[0].mxu0
        %v1781 = vadd.f32 %v1530, %v1780
        %v1782 = vpop.f32.mrb[0].mxu0
        %v1783 = vadd.f32 %v1531, %v1782
        %v1784 = vpop.f32.mrb[0].mxu0
        %v1785 = vadd.f32 %v1532, %v1784
        %1786 = vmatprep.mubr.bf16.mxu0 0
        %1787 = vmatmul.mubr.bf16.gmra.mrb[0].mxu0 %v1589
        %v1788 = vpop.f32.mrb[0].mxu0
        %v1789 = vadd.f32 %v1533, %v1788
        %v1790 = vpop.f32.mrb[0].mxu0
        %v1791 = vadd.f32 %v1534, %v1790
        %v1792 = vpop.f32.mrb[0].mxu0
        %v1793 = vadd.f32 %v1535, %v1792
        %v1794 = vpop.f32.mrb[0].mxu0
        %v1795 = vadd.f32 %v1536, %v1794
        %1796 = vmatprep.mubr.bf16.mxu0 0
        %1797 = vmatmul.mubr.bf16.gmra.mrb[0].mxu0 %v1592
        %v1798 = vpop.f32.mrb[0].mxu0
        %v1799 = vadd.f32 %v1537, %v1798
        %v1800 = vpop.f32.mrb[0].mxu0
        %v1801 = vadd.f32 %v1538, %v1800
        %v1802 = vpop.f32.mrb[0].mxu0
        %v1803 = vadd.f32 %v1539, %v1802
        %v1804 = vpop.f32.mrb[0].mxu0
        %v1805 = vadd.f32 %v1540, %v1804
        %1806 = vmatprep.mubr.bf16.mxu0 0
        %1807 = vmatmul.mubr.bf16.gmra.mrb[0].mxu0 %v1595
        %v1808 = vpop.f32.mrb[0].mxu0
        %v1809 = vadd.f32 %v1541, %v1808
        %v1810 = vpop.f32.mrb[0].mxu0
        %v1811 = vadd.f32 %v1542, %v1810
        %v1812 = vpop.f32.mrb[0].mxu0
        %v1813 = vadd.f32 %v1543, %v1812
        %v1814 = vpop.f32.mrb[0].mxu0
        %v1815 = vadd.f32 %v1544, %v1814
        %1816 = vmatprep.mubr.bf16.mxu0 0
        %1817 = vmatmul.mubr.bf16.gmra.mrb[0].mxu0 %v1598
        %v1818 = vpop.f32.mrb[0].mxu0
        %v1819 = vadd.f32 %v1545, %v1818
        %v1820 = vpop.f32.mrb[0].mxu0
        %v1821 = vadd.f32 %v1546, %v1820
        %v1822 = vpop.f32.mrb[0].mxu0
        %v1823 = vadd.f32 %v1547, %v1822
        %v1824 = vpop.f32.mrb[0].mxu0
        %v1825 = vadd.f32 %v1548, %v1824
        %1826 = vmatprep.mubr.bf16.mxu0 0
        %1827 = vmatmul.mubr.bf16.gmra.mrb[0].mxu0 %v1601
        %v1828 = vpop.f32.mrb[0].mxu0
        %v1829 = vadd.f32 %v1549, %v1828
        %v1830 = vpop.f32.mrb[0].mxu0
        %v1831 = vadd.f32 %v1550, %v1830
        %v1832 = vpop.f32.mrb[0].mxu0
        %v1833 = vadd.f32 %v1551, %v1832
        %v1834 = vpop.f32.mrb[0].mxu0
        %v1835 = vadd.f32 %v1552, %v1834
        %1836 = vmatprep.mubr.bf16.mxu0 0
        %1837 = vmatmul.mubr.bf16.gmra.mrb[0].mxu0 %v1604
        %v1838 = vpop.f32.mrb[0].mxu0
        %v1839 = vadd.f32 %v1553, %v1838
        %v1840 = vpop.f32.mrb[0].mxu0
        %v1841 = vadd.f32 %v1554, %v1840
        %v1842 = vpop.f32.mrb[0].mxu0
        %v1843 = vadd.f32 %v1555, %v1842
        %v1844 = vpop.f32.mrb[0].mxu0
        %v1845 = vadd.f32 %v1556, %v1844
        %1846 = vdwg.mxu0
        %v1847 = vmax.f32 %v1689, %v1691
        %1848 = vmax.xlane.f32.xlu0 %v1847
        %v1849 = vpop.xlane.xlu0 %1848
        %v1850 = vmax.f32 %v1693, %v1695
        %1851 = vmax.xlane.f32.xlu0 %v1850
        %v1852 = vpop.xlane.xlu0 %1851
        %v1853 = vmax.f32 %v1699, %v1701
        %1854 = vmax.xlane.f32.xlu0 %v1853
        %v1855 = vpop.xlane.xlu0 %1854
        %v1856 = vmax.f32 %v1703, %v1705
        %1857 = vmax.xlane.f32.xlu0 %v1856
        %v1858 = vpop.xlane.xlu0 %1857
        %v1859 = vmax.f32 %v1709, %v1711
        %1860 = vmax.xlane.f32.xlu0 %v1859
        %v1861 = vpop.xlane.xlu0 %1860
        %v1862 = vmax.f32 %v1713, %v1715
        %1863 = vmax.xlane.f32.xlu0 %v1862
        %v1864 = vpop.xlane.xlu0 %1863
        %v1865 = vmax.f32 %v1719, %v1721
        %1866 = vmax.xlane.f32.xlu0 %v1865
        %v1867 = vpop.xlane.xlu0 %1866
        %v1868 = vmax.f32 %v1723, %v1725
        %1869 = vmax.xlane.f32.xlu0 %v1868
        %v1870 = vpop.xlane.xlu0 %1869
        %v1871 = vmax.f32 %v1729, %v1731
        %1872 = vmax.xlane.f32.xlu0 %v1871
        %v1873 = vpop.xlane.xlu0 %1872
        %v1874 = vmax.f32 %v1733, %v1735
        %1875 = vmax.xlane.f32.xlu0 %v1874
        %v1876 = vpop.xlane.xlu0 %1875
        %v1877 = vmax.f32 %v1739, %v1741
        %1878 = vmax.xlane.f32.xlu0 %v1877
        %v1879 = vpop.xlane.xlu0 %1878
        %v1880 = vmax.f32 %v1743, %v1745
        %1881 = vmax.xlane.f32.xlu0 %v1880
        %v1882 = vpop.xlane.xlu0 %1881
        %v1883 = vmax.f32 %v1749, %v1751
        %1884 = vmax.xlane.f32.xlu0 %v1883
        %v1885 = vpop.xlane.xlu0 %1884
        %v1886 = vmax.f32 %v1753, %v1755
        %1887 = vmax.xlane.f32.xlu0 %v1886
        %v1888 = vpop.xlane.xlu0 %1887
        %v1889 = vmax.f32 %v1759, %v1761
        %1890 = vmax.xlane.f32.xlu0 %v1889
        %v1891 = vpop.xlane.xlu0 %1890
        %v1892 = vmax.f32 %v1763, %v1765
        %1893 = vmax.xlane.f32.xlu0 %v1892
        %v1894 = vpop.xlane.xlu0 %1893
        %v1895 = vmax.f32 %v1769, %v1771
        %1896 = vmax.xlane.f32.xlu0 %v1895
        %v1897 = vpop.xlane.xlu0 %1896
        %v1898 = vmax.f32 %v1773, %v1775
        %1899 = vmax.xlane.f32.xlu0 %v1898
        %v1900 = vpop.xlane.xlu0 %1899
        %v1901 = vmax.f32 %v1779, %v1781
        %1902 = vmax.xlane.f32.xlu0 %v1901
        %v1903 = vpop.xlane.xlu0 %1902
        %v1904 = vmax.f32 %v1783, %v1785
        %1905 = vmax.xlane.f32.xlu0 %v1904
        %v1906 = vpop.xlane.xlu0 %1905
        %v1907 = vmax.f32 %v1789, %v1791
        %1908 = vmax.xlane.f32.xlu0 %v1907
        %v1909 = vpop.xlane.xlu0 %1908
        %v1910 = vmax.f32 %v1793, %v1795
        %1911 = vmax.xlane.f32.xlu0 %v1910
        %v1912 = vpop.xlane.xlu0 %1911
        %v1913 = vmax.f32 %v1799, %v1801
        %1914 = vmax.xlane.f32.xlu0 %v1913
        %v1915 = vpop.xlane.xlu0 %1914
        %v1916 = vmax.f32 %v1803, %v1805
        %1917 = vmax.xlane.f32.xlu0 %v1916
        %v1918 = vpop.xlane.xlu0 %1917
        %v1919 = vmax.f32 %v1809, %v1811
        %1920 = vmax.xlane.f32.xlu0 %v1919
        %v1921 = vpop.xlane.xlu0 %1920
        %v1922 = vmax.f32 %v1813, %v1815
        %1923 = vmax.xlane.f32.xlu0 %v1922
        %v1924 = vpop.xlane.xlu0 %1923
        %v1925 = vmax.f32 %v1819, %v1821
        %1926 = vmax.xlane.f32.xlu0 %v1925
        %v1927 = vpop.xlane.xlu0 %1926
        %v1928 = vmax.f32 %v1823, %v1825
        %1929 = vmax.xlane.f32.xlu0 %v1928
        %v1930 = vpop.xlane.xlu0 %1929
        %v1931 = vmax.f32 %v1829, %v1831
        %1932 = vmax.xlane.f32.xlu0 %v1931
        %v1933 = vpop.xlane.xlu0 %1932
        %v1934 = vmax.f32 %v1833, %v1835
        %1935 = vmax.xlane.f32.xlu0 %v1934
        %v1936 = vpop.xlane.xlu0 %1935
        %v1937 = vmax.f32 %v1839, %v1841
        %1938 = vmax.xlane.f32.xlu0 %v1937
        %v1939 = vpop.xlane.xlu0 %1938
        %v1940 = vmax.f32 %v1843, %v1845
        %1941 = vmax.xlane.f32.xlu0 %v1940
        %v1942 = vpop.xlane.xlu0 %1941
        %v1943 = vsub.f32 %v1689, %v1849
        %v1944 = vsub.f32 %v1691, %v1849
        %v1945 = vsub.f32 %v1693, %v1852
        %v1946 = vsub.f32 %v1695, %v1852
        %v1947 = vsub.f32 %v1699, %v1855
        %v1948 = vsub.f32 %v1701, %v1855
        %v1949 = vsub.f32 %v1703, %v1858
        %v1950 = vsub.f32 %v1705, %v1858
        %v1951 = vsub.f32 %v1709, %v1861
        %v1952 = vsub.f32 %v1711, %v1861
        %v1953 = vsub.f32 %v1713, %v1864
        %v1954 = vsub.f32 %v1715, %v1864
        %v1955 = vsub.f32 %v1719, %v1867
        %v1956 = vsub.f32 %v1721, %v1867
        %v1957 = vsub.f32 %v1723, %v1870
        %v1958 = vsub.f32 %v1725, %v1870
        %v1959 = vsub.f32 %v1729, %v1873
        %v1960 = vsub.f32 %v1731, %v1873
        %v1961 = vsub.f32 %v1733, %v1876
        %v1962 = vsub.f32 %v1735, %v1876
        %v1963 = vsub.f32 %v1739, %v1879
        %v1964 = vsub.f32 %v1741, %v1879
        %v1965 = vsub.f32 %v1743, %v1882
        %v1966 = vsub.f32 %v1745, %v1882
        %v1967 = vsub.f32 %v1749, %v1885
        %v1968 = vsub.f32 %v1751, %v1885
        %v1969 = vsub.f32 %v1753, %v1888
        %v1970 = vsub.f32 %v1755, %v1888
        %v1971 = vsub.f32 %v1759, %v1891
        %v1972 = vsub.f32 %v1761, %v1891
        %v1973 = vsub.f32 %v1763, %v1894
        %v1974 = vsub.f32 %v1765, %v1894
        %v1975 = vsub.f32 %v1769, %v1897
        %v1976 = vsub.f32 %v1771, %v1897
        %v1977 = vsub.f32 %v1773, %v1900
        %v1978 = vsub.f32 %v1775, %v1900
        %v1979 = vsub.f32 %v1779, %v1903
        %v1980 = vsub.f32 %v1781, %v1903
        %v1981 = vsub.f32 %v1783, %v1906
        %v1982 = vsub.f32 %v1785, %v1906
        %v1983 = vsub.f32 %v1789, %v1909
        %v1984 = vsub.f32 %v1791, %v1909
        %v1985 = vsub.f32 %v1793, %v1912
        %v1986 = vsub.f32 %v1795, %v1912
        %v1987 = vsub.f32 %v1799, %v1915
        %v1988 = vsub.f32 %v1801, %v1915
        %v1989 = vsub.f32 %v1803, %v1918
        %v1990 = vsub.f32 %v1805, %v1918
        %v1991 = vsub.f32 %v1809, %v1921
        %v1992 = vsub.f32 %v1811, %v1921
        %v1993 = vsub.f32 %v1813, %v1924
        %v1994 = vsub.f32 %v1815, %v1924
        %v1995 = vsub.f32 %v1819, %v1927
        %v1996 = vsub.f32 %v1821, %v1927
        %v1997 = vsub.f32 %v1823, %v1930
        %v1998 = vsub.f32 %v1825, %v1930
        %v1999 = vsub.f32 %v1829, %v1933
        %v2000 = vsub.f32 %v1831, %v1933
        %v2001 = vsub.f32 %v1833, %v1936
        %v2002 = vsub.f32 %v1835, %v1936
        %v2003 = vsub.f32 %v1839, %v1939
        %v2004 = vsub.f32 %v1841, %v1939
        %v2005 = vsub.f32 %v1843, %v1942
        %v2006 = vsub.f32 %v1845, %v1942
        %v2007 = vmul.f32 %v1943, 1.442695
        %v2008 = vpow.pop %v2007
        %v2009 = vmul.f32 %v1944, 1.442695
        %v2010 = vpow.pop %v2009
        %v2011 = vmul.f32 %v1945, 1.442695
        %v2012 = vpow.pop %v2011
        %v2013 = vmul.f32 %v1946, 1.442695
        %v2014 = vpow.pop %v2013
        %v2015 = vmul.f32 %v1947, 1.442695
        %v2016 = vpow.pop %v2015
        %v2017 = vmul.f32 %v1948, 1.442695
        %v2018 = vpow.pop %v2017
        %v2019 = vmul.f32 %v1949, 1.442695
        %v2020 = vpow.pop %v2019
        %v2021 = vmul.f32 %v1950, 1.442695
        %v2022 = vpow.pop %v2021
        %v2023 = vmul.f32 %v1951, 1.442695
        %v2024 = vpow.pop %v2023
        %v2025 = vmul.f32 %v1952, 1.442695
        %v2026 = vpow.pop %v2025
        %v2027 = vmul.f32 %v1953, 1.442695
        %v2028 = vpow.pop %v2027
        %v2029 = vmul.f32 %v1954, 1.442695
        %v2030 = vpow.pop %v2029
        %v2031 = vmul.f32 %v1955, 1.442695
        %v2032 = vpow.pop %v2031
        %v2033 = vmul.f32 %v1956, 1.442695
        %v2034 = vpow.pop %v2033
        %v2035 = vmul.f32 %v1957, 1.442695
        %v2036 = vpow.pop %v2035
        %v2037 = vmul.f32 %v1958, 1.442695
        %v2038 = vpow.pop %v2037
        %v2039 = vmul.f32 %v1959, 1.442695
        %v2040 = vpow.pop %v2039
        %v2041 = vmul.f32 %v1960, 1.442695
        %v2042 = vpow.pop %v2041
        %v2043 = vmul.f32 %v1961, 1.442695
        %v2044 = vpow.pop %v2043
        %v2045 = vmul.f32 %v1962, 1.442695
        %v2046 = vpow.pop %v2045
        %v2047 = vmul.f32 %v1963, 1.442695
        %v2048 = vpow.pop %v2047
        %v2049 = vmul.f32 %v1964, 1.442695
        %v2050 = vpow.pop %v2049
        %v2051 = vmul.f32 %v1965, 1.442695
        %v2052 = vpow.pop %v2051
        %v2053 = vmul.f32 %v1966, 1.442695
        %v2054 = vpow.pop %v2053
        %v2055 = vmul.f32 %v1967, 1.442695
        %v2056 = vpow.pop %v2055
        %v2057 = vmul.f32 %v1968, 1.442695
        %v2058 = vpow.pop %v2057
        %v2059 = vmul.f32 %v1969, 1.442695
        %v2060 = vpow.pop %v2059
        %v2061 = vmul.f32 %v1970, 1.442695
        %v2062 = vpow.pop %v2061
        %v2063 = vmul.f32 %v1971, 1.442695
        %v2064 = vpow.pop %v2063
        %v2065 = vmul.f32 %v1972, 1.442695
        %v2066 = vpow.pop %v2065
        %v2067 = vmul.f32 %v1973, 1.442695
        %v2068 = vpow.pop %v2067
        %v2069 = vmul.f32 %v1974, 1.442695
        %v2070 = vpow.pop %v2069
        %v2071 = vmul.f32 %v1975, 1.442695
        %v2072 = vpow.pop %v2071
        %v2073 = vmul.f32 %v1976, 1.442695
        %v2074 = vpow.pop %v2073
        %v2075 = vmul.f32 %v1977, 1.442695
        %v2076 = vpow.pop %v2075
        %v2077 = vmul.f32 %v1978, 1.442695
        %v2078 = vpow.pop %v2077
        %v2079 = vmul.f32 %v1979, 1.442695
        %v2080 = vpow.pop %v2079
        %v2081 = vmul.f32 %v1980, 1.442695
        %v2082 = vpow.pop %v2081
        %v2083 = vmul.f32 %v1981, 1.442695
        %v2084 = vpow.pop %v2083
        %v2085 = vmul.f32 %v1982, 1.442695
        %v2086 = vpow.pop %v2085
        %v2087 = vmul.f32 %v1983, 1.442695
        %v2088 = vpow.pop %v2087
        %v2089 = vmul.f32 %v1984, 1.442695
        %v2090 = vpow.pop %v2089
        %v2091 = vmul.f32 %v1985, 1.442695
        %v2092 = vpow.pop %v2091
        %v2093 = vmul.f32 %v1986, 1.442695
        %v2094 = vpow.pop %v2093
        %v2095 = vmul.f32 %v1987, 1.442695
        %v2096 = vpow.pop %v2095
        %v2097 = vmul.f32 %v1988, 1.442695
        %v2098 = vpow.pop %v2097
        %v2099 = vmul.f32 %v1989, 1.442695
        %v2100 = vpow.pop %v2099
        %v2101 = vmul.f32 %v1990, 1.442695
        %v2102 = vpow.pop %v2101
        %v2103 = vmul.f32 %v1991, 1.442695
        %v2104 = vpow.pop %v2103
        %v2105 = vmul.f32 %v1992, 1.442695
        %v2106 = vpow.pop %v2105
        %v2107 = vmul.f32 %v1993, 1.442695
        %v2108 = vpow.pop %v2107
        %v2109 = vmul.f32 %v1994, 1.442695
        %v2110 = vpow.pop %v2109
        %v2111 = vmul.f32 %v1995, 1.442695
        %v2112 = vpow.pop %v2111
        %v2113 = vmul.f32 %v1996, 1.442695
        %v2114 = vpow.pop %v2113
        %v2115 = vmul.f32 %v1997, 1.442695
        %v2116 = vpow.pop %v2115
        %v2117 = vmul.f32 %v1998, 1.442695
        %v2118 = vpow.pop %v2117
        %v2119 = vmul.f32 %v1999, 1.442695
        %v2120 = vpow.pop %v2119
        %v2121 = vmul.f32 %v2000, 1.442695
        %v2122 = vpow.pop %v2121
        %v2123 = vmul.f32 %v2001, 1.442695
        %v2124 = vpow.pop %v2123
        %v2125 = vmul.f32 %v2002, 1.442695
        %v2126 = vpow.pop %v2125
        %v2127 = vmul.f32 %v2003, 1.442695
        %v2128 = vpow.pop %v2127
        %v2129 = vmul.f32 %v2004, 1.442695
        %v2130 = vpow.pop %v2129
        %v2131 = vmul.f32 %v2005, 1.442695
        %v2132 = vpow.pop %v2131
        %v2133 = vmul.f32 %v2006, 1.442695
        %v2134 = vpow.pop %v2133
        %v2135 = vadd.f32 %v2008, %v2010
        %2136 = vadd.xlane.f32.xlu0 %v2135
        %v2137 = vpop.xlane.xlu0 %2136
        %v2138 = vadd.f32 %v2012, %v2014
        %2139 = vadd.xlane.f32.xlu0 %v2138
        %v2140 = vpop.xlane.xlu0 %2139
        %v2141 = vadd.f32 %v2016, %v2018
        %2142 = vadd.xlane.f32.xlu0 %v2141
        %v2143 = vpop.xlane.xlu0 %2142
        %v2144 = vadd.f32 %v2020, %v2022
        %2145 = vadd.xlane.f32.xlu0 %v2144
        %v2146 = vpop.xlane.xlu0 %2145
        %v2147 = vadd.f32 %v2024, %v2026
        %2148 = vadd.xlane.f32.xlu0 %v2147
        %v2149 = vpop.xlane.xlu0 %2148
        %v2150 = vadd.f32 %v2028, %v2030
        %2151 = vadd.xlane.f32.xlu0 %v2150
        %v2152 = vpop.xlane.xlu0 %2151
        %v2153 = vadd.f32 %v2032, %v2034
        %2154 = vadd.xlane.f32.xlu0 %v2153
        %v2155 = vpop.xlane.xlu0 %2154
        %v2156 = vadd.f32 %v2036, %v2038
        %2157 = vadd.xlane.f32.xlu0 %v2156
        %v2158 = vpop.xlane.xlu0 %2157
        %v2159 = vadd.f32 %v2040, %v2042
        %2160 = vadd.xlane.f32.xlu0 %v2159
        %v2161 = vpop.xlane.xlu0 %2160
        %v2162 = vadd.f32 %v2044, %v2046
        %2163 = vadd.xlane.f32.xlu0 %v2162
        %v2164 = vpop.xlane.xlu0 %2163
        %v2165 = vadd.f32 %v2048, %v2050
        %2166 = vadd.xlane.f32.xlu0 %v2165
        %v2167 = vpop.xlane.xlu0 %2166
        %v2168 = vadd.f32 %v2052, %v2054
        %2169 = vadd.xlane.f32.xlu0 %v2168
        %v2170 = vpop.xlane.xlu0 %2169
        %v2171 = vadd.f32 %v2056, %v2058
        %2172 = vadd.xlane.f32.xlu0 %v2171
        %v2173 = vpop.xlane.xlu0 %2172
        %v2174 = vadd.f32 %v2060, %v2062
        %2175 = vadd.xlane.f32.xlu0 %v2174
        %v2176 = vpop.xlane.xlu0 %2175
        %v2177 = vadd.f32 %v2064, %v2066
        %2178 = vadd.xlane.f32.xlu0 %v2177
        %v2179 = vpop.xlane.xlu0 %2178
        %v2180 = vadd.f32 %v2068, %v2070
        %2181 = vadd.xlane.f32.xlu0 %v2180
        %v2182 = vpop.xlane.xlu0 %2181
        %v2183 = vadd.f32 %v2072, %v2074
        %2184 = vadd.xlane.f32.xlu0 %v2183
        %v2185 = vpop.xlane.xlu0 %2184
        %v2186 = vadd.f32 %v2076, %v2078
        %2187 = vadd.xlane.f32.xlu0 %v2186
        %v2188 = vpop.xlane.xlu0 %2187
        %v2189 = vadd.f32 %v2080, %v2082
        %2190 = vadd.xlane.f32.xlu0 %v2189
        %v2191 = vpop.xlane.xlu0 %2190
        %v2192 = vadd.f32 %v2084, %v2086
        %2193 = vadd.xlane.f32.xlu0 %v2192
        %v2194 = vpop.xlane.xlu0 %2193
        %v2195 = vadd.f32 %v2088, %v2090
        %2196 = vadd.xlane.f32.xlu0 %v2195
        %v2197 = vpop.xlane.xlu0 %2196
        %v2198 = vadd.f32 %v2092, %v2094
        %2199 = vadd.xlane.f32.xlu0 %v2198
        %v2200 = vpop.xlane.xlu0 %2199
        %v2201 = vadd.f32 %v2096, %v2098
        %2202 = vadd.xlane.f32.xlu0 %v2201
        %v2203 = vpop.xlane.xlu0 %2202
        %v2204 = vadd.f32 %v2100, %v2102
        %2205 = vadd.xlane.f32.xlu0 %v2204
        %v2206 = vpop.xlane.xlu0 %2205
        %v2207 = vadd.f32 %v2104, %v2106
        %2208 = vadd.xlane.f32.xlu0 %v2207
        %v2209 = vpop.xlane.xlu0 %2208
        %v2210 = vadd.f32 %v2108, %v2110
        %2211 = vadd.xlane.f32.xlu0 %v2210
        %v2212 = vpop.xlane.xlu0 %2211
        %v2213 = vadd.f32 %v2112, %v2114
        %2214 = vadd.xlane.f32.xlu0 %v2213
        %v2215 = vpop.xlane.xlu0 %2214
        %v2216 = vadd.f32 %v2116, %v2118
        %2217 = vadd.xlane.f32.xlu0 %v2216
        %v2218 = vpop.xlane.xlu0 %2217
        %v2219 = vadd.f32 %v2120, %v2122
        %2220 = vadd.xlane.f32.xlu0 %v2219
        %v2221 = vpop.xlane.xlu0 %2220
        %v2222 = vadd.f32 %v2124, %v2126
        %2223 = vadd.xlane.f32.xlu0 %v2222
        %v2224 = vpop.xlane.xlu0 %2223
        %v2225 = vadd.f32 %v2128, %v2130
        %2226 = vadd.xlane.f32.xlu0 %v2225
        %v2227 = vpop.xlane.xlu0 %2226
        %v2228 = vadd.f32 %v2132, %v2134
        %2229 = vadd.xlane.f32.xlu0 %v2228
        %v2230 = vpop.xlane.xlu0 %2229
        %v2231 = vrcp.pop %v2137
        %v2232 = vrcp.pop %v2140
        %v2233 = vrcp.pop %v2143
        %v2234 = vrcp.pop %v2146
        %v2235 = vrcp.pop %v2149
        %v2236 = vrcp.pop %v2152
        %v2237 = vrcp.pop %v2155
        %v2238 = vrcp.pop %v2158
        %v2239 = vrcp.pop %v2161
        %v2240 = vrcp.pop %v2164
        %v2241 = vrcp.pop %v2167
        %v2242 = vrcp.pop %v2170
        %v2243 = vrcp.pop %v2173
        %v2244 = vrcp.pop %v2176
        %v2245 = vrcp.pop %v2179
        %v2246 = vrcp.pop %v2182
        %v2247 = vrcp.pop %v2185
        %v2248 = vrcp.pop %v2188
        %v2249 = vrcp.pop %v2191
        %v2250 = vrcp.pop %v2194
        %v2251 = vrcp.pop %v2197
        %v2252 = vrcp.pop %v2200
        %v2253 = vrcp.pop %v2203
        %v2254 = vrcp.pop %v2206
        %v2255 = vrcp.pop %v2209
        %v2256 = vrcp.pop %v2212
        %v2257 = vrcp.pop %v2215
        %v2258 = vrcp.pop %v2218
        %v2259 = vrcp.pop %v2221
        %v2260 = vrcp.pop %v2224
        %v2261 = vrcp.pop %v2227
        %v2262 = vrcp.pop %v2230
        %v2263 = vmul.f32 %v2008, %v2231
        %v2264 = vmul.f32 %v2010, %v2231
        %v2265 = vmul.f32 %v2012, %v2232
        %v2266 = vmul.f32 %v2014, %v2232
        %v2267 = vmul.f32 %v2016, %v2233
        %v2268 = vmul.f32 %v2018, %v2233
        %v2269 = vmul.f32 %v2020, %v2234
        %v2270 = vmul.f32 %v2022, %v2234
        %v2271 = vmul.f32 %v2024, %v2235
        %v2272 = vmul.f32 %v2026, %v2235
        %v2273 = vmul.f32 %v2028, %v2236
        %v2274 = vmul.f32 %v2030, %v2236
        %v2275 = vmul.f32 %v2032, %v2237
        %v2276 = vmul.f32 %v2034, %v2237
        %v2277 = vmul.f32 %v2036, %v2238
        %v2278 = vmul.f32 %v2038, %v2238
        %v2279 = vmul.f32 %v2040, %v2239
        %v2280 = vmul.f32 %v2042, %v2239
        %v2281 = vmul.f32 %v2044, %v2240
        %v2282 = vmul.f32 %v2046, %v2240
        %v2283 = vmul.f32 %v2048, %v2241
        %v2284 = vmul.f32 %v2050, %v2241
        %v2285 = vmul.f32 %v2052, %v2242
        %v2286 = vmul.f32 %v2054, %v2242
        %v2287 = vmul.f32 %v2056, %v2243
        %v2288 = vmul.f32 %v2058, %v2243
        %v2289 = vmul.f32 %v2060, %v2244
        %v2290 = vmul.f32 %v2062, %v2244
        %v2291 = vmul.f32 %v2064, %v2245
        %v2292 = vmul.f32 %v2066, %v2245
        %v2293 = vmul.f32 %v2068, %v2246
        %v2294 = vmul.f32 %v2070, %v2246
        %v2295 = vmul.f32 %v2072, %v2247
        %v2296 = vmul.f32 %v2074, %v2247
        %v2297 = vmul.f32 %v2076, %v2248
        %v2298 = vmul.f32 %v2078, %v2248
        %v2299 = vmul.f32 %v2080, %v2249
        %v2300 = vmul.f32 %v2082, %v2249
        %v2301 = vmul.f32 %v2084, %v2250
        %v2302 = vmul.f32 %v2086, %v2250
        %v2303 = vmul.f32 %v2088, %v2251
        %v2304 = vmul.f32 %v2090, %v2251
        %v2305 = vmul.f32 %v2092, %v2252
        %v2306 = vmul.f32 %v2094, %v2252
        %v2307 = vmul.f32 %v2096, %v2253
        %v2308 = vmul.f32 %v2098, %v2253
        %v2309 = vmul.f32 %v2100, %v2254
        %v2310 = vmul.f32 %v2102, %v2254
        %v2311 = vmul.f32 %v2104, %v2255
        %v2312 = vmul.f32 %v2106, %v2255
        %v2313 = vmul.f32 %v2108, %v2256
        %v2314 = vmul.f32 %v2110, %v2256
        %v2315 = vmul.f32 %v2112, %v2257
        %v2316 = vmul.f32 %v2114, %v2257
        %v2317 = vmul.f32 %v2116, %v2258
        %v2318 = vmul.f32 %v2118, %v2258
        %v2319 = vmul.f32 %v2120, %v2259
        %v2320 = vmul.f32 %v2122, %v2259
        %v2321 = vmul.f32 %v2124, %v2260
        %v2322 = vmul.f32 %v2126, %v2260
        %v2323 = vmul.f32 %v2128, %v2261
        %v2324 = vmul.f32 %v2130, %v2261
        %v2325 = vmul.f32 %v2132, %v2262
        %v2326 = vmul.f32 %v2134, %v2262
        %v2327 = vpack.c.bf16 %v2265, %v2263
        %v2328 = vpack.c.bf16 %v2266, %v2264
        %v2329 = vpack.c.bf16 %v2269, %v2267
        %v2330 = vpack.c.bf16 %v2270, %v2268
        %v2331 = vpack.c.bf16 %v2273, %v2271
        %v2332 = vpack.c.bf16 %v2274, %v2272
        %v2333 = vpack.c.bf16 %v2277, %v2275
        %v2334 = vpack.c.bf16 %v2278, %v2276
        %v2335 = vpack.c.bf16 %v2281, %v2279
        %v2336 = vpack.c.bf16 %v2282, %v2280
        %v2337 = vpack.c.bf16 %v2285, %v2283
        %v2338 = vpack.c.bf16 %v2286, %v2284
        %v2339 = vpack.c.bf16 %v2289, %v2287
        %v2340 = vpack.c.bf16 %v2290, %v2288
        %v2341 = vpack.c.bf16 %v2293, %v2291
        %v2342 = vpack.c.bf16 %v2294, %v2292
        %v2343 = vpack.c.bf16 %v2297, %v2295
        %v2344 = vpack.c.bf16 %v2298, %v2296
        %v2345 = vpack.c.bf16 %v2301, %v2299
        %v2346 = vpack.c.bf16 %v2302, %v2300
        %v2347 = vpack.c.bf16 %v2305, %v2303
        %v2348 = vpack.c.bf16 %v2306, %v2304
        %v2349 = vpack.c.bf16 %v2309, %v2307
        %v2350 = vpack.c.bf16 %v2310, %v2308
        %v2351 = vpack.c.bf16 %v2313, %v2311
        %v2352 = vpack.c.bf16 %v2314, %v2312
        %v2353 = vpack.c.bf16 %v2317, %v2315
        %v2354 = vpack.c.bf16 %v2318, %v2316
        %v2355 = vpack.c.bf16 %v2321, %v2319
        %v2356 = vpack.c.bf16 %v2322, %v2320
        %v2357 = vpack.c.bf16 %v2325, %v2323
        %v2358 = vpack.c.bf16 %v2326, %v2324
        %2359 = vmatprep.subr.bf16.mxu0 0
        %2360 = vmatpush1.bf16.msra.mxu0 %v1430
        %2361 = vmatprep.subr.bf16.mxu0 0
        %2362 = vmatpush1.bf16.msra.mxu0 %v1432
        %2363 = vmatprep.subr.bf16.mxu0 0
        %2364 = vmatpush1.bf16.msra.mxu0 %v1434
        %2365 = vmatprep.subr.bf16.mxu0 0
        %2366 = vmatpush1.bf16.msra.mxu0 %v1436
        %2367 = vmatprep.subr.bf16.mxu0 0
        %2368 = vmatpush1.bf16.msra.mxu0 %v1438
        %2369 = vmatprep.subr.bf16.mxu0 0
        %2370 = vmatpush1.bf16.msra.mxu0 %v1440
        %2371 = vmatprep.subr.bf16.mxu0 0
        %2372 = vmatpush1.bf16.msra.mxu0 %v1442
        %2373 = vmatprep.subr.bf16.mxu0 0
        %2374 = vmatpush1.bf16.msra.mxu0 %v1444
        %2375 = vmatprep.subr.bf16.mxu0 0
        %2376 = vmatpush1.bf16.msra.mxu0 %v1446
        %2377 = vmatprep.subr.bf16.mxu0 0
        %2378 = vmatpush1.bf16.msra.mxu0 %v1448
        %2379 = vmatprep.subr.bf16.mxu0 0
        %2380 = vmatpush1.bf16.msra.mxu0 %v1450
        %2381 = vmatprep.subr.bf16.mxu0 0
        %2382 = vmatpush1.bf16.msra.mxu0 %v1452
        %2383 = vmatprep.subr.bf16.mxu0 0
        %2384 = vmatpush1.bf16.msra.mxu0 %v1454
        %2385 = vmatprep.subr.bf16.mxu0 0
        %2386 = vmatpush1.bf16.msra.mxu0 %v1456
        %2387 = vmatprep.subr.bf16.mxu0 0
        %2388 = vmatpush1.bf16.msra.mxu0 %v1458
        %2389 = vmatprep.subr.bf16.mxu0 0
        %2390 = vmatpush1.bf16.msra.mxu0 %v1460
        %2391 = vmatprep.mubr.bf16.mxu0 %v2328
        %2392 = vmatmul.mubr.bf16.gmra.mrb[0].mxu0 %v2327
        %v2393 = vpop.f32.mrb[0].mxu0
        %v2394 = vadd.f32 0.0, %v2393
        %v2395 = vpop.f32.mrb[0].mxu0
        %v2396 = vpop.f32.mrb[0].mxu0
        %v2397 = vadd.f32 0.0, %v2396
        %v2398 = vpop.f32.mrb[0].mxu0
        %2399 = vmatprep.mubr.bf16.mxu0 %v2330
        %2400 = vmatmul.mubr.bf16.gmra.mrb[0].mxu0 %v2329
        %v2401 = vpop.f32.mrb[0].mxu0
        %v2402 = vadd.f32 0.0, %v2401
        %v2403 = vpop.f32.mrb[0].mxu0
        %v2404 = vpop.f32.mrb[0].mxu0
        %v2405 = vadd.f32 0.0, %v2404
        %v2406 = vpop.f32.mrb[0].mxu0
        %2407 = vmatprep.mubr.bf16.mxu0 %v2332
        %2408 = vmatmul.mubr.bf16.gmra.mrb[0].mxu0 %v2331
        %v2409 = vpop.f32.mrb[0].mxu0
        %v2410 = vadd.f32 0.0, %v2409
        %v2411 = vpop.f32.mrb[0].mxu0
        %v2412 = vpop.f32.mrb[0].mxu0
        %v2413 = vadd.f32 0.0, %v2412
        %v2414 = vpop.f32.mrb[0].mxu0
        %2415 = vmatprep.mubr.bf16.mxu0 %v2334
        %2416 = vmatmul.mubr.bf16.gmra.mrb[0].mxu0 %v2333
        %v2417 = vpop.f32.mrb[0].mxu0
        %v2418 = vadd.f32 0.0, %v2417
        %v2419 = vpop.f32.mrb[0].mxu0
        %v2420 = vpop.f32.mrb[0].mxu0
        %v2421 = vadd.f32 0.0, %v2420
        %v2422 = vpop.f32.mrb[0].mxu0
        %2423 = vmatprep.mubr.bf16.mxu0 %v2336
        %2424 = vmatmul.mubr.bf16.gmra.mrb[0].mxu0 %v2335
        %v2425 = vpop.f32.mrb[0].mxu0
        %v2426 = vadd.f32 0.0, %v2425
        %v2427 = vpop.f32.mrb[0].mxu0
        %v2428 = vpop.f32.mrb[0].mxu0
        %v2429 = vadd.f32 0.0, %v2428
        %v2430 = vpop.f32.mrb[0].mxu0
        %2431 = vmatprep.mubr.bf16.mxu0 %v2338
        %2432 = vmatmul.mubr.bf16.gmra.mrb[0].mxu0 %v2337
        %v2433 = vpop.f32.mrb[0].mxu0
        %v2434 = vadd.f32 0.0, %v2433
        %v2435 = vpop.f32.mrb[0].mxu0
        %v2436 = vpop.f32.mrb[0].mxu0
        %v2437 = vadd.f32 0.0, %v2436
        %v2438 = vpop.f32.mrb[0].mxu0
        %2439 = vmatprep.mubr.bf16.mxu0 %v2340
        %2440 = vmatmul.mubr.bf16.gmra.mrb[0].mxu0 %v2339
        %v2441 = vpop.f32.mrb[0].mxu0
        %v2442 = vadd.f32 0.0, %v2441
        %v2443 = vpop.f32.mrb[0].mxu0
        %v2444 = vpop.f32.mrb[0].mxu0
        %v2445 = vadd.f32 0.0, %v2444
        %v2446 = vpop.f32.mrb[0].mxu0
        %2447 = vmatprep.mubr.bf16.mxu0 %v2342
        %2448 = vmatmul.mubr.bf16.gmra.mrb[0].mxu0 %v2341
        %v2449 = vpop.f32.mrb[0].mxu0
        %v2450 = vadd.f32 0.0, %v2449
        %v2451 = vpop.f32.mrb[0].mxu0
        %v2452 = vpop.f32.mrb[0].mxu0
        %v2453 = vadd.f32 0.0, %v2452
        %v2454 = vpop.f32.mrb[0].mxu0
        %2455 = vmatprep.mubr.bf16.mxu0 %v2344
        %2456 = vmatmul.mubr.bf16.gmra.mrb[0].mxu0 %v2343
        %v2457 = vpop.f32.mrb[0].mxu0
        %v2458 = vadd.f32 0.0, %v2457
        %v2459 = vpop.f32.mrb[0].mxu0
        %v2460 = vpop.f32.mrb[0].mxu0
        %v2461 = vadd.f32 0.0, %v2460
        %v2462 = vpop.f32.mrb[0].mxu0
        %2463 = vmatprep.mubr.bf16.mxu0 %v2346
        %2464 = vmatmul.mubr.bf16.gmra.mrb[0].mxu0 %v2345
        %v2465 = vpop.f32.mrb[0].mxu0
        %v2466 = vadd.f32 0.0, %v2465
        %v2467 = vpop.f32.mrb[0].mxu0
        %v2468 = vpop.f32.mrb[0].mxu0
        %v2469 = vadd.f32 0.0, %v2468
        %v2470 = vpop.f32.mrb[0].mxu0
        %2471 = vmatprep.mubr.bf16.mxu0 %v2348
        %2472 = vmatmul.mubr.bf16.gmra.mrb[0].mxu0 %v2347
        %v2473 = vpop.f32.mrb[0].mxu0
        %v2474 = vadd.f32 0.0, %v2473
        %v2475 = vpop.f32.mrb[0].mxu0
        %v2476 = vpop.f32.mrb[0].mxu0
        %v2477 = vadd.f32 0.0, %v2476
        %v2478 = vpop.f32.mrb[0].mxu0
        %2479 = vmatprep.mubr.bf16.mxu0 %v2350
        %2480 = vmatmul.mubr.bf16.gmra.mrb[0].mxu0 %v2349
        %v2481 = vpop.f32.mrb[0].mxu0
        %v2482 = vadd.f32 0.0, %v2481
        %v2483 = vpop.f32.mrb[0].mxu0
        %v2484 = vpop.f32.mrb[0].mxu0
        %v2485 = vadd.f32 0.0, %v2484
        %v2486 = vpop.f32.mrb[0].mxu0
        %2487 = vmatprep.mubr.bf16.mxu0 %v2352
        %2488 = vmatmul.mubr.bf16.gmra.mrb[0].mxu0 %v2351
        %v2489 = vpop.f32.mrb[0].mxu0
        %v2490 = vadd.f32 0.0, %v2489
        %v2491 = vpop.f32.mrb[0].mxu0
        %v2492 = vpop.f32.mrb[0].mxu0
        %v2493 = vadd.f32 0.0, %v2492
        %v2494 = vpop.f32.mrb[0].mxu0
        %2495 = vmatprep.mubr.bf16.mxu0 %v2354
        %2496 = vmatmul.mubr.bf16.gmra.mrb[0].mxu0 %v2353
        %v2497 = vpop.f32.mrb[0].mxu0
        %v2498 = vadd.f32 0.0, %v2497
        %v2499 = vpop.f32.mrb[0].mxu0
        %v2500 = vpop.f32.mrb[0].mxu0
        %v2501 = vadd.f32 0.0, %v2500
        %v2502 = vpop.f32.mrb[0].mxu0
        %2503 = vmatprep.mubr.bf16.mxu0 %v2356
        %2504 = vmatmul.mubr.bf16.gmra.mrb[0].mxu0 %v2355
        %v2505 = vpop.f32.mrb[0].mxu0
        %v2506 = vadd.f32 0.0, %v2505
        %v2507 = vpop.f32.mrb[0].mxu0
        %v2508 = vpop.f32.mrb[0].mxu0
        %v2509 = vadd.f32 0.0, %v2508
        %v2510 = vpop.f32.mrb[0].mxu0
        %2511 = vmatprep.mubr.bf16.mxu0 %v2358
        %2512 = vmatmul.mubr.bf16.gmra.mrb[0].mxu0 %v2357
        %v2513 = vpop.f32.mrb[0].mxu0
        %v2514 = vadd.f32 0.0, %v2513
        %v2515 = vpop.f32.mrb[0].mxu0
        %v2516 = vpop.f32.mrb[0].mxu0
        %v2517 = vadd.f32 0.0, %v2516
        %v2518 = vpop.f32.mrb[0].mxu0
        %2519 = vdwg.mxu0
        %s2520 = scalar_lea.vmem [#allocation12], 256
        %v2521 = vld [vmem:[%s2520] sm:$0xff]
        %v2522 = vld [vmem:[%s2520 + $0x8] sm:$0xff]
        %v2523 = vld [vmem:[%s2520 + $0x10] sm:$0xff]
        %v2524 = vld [vmem:[%s2520 + $0x18] sm:$0xff]
        %v2525 = vld [vmem:[%s2520 + $0x20] sm:$0xff]
        %v2526 = vld [vmem:[%s2520 + $0x28] sm:$0xff]
        %v2527 = vld [vmem:[%s2520 + $0x30] sm:$0xff]
        %v2528 = vld [vmem:[%s2520 + $0x38] sm:$0xff]
        %v2529 = vld [vmem:[%s2520 + $0x40] sm:$0xff]
        %v2530 = vld [vmem:[%s2520 + $0x48] sm:$0xff]
        %v2531 = vld [vmem:[%s2520 + $0x50] sm:$0xff]
        %v2532 = vld [vmem:[%s2520 + $0x58] sm:$0xff]
        %v2533 = vld [vmem:[%s2520 + $0x60] sm:$0xff]
        %v2534 = vld [vmem:[%s2520 + $0x68] sm:$0xff]
        %v2535 = vld [vmem:[%s2520 + $0x70] sm:$0xff]
        %v2536 = vld [vmem:[%s2520 + $0x78] sm:$0xff]
        %v2537 = vld [vmem:[%s2520 + $0x80] sm:$0xff]
        %v2538 = vld [vmem:[%s2520 + $0x88] sm:$0xff]
        %v2539 = vld [vmem:[%s2520 + $0x90] sm:$0xff]
        %v2540 = vld [vmem:[%s2520 + $0x98] sm:$0xff]
        %v2541 = vld [vmem:[%s2520 + $0xa0] sm:$0xff]
        %v2542 = vld [vmem:[%s2520 + $0xa8] sm:$0xff]
        %v2543 = vld [vmem:[%s2520 + $0xb0] sm:$0xff]
        %v2544 = vld [vmem:[%s2520 + $0xb8] sm:$0xff]
        %v2545 = vld [vmem:[%s2520 + $0xc0] sm:$0xff]
        %v2546 = vld [vmem:[%s2520 + $0xc8] sm:$0xff]
        %v2547 = vld [vmem:[%s2520 + $0xd0] sm:$0xff]
        %v2548 = vld [vmem:[%s2520 + $0xd8] sm:$0xff]
        %v2549 = vld [vmem:[%s2520 + $0xe0] sm:$0xff]
        %v2550 = vld [vmem:[%s2520 + $0xe8] sm:$0xff]
        %v2551 = vld [vmem:[%s2520 + $0xf0] sm:$0xff]
        %v2552 = vld [vmem:[%s2520 + $0xf8] sm:$0xff]
        %v2553 = vunpack.c.l.bf16 %v2521
        %v2554 = vunpack.c.h.bf16 %v2521
        %v2555 = vunpack.c.l.bf16 %v2522
        %v2556 = vunpack.c.h.bf16 %v2522
        %v2557 = vunpack.c.l.bf16 %v2523
        %v2558 = vunpack.c.h.bf16 %v2523
        %v2559 = vunpack.c.l.bf16 %v2524
        %v2560 = vunpack.c.h.bf16 %v2524
        %v2561 = vunpack.c.l.bf16 %v2525
        %v2562 = vunpack.c.h.bf16 %v2525
        %v2563 = vunpack.c.l.bf16 %v2526
        %v2564 = vunpack.c.h.bf16 %v2526
        %v2565 = vunpack.c.l.bf16 %v2527
        %v2566 = vunpack.c.h.bf16 %v2527
        %v2567 = vunpack.c.l.bf16 %v2528
        %v2568 = vunpack.c.h.bf16 %v2528
        %v2569 = vunpack.c.l.bf16 %v2529
        %v2570 = vunpack.c.h.bf16 %v2529
        %v2571 = vunpack.c.l.bf16 %v2530
        %v2572 = vunpack.c.h.bf16 %v2530
        %v2573 = vunpack.c.l.bf16 %v2531
        %v2574 = vunpack.c.h.bf16 %v2531
        %v2575 = vunpack.c.l.bf16 %v2532
        %v2576 = vunpack.c.h.bf16 %v2532
        %v2577 = vunpack.c.l.bf16 %v2533
        %v2578 = vunpack.c.h.bf16 %v2533
        %v2579 = vunpack.c.l.bf16 %v2534
        %v2580 = vunpack.c.h.bf16 %v2534
        %v2581 = vunpack.c.l.bf16 %v2535
        %v2582 = vunpack.c.h.bf16 %v2535
        %v2583 = vunpack.c.l.bf16 %v2536
        %v2584 = vunpack.c.h.bf16 %v2536
        %v2585 = vunpack.c.l.bf16 %v2537
        %v2586 = vunpack.c.h.bf16 %v2537
        %v2587 = vunpack.c.l.bf16 %v2538
        %v2588 = vunpack.c.h.bf16 %v2538
        %v2589 = vunpack.c.l.bf16 %v2539
        %v2590 = vunpack.c.h.bf16 %v2539
        %v2591 = vunpack.c.l.bf16 %v2540
        %v2592 = vunpack.c.h.bf16 %v2540
        %v2593 = vunpack.c.l.bf16 %v2541
        %v2594 = vunpack.c.h.bf16 %v2541
        %v2595 = vunpack.c.l.bf16 %v2542
        %v2596 = vunpack.c.h.bf16 %v2542
        %v2597 = vunpack.c.l.bf16 %v2543
        %v2598 = vunpack.c.h.bf16 %v2543
        %v2599 = vunpack.c.l.bf16 %v2544
        %v2600 = vunpack.c.h.bf16 %v2544
        %v2601 = vunpack.c.l.bf16 %v2545
        %v2602 = vunpack.c.h.bf16 %v2545
        %v2603 = vunpack.c.l.bf16 %v2546
        %v2604 = vunpack.c.h.bf16 %v2546
        %v2605 = vunpack.c.l.bf16 %v2547
        %v2606 = vunpack.c.h.bf16 %v2547
        %v2607 = vunpack.c.l.bf16 %v2548
        %v2608 = vunpack.c.h.bf16 %v2548
        %v2609 = vunpack.c.l.bf16 %v2549
        %v2610 = vunpack.c.h.bf16 %v2549
        %v2611 = vunpack.c.l.bf16 %v2550
        %v2612 = vunpack.c.h.bf16 %v2550
        %v2613 = vunpack.c.l.bf16 %v2551
        %v2614 = vunpack.c.h.bf16 %v2551
        %v2615 = vunpack.c.l.bf16 %v2552
        %v2616 = vunpack.c.h.bf16 %v2552
        %2633 = vrot.lane.b32.xlu0 %v1413, 96
        %v2634 = vpop.permute.xlu0 %2633
        %2635 = vrot.lane.b32.xlu0 %v1414, 96
        %v2636 = vpop.permute.xlu0 %2635
        %2637 = vrot.lane.b32.xlu0 %v1415, 96
        %v2638 = vpop.permute.xlu0 %2637
        %2639 = vrot.lane.b32.xlu0 %v1416, 96
        %v2640 = vpop.permute.xlu0 %2639
        %2641 = vrot.lane.b32.xlu0 %v1417, 96
        %v2642 = vpop.permute.xlu0 %2641
        %2643 = vrot.lane.b32.xlu0 %v1418, 96
        %v2644 = vpop.permute.xlu0 %2643
        %2645 = vrot.lane.b32.xlu0 %v1419, 96
        %v2646 = vpop.permute.xlu0 %2645
        %2647 = vrot.lane.b32.xlu0 %v1420, 96
        %v2648 = vpop.permute.xlu0 %2647
        %2649 = vrot.lane.b32.xlu0 %v1421, 96
        %v2650 = vpop.permute.xlu0 %2649
        %2651 = vrot.lane.b32.xlu0 %v1422, 96
        %v2652 = vpop.permute.xlu0 %2651
        %2653 = vrot.lane.b32.xlu0 %v1423, 96
        %v2654 = vpop.permute.xlu0 %2653
        %2655 = vrot.lane.b32.xlu0 %v1424, 96
        %v2656 = vpop.permute.xlu0 %2655
        %2657 = vrot.lane.b32.xlu0 %v1425, 96
        %v2658 = vpop.permute.xlu0 %2657
        %2659 = vrot.lane.b32.xlu0 %v1426, 96
        %v2660 = vpop.permute.xlu0 %2659
        %2661 = vrot.lane.b32.xlu0 %v1427, 96
        %v2662 = vpop.permute.xlu0 %2661
        %2663 = vrot.lane.b32.xlu0 %v1428, 96
        %v2664 = vpop.permute.xlu0 %2663
        %2681 = vrot.lane.b32.xlu0 %v1429, 96
        %v2682 = vpop.permute.xlu0 %2681
        %2683 = vrot.lane.b32.xlu0 %v1431, 96
        %v2684 = vpop.permute.xlu0 %2683
        %2685 = vrot.lane.b32.xlu0 %v1433, 96
        %v2686 = vpop.permute.xlu0 %2685
        %2687 = vrot.lane.b32.xlu0 %v1435, 96
        %v2688 = vpop.permute.xlu0 %2687
        %2689 = vrot.lane.b32.xlu0 %v1437, 96
        %v2690 = vpop.permute.xlu0 %2689
        %2691 = vrot.lane.b32.xlu0 %v1439, 96
        %v2692 = vpop.permute.xlu0 %2691
        %2693 = vrot.lane.b32.xlu0 %v1441, 96
        %v2694 = vpop.permute.xlu0 %2693
        %2695 = vrot.lane.b32.xlu0 %v1443, 96
        %v2696 = vpop.permute.xlu0 %2695
        %2697 = vrot.lane.b32.xlu0 %v1445, 96
        %v2698 = vpop.permute.xlu0 %2697
        %2699 = vrot.lane.b32.xlu0 %v1447, 96
        %v2700 = vpop.permute.xlu0 %2699
        %2701 = vrot.lane.b32.xlu0 %v1449, 96
        %v2702 = vpop.permute.xlu0 %2701
        %2703 = vrot.lane.b32.xlu0 %v1451, 96
        %v2704 = vpop.permute.xlu0 %2703
        %2705 = vrot.lane.b32.xlu0 %v1453, 96
        %v2706 = vpop.permute.xlu0 %2705
        %2707 = vrot.lane.b32.xlu0 %v1455, 96
        %v2708 = vpop.permute.xlu0 %2707
        %2709 = vrot.lane.b32.xlu0 %v1457, 96
        %v2710 = vpop.permute.xlu0 %2709
        %2711 = vrot.lane.b32.xlu0 %v1459, 96
        %v2712 = vpop.permute.xlu0 %2711
        %v2714 = vsel %vm1557, %v2634, 0
        %v2717 = vsel %vm1557, %v2636, 0
        %v2720 = vsel %vm1557, %v2638, 0
        %v2723 = vsel %vm1557, %v2640, 0
        %v2726 = vsel %vm1557, %v2642, 0
        %v2729 = vsel %vm1557, %v2644, 0
        %v2732 = vsel %vm1557, %v2646, 0
        %v2735 = vsel %vm1557, %v2648, 0
        %v2738 = vsel %vm1557, %v2650, 0
        %v2741 = vsel %vm1557, %v2652, 0
        %v2744 = vsel %vm1557, %v2654, 0
        %v2747 = vsel %vm1557, %v2656, 0
        %v2750 = vsel %vm1557, %v2658, 0
        %v2753 = vsel %vm1557, %v2660, 0
        %v2756 = vsel %vm1557, %v2662, 0
        %v2759 = vsel %vm1557, %v2664, 0
        %v2762 = vsel %vm1557, %v2682, 0
        %v2765 = vsel %vm1557, %v2684, 0
        %v2768 = vsel %vm1557, %v2686, 0
        %v2771 = vsel %vm1557, %v2688, 0
        %v2774 = vsel %vm1557, %v2690, 0
        %v2777 = vsel %vm1557, %v2692, 0
        %v2780 = vsel %vm1557, %v2694, 0
        %v2783 = vsel %vm1557, %v2696, 0
        %v2786 = vsel %vm1557, %v2698, 0
        %v2789 = vsel %vm1557, %v2700, 0
        %v2792 = vsel %vm1557, %v2702, 0
        %v2795 = vsel %vm1557, %v2704, 0
        %v2798 = vsel %vm1557, %v2706, 0
        %v2801 = vsel %vm1557, %v2708, 0
        %v2804 = vsel %vm1557, %v2710, 0
        %v2807 = vsel %vm1557, %v2712, 0
        %2809 = vmatprep.subr.bf16.mxu0 0
        %2810 = vmatpush1.bf16.xpose.msra.mxu0 %v2762
        %2811 = vmatprep.subr.bf16.mxu0 0
        %2812 = vmatpush1.bf16.xpose.msra.mxu0 %v2765
        %2813 = vmatprep.subr.bf16.mxu0 0
        %2814 = vmatpush1.bf16.xpose.msra.mxu0 %v2768
        %2815 = vmatprep.subr.bf16.mxu0 0
        %2816 = vmatpush1.bf16.xpose.msra.mxu0 %v2771
        %2817 = vmatprep.subr.bf16.mxu0 0
        %2818 = vmatpush1.bf16.xpose.msra.mxu0 %v2774
        %2819 = vmatprep.subr.bf16.mxu0 0
        %2820 = vmatpush1.bf16.xpose.msra.mxu0 %v2777
        %2821 = vmatprep.subr.bf16.mxu0 0
        %2822 = vmatpush1.bf16.xpose.msra.mxu0 %v2780
        %2823 = vmatprep.subr.bf16.mxu0 0
        %2824 = vmatpush1.bf16.xpose.msra.mxu0 %v2783
        %2825 = vmatprep.subr.bf16.mxu0 0
        %2826 = vmatpush1.bf16.xpose.msra.mxu0 %v2786
        %2827 = vmatprep.subr.bf16.mxu0 0
        %2828 = vmatpush1.bf16.xpose.msra.mxu0 %v2789
        %2829 = vmatprep.subr.bf16.mxu0 0
        %2830 = vmatpush1.bf16.xpose.msra.mxu0 %v2792
        %2831 = vmatprep.subr.bf16.mxu0 0
        %2832 = vmatpush1.bf16.xpose.msra.mxu0 %v2795
        %2833 = vmatprep.subr.bf16.mxu0 0
        %2834 = vmatpush1.bf16.xpose.msra.mxu0 %v2798
        %2835 = vmatprep.subr.bf16.mxu0 0
        %2836 = vmatpush1.bf16.xpose.msra.mxu0 %v2801
        %2837 = vmatprep.subr.bf16.mxu0 0
        %2838 = vmatpush1.bf16.xpose.msra.mxu0 %v2804
        %2839 = vmatprep.subr.bf16.mxu0 0
        %2840 = vmatpush1.bf16.xpose.msra.mxu0 %v2807
        %2841 = vmatprep.mubr.bf16.mxu0 0
        %2842 = vmatmul.mubr.bf16.gmra.mrb[0].mxu0 %v2714
        %v2843 = vpop.f32.mrb[0].mxu0
        %v2844 = vadd.f32 %v2553, %v2843
        %v2845 = vpop.f32.mrb[0].mxu0
        %v2846 = vadd.f32 %v2554, %v2845
        %v2847 = vpop.f32.mrb[0].mxu0
        %v2848 = vadd.f32 %v2555, %v2847
        %v2849 = vpop.f32.mrb[0].mxu0
        %v2850 = vadd.f32 %v2556, %v2849
        %2851 = vmatprep.mubr.bf16.mxu0 0
        %2852 = vmatmul.mubr.bf16.gmra.mrb[0].mxu0 %v2717
        %v2853 = vpop.f32.mrb[0].mxu0
        %v2854 = vadd.f32 %v2557, %v2853
        %v2855 = vpop.f32.mrb[0].mxu0
        %v2856 = vadd.f32 %v2558, %v2855
        %v2857 = vpop.f32.mrb[0].mxu0
        %v2858 = vadd.f32 %v2559, %v2857
        %v2859 = vpop.f32.mrb[0].mxu0
        %v2860 = vadd.f32 %v2560, %v2859
        %2861 = vmatprep.mubr.bf16.mxu0 0
        %2862 = vmatmul.mubr.bf16.gmra.mrb[0].mxu0 %v2720
        %v2863 = vpop.f32.mrb[0].mxu0
        %v2864 = vadd.f32 %v2561, %v2863
        %v2865 = vpop.f32.mrb[0].mxu0
        %v2866 = vadd.f32 %v2562, %v2865
        %v2867 = vpop.f32.mrb[0].mxu0
        %v2868 = vadd.f32 %v2563, %v2867
        %v2869 = vpop.f32.mrb[0].mxu0
        %v2870 = vadd.f32 %v2564, %v2869
        %2871 = vmatprep.mubr.bf16.mxu0 0
        %2872 = vmatmul.mubr.bf16.gmra.mrb[0].mxu0 %v2723
        %v2873 = vpop.f32.mrb[0].mxu0
        %v2874 = vadd.f32 %v2565, %v2873
        %v2875 = vpop.f32.mrb[0].mxu0
        %v2876 = vadd.f32 %v2566, %v2875
        %v2877 = vpop.f32.mrb[0].mxu0
        %v2878 = vadd.f32 %v2567, %v2877
        %v2879 = vpop.f32.mrb[0].mxu0
        %v2880 = vadd.f32 %v2568, %v2879
        %2881 = vmatprep.mubr.bf16.mxu0 0
        %2882 = vmatmul.mubr.bf16.gmra.mrb[0].mxu0 %v2726
        %v2883 = vpop.f32.mrb[0].mxu0
        %v2884 = vadd.f32 %v2569, %v2883
        %v2885 = vpop.f32.mrb[0].mxu0
        %v2886 = vadd.f32 %v2570, %v2885
        %v2887 = vpop.f32.mrb[0].mxu0
        %v2888 = vadd.f32 %v2571, %v2887
        %v2889 = vpop.f32.mrb[0].mxu0
        %v2890 = vadd.f32 %v2572, %v2889
        %2891 = vmatprep.mubr.bf16.mxu0 0
        %2892 = vmatmul.mubr.bf16.gmra.mrb[0].mxu0 %v2729
        %v2893 = vpop.f32.mrb[0].mxu0
        %v2894 = vadd.f32 %v2573, %v2893
        %v2895 = vpop.f32.mrb[0].mxu0
        %v2896 = vadd.f32 %v2574, %v2895
        %v2897 = vpop.f32.mrb[0].mxu0
        %v2898 = vadd.f32 %v2575, %v2897
        %v2899 = vpop.f32.mrb[0].mxu0
        %v2900 = vadd.f32 %v2576, %v2899
        %2901 = vmatprep.mubr.bf16.mxu0 0
        %2902 = vmatmul.mubr.bf16.gmra.mrb[0].mxu0 %v2732
        %v2903 = vpop.f32.mrb[0].mxu0
        %v2904 = vadd.f32 %v2577, %v2903
        %v2905 = vpop.f32.mrb[0].mxu0
        %v2906 = vadd.f32 %v2578, %v2905
        %v2907 = vpop.f32.mrb[0].mxu0
        %v2908 = vadd.f32 %v2579, %v2907
        %v2909 = vpop.f32.mrb[0].mxu0
        %v2910 = vadd.f32 %v2580, %v2909
        %2911 = vmatprep.mubr.bf16.mxu0 0
        %2912 = vmatmul.mubr.bf16.gmra.mrb[0].mxu0 %v2735
        %v2913 = vpop.f32.mrb[0].mxu0
        %v2914 = vadd.f32 %v2581, %v2913
        %v2915 = vpop.f32.mrb[0].mxu0
        %v2916 = vadd.f32 %v2582, %v2915
        %v2917 = vpop.f32.mrb[0].mxu0
        %v2918 = vadd.f32 %v2583, %v2917
        %v2919 = vpop.f32.mrb[0].mxu0
        %v2920 = vadd.f32 %v2584, %v2919
        %2921 = vmatprep.mubr.bf16.mxu0 0
        %2922 = vmatmul.mubr.bf16.gmra.mrb[0].mxu0 %v2738
        %v2923 = vpop.f32.mrb[0].mxu0
        %v2924 = vadd.f32 %v2585, %v2923
        %v2925 = vpop.f32.mrb[0].mxu0
        %v2926 = vadd.f32 %v2586, %v2925
        %v2927 = vpop.f32.mrb[0].mxu0
        %v2928 = vadd.f32 %v2587, %v2927
        %v2929 = vpop.f32.mrb[0].mxu0
        %v2930 = vadd.f32 %v2588, %v2929
        %2931 = vmatprep.mubr.bf16.mxu0 0
        %2932 = vmatmul.mubr.bf16.gmra.mrb[0].mxu0 %v2741
        %v2933 = vpop.f32.mrb[0].mxu0
        %v2934 = vadd.f32 %v2589, %v2933
        %v2935 = vpop.f32.mrb[0].mxu0
        %v2936 = vadd.f32 %v2590, %v2935
        %v2937 = vpop.f32.mrb[0].mxu0
        %v2938 = vadd.f32 %v2591, %v2937
        %v2939 = vpop.f32.mrb[0].mxu0
        %v2940 = vadd.f32 %v2592, %v2939
        %2941 = vmatprep.mubr.bf16.mxu0 0
        %2942 = vmatmul.mubr.bf16.gmra.mrb[0].mxu0 %v2744
        %v2943 = vpop.f32.mrb[0].mxu0
        %v2944 = vadd.f32 %v2593, %v2943
        %v2945 = vpop.f32.mrb[0].mxu0
        %v2946 = vadd.f32 %v2594, %v2945
        %v2947 = vpop.f32.mrb[0].mxu0
        %v2948 = vadd.f32 %v2595, %v2947
        %v2949 = vpop.f32.mrb[0].mxu0
        %v2950 = vadd.f32 %v2596, %v2949
        %2951 = vmatprep.mubr.bf16.mxu0 0
        %2952 = vmatmul.mubr.bf16.gmra.mrb[0].mxu0 %v2747
        %v2953 = vpop.f32.mrb[0].mxu0
        %v2954 = vadd.f32 %v2597, %v2953
        %v2955 = vpop.f32.mrb[0].mxu0
        %v2956 = vadd.f32 %v2598, %v2955
        %v2957 = vpop.f32.mrb[0].mxu0
        %v2958 = vadd.f32 %v2599, %v2957
        %v2959 = vpop.f32.mrb[0].mxu0
        %v2960 = vadd.f32 %v2600, %v2959
        %2961 = vmatprep.mubr.bf16.mxu0 0
        %2962 = vmatmul.mubr.bf16.gmra.mrb[0].mxu0 %v2750
        %v2963 = vpop.f32.mrb[0].mxu0
        %v2964 = vadd.f32 %v2601, %v2963
        %v2965 = vpop.f32.mrb[0].mxu0
        %v2966 = vadd.f32 %v2602, %v2965
        %v2967 = vpop.f32.mrb[0].mxu0
        %v2968 = vadd.f32 %v2603, %v2967
        %v2969 = vpop.f32.mrb[0].mxu0
        %v2970 = vadd.f32 %v2604, %v2969
        %2971 = vmatprep.mubr.bf16.mxu0 0
        %2972 = vmatmul.mubr.bf16.gmra.mrb[0].mxu0 %v2753
        %v2973 = vpop.f32.mrb[0].mxu0
        %v2974 = vadd.f32 %v2605, %v2973
        %v2975 = vpop.f32.mrb[0].mxu0
        %v2976 = vadd.f32 %v2606, %v2975
        %v2977 = vpop.f32.mrb[0].mxu0
        %v2978 = vadd.f32 %v2607, %v2977
        %v2979 = vpop.f32.mrb[0].mxu0
        %v2980 = vadd.f32 %v2608, %v2979
        %2981 = vmatprep.mubr.bf16.mxu0 0
        %2982 = vmatmul.mubr.bf16.gmra.mrb[0].mxu0 %v2756
        %v2983 = vpop.f32.mrb[0].mxu0
        %v2984 = vadd.f32 %v2609, %v2983
        %v2985 = vpop.f32.mrb[0].mxu0
        %v2986 = vadd.f32 %v2610, %v2985
        %v2987 = vpop.f32.mrb[0].mxu0
        %v2988 = vadd.f32 %v2611, %v2987
        %v2989 = vpop.f32.mrb[0].mxu0
        %v2990 = vadd.f32 %v2612, %v2989
        %2991 = vmatprep.mubr.bf16.mxu0 0
        %2992 = vmatmul.mubr.bf16.gmra.mrb[0].mxu0 %v2759
        %v2993 = vpop.f32.mrb[0].mxu0
        %v2994 = vadd.f32 %v2613, %v2993
        %v2995 = vpop.f32.mrb[0].mxu0
        %v2996 = vadd.f32 %v2614, %v2995
        %v2997 = vpop.f32.mrb[0].mxu0
        %v2998 = vadd.f32 %v2615, %v2997
        %v2999 = vpop.f32.mrb[0].mxu0
        %v3000 = vadd.f32 %v2616, %v2999
        %3001 = vdwg.mxu0
        %v3002 = vmax.f32 %v2844, %v2846
        %3003 = vmax.xlane.f32.xlu0 %v3002
        %v3004 = vpop.xlane.xlu0 %3003
        %v3005 = vmax.f32 %v2848, %v2850
        %3006 = vmax.xlane.f32.xlu0 %v3005
        %v3007 = vpop.xlane.xlu0 %3006
        %v3008 = vmax.f32 %v2854, %v2856
        %3009 = vmax.xlane.f32.xlu0 %v3008
        %v3010 = vpop.xlane.xlu0 %3009
        %v3011 = vmax.f32 %v2858, %v2860
        %3012 = vmax.xlane.f32.xlu0 %v3011
        %v3013 = vpop.xlane.xlu0 %3012
        %v3014 = vmax.f32 %v2864, %v2866
        %3015 = vmax.xlane.f32.xlu0 %v3014
        %v3016 = vpop.xlane.xlu0 %3015
        %v3017 = vmax.f32 %v2868, %v2870
        %3018 = vmax.xlane.f32.xlu0 %v3017
        %v3019 = vpop.xlane.xlu0 %3018
        %v3020 = vmax.f32 %v2874, %v2876
        %3021 = vmax.xlane.f32.xlu0 %v3020
        %v3022 = vpop.xlane.xlu0 %3021
        %v3023 = vmax.f32 %v2878, %v2880
        %3024 = vmax.xlane.f32.xlu0 %v3023
        %v3025 = vpop.xlane.xlu0 %3024
        %v3026 = vmax.f32 %v2884, %v2886
        %3027 = vmax.xlane.f32.xlu0 %v3026
        %v3028 = vpop.xlane.xlu0 %3027
        %v3029 = vmax.f32 %v2888, %v2890
        %3030 = vmax.xlane.f32.xlu0 %v3029
        %v3031 = vpop.xlane.xlu0 %3030
        %v3032 = vmax.f32 %v2894, %v2896
        %3033 = vmax.xlane.f32.xlu0 %v3032
        %v3034 = vpop.xlane.xlu0 %3033
        %v3035 = vmax.f32 %v2898, %v2900
        %3036 = vmax.xlane.f32.xlu0 %v3035
        %v3037 = vpop.xlane.xlu0 %3036
        %v3038 = vmax.f32 %v2904, %v2906
        %3039 = vmax.xlane.f32.xlu0 %v3038
        %v3040 = vpop.xlane.xlu0 %3039
        %v3041 = vmax.f32 %v2908, %v2910
        %3042 = vmax.xlane.f32.xlu0 %v3041
        %v3043 = vpop.xlane.xlu0 %3042
        %v3044 = vmax.f32 %v2914, %v2916
        %3045 = vmax.xlane.f32.xlu0 %v3044
        %v3046 = vpop.xlane.xlu0 %3045
        %v3047 = vmax.f32 %v2918, %v2920
        %3048 = vmax.xlane.f32.xlu0 %v3047
        %v3049 = vpop.xlane.xlu0 %3048
        %v3050 = vmax.f32 %v2924, %v2926
        %3051 = vmax.xlane.f32.xlu0 %v3050
        %v3052 = vpop.xlane.xlu0 %3051
        %v3053 = vmax.f32 %v2928, %v2930
        %3054 = vmax.xlane.f32.xlu0 %v3053
        %v3055 = vpop.xlane.xlu0 %3054
        %v3056 = vmax.f32 %v2934, %v2936
        %3057 = vmax.xlane.f32.xlu0 %v3056
        %v3058 = vpop.xlane.xlu0 %3057
        %v3059 = vmax.f32 %v2938, %v2940
        %3060 = vmax.xlane.f32.xlu0 %v3059
        %v3061 = vpop.xlane.xlu0 %3060
        %v3062 = vmax.f32 %v2944, %v2946
        %3063 = vmax.xlane.f32.xlu0 %v3062
        %v3064 = vpop.xlane.xlu0 %3063
        %v3065 = vmax.f32 %v2948, %v2950
        %3066 = vmax.xlane.f32.xlu0 %v3065
        %v3067 = vpop.xlane.xlu0 %3066
        %v3068 = vmax.f32 %v2954, %v2956
        %3069 = vmax.xlane.f32.xlu0 %v3068
        %v3070 = vpop.xlane.xlu0 %3069
        %v3071 = vmax.f32 %v2958, %v2960
        %3072 = vmax.xlane.f32.xlu0 %v3071
        %v3073 = vpop.xlane.xlu0 %3072
        %v3074 = vmax.f32 %v2964, %v2966
        %3075 = vmax.xlane.f32.xlu0 %v3074
        %v3076 = vpop.xlane.xlu0 %3075
        %v3077 = vmax.f32 %v2968, %v2970
        %3078 = vmax.xlane.f32.xlu0 %v3077
        %v3079 = vpop.xlane.xlu0 %3078
        %v3080 = vmax.f32 %v2974, %v2976
        %3081 = vmax.xlane.f32.xlu0 %v3080
        %v3082 = vpop.xlane.xlu0 %3081
        %v3083 = vmax.f32 %v2978, %v2980
        %3084 = vmax.xlane.f32.xlu0 %v3083
        %v3085 = vpop.xlane.xlu0 %3084
        %v3086 = vmax.f32 %v2984, %v2986
        %3087 = vmax.xlane.f32.xlu0 %v3086
        %v3088 = vpop.xlane.xlu0 %3087
        %v3089 = vmax.f32 %v2988, %v2990
        %3090 = vmax.xlane.f32.xlu0 %v3089
        %v3091 = vpop.xlane.xlu0 %3090
        %v3092 = vmax.f32 %v2994, %v2996
        %3093 = vmax.xlane.f32.xlu0 %v3092
        %v3094 = vpop.xlane.xlu0 %3093
        %v3095 = vmax.f32 %v2998, %v3000
        %3096 = vmax.xlane.f32.xlu0 %v3095
        %v3097 = vpop.xlane.xlu0 %3096
        %v3098 = vsub.f32 %v2844, %v3004
        %v3099 = vsub.f32 %v2846, %v3004
        %v3100 = vsub.f32 %v2848, %v3007
        %v3101 = vsub.f32 %v2850, %v3007
        %v3102 = vsub.f32 %v2854, %v3010
        %v3103 = vsub.f32 %v2856, %v3010
        %v3104 = vsub.f32 %v2858, %v3013
        %v3105 = vsub.f32 %v2860, %v3013
        %v3106 = vsub.f32 %v2864, %v3016
        %v3107 = vsub.f32 %v2866, %v3016
        %v3108 = vsub.f32 %v2868, %v3019
        %v3109 = vsub.f32 %v2870, %v3019
        %v3110 = vsub.f32 %v2874, %v3022
        %v3111 = vsub.f32 %v2876, %v3022
        %v3112 = vsub.f32 %v2878, %v3025
        %v3113 = vsub.f32 %v2880, %v3025
        %v3114 = vsub.f32 %v2884, %v3028
        %v3115 = vsub.f32 %v2886, %v3028
        %v3116 = vsub.f32 %v2888, %v3031
        %v3117 = vsub.f32 %v2890, %v3031
        %v3118 = vsub.f32 %v2894, %v3034
        %v3119 = vsub.f32 %v2896, %v3034
        %v3120 = vsub.f32 %v2898, %v3037
        %v3121 = vsub.f32 %v2900, %v3037
        %v3122 = vsub.f32 %v2904, %v3040
        %v3123 = vsub.f32 %v2906, %v3040
        %v3124 = vsub.f32 %v2908, %v3043
        %v3125 = vsub.f32 %v2910, %v3043
        %v3126 = vsub.f32 %v2914, %v3046
        %v3127 = vsub.f32 %v2916, %v3046
        %v3128 = vsub.f32 %v2918, %v3049
        %v3129 = vsub.f32 %v2920, %v3049
        %v3130 = vsub.f32 %v2924, %v3052
        %v3131 = vsub.f32 %v2926, %v3052
        %v3132 = vsub.f32 %v2928, %v3055
        %v3133 = vsub.f32 %v2930, %v3055
        %v3134 = vsub.f32 %v2934, %v3058
        %v3135 = vsub.f32 %v2936, %v3058
        %v3136 = vsub.f32 %v2938, %v3061
        %v3137 = vsub.f32 %v2940, %v3061
        %v3138 = vsub.f32 %v2944, %v3064
        %v3139 = vsub.f32 %v2946, %v3064
        %v3140 = vsub.f32 %v2948, %v3067
        %v3141 = vsub.f32 %v2950, %v3067
        %v3142 = vsub.f32 %v2954, %v3070
        %v3143 = vsub.f32 %v2956, %v3070
        %v3144 = vsub.f32 %v2958, %v3073
        %v3145 = vsub.f32 %v2960, %v3073
        %v3146 = vsub.f32 %v2964, %v3076
        %v3147 = vsub.f32 %v2966, %v3076
        %v3148 = vsub.f32 %v2968, %v3079
        %v3149 = vsub.f32 %v2970, %v3079
        %v3150 = vsub.f32 %v2974, %v3082
        %v3151 = vsub.f32 %v2976, %v3082
        %v3152 = vsub.f32 %v2978, %v3085
        %v3153 = vsub.f32 %v2980, %v3085
        %v3154 = vsub.f32 %v2984, %v3088
        %v3155 = vsub.f32 %v2986, %v3088
        %v3156 = vsub.f32 %v2988, %v3091
        %v3157 = vsub.f32 %v2990, %v3091
        %v3158 = vsub.f32 %v2994, %v3094
        %v3159 = vsub.f32 %v2996, %v3094
        %v3160 = vsub.f32 %v2998, %v3097
        %v3161 = vsub.f32 %v3000, %v3097
        %v3162 = vmul.f32 %v3098, 1.442695
        %v3163 = vpow.pop %v3162
        %v3164 = vmul.f32 %v3099, 1.442695
        %v3165 = vpow.pop %v3164
        %v3166 = vmul.f32 %v3100, 1.442695
        %v3167 = vpow.pop %v3166
        %v3168 = vmul.f32 %v3101, 1.442695
        %v3169 = vpow.pop %v3168
        %v3170 = vmul.f32 %v3102, 1.442695
        %v3171 = vpow.pop %v3170
        %v3172 = vmul.f32 %v3103, 1.442695
        %v3173 = vpow.pop %v3172
        %v3174 = vmul.f32 %v3104, 1.442695
        %v3175 = vpow.pop %v3174
        %v3176 = vmul.f32 %v3105, 1.442695
        %v3177 = vpow.pop %v3176
        %v3178 = vmul.f32 %v3106, 1.442695
        %v3179 = vpow.pop %v3178
        %v3180 = vmul.f32 %v3107, 1.442695
        %v3181 = vpow.pop %v3180
        %v3182 = vmul.f32 %v3108, 1.442695
        %v3183 = vpow.pop %v3182
        %v3184 = vmul.f32 %v3109, 1.442695
        %v3185 = vpow.pop %v3184
        %v3186 = vmul.f32 %v3110, 1.442695
        %v3187 = vpow.pop %v3186
        %v3188 = vmul.f32 %v3111, 1.442695
        %v3189 = vpow.pop %v3188
        %v3190 = vmul.f32 %v3112, 1.442695
        %v3191 = vpow.pop %v3190
        %v3192 = vmul.f32 %v3113, 1.442695
        %v3193 = vpow.pop %v3192
        %v3194 = vmul.f32 %v3114, 1.442695
        %v3195 = vpow.pop %v3194
        %v3196 = vmul.f32 %v3115, 1.442695
        %v3197 = vpow.pop %v3196
        %v3198 = vmul.f32 %v3116, 1.442695
        %v3199 = vpow.pop %v3198
        %v3200 = vmul.f32 %v3117, 1.442695
        %v3201 = vpow.pop %v3200
        %v3202 = vmul.f32 %v3118, 1.442695
        %v3203 = vpow.pop %v3202
        %v3204 = vmul.f32 %v3119, 1.442695
        %v3205 = vpow.pop %v3204
        %v3206 = vmul.f32 %v3120, 1.442695
        %v3207 = vpow.pop %v3206
        %v3208 = vmul.f32 %v3121, 1.442695
        %v3209 = vpow.pop %v3208
        %v3210 = vmul.f32 %v3122, 1.442695
        %v3211 = vpow.pop %v3210
        %v3212 = vmul.f32 %v3123, 1.442695
        %v3213 = vpow.pop %v3212
        %v3214 = vmul.f32 %v3124, 1.442695
        %v3215 = vpow.pop %v3214
        %v3216 = vmul.f32 %v3125, 1.442695
        %v3217 = vpow.pop %v3216
        %v3218 = vmul.f32 %v3126, 1.442695
        %v3219 = vpow.pop %v3218
        %v3220 = vmul.f32 %v3127, 1.442695
        %v3221 = vpow.pop %v3220
        %v3222 = vmul.f32 %v3128, 1.442695
        %v3223 = vpow.pop %v3222
        %v3224 = vmul.f32 %v3129, 1.442695
        %v3225 = vpow.pop %v3224
        %v3226 = vmul.f32 %v3130, 1.442695
        %v3227 = vpow.pop %v3226
        %v3228 = vmul.f32 %v3131, 1.442695
        %v3229 = vpow.pop %v3228
        %v3230 = vmul.f32 %v3132, 1.442695
        %v3231 = vpow.pop %v3230
        %v3232 = vmul.f32 %v3133, 1.442695
        %v3233 = vpow.pop %v3232
        %v3234 = vmul.f32 %v3134, 1.442695
        %v3235 = vpow.pop %v3234
        %v3236 = vmul.f32 %v3135, 1.442695
        %v3237 = vpow.pop %v3236
        %v3238 = vmul.f32 %v3136, 1.442695
        %v3239 = vpow.pop %v3238
        %v3240 = vmul.f32 %v3137, 1.442695
        %v3241 = vpow.pop %v3240
        %v3242 = vmul.f32 %v3138, 1.442695
        %v3243 = vpow.pop %v3242
        %v3244 = vmul.f32 %v3139, 1.442695
        %v3245 = vpow.pop %v3244
        %v3246 = vmul.f32 %v3140, 1.442695
        %v3247 = vpow.pop %v3246
        %v3248 = vmul.f32 %v3141, 1.442695
        %v3249 = vpow.pop %v3248
        %v3250 = vmul.f32 %v3142, 1.442695
        %v3251 = vpow.pop %v3250
        %v3252 = vmul.f32 %v3143, 1.442695
        %v3253 = vpow.pop %v3252
        %v3254 = vmul.f32 %v3144, 1.442695
        %v3255 = vpow.pop %v3254
        %v3256 = vmul.f32 %v3145, 1.442695
        %v3257 = vpow.pop %v3256
        %v3258 = vmul.f32 %v3146, 1.442695
        %v3259 = vpow.pop %v3258
        %v3260 = vmul.f32 %v3147, 1.442695
        %v3261 = vpow.pop %v3260
        %v3262 = vmul.f32 %v3148, 1.442695
        %v3263 = vpow.pop %v3262
        %v3264 = vmul.f32 %v3149, 1.442695
        %v3265 = vpow.pop %v3264
        %v3266 = vmul.f32 %v3150, 1.442695
        %v3267 = vpow.pop %v3266
        %v3268 = vmul.f32 %v3151, 1.442695
        %v3269 = vpow.pop %v3268
        %v3270 = vmul.f32 %v3152, 1.442695
        %v3271 = vpow.pop %v3270
        %v3272 = vmul.f32 %v3153, 1.442695
        %v3273 = vpow.pop %v3272
        %v3274 = vmul.f32 %v3154, 1.442695
        %v3275 = vpow.pop %v3274
        %v3276 = vmul.f32 %v3155, 1.442695
        %v3277 = vpow.pop %v3276
        %v3278 = vmul.f32 %v3156, 1.442695
        %v3279 = vpow.pop %v3278
        %v3280 = vmul.f32 %v3157, 1.442695
        %v3281 = vpow.pop %v3280
        %v3282 = vmul.f32 %v3158, 1.442695
        %v3283 = vpow.pop %v3282
        %v3284 = vmul.f32 %v3159, 1.442695
        %v3285 = vpow.pop %v3284
        %v3286 = vmul.f32 %v3160, 1.442695
        %v3287 = vpow.pop %v3286
        %v3288 = vmul.f32 %v3161, 1.442695
        %v3289 = vpow.pop %v3288
        %v3290 = vadd.f32 %v3163, %v3165
        %3291 = vadd.xlane.f32.xlu0 %v3290
        %v3292 = vpop.xlane.xlu0 %3291
        %v3293 = vadd.f32 %v3167, %v3169
        %3294 = vadd.xlane.f32.xlu0 %v3293
        %v3295 = vpop.xlane.xlu0 %3294
        %v3296 = vadd.f32 %v3171, %v3173
        %3297 = vadd.xlane.f32.xlu0 %v3296
        %v3298 = vpop.xlane.xlu0 %3297
        %v3299 = vadd.f32 %v3175, %v3177
        %3300 = vadd.xlane.f32.xlu0 %v3299
        %v3301 = vpop.xlane.xlu0 %3300
        %v3302 = vadd.f32 %v3179, %v3181
        %3303 = vadd.xlane.f32.xlu0 %v3302
        %v3304 = vpop.xlane.xlu0 %3303
        %v3305 = vadd.f32 %v3183, %v3185
        %3306 = vadd.xlane.f32.xlu0 %v3305
        %v3307 = vpop.xlane.xlu0 %3306
        %v3308 = vadd.f32 %v3187, %v3189
        %3309 = vadd.xlane.f32.xlu0 %v3308
        %v3310 = vpop.xlane.xlu0 %3309
        %v3311 = vadd.f32 %v3191, %v3193
        %3312 = vadd.xlane.f32.xlu0 %v3311
        %v3313 = vpop.xlane.xlu0 %3312
        %v3314 = vadd.f32 %v3195, %v3197
        %3315 = vadd.xlane.f32.xlu0 %v3314
        %v3316 = vpop.xlane.xlu0 %3315
        %v3317 = vadd.f32 %v3199, %v3201
        %3318 = vadd.xlane.f32.xlu0 %v3317
        %v3319 = vpop.xlane.xlu0 %3318
        %v3320 = vadd.f32 %v3203, %v3205
        %3321 = vadd.xlane.f32.xlu0 %v3320
        %v3322 = vpop.xlane.xlu0 %3321
        %v3323 = vadd.f32 %v3207, %v3209
        %3324 = vadd.xlane.f32.xlu0 %v3323
        %v3325 = vpop.xlane.xlu0 %3324
        %v3326 = vadd.f32 %v3211, %v3213
        %3327 = vadd.xlane.f32.xlu0 %v3326
        %v3328 = vpop.xlane.xlu0 %3327
        %v3329 = vadd.f32 %v3215, %v3217
        %3330 = vadd.xlane.f32.xlu0 %v3329
        %v3331 = vpop.xlane.xlu0 %3330
        %v3332 = vadd.f32 %v3219, %v3221
        %3333 = vadd.xlane.f32.xlu0 %v3332
        %v3334 = vpop.xlane.xlu0 %3333
        %v3335 = vadd.f32 %v3223, %v3225
        %3336 = vadd.xlane.f32.xlu0 %v3335
        %v3337 = vpop.xlane.xlu0 %3336
        %v3338 = vadd.f32 %v3227, %v3229
        %3339 = vadd.xlane.f32.xlu0 %v3338
        %v3340 = vpop.xlane.xlu0 %3339
        %v3341 = vadd.f32 %v3231, %v3233
        %3342 = vadd.xlane.f32.xlu0 %v3341
        %v3343 = vpop.xlane.xlu0 %3342
        %v3344 = vadd.f32 %v3235, %v3237
        %3345 = vadd.xlane.f32.xlu0 %v3344
        %v3346 = vpop.xlane.xlu0 %3345
        %v3347 = vadd.f32 %v3239, %v3241
        %3348 = vadd.xlane.f32.xlu0 %v3347
        %v3349 = vpop.xlane.xlu0 %3348
        %v3350 = vadd.f32 %v3243, %v3245
        %3351 = vadd.xlane.f32.xlu0 %v3350
        %v3352 = vpop.xlane.xlu0 %3351
        %v3353 = vadd.f32 %v3247, %v3249
        %3354 = vadd.xlane.f32.xlu0 %v3353
        %v3355 = vpop.xlane.xlu0 %3354
        %v3356 = vadd.f32 %v3251, %v3253
        %3357 = vadd.xlane.f32.xlu0 %v3356
        %v3358 = vpop.xlane.xlu0 %3357
        %v3359 = vadd.f32 %v3255, %v3257
        %3360 = vadd.xlane.f32.xlu0 %v3359
        %v3361 = vpop.xlane.xlu0 %3360
        %v3362 = vadd.f32 %v3259, %v3261
        %3363 = vadd.xlane.f32.xlu0 %v3362
        %v3364 = vpop.xlane.xlu0 %3363
        %v3365 = vadd.f32 %v3263, %v3265
        %3366 = vadd.xlane.f32.xlu0 %v3365
        %v3367 = vpop.xlane.xlu0 %3366
        %v3368 = vadd.f32 %v3267, %v3269
        %3369 = vadd.xlane.f32.xlu0 %v3368
        %v3370 = vpop.xlane.xlu0 %3369
        %v3371 = vadd.f32 %v3271, %v3273
        %3372 = vadd.xlane.f32.xlu0 %v3371
        %v3373 = vpop.xlane.xlu0 %3372
        %v3374 = vadd.f32 %v3275, %v3277
        %3375 = vadd.xlane.f32.xlu0 %v3374
        %v3376 = vpop.xlane.xlu0 %3375
        %v3377 = vadd.f32 %v3279, %v3281
        %3378 = vadd.xlane.f32.xlu0 %v3377
        %v3379 = vpop.xlane.xlu0 %3378
        %v3380 = vadd.f32 %v3283, %v3285
        %3381 = vadd.xlane.f32.xlu0 %v3380
        %v3382 = vpop.xlane.xlu0 %3381
        %v3383 = vadd.f32 %v3287, %v3289
        %3384 = vadd.xlane.f32.xlu0 %v3383
        %v3385 = vpop.xlane.xlu0 %3384
        %v3386 = vrcp.pop %v3292
        %v3387 = vrcp.pop %v3295
        %v3388 = vrcp.pop %v3298
        %v3389 = vrcp.pop %v3301
        %v3390 = vrcp.pop %v3304
        %v3391 = vrcp.pop %v3307
        %v3392 = vrcp.pop %v3310
        %v3393 = vrcp.pop %v3313
        %v3394 = vrcp.pop %v3316
        %v3395 = vrcp.pop %v3319
        %v3396 = vrcp.pop %v3322
        %v3397 = vrcp.pop %v3325
        %v3398 = vrcp.pop %v3328
        %v3399 = vrcp.pop %v3331
        %v3400 = vrcp.pop %v3334
        %v3401 = vrcp.pop %v3337
        %v3402 = vrcp.pop %v3340
        %v3403 = vrcp.pop %v3343
        %v3404 = vrcp.pop %v3346
        %v3405 = vrcp.pop %v3349
        %v3406 = vrcp.pop %v3352
        %v3407 = vrcp.pop %v3355
        %v3408 = vrcp.pop %v3358
        %v3409 = vrcp.pop %v3361
        %v3410 = vrcp.pop %v3364
        %v3411 = vrcp.pop %v3367
        %v3412 = vrcp.pop %v3370
        %v3413 = vrcp.pop %v3373
        %v3414 = vrcp.pop %v3376
        %v3415 = vrcp.pop %v3379
        %v3416 = vrcp.pop %v3382
        %v3417 = vrcp.pop %v3385
        %v3418 = vmul.f32 %v3163, %v3386
        %v3419 = vmul.f32 %v3165, %v3386
        %v3420 = vmul.f32 %v3167, %v3387
        %v3421 = vmul.f32 %v3169, %v3387
        %v3422 = vmul.f32 %v3171, %v3388
        %v3423 = vmul.f32 %v3173, %v3388
        %v3424 = vmul.f32 %v3175, %v3389
        %v3425 = vmul.f32 %v3177, %v3389
        %v3426 = vmul.f32 %v3179, %v3390
        %v3427 = vmul.f32 %v3181, %v3390
        %v3428 = vmul.f32 %v3183, %v3391
        %v3429 = vmul.f32 %v3185, %v3391
        %v3430 = vmul.f32 %v3187, %v3392
        %v3431 = vmul.f32 %v3189, %v3392
        %v3432 = vmul.f32 %v3191, %v3393
        %v3433 = vmul.f32 %v3193, %v3393
        %v3434 = vmul.f32 %v3195, %v3394
        %v3435 = vmul.f32 %v3197, %v3394
        %v3436 = vmul.f32 %v3199, %v3395
        %v3437 = vmul.f32 %v3201, %v3395
        %v3438 = vmul.f32 %v3203, %v3396
        %v3439 = vmul.f32 %v3205, %v3396
        %v3440 = vmul.f32 %v3207, %v3397
        %v3441 = vmul.f32 %v3209, %v3397
        %v3442 = vmul.f32 %v3211, %v3398
        %v3443 = vmul.f32 %v3213, %v3398
        %v3444 = vmul.f32 %v3215, %v3399
        %v3445 = vmul.f32 %v3217, %v3399
        %v3446 = vmul.f32 %v3219, %v3400
        %v3447 = vmul.f32 %v3221, %v3400
        %v3448 = vmul.f32 %v3223, %v3401
        %v3449 = vmul.f32 %v3225, %v3401
        %v3450 = vmul.f32 %v3227, %v3402
        %v3451 = vmul.f32 %v3229, %v3402
        %v3452 = vmul.f32 %v3231, %v3403
        %v3453 = vmul.f32 %v3233, %v3403
        %v3454 = vmul.f32 %v3235, %v3404
        %v3455 = vmul.f32 %v3237, %v3404
        %v3456 = vmul.f32 %v3239, %v3405
        %v3457 = vmul.f32 %v3241, %v3405
        %v3458 = vmul.f32 %v3243, %v3406
        %v3459 = vmul.f32 %v3245, %v3406
        %v3460 = vmul.f32 %v3247, %v3407
        %v3461 = vmul.f32 %v3249, %v3407
        %v3462 = vmul.f32 %v3251, %v3408
        %v3463 = vmul.f32 %v3253, %v3408
        %v3464 = vmul.f32 %v3255, %v3409
        %v3465 = vmul.f32 %v3257, %v3409
        %v3466 = vmul.f32 %v3259, %v3410
        %v3467 = vmul.f32 %v3261, %v3410
        %v3468 = vmul.f32 %v3263, %v3411
        %v3469 = vmul.f32 %v3265, %v3411
        %v3470 = vmul.f32 %v3267, %v3412
        %v3471 = vmul.f32 %v3269, %v3412
        %v3472 = vmul.f32 %v3271, %v3413
        %v3473 = vmul.f32 %v3273, %v3413
        %v3474 = vmul.f32 %v3275, %v3414
        %v3475 = vmul.f32 %v3277, %v3414
        %v3476 = vmul.f32 %v3279, %v3415
        %v3477 = vmul.f32 %v3281, %v3415
        %v3478 = vmul.f32 %v3283, %v3416
        %v3479 = vmul.f32 %v3285, %v3416
        %v3480 = vmul.f32 %v3287, %v3417
        %v3481 = vmul.f32 %v3289, %v3417
        %v3482 = vpack.c.bf16 %v3420, %v3418
        %v3483 = vpack.c.bf16 %v3421, %v3419
        %v3484 = vpack.c.bf16 %v3424, %v3422
        %v3485 = vpack.c.bf16 %v3425, %v3423
        %v3486 = vpack.c.bf16 %v3428, %v3426
        %v3487 = vpack.c.bf16 %v3429, %v3427
        %v3488 = vpack.c.bf16 %v3432, %v3430
        %v3489 = vpack.c.bf16 %v3433, %v3431
        %v3490 = vpack.c.bf16 %v3436, %v3434
        %v3491 = vpack.c.bf16 %v3437, %v3435
        %v3492 = vpack.c.bf16 %v3440, %v3438
        %v3493 = vpack.c.bf16 %v3441, %v3439
        %v3494 = vpack.c.bf16 %v3444, %v3442
        %v3495 = vpack.c.bf16 %v3445, %v3443
        %v3496 = vpack.c.bf16 %v3448, %v3446
        %v3497 = vpack.c.bf16 %v3449, %v3447
        %v3498 = vpack.c.bf16 %v3452, %v3450
        %v3499 = vpack.c.bf16 %v3453, %v3451
        %v3500 = vpack.c.bf16 %v3456, %v3454
        %v3501 = vpack.c.bf16 %v3457, %v3455
        %v3502 = vpack.c.bf16 %v3460, %v3458
        %v3503 = vpack.c.bf16 %v3461, %v3459
        %v3504 = vpack.c.bf16 %v3464, %v3462
        %v3505 = vpack.c.bf16 %v3465, %v3463
        %v3506 = vpack.c.bf16 %v3468, %v3466
        %v3507 = vpack.c.bf16 %v3469, %v3467
        %v3508 = vpack.c.bf16 %v3472, %v3470
        %v3509 = vpack.c.bf16 %v3473, %v3471
        %v3510 = vpack.c.bf16 %v3476, %v3474
        %v3511 = vpack.c.bf16 %v3477, %v3475
        %v3512 = vpack.c.bf16 %v3480, %v3478
        %v3513 = vpack.c.bf16 %v3481, %v3479
        %3530 = vrot.lane.b32.xlu0 %v1430, 96
        %v3531 = vpop.permute.xlu0 %3530
        %3532 = vrot.lane.b32.xlu0 %v1432, 96
        %v3533 = vpop.permute.xlu0 %3532
        %3534 = vrot.lane.b32.xlu0 %v1434, 96
        %v3535 = vpop.permute.xlu0 %3534
        %3536 = vrot.lane.b32.xlu0 %v1436, 96
        %v3537 = vpop.permute.xlu0 %3536
        %3538 = vrot.lane.b32.xlu0 %v1438, 96
        %v3539 = vpop.permute.xlu0 %3538
        %3540 = vrot.lane.b32.xlu0 %v1440, 96
        %v3541 = vpop.permute.xlu0 %3540
        %3542 = vrot.lane.b32.xlu0 %v1442, 96
        %v3543 = vpop.permute.xlu0 %3542
        %3544 = vrot.lane.b32.xlu0 %v1444, 96
        %v3545 = vpop.permute.xlu0 %3544
        %3546 = vrot.lane.b32.xlu0 %v1446, 96
        %v3547 = vpop.permute.xlu0 %3546
        %3548 = vrot.lane.b32.xlu0 %v1448, 96
        %v3549 = vpop.permute.xlu0 %3548
        %3550 = vrot.lane.b32.xlu0 %v1450, 96
        %v3551 = vpop.permute.xlu0 %3550
        %3552 = vrot.lane.b32.xlu0 %v1452, 96
        %v3553 = vpop.permute.xlu0 %3552
        %3554 = vrot.lane.b32.xlu0 %v1454, 96
        %v3555 = vpop.permute.xlu0 %3554
        %3556 = vrot.lane.b32.xlu0 %v1456, 96
        %v3557 = vpop.permute.xlu0 %3556
        %3558 = vrot.lane.b32.xlu0 %v1458, 96
        %v3559 = vpop.permute.xlu0 %3558
        %3560 = vrot.lane.b32.xlu0 %v1460, 96
        %v3561 = vpop.permute.xlu0 %3560
        %3578 = vmatprep.subr.bf16.mxu0 0
        %3579 = vmatpush1.bf16.msra.mxu0 %v3531
        %3580 = vmatprep.subr.bf16.mxu0 0
        %3581 = vmatpush1.bf16.msra.mxu0 %v3533
        %3582 = vmatprep.subr.bf16.mxu0 0
        %3583 = vmatpush1.bf16.msra.mxu0 %v3535
        %3584 = vmatprep.subr.bf16.mxu0 0
        %3585 = vmatpush1.bf16.msra.mxu0 %v3537
        %3586 = vmatprep.subr.bf16.mxu0 0
        %3587 = vmatpush1.bf16.msra.mxu0 %v3539
        %3588 = vmatprep.subr.bf16.mxu0 0
        %3589 = vmatpush1.bf16.msra.mxu0 %v3541
        %3590 = vmatprep.subr.bf16.mxu0 0
        %3591 = vmatpush1.bf16.msra.mxu0 %v3543
        %3592 = vmatprep.subr.bf16.mxu0 0
        %3593 = vmatpush1.bf16.msra.mxu0 %v3545
        %3594 = vmatprep.subr.bf16.mxu0 0
        %3595 = vmatpush1.bf16.msra.mxu0 %v3547
        %3596 = vmatprep.subr.bf16.mxu0 0
        %3597 = vmatpush1.bf16.msra.mxu0 %v3549
        %3598 = vmatprep.subr.bf16.mxu0 0
        %3599 = vmatpush1.bf16.msra.mxu0 %v3551
        %3600 = vmatprep.subr.bf16.mxu0 0
        %3601 = vmatpush1.bf16.msra.mxu0 %v3553
        %3602 = vmatprep.subr.bf16.mxu0 0
        %3603 = vmatpush1.bf16.msra.mxu0 %v3555
        %3604 = vmatprep.subr.bf16.mxu0 0
        %3605 = vmatpush1.bf16.msra.mxu0 %v3557
        %3606 = vmatprep.subr.bf16.mxu0 0
        %3607 = vmatpush1.bf16.msra.mxu0 %v3559
        %3608 = vmatprep.subr.bf16.mxu0 0
        %3609 = vmatpush1.bf16.msra.mxu0 %v3561
        %3610 = vmatprep.mubr.bf16.mxu0 %v3483
        %3611 = vmatmul.mubr.bf16.gmra.mrb[0].mxu0 %v3482
        %v3612 = vpop.f32.mrb[0].mxu0
        %v3613 = vadd.f32 0.0, %v3612
        %v3614 = vpop.f32.mrb[0].mxu0
        %v3615 = vpop.f32.mrb[0].mxu0
        %v3616 = vadd.f32 0.0, %v3615
        %v3617 = vpop.f32.mrb[0].mxu0
        %3618 = vmatprep.mubr.bf16.mxu0 %v3485
        %3619 = vmatmul.mubr.bf16.gmra.mrb[0].mxu0 %v3484
        %v3620 = vpop.f32.mrb[0].mxu0
        %v3621 = vadd.f32 0.0, %v3620
        %v3622 = vpop.f32.mrb[0].mxu0
        %v3623 = vpop.f32.mrb[0].mxu0
        %v3624 = vadd.f32 0.0, %v3623
        %v3625 = vpop.f32.mrb[0].mxu0
        %3626 = vmatprep.mubr.bf16.mxu0 %v3487
        %3627 = vmatmul.mubr.bf16.gmra.mrb[0].mxu0 %v3486
        %v3628 = vpop.f32.mrb[0].mxu0
        %v3629 = vadd.f32 0.0, %v3628
        %v3630 = vpop.f32.mrb[0].mxu0
        %v3631 = vpop.f32.mrb[0].mxu0
        %v3632 = vadd.f32 0.0, %v3631
        %v3633 = vpop.f32.mrb[0].mxu0
        %3634 = vmatprep.mubr.bf16.mxu0 %v3489
        %3635 = vmatmul.mubr.bf16.gmra.mrb[0].mxu0 %v3488
        %v3636 = vpop.f32.mrb[0].mxu0
        %v3637 = vadd.f32 0.0, %v3636
        %v3638 = vpop.f32.mrb[0].mxu0
        %v3639 = vpop.f32.mrb[0].mxu0
        %v3640 = vadd.f32 0.0, %v3639
        %v3641 = vpop.f32.mrb[0].mxu0
        %3642 = vmatprep.mubr.bf16.mxu0 %v3491
        %3643 = vmatmul.mubr.bf16.gmra.mrb[0].mxu0 %v3490
        %v3644 = vpop.f32.mrb[0].mxu0
        %v3645 = vadd.f32 0.0, %v3644
        %v3646 = vpop.f32.mrb[0].mxu0
        %v3647 = vpop.f32.mrb[0].mxu0
        %v3648 = vadd.f32 0.0, %v3647
        %v3649 = vpop.f32.mrb[0].mxu0
        %3650 = vmatprep.mubr.bf16.mxu0 %v3493
        %3651 = vmatmul.mubr.bf16.gmra.mrb[0].mxu0 %v3492
        %v3652 = vpop.f32.mrb[0].mxu0
        %v3653 = vadd.f32 0.0, %v3652
        %v3654 = vpop.f32.mrb[0].mxu0
        %v3655 = vpop.f32.mrb[0].mxu0
        %v3656 = vadd.f32 0.0, %v3655
        %v3657 = vpop.f32.mrb[0].mxu0
        %3658 = vmatprep.mubr.bf16.mxu0 %v3495
        %3659 = vmatmul.mubr.bf16.gmra.mrb[0].mxu0 %v3494
        %v3660 = vpop.f32.mrb[0].mxu0
        %v3661 = vadd.f32 0.0, %v3660
        %v3662 = vpop.f32.mrb[0].mxu0
        %v3663 = vpop.f32.mrb[0].mxu0
        %v3664 = vadd.f32 0.0, %v3663
        %v3665 = vpop.f32.mrb[0].mxu0
        %3666 = vmatprep.mubr.bf16.mxu0 %v3497
        %3667 = vmatmul.mubr.bf16.gmra.mrb[0].mxu0 %v3496
        %v3668 = vpop.f32.mrb[0].mxu0
        %v3669 = vadd.f32 0.0, %v3668
        %v3670 = vpop.f32.mrb[0].mxu0
        %v3671 = vpop.f32.mrb[0].mxu0
        %v3672 = vadd.f32 0.0, %v3671
        %v3673 = vpop.f32.mrb[0].mxu0
        %3674 = vmatprep.mubr.bf16.mxu0 %v3499
        %3675 = vmatmul.mubr.bf16.gmra.mrb[0].mxu0 %v3498
        %v3676 = vpop.f32.mrb[0].mxu0
        %v3677 = vadd.f32 0.0, %v3676
        %v3678 = vpop.f32.mrb[0].mxu0
        %v3679 = vpop.f32.mrb[0].mxu0
        %v3680 = vadd.f32 0.0, %v3679
        %v3681 = vpop.f32.mrb[0].mxu0
        %3682 = vmatprep.mubr.bf16.mxu0 %v3501
        %3683 = vmatmul.mubr.bf16.gmra.mrb[0].mxu0 %v3500
        %v3684 = vpop.f32.mrb[0].mxu0
        %v3685 = vadd.f32 0.0, %v3684
        %v3686 = vpop.f32.mrb[0].mxu0
        %v3687 = vpop.f32.mrb[0].mxu0
        %v3688 = vadd.f32 0.0, %v3687
        %v3689 = vpop.f32.mrb[0].mxu0
        %3690 = vmatprep.mubr.bf16.mxu0 %v3503
        %3691 = vmatmul.mubr.bf16.gmra.mrb[0].mxu0 %v3502
        %v3692 = vpop.f32.mrb[0].mxu0
        %v3693 = vadd.f32 0.0, %v3692
        %v3694 = vpop.f32.mrb[0].mxu0
        %v3695 = vpop.f32.mrb[0].mxu0
        %v3696 = vadd.f32 0.0, %v3695
        %v3697 = vpop.f32.mrb[0].mxu0
        %3698 = vmatprep.mubr.bf16.mxu0 %v3505
        %3699 = vmatmul.mubr.bf16.gmra.mrb[0].mxu0 %v3504
        %v3700 = vpop.f32.mrb[0].mxu0
        %v3701 = vadd.f32 0.0, %v3700
        %v3702 = vpop.f32.mrb[0].mxu0
        %v3703 = vpop.f32.mrb[0].mxu0
        %v3704 = vadd.f32 0.0, %v3703
        %v3705 = vpop.f32.mrb[0].mxu0
        %3706 = vmatprep.mubr.bf16.mxu0 %v3507
        %3707 = vmatmul.mubr.bf16.gmra.mrb[0].mxu0 %v3506
        %v3708 = vpop.f32.mrb[0].mxu0
        %v3709 = vadd.f32 0.0, %v3708
        %v3710 = vpop.f32.mrb[0].mxu0
        %v3711 = vpop.f32.mrb[0].mxu0
        %v3712 = vadd.f32 0.0, %v3711
        %v3713 = vpop.f32.mrb[0].mxu0
        %3714 = vmatprep.mubr.bf16.mxu0 %v3509
        %3715 = vmatmul.mubr.bf16.gmra.mrb[0].mxu0 %v3508
        %v3716 = vpop.f32.mrb[0].mxu0
        %v3717 = vadd.f32 0.0, %v3716
        %v3718 = vpop.f32.mrb[0].mxu0
        %v3719 = vpop.f32.mrb[0].mxu0
        %v3720 = vadd.f32 0.0, %v3719
        %v3721 = vpop.f32.mrb[0].mxu0
        %3722 = vmatprep.mubr.bf16.mxu0 %v3511
        %3723 = vmatmul.mubr.bf16.gmra.mrb[0].mxu0 %v3510
        %v3724 = vpop.f32.mrb[0].mxu0
        %v3725 = vadd.f32 0.0, %v3724
        %v3726 = vpop.f32.mrb[0].mxu0
        %v3727 = vpop.f32.mrb[0].mxu0
        %v3728 = vadd.f32 0.0, %v3727
        %v3729 = vpop.f32.mrb[0].mxu0
        %3730 = vmatprep.mubr.bf16.mxu0 %v3513
        %3731 = vmatmul.mubr.bf16.gmra.mrb[0].mxu0 %v3512
        %v3732 = vpop.f32.mrb[0].mxu0
        %v3733 = vadd.f32 0.0, %v3732
        %v3734 = vpop.f32.mrb[0].mxu0
        %v3735 = vpop.f32.mrb[0].mxu0
        %v3736 = vadd.f32 0.0, %v3735
        %v3737 = vpop.f32.mrb[0].mxu0
        %3738 = vdwg.mxu0
        %s3739 = scalar_lea.vmem [#allocation12], 512
        %v3740 = vld [vmem:[%s3739] sm:$0xff]
        %v3741 = vld [vmem:[%s3739 + $0x8] sm:$0xff]
        %v3742 = vld [vmem:[%s3739 + $0x10] sm:$0xff]
        %v3743 = vld [vmem:[%s3739 + $0x18] sm:$0xff]
        %v3744 = vld [vmem:[%s3739 + $0x20] sm:$0xff]
        %v3745 = vld [vmem:[%s3739 + $0x28] sm:$0xff]
        %v3746 = vld [vmem:[%s3739 + $0x30] sm:$0xff]
        %v3747 = vld [vmem:[%s3739 + $0x38] sm:$0xff]
        %v3748 = vld [vmem:[%s3739 + $0x40] sm:$0xff]
        %v3749 = vld [vmem:[%s3739 + $0x48] sm:$0xff]
        %v3750 = vld [vmem:[%s3739 + $0x50] sm:$0xff]
        %v3751 = vld [vmem:[%s3739 + $0x58] sm:$0xff]
        %v3752 = vld [vmem:[%s3739 + $0x60] sm:$0xff]
        %v3753 = vld [vmem:[%s3739 + $0x68] sm:$0xff]
        %v3754 = vld [vmem:[%s3739 + $0x70] sm:$0xff]
        %v3755 = vld [vmem:[%s3739 + $0x78] sm:$0xff]
        %v3756 = vld [vmem:[%s3739 + $0x80] sm:$0xff]
        %v3757 = vld [vmem:[%s3739 + $0x88] sm:$0xff]
        %v3758 = vld [vmem:[%s3739 + $0x90] sm:$0xff]
        %v3759 = vld [vmem:[%s3739 + $0x98] sm:$0xff]
        %v3760 = vld [vmem:[%s3739 + $0xa0] sm:$0xff]
        %v3761 = vld [vmem:[%s3739 + $0xa8] sm:$0xff]
        %v3762 = vld [vmem:[%s3739 + $0xb0] sm:$0xff]
        %v3763 = vld [vmem:[%s3739 + $0xb8] sm:$0xff]
        %v3764 = vld [vmem:[%s3739 + $0xc0] sm:$0xff]
        %v3765 = vld [vmem:[%s3739 + $0xc8] sm:$0xff]
        %v3766 = vld [vmem:[%s3739 + $0xd0] sm:$0xff]
        %v3767 = vld [vmem:[%s3739 + $0xd8] sm:$0xff]
        %v3768 = vld [vmem:[%s3739 + $0xe0] sm:$0xff]
        %v3769 = vld [vmem:[%s3739 + $0xe8] sm:$0xff]
        %v3770 = vld [vmem:[%s3739 + $0xf0] sm:$0xff]
        %v3771 = vld [vmem:[%s3739 + $0xf8] sm:$0xff]
        %v3772 = vunpack.c.l.bf16 %v3740
        %v3773 = vunpack.c.h.bf16 %v3740
        %v3774 = vunpack.c.l.bf16 %v3741
        %v3775 = vunpack.c.h.bf16 %v3741
        %v3776 = vunpack.c.l.bf16 %v3742
        %v3777 = vunpack.c.h.bf16 %v3742
        %v3778 = vunpack.c.l.bf16 %v3743
        %v3779 = vunpack.c.h.bf16 %v3743
        %v3780 = vunpack.c.l.bf16 %v3744
        %v3781 = vunpack.c.h.bf16 %v3744
        %v3782 = vunpack.c.l.bf16 %v3745
        %v3783 = vunpack.c.h.bf16 %v3745
        %v3784 = vunpack.c.l.bf16 %v3746
        %v3785 = vunpack.c.h.bf16 %v3746
        %v3786 = vunpack.c.l.bf16 %v3747
        %v3787 = vunpack.c.h.bf16 %v3747
        %v3788 = vunpack.c.l.bf16 %v3748
        %v3789 = vunpack.c.h.bf16 %v3748
        %v3790 = vunpack.c.l.bf16 %v3749
        %v3791 = vunpack.c.h.bf16 %v3749
        %v3792 = vunpack.c.l.bf16 %v3750
        %v3793 = vunpack.c.h.bf16 %v3750
        %v3794 = vunpack.c.l.bf16 %v3751
        %v3795 = vunpack.c.h.bf16 %v3751
        %v3796 = vunpack.c.l.bf16 %v3752
        %v3797 = vunpack.c.h.bf16 %v3752
        %v3798 = vunpack.c.l.bf16 %v3753
        %v3799 = vunpack.c.h.bf16 %v3753
        %v3800 = vunpack.c.l.bf16 %v3754
        %v3801 = vunpack.c.h.bf16 %v3754
        %v3802 = vunpack.c.l.bf16 %v3755
        %v3803 = vunpack.c.h.bf16 %v3755
        %v3804 = vunpack.c.l.bf16 %v3756
        %v3805 = vunpack.c.h.bf16 %v3756
        %v3806 = vunpack.c.l.bf16 %v3757
        %v3807 = vunpack.c.h.bf16 %v3757
        %v3808 = vunpack.c.l.bf16 %v3758
        %v3809 = vunpack.c.h.bf16 %v3758
        %v3810 = vunpack.c.l.bf16 %v3759
        %v3811 = vunpack.c.h.bf16 %v3759
        %v3812 = vunpack.c.l.bf16 %v3760
        %v3813 = vunpack.c.h.bf16 %v3760
        %v3814 = vunpack.c.l.bf16 %v3761
        %v3815 = vunpack.c.h.bf16 %v3761
        %v3816 = vunpack.c.l.bf16 %v3762
        %v3817 = vunpack.c.h.bf16 %v3762
        %v3818 = vunpack.c.l.bf16 %v3763
        %v3819 = vunpack.c.h.bf16 %v3763
        %v3820 = vunpack.c.l.bf16 %v3764
        %v3821 = vunpack.c.h.bf16 %v3764
        %v3822 = vunpack.c.l.bf16 %v3765
        %v3823 = vunpack.c.h.bf16 %v3765
        %v3824 = vunpack.c.l.bf16 %v3766
        %v3825 = vunpack.c.h.bf16 %v3766
        %v3826 = vunpack.c.l.bf16 %v3767
        %v3827 = vunpack.c.h.bf16 %v3767
        %v3828 = vunpack.c.l.bf16 %v3768
        %v3829 = vunpack.c.h.bf16 %v3768
        %v3830 = vunpack.c.l.bf16 %v3769
        %v3831 = vunpack.c.h.bf16 %v3769
        %v3832 = vunpack.c.l.bf16 %v3770
        %v3833 = vunpack.c.h.bf16 %v3770
        %v3834 = vunpack.c.l.bf16 %v3771
        %v3835 = vunpack.c.h.bf16 %v3771
        %3836 = vrot.lane.b32.xlu0 %v1413, 64
        %v3837 = vpop.permute.xlu0 %3836
        %3838 = vrot.lane.b32.xlu0 %v1414, 64
        %v3839 = vpop.permute.xlu0 %3838
        %3840 = vrot.lane.b32.xlu0 %v1415, 64
        %v3841 = vpop.permute.xlu0 %3840
        %3842 = vrot.lane.b32.xlu0 %v1416, 64
        %v3843 = vpop.permute.xlu0 %3842
        %3844 = vrot.lane.b32.xlu0 %v1417, 64
        %v3845 = vpop.permute.xlu0 %3844
        %3846 = vrot.lane.b32.xlu0 %v1418, 64
        %v3847 = vpop.permute.xlu0 %3846
        %3848 = vrot.lane.b32.xlu0 %v1419, 64
        %v3849 = vpop.permute.xlu0 %3848
        %3850 = vrot.lane.b32.xlu0 %v1420, 64
        %v3851 = vpop.permute.xlu0 %3850
        %3852 = vrot.lane.b32.xlu0 %v1421, 64
        %v3853 = vpop.permute.xlu0 %3852
        %3854 = vrot.lane.b32.xlu0 %v1422, 64
        %v3855 = vpop.permute.xlu0 %3854
        %3856 = vrot.lane.b32.xlu0 %v1423, 64
        %v3857 = vpop.permute.xlu0 %3856
        %3858 = vrot.lane.b32.xlu0 %v1424, 64
        %v3859 = vpop.permute.xlu0 %3858
        %3860 = vrot.lane.b32.xlu0 %v1425, 64
        %v3861 = vpop.permute.xlu0 %3860
        %3862 = vrot.lane.b32.xlu0 %v1426, 64
        %v3863 = vpop.permute.xlu0 %3862
        %3864 = vrot.lane.b32.xlu0 %v1427, 64
        %v3865 = vpop.permute.xlu0 %3864
        %3866 = vrot.lane.b32.xlu0 %v1428, 64
        %v3867 = vpop.permute.xlu0 %3866
        %3868 = vrot.lane.b32.xlu0 %v1429, 64
        %v3869 = vpop.permute.xlu0 %3868
        %3870 = vrot.lane.b32.xlu0 %v1431, 64
        %v3871 = vpop.permute.xlu0 %3870
        %3872 = vrot.lane.b32.xlu0 %v1433, 64
        %v3873 = vpop.permute.xlu0 %3872
        %3874 = vrot.lane.b32.xlu0 %v1435, 64
        %v3875 = vpop.permute.xlu0 %3874
        %3876 = vrot.lane.b32.xlu0 %v1437, 64
        %v3877 = vpop.permute.xlu0 %3876
        %3878 = vrot.lane.b32.xlu0 %v1439, 64
        %v3879 = vpop.permute.xlu0 %3878
        %3880 = vrot.lane.b32.xlu0 %v1441, 64
        %v3881 = vpop.permute.xlu0 %3880
        %3882 = vrot.lane.b32.xlu0 %v1443, 64
        %v3883 = vpop.permute.xlu0 %3882
        %3884 = vrot.lane.b32.xlu0 %v1445, 64
        %v3885 = vpop.permute.xlu0 %3884
        %3886 = vrot.lane.b32.xlu0 %v1447, 64
        %v3887 = vpop.permute.xlu0 %3886
        %3888 = vrot.lane.b32.xlu0 %v1449, 64
        %v3889 = vpop.permute.xlu0 %3888
        %3890 = vrot.lane.b32.xlu0 %v1451, 64
        %v3891 = vpop.permute.xlu0 %3890
        %3892 = vrot.lane.b32.xlu0 %v1453, 64
        %v3893 = vpop.permute.xlu0 %3892
        %3894 = vrot.lane.b32.xlu0 %v1455, 64
        %v3895 = vpop.permute.xlu0 %3894
        %3896 = vrot.lane.b32.xlu0 %v1457, 64
        %v3897 = vpop.permute.xlu0 %3896
        %3898 = vrot.lane.b32.xlu0 %v1459, 64
        %v3899 = vpop.permute.xlu0 %3898
        %v3901 = vsel %vm1557, %v3837, 0
        %v3904 = vsel %vm1557, %v3839, 0
        %v3907 = vsel %vm1557, %v3841, 0
        %v3910 = vsel %vm1557, %v3843, 0
        %v3913 = vsel %vm1557, %v3845, 0
        %v3916 = vsel %vm1557, %v3847, 0
        %v3919 = vsel %vm1557, %v3849, 0
        %v3922 = vsel %vm1557, %v3851, 0
        %v3925 = vsel %vm1557, %v3853, 0
        %v3928 = vsel %vm1557, %v3855, 0
        %v3931 = vsel %vm1557, %v3857, 0
        %v3934 = vsel %vm1557, %v3859, 0
        %v3937 = vsel %vm1557, %v3861, 0
        %v3940 = vsel %vm1557, %v3863, 0
        %v3943 = vsel %vm1557, %v3865, 0
        %v3946 = vsel %vm1557, %v3867, 0
        %v3949 = vsel %vm1557, %v3869, 0
        %v3952 = vsel %vm1557, %v3871, 0
        %v3955 = vsel %vm1557, %v3873, 0
        %v3958 = vsel %vm1557, %v3875, 0
        %v3961 = vsel %vm1557, %v3877, 0
        %v3964 = vsel %vm1557, %v3879, 0
        %v3967 = vsel %vm1557, %v3881, 0
        %v3970 = vsel %vm1557, %v3883, 0
        %v3973 = vsel %vm1557, %v3885, 0
        %v3976 = vsel %vm1557, %v3887, 0
        %v3979 = vsel %vm1557, %v3889, 0
        %v3982 = vsel %vm1557, %v3891, 0
        %v3985 = vsel %vm1557, %v3893, 0
        %v3988 = vsel %vm1557, %v3895, 0
        %v3991 = vsel %vm1557, %v3897, 0
        %v3994 = vsel %vm1557, %v3899, 0
        %3996 = vmatprep.subr.bf16.mxu0 0
        %3997 = vmatpush1.bf16.xpose.msra.mxu0 %v3949
        %3998 = vmatprep.subr.bf16.mxu0 0
        %3999 = vmatpush1.bf16.xpose.msra.mxu0 %v3952
        %4000 = vmatprep.subr.bf16.mxu0 0
        %4001 = vmatpush1.bf16.xpose.msra.mxu0 %v3955
        %4002 = vmatprep.subr.bf16.mxu0 0
        %4003 = vmatpush1.bf16.xpose.msra.mxu0 %v3958
        %4004 = vmatprep.subr.bf16.mxu0 0
        %4005 = vmatpush1.bf16.xpose.msra.mxu0 %v3961
        %4006 = vmatprep.subr.bf16.mxu0 0
        %4007 = vmatpush1.bf16.xpose.msra.mxu0 %v3964
        %4008 = vmatprep.subr.bf16.mxu0 0
        %4009 = vmatpush1.bf16.xpose.msra.mxu0 %v3967
        %4010 = vmatprep.subr.bf16.mxu0 0
        %4011 = vmatpush1.bf16.xpose.msra.mxu0 %v3970
        %4012 = vmatprep.subr.bf16.mxu0 0
        %4013 = vmatpush1.bf16.xpose.msra.mxu0 %v3973
        %4014 = vmatprep.subr.bf16.mxu0 0
        %4015 = vmatpush1.bf16.xpose.msra.mxu0 %v3976
        %4016 = vmatprep.subr.bf16.mxu0 0
        %4017 = vmatpush1.bf16.xpose.msra.mxu0 %v3979
        %4018 = vmatprep.subr.bf16.mxu0 0
        %4019 = vmatpush1.bf16.xpose.msra.mxu0 %v3982
        %4020 = vmatprep.subr.bf16.mxu0 0
        %4021 = vmatpush1.bf16.xpose.msra.mxu0 %v3985
        %4022 = vmatprep.subr.bf16.mxu0 0
        %4023 = vmatpush1.bf16.xpose.msra.mxu0 %v3988
        %4024 = vmatprep.subr.bf16.mxu0 0
        %4025 = vmatpush1.bf16.xpose.msra.mxu0 %v3991
        %4026 = vmatprep.subr.bf16.mxu0 0
        %4027 = vmatpush1.bf16.xpose.msra.mxu0 %v3994
        %4028 = vmatprep.mubr.bf16.mxu0 0
        %4029 = vmatmul.mubr.bf16.gmra.mrb[0].mxu0 %v3901
        %v4030 = vpop.f32.mrb[0].mxu0
        %v4031 = vadd.f32 %v3772, %v4030
        %v4032 = vpop.f32.mrb[0].mxu0
        %v4033 = vadd.f32 %v3773, %v4032
        %v4034 = vpop.f32.mrb[0].mxu0
        %v4035 = vadd.f32 %v3774, %v4034
        %v4036 = vpop.f32.mrb[0].mxu0
        %v4037 = vadd.f32 %v3775, %v4036
        %4038 = vmatprep.mubr.bf16.mxu0 0
        %4039 = vmatmul.mubr.bf16.gmra.mrb[0].mxu0 %v3904
        %v4040 = vpop.f32.mrb[0].mxu0
        %v4041 = vadd.f32 %v3776, %v4040
        %v4042 = vpop.f32.mrb[0].mxu0
        %v4043 = vadd.f32 %v3777, %v4042
        %v4044 = vpop.f32.mrb[0].mxu0
        %v4045 = vadd.f32 %v3778, %v4044
        %v4046 = vpop.f32.mrb[0].mxu0
        %v4047 = vadd.f32 %v3779, %v4046
        %4048 = vmatprep.mubr.bf16.mxu0 0
        %4049 = vmatmul.mubr.bf16.gmra.mrb[0].mxu0 %v3907
        %v4050 = vpop.f32.mrb[0].mxu0
        %v4051 = vadd.f32 %v3780, %v4050
        %v4052 = vpop.f32.mrb[0].mxu0
        %v4053 = vadd.f32 %v3781, %v4052
        %v4054 = vpop.f32.mrb[0].mxu0
        %v4055 = vadd.f32 %v3782, %v4054
        %v4056 = vpop.f32.mrb[0].mxu0
        %v4057 = vadd.f32 %v3783, %v4056
        %4058 = vmatprep.mubr.bf16.mxu0 0
        %4059 = vmatmul.mubr.bf16.gmra.mrb[0].mxu0 %v3910
        %v4060 = vpop.f32.mrb[0].mxu0
        %v4061 = vadd.f32 %v3784, %v4060
        %v4062 = vpop.f32.mrb[0].mxu0
        %v4063 = vadd.f32 %v3785, %v4062
        %v4064 = vpop.f32.mrb[0].mxu0
        %v4065 = vadd.f32 %v3786, %v4064
        %v4066 = vpop.f32.mrb[0].mxu0
        %v4067 = vadd.f32 %v3787, %v4066
        %4068 = vmatprep.mubr.bf16.mxu0 0
        %4069 = vmatmul.mubr.bf16.gmra.mrb[0].mxu0 %v3913
        %v4070 = vpop.f32.mrb[0].mxu0
        %v4071 = vadd.f32 %v3788, %v4070
        %v4072 = vpop.f32.mrb[0].mxu0
        %v4073 = vadd.f32 %v3789, %v4072
        %v4074 = vpop.f32.mrb[0].mxu0
        %v4075 = vadd.f32 %v3790, %v4074
        %v4076 = vpop.f32.mrb[0].mxu0
        %v4077 = vadd.f32 %v3791, %v4076
        %4078 = vmatprep.mubr.bf16.mxu0 0
        %4079 = vmatmul.mubr.bf16.gmra.mrb[0].mxu0 %v3916
        %v4080 = vpop.f32.mrb[0].mxu0
        %v4081 = vadd.f32 %v3792, %v4080
        %v4082 = vpop.f32.mrb[0].mxu0
        %v4083 = vadd.f32 %v3793, %v4082
        %v4084 = vpop.f32.mrb[0].mxu0
        %v4085 = vadd.f32 %v3794, %v4084
        %v4086 = vpop.f32.mrb[0].mxu0
        %v4087 = vadd.f32 %v3795, %v4086
        %4088 = vmatprep.mubr.bf16.mxu0 0
        %4089 = vmatmul.mubr.bf16.gmra.mrb[0].mxu0 %v3919
        %v4090 = vpop.f32.mrb[0].mxu0
        %v4091 = vadd.f32 %v3796, %v4090
        %v4092 = vpop.f32.mrb[0].mxu0
        %v4093 = vadd.f32 %v3797, %v4092
        %v4094 = vpop.f32.mrb[0].mxu0
        %v4095 = vadd.f32 %v3798, %v4094
        %v4096 = vpop.f32.mrb[0].mxu0
        %v4097 = vadd.f32 %v3799, %v4096
        %4098 = vmatprep.mubr.bf16.mxu0 0
        %4099 = vmatmul.mubr.bf16.gmra.mrb[0].mxu0 %v3922
        %v4100 = vpop.f32.mrb[0].mxu0
        %v4101 = vadd.f32 %v3800, %v4100
        %v4102 = vpop.f32.mrb[0].mxu0
        %v4103 = vadd.f32 %v3801, %v4102
        %v4104 = vpop.f32.mrb[0].mxu0
        %v4105 = vadd.f32 %v3802, %v4104
        %v4106 = vpop.f32.mrb[0].mxu0
        %v4107 = vadd.f32 %v3803, %v4106
        %4108 = vmatprep.mubr.bf16.mxu0 0
        %4109 = vmatmul.mubr.bf16.gmra.mrb[0].mxu0 %v3925
        %v4110 = vpop.f32.mrb[0].mxu0
        %v4111 = vadd.f32 %v3804, %v4110
        %v4112 = vpop.f32.mrb[0].mxu0
        %v4113 = vadd.f32 %v3805, %v4112
        %v4114 = vpop.f32.mrb[0].mxu0
        %v4115 = vadd.f32 %v3806, %v4114
        %v4116 = vpop.f32.mrb[0].mxu0
        %v4117 = vadd.f32 %v3807, %v4116
        %4118 = vmatprep.mubr.bf16.mxu0 0
        %4119 = vmatmul.mubr.bf16.gmra.mrb[0].mxu0 %v3928
        %v4120 = vpop.f32.mrb[0].mxu0
        %v4121 = vadd.f32 %v3808, %v4120
        %v4122 = vpop.f32.mrb[0].mxu0
        %v4123 = vadd.f32 %v3809, %v4122
        %v4124 = vpop.f32.mrb[0].mxu0
        %v4125 = vadd.f32 %v3810, %v4124
        %v4126 = vpop.f32.mrb[0].mxu0
        %v4127 = vadd.f32 %v3811, %v4126
        %4128 = vmatprep.mubr.bf16.mxu0 0
        %4129 = vmatmul.mubr.bf16.gmra.mrb[0].mxu0 %v3931
        %v4130 = vpop.f32.mrb[0].mxu0
        %v4131 = vadd.f32 %v3812, %v4130
        %v4132 = vpop.f32.mrb[0].mxu0
        %v4133 = vadd.f32 %v3813, %v4132
        %v4134 = vpop.f32.mrb[0].mxu0
        %v4135 = vadd.f32 %v3814, %v4134
        %v4136 = vpop.f32.mrb[0].mxu0
        %v4137 = vadd.f32 %v3815, %v4136
        %4138 = vmatprep.mubr.bf16.mxu0 0
        %4139 = vmatmul.mubr.bf16.gmra.mrb[0].mxu0 %v3934
        %v4140 = vpop.f32.mrb[0].mxu0
        %v4141 = vadd.f32 %v3816, %v4140
        %v4142 = vpop.f32.mrb[0].mxu0
        %v4143 = vadd.f32 %v3817, %v4142
        %v4144 = vpop.f32.mrb[0].mxu0
        %v4145 = vadd.f32 %v3818, %v4144
        %v4146 = vpop.f32.mrb[0].mxu0
        %v4147 = vadd.f32 %v3819, %v4146
        %4148 = vmatprep.mubr.bf16.mxu0 0
        %4149 = vmatmul.mubr.bf16.gmra.mrb[0].mxu0 %v3937
        %v4150 = vpop.f32.mrb[0].mxu0
        %v4151 = vadd.f32 %v3820, %v4150
        %v4152 = vpop.f32.mrb[0].mxu0
        %v4153 = vadd.f32 %v3821, %v4152
        %v4154 = vpop.f32.mrb[0].mxu0
        %v4155 = vadd.f32 %v3822, %v4154
        %v4156 = vpop.f32.mrb[0].mxu0
        %v4157 = vadd.f32 %v3823, %v4156
        %4158 = vmatprep.mubr.bf16.mxu0 0
        %4159 = vmatmul.mubr.bf16.gmra.mrb[0].mxu0 %v3940
        %v4160 = vpop.f32.mrb[0].mxu0
        %v4161 = vadd.f32 %v3824, %v4160
        %v4162 = vpop.f32.mrb[0].mxu0
        %v4163 = vadd.f32 %v3825, %v4162
        %v4164 = vpop.f32.mrb[0].mxu0
        %v4165 = vadd.f32 %v3826, %v4164
        %v4166 = vpop.f32.mrb[0].mxu0
        %v4167 = vadd.f32 %v3827, %v4166
        %4168 = vmatprep.mubr.bf16.mxu0 0
        %4169 = vmatmul.mubr.bf16.gmra.mrb[0].mxu0 %v3943
        %v4170 = vpop.f32.mrb[0].mxu0
        %v4171 = vadd.f32 %v3828, %v4170
        %v4172 = vpop.f32.mrb[0].mxu0
        %v4173 = vadd.f32 %v3829, %v4172
        %v4174 = vpop.f32.mrb[0].mxu0
        %v4175 = vadd.f32 %v3830, %v4174
        %v4176 = vpop.f32.mrb[0].mxu0
        %v4177 = vadd.f32 %v3831, %v4176
        %4178 = vmatprep.mubr.bf16.mxu0 0
        %4179 = vmatmul.mubr.bf16.gmra.mrb[0].mxu0 %v3946
        %v4180 = vpop.f32.mrb[0].mxu0
        %v4181 = vadd.f32 %v3832, %v4180
        %v4182 = vpop.f32.mrb[0].mxu0
        %v4183 = vadd.f32 %v3833, %v4182
        %v4184 = vpop.f32.mrb[0].mxu0
        %v4185 = vadd.f32 %v3834, %v4184
        %v4186 = vpop.f32.mrb[0].mxu0
        %v4187 = vadd.f32 %v3835, %v4186
        %4188 = vdwg.mxu0
        %v4189 = vmax.f32 %v4031, %v4033
        %4190 = vmax.xlane.f32.xlu0 %v4189
        %v4191 = vpop.xlane.xlu0 %4190
        %v4192 = vmax.f32 %v4035, %v4037
        %4193 = vmax.xlane.f32.xlu0 %v4192
        %v4194 = vpop.xlane.xlu0 %4193
        %v4195 = vmax.f32 %v4041, %v4043
        %4196 = vmax.xlane.f32.xlu0 %v4195
        %v4197 = vpop.xlane.xlu0 %4196
        %v4198 = vmax.f32 %v4045, %v4047
        %4199 = vmax.xlane.f32.xlu0 %v4198
        %v4200 = vpop.xlane.xlu0 %4199
        %v4201 = vmax.f32 %v4051, %v4053
        %4202 = vmax.xlane.f32.xlu0 %v4201
        %v4203 = vpop.xlane.xlu0 %4202
        %v4204 = vmax.f32 %v4055, %v4057
        %4205 = vmax.xlane.f32.xlu0 %v4204
        %v4206 = vpop.xlane.xlu0 %4205
        %v4207 = vmax.f32 %v4061, %v4063
        %4208 = vmax.xlane.f32.xlu0 %v4207
        %v4209 = vpop.xlane.xlu0 %4208
        %v4210 = vmax.f32 %v4065, %v4067
        %4211 = vmax.xlane.f32.xlu0 %v4210
        %v4212 = vpop.xlane.xlu0 %4211
        %v4213 = vmax.f32 %v4071, %v4073
        %4214 = vmax.xlane.f32.xlu0 %v4213
        %v4215 = vpop.xlane.xlu0 %4214
        %v4216 = vmax.f32 %v4075, %v4077
        %4217 = vmax.xlane.f32.xlu0 %v4216
        %v4218 = vpop.xlane.xlu0 %4217
        %v4219 = vmax.f32 %v4081, %v4083
        %4220 = vmax.xlane.f32.xlu0 %v4219
        %v4221 = vpop.xlane.xlu0 %4220
        %v4222 = vmax.f32 %v4085, %v4087
        %4223 = vmax.xlane.f32.xlu0 %v4222
        %v4224 = vpop.xlane.xlu0 %4223
        %v4225 = vmax.f32 %v4091, %v4093
        %4226 = vmax.xlane.f32.xlu0 %v4225
        %v4227 = vpop.xlane.xlu0 %4226
        %v4228 = vmax.f32 %v4095, %v4097
        %4229 = vmax.xlane.f32.xlu0 %v4228
        %v4230 = vpop.xlane.xlu0 %4229
        %v4231 = vmax.f32 %v4101, %v4103
        %4232 = vmax.xlane.f32.xlu0 %v4231
        %v4233 = vpop.xlane.xlu0 %4232
        %v4234 = vmax.f32 %v4105, %v4107
        %4235 = vmax.xlane.f32.xlu0 %v4234
        %v4236 = vpop.xlane.xlu0 %4235
        %v4237 = vmax.f32 %v4111, %v4113
        %4238 = vmax.xlane.f32.xlu0 %v4237
        %v4239 = vpop.xlane.xlu0 %4238
        %v4240 = vmax.f32 %v4115, %v4117
        %4241 = vmax.xlane.f32.xlu0 %v4240
        %v4242 = vpop.xlane.xlu0 %4241
        %v4243 = vmax.f32 %v4121, %v4123
        %4244 = vmax.xlane.f32.xlu0 %v4243
        %v4245 = vpop.xlane.xlu0 %4244
        %v4246 = vmax.f32 %v4125, %v4127
        %4247 = vmax.xlane.f32.xlu0 %v4246
        %v4248 = vpop.xlane.xlu0 %4247
        %v4249 = vmax.f32 %v4131, %v4133
        %4250 = vmax.xlane.f32.xlu0 %v4249
        %v4251 = vpop.xlane.xlu0 %4250
        %v4252 = vmax.f32 %v4135, %v4137
        %4253 = vmax.xlane.f32.xlu0 %v4252
        %v4254 = vpop.xlane.xlu0 %4253
        %v4255 = vmax.f32 %v4141, %v4143
        %4256 = vmax.xlane.f32.xlu0 %v4255
        %v4257 = vpop.xlane.xlu0 %4256
        %v4258 = vmax.f32 %v4145, %v4147
        %4259 = vmax.xlane.f32.xlu0 %v4258
        %v4260 = vpop.xlane.xlu0 %4259
        %v4261 = vmax.f32 %v4151, %v4153
        %4262 = vmax.xlane.f32.xlu0 %v4261
        %v4263 = vpop.xlane.xlu0 %4262
        %v4264 = vmax.f32 %v4155, %v4157
        %4265 = vmax.xlane.f32.xlu0 %v4264
        %v4266 = vpop.xlane.xlu0 %4265
        %v4267 = vmax.f32 %v4161, %v4163
        %4268 = vmax.xlane.f32.xlu0 %v4267
        %v4269 = vpop.xlane.xlu0 %4268
        %v4270 = vmax.f32 %v4165, %v4167
        %4271 = vmax.xlane.f32.xlu0 %v4270
        %v4272 = vpop.xlane.xlu0 %4271
        %v4273 = vmax.f32 %v4171, %v4173
        %4274 = vmax.xlane.f32.xlu0 %v4273
        %v4275 = vpop.xlane.xlu0 %4274
        %v4276 = vmax.f32 %v4175, %v4177
        %4277 = vmax.xlane.f32.xlu0 %v4276
        %v4278 = vpop.xlane.xlu0 %4277
        %v4279 = vmax.f32 %v4181, %v4183
        %4280 = vmax.xlane.f32.xlu0 %v4279
        %v4281 = vpop.xlane.xlu0 %4280
        %v4282 = vmax.f32 %v4185, %v4187
        %4283 = vmax.xlane.f32.xlu0 %v4282
        %v4284 = vpop.xlane.xlu0 %4283
        %v4285 = vsub.f32 %v4031, %v4191
        %v4286 = vsub.f32 %v4033, %v4191
        %v4287 = vsub.f32 %v4035, %v4194
        %v4288 = vsub.f32 %v4037, %v4194
        %v4289 = vsub.f32 %v4041, %v4197
        %v4290 = vsub.f32 %v4043, %v4197
        %v4291 = vsub.f32 %v4045, %v4200
        %v4292 = vsub.f32 %v4047, %v4200
        %v4293 = vsub.f32 %v4051, %v4203
        %v4294 = vsub.f32 %v4053, %v4203
        %v4295 = vsub.f32 %v4055, %v4206
        %v4296 = vsub.f32 %v4057, %v4206
        %v4297 = vsub.f32 %v4061, %v4209
        %v4298 = vsub.f32 %v4063, %v4209
        %v4299 = vsub.f32 %v4065, %v4212
        %v4300 = vsub.f32 %v4067, %v4212
        %v4301 = vsub.f32 %v4071, %v4215
        %v4302 = vsub.f32 %v4073, %v4215
        %v4303 = vsub.f32 %v4075, %v4218
        %v4304 = vsub.f32 %v4077, %v4218
        %v4305 = vsub.f32 %v4081, %v4221
        %v4306 = vsub.f32 %v4083, %v4221
        %v4307 = vsub.f32 %v4085, %v4224
        %v4308 = vsub.f32 %v4087, %v4224
        %v4309 = vsub.f32 %v4091, %v4227
        %v4310 = vsub.f32 %v4093, %v4227
        %v4311 = vsub.f32 %v4095, %v4230
        %v4312 = vsub.f32 %v4097, %v4230
        %v4313 = vsub.f32 %v4101, %v4233
        %v4314 = vsub.f32 %v4103, %v4233
        %v4315 = vsub.f32 %v4105, %v4236
        %v4316 = vsub.f32 %v4107, %v4236
        %v4317 = vsub.f32 %v4111, %v4239
        %v4318 = vsub.f32 %v4113, %v4239
        %v4319 = vsub.f32 %v4115, %v4242
        %v4320 = vsub.f32 %v4117, %v4242
        %v4321 = vsub.f32 %v4121, %v4245
        %v4322 = vsub.f32 %v4123, %v4245
        %v4323 = vsub.f32 %v4125, %v4248
        %v4324 = vsub.f32 %v4127, %v4248
        %v4325 = vsub.f32 %v4131, %v4251
        %v4326 = vsub.f32 %v4133, %v4251
        %v4327 = vsub.f32 %v4135, %v4254
        %v4328 = vsub.f32 %v4137, %v4254
        %v4329 = vsub.f32 %v4141, %v4257
        %v4330 = vsub.f32 %v4143, %v4257
        %v4331 = vsub.f32 %v4145, %v4260
        %v4332 = vsub.f32 %v4147, %v4260
        %v4333 = vsub.f32 %v4151, %v4263
        %v4334 = vsub.f32 %v4153, %v4263
        %v4335 = vsub.f32 %v4155, %v4266
        %v4336 = vsub.f32 %v4157, %v4266
        %v4337 = vsub.f32 %v4161, %v4269
        %v4338 = vsub.f32 %v4163, %v4269
        %v4339 = vsub.f32 %v4165, %v4272
        %v4340 = vsub.f32 %v4167, %v4272
        %v4341 = vsub.f32 %v4171, %v4275
        %v4342 = vsub.f32 %v4173, %v4275
        %v4343 = vsub.f32 %v4175, %v4278
        %v4344 = vsub.f32 %v4177, %v4278
        %v4345 = vsub.f32 %v4181, %v4281
        %v4346 = vsub.f32 %v4183, %v4281
        %v4347 = vsub.f32 %v4185, %v4284
        %v4348 = vsub.f32 %v4187, %v4284
        %v4349 = vmul.f32 %v4285, 1.442695
        %v4350 = vpow.pop %v4349
        %v4351 = vmul.f32 %v4286, 1.442695
        %v4352 = vpow.pop %v4351
        %v4353 = vmul.f32 %v4287, 1.442695
        %v4354 = vpow.pop %v4353
        %v4355 = vmul.f32 %v4288, 1.442695
        %v4356 = vpow.pop %v4355
        %v4357 = vmul.f32 %v4289, 1.442695
        %v4358 = vpow.pop %v4357
        %v4359 = vmul.f32 %v4290, 1.442695
        %v4360 = vpow.pop %v4359
        %v4361 = vmul.f32 %v4291, 1.442695
        %v4362 = vpow.pop %v4361
        %v4363 = vmul.f32 %v4292, 1.442695
        %v4364 = vpow.pop %v4363
        %v4365 = vmul.f32 %v4293, 1.442695
        %v4366 = vpow.pop %v4365
        %v4367 = vmul.f32 %v4294, 1.442695
        %v4368 = vpow.pop %v4367
        %v4369 = vmul.f32 %v4295, 1.442695
        %v4370 = vpow.pop %v4369
        %v4371 = vmul.f32 %v4296, 1.442695
        %v4372 = vpow.pop %v4371
        %v4373 = vmul.f32 %v4297, 1.442695
        %v4374 = vpow.pop %v4373
        %v4375 = vmul.f32 %v4298, 1.442695
        %v4376 = vpow.pop %v4375
        %v4377 = vmul.f32 %v4299, 1.442695
        %v4378 = vpow.pop %v4377
        %v4379 = vmul.f32 %v4300, 1.442695
        %v4380 = vpow.pop %v4379
        %v4381 = vmul.f32 %v4301, 1.442695
        %v4382 = vpow.pop %v4381
        %v4383 = vmul.f32 %v4302, 1.442695
        %v4384 = vpow.pop %v4383
        %v4385 = vmul.f32 %v4303, 1.442695
        %v4386 = vpow.pop %v4385
        %v4387 = vmul.f32 %v4304, 1.442695
        %v4388 = vpow.pop %v4387
        %v4389 = vmul.f32 %v4305, 1.442695
        %v4390 = vpow.pop %v4389
        %v4391 = vmul.f32 %v4306, 1.442695
        %v4392 = vpow.pop %v4391
        %v4393 = vmul.f32 %v4307, 1.442695
        %v4394 = vpow.pop %v4393
        %v4395 = vmul.f32 %v4308, 1.442695
        %v4396 = vpow.pop %v4395
        %v4397 = vmul.f32 %v4309, 1.442695
        %v4398 = vpow.pop %v4397
        %v4399 = vmul.f32 %v4310, 1.442695
        %v4400 = vpow.pop %v4399
        %v4401 = vmul.f32 %v4311, 1.442695
        %v4402 = vpow.pop %v4401
        %v4403 = vmul.f32 %v4312, 1.442695
        %v4404 = vpow.pop %v4403
        %v4405 = vmul.f32 %v4313, 1.442695
        %v4406 = vpow.pop %v4405
        %v4407 = vmul.f32 %v4314, 1.442695
        %v4408 = vpow.pop %v4407
        %v4409 = vmul.f32 %v4315, 1.442695
        %v4410 = vpow.pop %v4409
        %v4411 = vmul.f32 %v4316, 1.442695
        %v4412 = vpow.pop %v4411
        %v4413 = vmul.f32 %v4317, 1.442695
        %v4414 = vpow.pop %v4413
        %v4415 = vmul.f32 %v4318, 1.442695
        %v4416 = vpow.pop %v4415
        %v4417 = vmul.f32 %v4319, 1.442695
        %v4418 = vpow.pop %v4417
        %v4419 = vmul.f32 %v4320, 1.442695
        %v4420 = vpow.pop %v4419
        %v4421 = vmul.f32 %v4321, 1.442695
        %v4422 = vpow.pop %v4421
        %v4423 = vmul.f32 %v4322, 1.442695
        %v4424 = vpow.pop %v4423
        %v4425 = vmul.f32 %v4323, 1.442695
        %v4426 = vpow.pop %v4425
        %v4427 = vmul.f32 %v4324, 1.442695
        %v4428 = vpow.pop %v4427
        %v4429 = vmul.f32 %v4325, 1.442695
        %v4430 = vpow.pop %v4429
        %v4431 = vmul.f32 %v4326, 1.442695
        %v4432 = vpow.pop %v4431
        %v4433 = vmul.f32 %v4327, 1.442695
        %v4434 = vpow.pop %v4433
        %v4435 = vmul.f32 %v4328, 1.442695
        %v4436 = vpow.pop %v4435
        %v4437 = vmul.f32 %v4329, 1.442695
        %v4438 = vpow.pop %v4437
        %v4439 = vmul.f32 %v4330, 1.442695
        %v4440 = vpow.pop %v4439
        %v4441 = vmul.f32 %v4331, 1.442695
        %v4442 = vpow.pop %v4441
        %v4443 = vmul.f32 %v4332, 1.442695
        %v4444 = vpow.pop %v4443
        %v4445 = vmul.f32 %v4333, 1.442695
        %v4446 = vpow.pop %v4445
        %v4447 = vmul.f32 %v4334, 1.442695
        %v4448 = vpow.pop %v4447
        %v4449 = vmul.f32 %v4335, 1.442695
        %v4450 = vpow.pop %v4449
        %v4451 = vmul.f32 %v4336, 1.442695
        %v4452 = vpow.pop %v4451
        %v4453 = vmul.f32 %v4337, 1.442695
        %v4454 = vpow.pop %v4453
        %v4455 = vmul.f32 %v4338, 1.442695
        %v4456 = vpow.pop %v4455
        %v4457 = vmul.f32 %v4339, 1.442695
        %v4458 = vpow.pop %v4457
        %v4459 = vmul.f32 %v4340, 1.442695
        %v4460 = vpow.pop %v4459
        %v4461 = vmul.f32 %v4341, 1.442695
        %v4462 = vpow.pop %v4461
        %v4463 = vmul.f32 %v4342, 1.442695
        %v4464 = vpow.pop %v4463
        %v4465 = vmul.f32 %v4343, 1.442695
        %v4466 = vpow.pop %v4465
        %v4467 = vmul.f32 %v4344, 1.442695
        %v4468 = vpow.pop %v4467
        %v4469 = vmul.f32 %v4345, 1.442695
        %v4470 = vpow.pop %v4469
        %v4471 = vmul.f32 %v4346, 1.442695
        %v4472 = vpow.pop %v4471
        %v4473 = vmul.f32 %v4347, 1.442695
        %v4474 = vpow.pop %v4473
        %v4475 = vmul.f32 %v4348, 1.442695
        %v4476 = vpow.pop %v4475
        %v4477 = vadd.f32 %v4350, %v4352
        %4478 = vadd.xlane.f32.xlu0 %v4477
        %v4479 = vpop.xlane.xlu0 %4478
        %v4480 = vadd.f32 %v4354, %v4356
        %4481 = vadd.xlane.f32.xlu0 %v4480
        %v4482 = vpop.xlane.xlu0 %4481
        %v4483 = vadd.f32 %v4358, %v4360
        %4484 = vadd.xlane.f32.xlu0 %v4483
        %v4485 = vpop.xlane.xlu0 %4484
        %v4486 = vadd.f32 %v4362, %v4364
        %4487 = vadd.xlane.f32.xlu0 %v4486
        %v4488 = vpop.xlane.xlu0 %4487
        %v4489 = vadd.f32 %v4366, %v4368
        %4490 = vadd.xlane.f32.xlu0 %v4489
        %v4491 = vpop.xlane.xlu0 %4490
        %v4492 = vadd.f32 %v4370, %v4372
        %4493 = vadd.xlane.f32.xlu0 %v4492
        %v4494 = vpop.xlane.xlu0 %4493
        %v4495 = vadd.f32 %v4374, %v4376
        %4496 = vadd.xlane.f32.xlu0 %v4495
        %v4497 = vpop.xlane.xlu0 %4496
        %v4498 = vadd.f32 %v4378, %v4380
        %4499 = vadd.xlane.f32.xlu0 %v4498
        %v4500 = vpop.xlane.xlu0 %4499
        %v4501 = vadd.f32 %v4382, %v4384
        %4502 = vadd.xlane.f32.xlu0 %v4501
        %v4503 = vpop.xlane.xlu0 %4502
        %v4504 = vadd.f32 %v4386, %v4388
        %4505 = vadd.xlane.f32.xlu0 %v4504
        %v4506 = vpop.xlane.xlu0 %4505
        %v4507 = vadd.f32 %v4390, %v4392
        %4508 = vadd.xlane.f32.xlu0 %v4507
        %v4509 = vpop.xlane.xlu0 %4508
        %v4510 = vadd.f32 %v4394, %v4396
        %4511 = vadd.xlane.f32.xlu0 %v4510
        %v4512 = vpop.xlane.xlu0 %4511
        %v4513 = vadd.f32 %v4398, %v4400
        %4514 = vadd.xlane.f32.xlu0 %v4513
        %v4515 = vpop.xlane.xlu0 %4514
        %v4516 = vadd.f32 %v4402, %v4404
        %4517 = vadd.xlane.f32.xlu0 %v4516
        %v4518 = vpop.xlane.xlu0 %4517
        %v4519 = vadd.f32 %v4406, %v4408
        %4520 = vadd.xlane.f32.xlu0 %v4519
        %v4521 = vpop.xlane.xlu0 %4520
        %v4522 = vadd.f32 %v4410, %v4412
        %4523 = vadd.xlane.f32.xlu0 %v4522
        %v4524 = vpop.xlane.xlu0 %4523
        %v4525 = vadd.f32 %v4414, %v4416
        %4526 = vadd.xlane.f32.xlu0 %v4525
        %v4527 = vpop.xlane.xlu0 %4526
        %v4528 = vadd.f32 %v4418, %v4420
        %4529 = vadd.xlane.f32.xlu0 %v4528
        %v4530 = vpop.xlane.xlu0 %4529
        %v4531 = vadd.f32 %v4422, %v4424
        %4532 = vadd.xlane.f32.xlu0 %v4531
        %v4533 = vpop.xlane.xlu0 %4532
        %v4534 = vadd.f32 %v4426, %v4428
        %4535 = vadd.xlane.f32.xlu0 %v4534
        %v4536 = vpop.xlane.xlu0 %4535
        %v4537 = vadd.f32 %v4430, %v4432
        %4538 = vadd.xlane.f32.xlu0 %v4537
        %v4539 = vpop.xlane.xlu0 %4538
        %v4540 = vadd.f32 %v4434, %v4436
        %4541 = vadd.xlane.f32.xlu0 %v4540
        %v4542 = vpop.xlane.xlu0 %4541
        %v4543 = vadd.f32 %v4438, %v4440
        %4544 = vadd.xlane.f32.xlu0 %v4543
        %v4545 = vpop.xlane.xlu0 %4544
        %v4546 = vadd.f32 %v4442, %v4444
        %4547 = vadd.xlane.f32.xlu0 %v4546
        %v4548 = vpop.xlane.xlu0 %4547
        %v4549 = vadd.f32 %v4446, %v4448
        %4550 = vadd.xlane.f32.xlu0 %v4549
        %v4551 = vpop.xlane.xlu0 %4550
        %v4552 = vadd.f32 %v4450, %v4452
        %4553 = vadd.xlane.f32.xlu0 %v4552
        %v4554 = vpop.xlane.xlu0 %4553
        %v4555 = vadd.f32 %v4454, %v4456
        %4556 = vadd.xlane.f32.xlu0 %v4555
        %v4557 = vpop.xlane.xlu0 %4556
        %v4558 = vadd.f32 %v4458, %v4460
        %4559 = vadd.xlane.f32.xlu0 %v4558
        %v4560 = vpop.xlane.xlu0 %4559
        %v4561 = vadd.f32 %v4462, %v4464
        %4562 = vadd.xlane.f32.xlu0 %v4561
        %v4563 = vpop.xlane.xlu0 %4562
        %v4564 = vadd.f32 %v4466, %v4468
        %4565 = vadd.xlane.f32.xlu0 %v4564
        %v4566 = vpop.xlane.xlu0 %4565
        %v4567 = vadd.f32 %v4470, %v4472
        %4568 = vadd.xlane.f32.xlu0 %v4567
        %v4569 = vpop.xlane.xlu0 %4568
        %v4570 = vadd.f32 %v4474, %v4476
        %4571 = vadd.xlane.f32.xlu0 %v4570
        %v4572 = vpop.xlane.xlu0 %4571
        %v4573 = vrcp.pop %v4479
        %v4574 = vrcp.pop %v4482
        %v4575 = vrcp.pop %v4485
        %v4576 = vrcp.pop %v4488
        %v4577 = vrcp.pop %v4491
        %v4578 = vrcp.pop %v4494
        %v4579 = vrcp.pop %v4497
        %v4580 = vrcp.pop %v4500
        %v4581 = vrcp.pop %v4503
        %v4582 = vrcp.pop %v4506
        %v4583 = vrcp.pop %v4509
        %v4584 = vrcp.pop %v4512
        %v4585 = vrcp.pop %v4515
        %v4586 = vrcp.pop %v4518
        %v4587 = vrcp.pop %v4521
        %v4588 = vrcp.pop %v4524
        %v4589 = vrcp.pop %v4527
        %v4590 = vrcp.pop %v4530
        %v4591 = vrcp.pop %v4533
        %v4592 = vrcp.pop %v4536
        %v4593 = vrcp.pop %v4539
        %v4594 = vrcp.pop %v4542
        %v4595 = vrcp.pop %v4545
        %v4596 = vrcp.pop %v4548
        %v4597 = vrcp.pop %v4551
        %v4598 = vrcp.pop %v4554
        %v4599 = vrcp.pop %v4557
        %v4600 = vrcp.pop %v4560
        %v4601 = vrcp.pop %v4563
        %v4602 = vrcp.pop %v4566
        %v4603 = vrcp.pop %v4569
        %v4604 = vrcp.pop %v4572
        %v4605 = vmul.f32 %v4350, %v4573
        %v4606 = vmul.f32 %v4352, %v4573
        %v4607 = vmul.f32 %v4354, %v4574
        %v4608 = vmul.f32 %v4356, %v4574
        %v4609 = vmul.f32 %v4358, %v4575
        %v4610 = vmul.f32 %v4360, %v4575
        %v4611 = vmul.f32 %v4362, %v4576
        %v4612 = vmul.f32 %v4364, %v4576
        %v4613 = vmul.f32 %v4366, %v4577
        %v4614 = vmul.f32 %v4368, %v4577
        %v4615 = vmul.f32 %v4370, %v4578
        %v4616 = vmul.f32 %v4372, %v4578
        %v4617 = vmul.f32 %v4374, %v4579
        %v4618 = vmul.f32 %v4376, %v4579
        %v4619 = vmul.f32 %v4378, %v4580
        %v4620 = vmul.f32 %v4380, %v4580
        %v4621 = vmul.f32 %v4382, %v4581
        %v4622 = vmul.f32 %v4384, %v4581
        %v4623 = vmul.f32 %v4386, %v4582
        %v4624 = vmul.f32 %v4388, %v4582
        %v4625 = vmul.f32 %v4390, %v4583
        %v4626 = vmul.f32 %v4392, %v4583
        %v4627 = vmul.f32 %v4394, %v4584
        %v4628 = vmul.f32 %v4396, %v4584
        %v4629 = vmul.f32 %v4398, %v4585
        %v4630 = vmul.f32 %v4400, %v4585
        %v4631 = vmul.f32 %v4402, %v4586
        %v4632 = vmul.f32 %v4404, %v4586
        %v4633 = vmul.f32 %v4406, %v4587
        %v4634 = vmul.f32 %v4408, %v4587
        %v4635 = vmul.f32 %v4410, %v4588
        %v4636 = vmul.f32 %v4412, %v4588
        %v4637 = vmul.f32 %v4414, %v4589
        %v4638 = vmul.f32 %v4416, %v4589
        %v4639 = vmul.f32 %v4418, %v4590
        %v4640 = vmul.f32 %v4420, %v4590
        %v4641 = vmul.f32 %v4422, %v4591
        %v4642 = vmul.f32 %v4424, %v4591
        %v4643 = vmul.f32 %v4426, %v4592
        %v4644 = vmul.f32 %v4428, %v4592
        %v4645 = vmul.f32 %v4430, %v4593
        %v4646 = vmul.f32 %v4432, %v4593
        %v4647 = vmul.f32 %v4434, %v4594
        %v4648 = vmul.f32 %v4436, %v4594
        %v4649 = vmul.f32 %v4438, %v4595
        %v4650 = vmul.f32 %v4440, %v4595
        %v4651 = vmul.f32 %v4442, %v4596
        %v4652 = vmul.f32 %v4444, %v4596
        %v4653 = vmul.f32 %v4446, %v4597
        %v4654 = vmul.f32 %v4448, %v4597
        %v4655 = vmul.f32 %v4450, %v4598
        %v4656 = vmul.f32 %v4452, %v4598
        %v4657 = vmul.f32 %v4454, %v4599
        %v4658 = vmul.f32 %v4456, %v4599
        %v4659 = vmul.f32 %v4458, %v4600
        %v4660 = vmul.f32 %v4460, %v4600
        %v4661 = vmul.f32 %v4462, %v4601
        %v4662 = vmul.f32 %v4464, %v4601
        %v4663 = vmul.f32 %v4466, %v4602
        %v4664 = vmul.f32 %v4468, %v4602
        %v4665 = vmul.f32 %v4470, %v4603
        %v4666 = vmul.f32 %v4472, %v4603
        %v4667 = vmul.f32 %v4474, %v4604
        %v4668 = vmul.f32 %v4476, %v4604
        %v4669 = vpack.c.bf16 %v4607, %v4605
        %v4670 = vpack.c.bf16 %v4608, %v4606
        %v4671 = vpack.c.bf16 %v4611, %v4609
        %v4672 = vpack.c.bf16 %v4612, %v4610
        %v4673 = vpack.c.bf16 %v4615, %v4613
        %v4674 = vpack.c.bf16 %v4616, %v4614
        %v4675 = vpack.c.bf16 %v4619, %v4617
        %v4676 = vpack.c.bf16 %v4620, %v4618
        %v4677 = vpack.c.bf16 %v4623, %v4621
        %v4678 = vpack.c.bf16 %v4624, %v4622
        %v4679 = vpack.c.bf16 %v4627, %v4625
        %v4680 = vpack.c.bf16 %v4628, %v4626
        %v4681 = vpack.c.bf16 %v4631, %v4629
        %v4682 = vpack.c.bf16 %v4632, %v4630
        %v4683 = vpack.c.bf16 %v4635, %v4633
        %v4684 = vpack.c.bf16 %v4636, %v4634
        %v4685 = vpack.c.bf16 %v4639, %v4637
        %v4686 = vpack.c.bf16 %v4640, %v4638
        %v4687 = vpack.c.bf16 %v4643, %v4641
        %v4688 = vpack.c.bf16 %v4644, %v4642
        %v4689 = vpack.c.bf16 %v4647, %v4645
        %v4690 = vpack.c.bf16 %v4648, %v4646
        %v4691 = vpack.c.bf16 %v4651, %v4649
        %v4692 = vpack.c.bf16 %v4652, %v4650
        %v4693 = vpack.c.bf16 %v4655, %v4653
        %v4694 = vpack.c.bf16 %v4656, %v4654
        %v4695 = vpack.c.bf16 %v4659, %v4657
        %v4696 = vpack.c.bf16 %v4660, %v4658
        %v4697 = vpack.c.bf16 %v4663, %v4661
        %v4698 = vpack.c.bf16 %v4664, %v4662
        %v4699 = vpack.c.bf16 %v4667, %v4665
        %v4700 = vpack.c.bf16 %v4668, %v4666
        %4701 = vrot.lane.b32.xlu0 %v1430, 64
        %v4702 = vpop.permute.xlu0 %4701
        %4703 = vrot.lane.b32.xlu0 %v1432, 64
        %v4704 = vpop.permute.xlu0 %4703
        %4705 = vrot.lane.b32.xlu0 %v1434, 64
        %v4706 = vpop.permute.xlu0 %4705
        %4707 = vrot.lane.b32.xlu0 %v1436, 64
        %v4708 = vpop.permute.xlu0 %4707
        %4709 = vrot.lane.b32.xlu0 %v1438, 64
        %v4710 = vpop.permute.xlu0 %4709
        %4711 = vrot.lane.b32.xlu0 %v1440, 64
        %v4712 = vpop.permute.xlu0 %4711
        %4713 = vrot.lane.b32.xlu0 %v1442, 64
        %v4714 = vpop.permute.xlu0 %4713
        %4715 = vrot.lane.b32.xlu0 %v1444, 64
        %v4716 = vpop.permute.xlu0 %4715
        %4717 = vrot.lane.b32.xlu0 %v1446, 64
        %v4718 = vpop.permute.xlu0 %4717
        %4719 = vrot.lane.b32.xlu0 %v1448, 64
        %v4720 = vpop.permute.xlu0 %4719
        %4721 = vrot.lane.b32.xlu0 %v1450, 64
        %v4722 = vpop.permute.xlu0 %4721
        %4723 = vrot.lane.b32.xlu0 %v1452, 64
        %v4724 = vpop.permute.xlu0 %4723
        %4725 = vrot.lane.b32.xlu0 %v1454, 64
        %v4726 = vpop.permute.xlu0 %4725
        %4727 = vrot.lane.b32.xlu0 %v1456, 64
        %v4728 = vpop.permute.xlu0 %4727
        %4729 = vrot.lane.b32.xlu0 %v1458, 64
        %v4730 = vpop.permute.xlu0 %4729
        %4731 = vrot.lane.b32.xlu0 %v1460, 64
        %v4732 = vpop.permute.xlu0 %4731
        %4749 = vmatprep.subr.bf16.mxu0 0
        %4750 = vmatpush1.bf16.msra.mxu0 %v4702
        %4751 = vmatprep.subr.bf16.mxu0 0
        %4752 = vmatpush1.bf16.msra.mxu0 %v4704
        %4753 = vmatprep.subr.bf16.mxu0 0
        %4754 = vmatpush1.bf16.msra.mxu0 %v4706
        %4755 = vmatprep.subr.bf16.mxu0 0
        %4756 = vmatpush1.bf16.msra.mxu0 %v4708
        %4757 = vmatprep.subr.bf16.mxu0 0
        %4758 = vmatpush1.bf16.msra.mxu0 %v4710
        %4759 = vmatprep.subr.bf16.mxu0 0
        %4760 = vmatpush1.bf16.msra.mxu0 %v4712
        %4761 = vmatprep.subr.bf16.mxu0 0
        %4762 = vmatpush1.bf16.msra.mxu0 %v4714
        %4763 = vmatprep.subr.bf16.mxu0 0
        %4764 = vmatpush1.bf16.msra.mxu0 %v4716
        %4765 = vmatprep.subr.bf16.mxu0 0
        %4766 = vmatpush1.bf16.msra.mxu0 %v4718
        %4767 = vmatprep.subr.bf16.mxu0 0
        %4768 = vmatpush1.bf16.msra.mxu0 %v4720
        %4769 = vmatprep.subr.bf16.mxu0 0
        %4770 = vmatpush1.bf16.msra.mxu0 %v4722
        %4771 = vmatprep.subr.bf16.mxu0 0
        %4772 = vmatpush1.bf16.msra.mxu0 %v4724
        %4773 = vmatprep.subr.bf16.mxu0 0
        %4774 = vmatpush1.bf16.msra.mxu0 %v4726
        %4775 = vmatprep.subr.bf16.mxu0 0
        %4776 = vmatpush1.bf16.msra.mxu0 %v4728
        %4777 = vmatprep.subr.bf16.mxu0 0
        %4778 = vmatpush1.bf16.msra.mxu0 %v4730
        %4779 = vmatprep.subr.bf16.mxu0 0
        %4780 = vmatpush1.bf16.msra.mxu0 %v4732
        %4781 = vmatprep.mubr.bf16.mxu0 %v4670
        %4782 = vmatmul.mubr.bf16.gmra.mrb[0].mxu0 %v4669
        %v4783 = vpop.f32.mrb[0].mxu0
        %v4784 = vadd.f32 0.0, %v4783
        %v4785 = vpop.f32.mrb[0].mxu0
        %v4786 = vpop.f32.mrb[0].mxu0
        %v4787 = vadd.f32 0.0, %v4786
        %v4788 = vpop.f32.mrb[0].mxu0
        %4789 = vmatprep.mubr.bf16.mxu0 %v4672
        %4790 = vmatmul.mubr.bf16.gmra.mrb[0].mxu0 %v4671
        %v4791 = vpop.f32.mrb[0].mxu0
        %v4792 = vadd.f32 0.0, %v4791
        %v4793 = vpop.f32.mrb[0].mxu0
        %v4794 = vpop.f32.mrb[0].mxu0
        %v4795 = vadd.f32 0.0, %v4794
        %v4796 = vpop.f32.mrb[0].mxu0
        %4797 = vmatprep.mubr.bf16.mxu0 %v4674
        %4798 = vmatmul.mubr.bf16.gmra.mrb[0].mxu0 %v4673
        %v4799 = vpop.f32.mrb[0].mxu0
        %v4800 = vadd.f32 0.0, %v4799
        %v4801 = vpop.f32.mrb[0].mxu0
        %v4802 = vpop.f32.mrb[0].mxu0
        %v4803 = vadd.f32 0.0, %v4802
        %v4804 = vpop.f32.mrb[0].mxu0
        %4805 = vmatprep.mubr.bf16.mxu0 %v4676
        %4806 = vmatmul.mubr.bf16.gmra.mrb[0].mxu0 %v4675
        %v4807 = vpop.f32.mrb[0].mxu0
        %v4808 = vadd.f32 0.0, %v4807
        %v4809 = vpop.f32.mrb[0].mxu0
        %v4810 = vpop.f32.mrb[0].mxu0
        %v4811 = vadd.f32 0.0, %v4810
        %v4812 = vpop.f32.mrb[0].mxu0
        %4813 = vmatprep.mubr.bf16.mxu0 %v4678
        %4814 = vmatmul.mubr.bf16.gmra.mrb[0].mxu0 %v4677
        %v4815 = vpop.f32.mrb[0].mxu0
        %v4816 = vadd.f32 0.0, %v4815
        %v4817 = vpop.f32.mrb[0].mxu0
        %v4818 = vpop.f32.mrb[0].mxu0
        %v4819 = vadd.f32 0.0, %v4818
        %v4820 = vpop.f32.mrb[0].mxu0
        %4821 = vmatprep.mubr.bf16.mxu0 %v4680
        %4822 = vmatmul.mubr.bf16.gmra.mrb[0].mxu0 %v4679
        %v4823 = vpop.f32.mrb[0].mxu0
        %v4824 = vadd.f32 0.0, %v4823
        %v4825 = vpop.f32.mrb[0].mxu0
        %v4826 = vpop.f32.mrb[0].mxu0
        %v4827 = vadd.f32 0.0, %v4826
        %v4828 = vpop.f32.mrb[0].mxu0
        %4829 = vmatprep.mubr.bf16.mxu0 %v4682
        %4830 = vmatmul.mubr.bf16.gmra.mrb[0].mxu0 %v4681
        %v4831 = vpop.f32.mrb[0].mxu0
        %v4832 = vadd.f32 0.0, %v4831
        %v4833 = vpop.f32.mrb[0].mxu0
        %v4834 = vpop.f32.mrb[0].mxu0
        %v4835 = vadd.f32 0.0, %v4834
        %v4836 = vpop.f32.mrb[0].mxu0
        %4837 = vmatprep.mubr.bf16.mxu0 %v4684
        %4838 = vmatmul.mubr.bf16.gmra.mrb[0].mxu0 %v4683
        %v4839 = vpop.f32.mrb[0].mxu0
        %v4840 = vadd.f32 0.0, %v4839
        %v4841 = vpop.f32.mrb[0].mxu0
        %v4842 = vpop.f32.mrb[0].mxu0
        %v4843 = vadd.f32 0.0, %v4842
        %v4844 = vpop.f32.mrb[0].mxu0
        %4845 = vmatprep.mubr.bf16.mxu0 %v4686
        %4846 = vmatmul.mubr.bf16.gmra.mrb[0].mxu0 %v4685
        %v4847 = vpop.f32.mrb[0].mxu0
        %v4848 = vadd.f32 0.0, %v4847
        %v4849 = vpop.f32.mrb[0].mxu0
        %v4850 = vpop.f32.mrb[0].mxu0
        %v4851 = vadd.f32 0.0, %v4850
        %v4852 = vpop.f32.mrb[0].mxu0
        %4853 = vmatprep.mubr.bf16.mxu0 %v4688
        %4854 = vmatmul.mubr.bf16.gmra.mrb[0].mxu0 %v4687
        %v4855 = vpop.f32.mrb[0].mxu0
        %v4856 = vadd.f32 0.0, %v4855
        %v4857 = vpop.f32.mrb[0].mxu0
        %v4858 = vpop.f32.mrb[0].mxu0
        %v4859 = vadd.f32 0.0, %v4858
        %v4860 = vpop.f32.mrb[0].mxu0
        %4861 = vmatprep.mubr.bf16.mxu0 %v4690
        %4862 = vmatmul.mubr.bf16.gmra.mrb[0].mxu0 %v4689
        %v4863 = vpop.f32.mrb[0].mxu0
        %v4864 = vadd.f32 0.0, %v4863
        %v4865 = vpop.f32.mrb[0].mxu0
        %v4866 = vpop.f32.mrb[0].mxu0
        %v4867 = vadd.f32 0.0, %v4866
        %v4868 = vpop.f32.mrb[0].mxu0
        %4869 = vmatprep.mubr.bf16.mxu0 %v4692
        %4870 = vmatmul.mubr.bf16.gmra.mrb[0].mxu0 %v4691
        %v4871 = vpop.f32.mrb[0].mxu0
        %v4872 = vadd.f32 0.0, %v4871
        %v4873 = vpop.f32.mrb[0].mxu0
        %v4874 = vpop.f32.mrb[0].mxu0
        %v4875 = vadd.f32 0.0, %v4874
        %v4876 = vpop.f32.mrb[0].mxu0
        %4877 = vmatprep.mubr.bf16.mxu0 %v4694
        %4878 = vmatmul.mubr.bf16.gmra.mrb[0].mxu0 %v4693
        %v4879 = vpop.f32.mrb[0].mxu0
        %v4880 = vadd.f32 0.0, %v4879
        %v4881 = vpop.f32.mrb[0].mxu0
        %v4882 = vpop.f32.mrb[0].mxu0
        %v4883 = vadd.f32 0.0, %v4882
        %v4884 = vpop.f32.mrb[0].mxu0
        %4885 = vmatprep.mubr.bf16.mxu0 %v4696
        %4886 = vmatmul.mubr.bf16.gmra.mrb[0].mxu0 %v4695
        %v4887 = vpop.f32.mrb[0].mxu0
        %v4888 = vadd.f32 0.0, %v4887
        %v4889 = vpop.f32.mrb[0].mxu0
        %v4890 = vpop.f32.mrb[0].mxu0
        %v4891 = vadd.f32 0.0, %v4890
        %v4892 = vpop.f32.mrb[0].mxu0
        %4893 = vmatprep.mubr.bf16.mxu0 %v4698
        %4894 = vmatmul.mubr.bf16.gmra.mrb[0].mxu0 %v4697
        %v4895 = vpop.f32.mrb[0].mxu0
        %v4896 = vadd.f32 0.0, %v4895
        %v4897 = vpop.f32.mrb[0].mxu0
        %v4898 = vpop.f32.mrb[0].mxu0
        %v4899 = vadd.f32 0.0, %v4898
        %v4900 = vpop.f32.mrb[0].mxu0
        %4901 = vmatprep.mubr.bf16.mxu0 %v4700
        %4902 = vmatmul.mubr.bf16.gmra.mrb[0].mxu0 %v4699
        %v4903 = vpop.f32.mrb[0].mxu0
        %v4904 = vadd.f32 0.0, %v4903
        %v4905 = vpop.f32.mrb[0].mxu0
        %v4906 = vpop.f32.mrb[0].mxu0
        %v4907 = vadd.f32 0.0, %v4906
        %v4908 = vpop.f32.mrb[0].mxu0
        %4909 = vdwg.mxu0
        %s4910 = scalar_lea.vmem [#allocation12], 768
        %v4911 = vld [vmem:[%s4910] sm:$0xff]
        %v4912 = vld [vmem:[%s4910 + $0x8] sm:$0xff]
        %v4913 = vld [vmem:[%s4910 + $0x10] sm:$0xff]
        %v4914 = vld [vmem:[%s4910 + $0x18] sm:$0xff]
        %v4915 = vld [vmem:[%s4910 + $0x20] sm:$0xff]
        %v4916 = vld [vmem:[%s4910 + $0x28] sm:$0xff]
        %v4917 = vld [vmem:[%s4910 + $0x30] sm:$0xff]
        %v4918 = vld [vmem:[%s4910 + $0x38] sm:$0xff]
        %v4919 = vld [vmem:[%s4910 + $0x40] sm:$0xff]
        %v4920 = vld [vmem:[%s4910 + $0x48] sm:$0xff]
        %v4921 = vld [vmem:[%s4910 + $0x50] sm:$0xff]
        %v4922 = vld [vmem:[%s4910 + $0x58] sm:$0xff]
        %v4923 = vld [vmem:[%s4910 + $0x60] sm:$0xff]
        %v4924 = vld [vmem:[%s4910 + $0x68] sm:$0xff]
        %v4925 = vld [vmem:[%s4910 + $0x70] sm:$0xff]
        %v4926 = vld [vmem:[%s4910 + $0x78] sm:$0xff]
        %v4927 = vld [vmem:[%s4910 + $0x80] sm:$0xff]
        %v4928 = vld [vmem:[%s4910 + $0x88] sm:$0xff]
        %v4929 = vld [vmem:[%s4910 + $0x90] sm:$0xff]
        %v4930 = vld [vmem:[%s4910 + $0x98] sm:$0xff]
        %v4931 = vld [vmem:[%s4910 + $0xa0] sm:$0xff]
        %v4932 = vld [vmem:[%s4910 + $0xa8] sm:$0xff]
        %v4933 = vld [vmem:[%s4910 + $0xb0] sm:$0xff]
        %v4934 = vld [vmem:[%s4910 + $0xb8] sm:$0xff]
        %v4935 = vld [vmem:[%s4910 + $0xc0] sm:$0xff]
        %v4936 = vld [vmem:[%s4910 + $0xc8] sm:$0xff]
        %v4937 = vld [vmem:[%s4910 + $0xd0] sm:$0xff]
        %v4938 = vld [vmem:[%s4910 + $0xd8] sm:$0xff]
        %v4939 = vld [vmem:[%s4910 + $0xe0] sm:$0xff]
        %v4940 = vld [vmem:[%s4910 + $0xe8] sm:$0xff]
        %v4941 = vld [vmem:[%s4910 + $0xf0] sm:$0xff]
        %v4942 = vld [vmem:[%s4910 + $0xf8] sm:$0xff]
        %v4943 = vunpack.c.l.bf16 %v4911
        %v4944 = vunpack.c.h.bf16 %v4911
        %v4945 = vunpack.c.l.bf16 %v4912
        %v4946 = vunpack.c.h.bf16 %v4912
        %v4947 = vunpack.c.l.bf16 %v4913
        %v4948 = vunpack.c.h.bf16 %v4913
        %v4949 = vunpack.c.l.bf16 %v4914
        %v4950 = vunpack.c.h.bf16 %v4914
        %v4951 = vunpack.c.l.bf16 %v4915
        %v4952 = vunpack.c.h.bf16 %v4915
        %v4953 = vunpack.c.l.bf16 %v4916
        %v4954 = vunpack.c.h.bf16 %v4916
        %v4955 = vunpack.c.l.bf16 %v4917
        %v4956 = vunpack.c.h.bf16 %v4917
        %v4957 = vunpack.c.l.bf16 %v4918
        %v4958 = vunpack.c.h.bf16 %v4918
        %v4959 = vunpack.c.l.bf16 %v4919
        %v4960 = vunpack.c.h.bf16 %v4919
        %v4961 = vunpack.c.l.bf16 %v4920
        %v4962 = vunpack.c.h.bf16 %v4920
        %v4963 = vunpack.c.l.bf16 %v4921
        %v4964 = vunpack.c.h.bf16 %v4921
        %v4965 = vunpack.c.l.bf16 %v4922
        %v4966 = vunpack.c.h.bf16 %v4922
        %v4967 = vunpack.c.l.bf16 %v4923
        %v4968 = vunpack.c.h.bf16 %v4923
        %v4969 = vunpack.c.l.bf16 %v4924
        %v4970 = vunpack.c.h.bf16 %v4924
        %v4971 = vunpack.c.l.bf16 %v4925
        %v4972 = vunpack.c.h.bf16 %v4925
        %v4973 = vunpack.c.l.bf16 %v4926
        %v4974 = vunpack.c.h.bf16 %v4926
        %v4975 = vunpack.c.l.bf16 %v4927
        %v4976 = vunpack.c.h.bf16 %v4927
        %v4977 = vunpack.c.l.bf16 %v4928
        %v4978 = vunpack.c.h.bf16 %v4928
        %v4979 = vunpack.c.l.bf16 %v4929
        %v4980 = vunpack.c.h.bf16 %v4929
        %v4981 = vunpack.c.l.bf16 %v4930
        %v4982 = vunpack.c.h.bf16 %v4930
        %v4983 = vunpack.c.l.bf16 %v4931
        %v4984 = vunpack.c.h.bf16 %v4931
        %v4985 = vunpack.c.l.bf16 %v4932
        %v4986 = vunpack.c.h.bf16 %v4932
        %v4987 = vunpack.c.l.bf16 %v4933
        %v4988 = vunpack.c.h.bf16 %v4933
        %v4989 = vunpack.c.l.bf16 %v4934
        %v4990 = vunpack.c.h.bf16 %v4934
        %v4991 = vunpack.c.l.bf16 %v4935
        %v4992 = vunpack.c.h.bf16 %v4935
        %v4993 = vunpack.c.l.bf16 %v4936
        %v4994 = vunpack.c.h.bf16 %v4936
        %v4995 = vunpack.c.l.bf16 %v4937
        %v4996 = vunpack.c.h.bf16 %v4937
        %v4997 = vunpack.c.l.bf16 %v4938
        %v4998 = vunpack.c.h.bf16 %v4938
        %v4999 = vunpack.c.l.bf16 %v4939
        %v5000 = vunpack.c.h.bf16 %v4939
        %v5001 = vunpack.c.l.bf16 %v4940
        %v5002 = vunpack.c.h.bf16 %v4940
        %v5003 = vunpack.c.l.bf16 %v4941
        %v5004 = vunpack.c.h.bf16 %v4941
        %v5005 = vunpack.c.l.bf16 %v4942
        %v5006 = vunpack.c.h.bf16 %v4942
        %5007 = vrot.lane.b32.xlu0 %v1413, 32
        %v5008 = vpop.permute.xlu0 %5007
        %5009 = vrot.lane.b32.xlu0 %v1414, 32
        %v5010 = vpop.permute.xlu0 %5009
        %5011 = vrot.lane.b32.xlu0 %v1415, 32
        %v5012 = vpop.permute.xlu0 %5011
        %5013 = vrot.lane.b32.xlu0 %v1416, 32
        %v5014 = vpop.permute.xlu0 %5013
        %5015 = vrot.lane.b32.xlu0 %v1417, 32
        %v5016 = vpop.permute.xlu0 %5015
        %5017 = vrot.lane.b32.xlu0 %v1418, 32
        %v5018 = vpop.permute.xlu0 %5017
        %5019 = vrot.lane.b32.xlu0 %v1419, 32
        %v5020 = vpop.permute.xlu0 %5019
        %5021 = vrot.lane.b32.xlu0 %v1420, 32
        %v5022 = vpop.permute.xlu0 %5021
        %5023 = vrot.lane.b32.xlu0 %v1421, 32
        %v5024 = vpop.permute.xlu0 %5023
        %5025 = vrot.lane.b32.xlu0 %v1422, 32
        %v5026 = vpop.permute.xlu0 %5025
        %5027 = vrot.lane.b32.xlu0 %v1423, 32
        %v5028 = vpop.permute.xlu0 %5027
        %5029 = vrot.lane.b32.xlu0 %v1424, 32
        %v5030 = vpop.permute.xlu0 %5029
        %5031 = vrot.lane.b32.xlu0 %v1425, 32
        %v5032 = vpop.permute.xlu0 %5031
        %5033 = vrot.lane.b32.xlu0 %v1426, 32
        %v5034 = vpop.permute.xlu0 %5033
        %5035 = vrot.lane.b32.xlu0 %v1427, 32
        %v5036 = vpop.permute.xlu0 %5035
        %5037 = vrot.lane.b32.xlu0 %v1428, 32
        %v5038 = vpop.permute.xlu0 %5037
        %5039 = vrot.lane.b32.xlu0 %v1429, 32
        %v5040 = vpop.permute.xlu0 %5039
        %5041 = vrot.lane.b32.xlu0 %v1431, 32
        %v5042 = vpop.permute.xlu0 %5041
        %5043 = vrot.lane.b32.xlu0 %v1433, 32
        %v5044 = vpop.permute.xlu0 %5043
        %5045 = vrot.lane.b32.xlu0 %v1435, 32
        %v5046 = vpop.permute.xlu0 %5045
        %5047 = vrot.lane.b32.xlu0 %v1437, 32
        %v5048 = vpop.permute.xlu0 %5047
        %5049 = vrot.lane.b32.xlu0 %v1439, 32
        %v5050 = vpop.permute.xlu0 %5049
        %5051 = vrot.lane.b32.xlu0 %v1441, 32
        %v5052 = vpop.permute.xlu0 %5051
        %5053 = vrot.lane.b32.xlu0 %v1443, 32
        %v5054 = vpop.permute.xlu0 %5053
        %5055 = vrot.lane.b32.xlu0 %v1445, 32
        %v5056 = vpop.permute.xlu0 %5055
        %5057 = vrot.lane.b32.xlu0 %v1447, 32
        %v5058 = vpop.permute.xlu0 %5057
        %5059 = vrot.lane.b32.xlu0 %v1449, 32
        %v5060 = vpop.permute.xlu0 %5059
        %5061 = vrot.lane.b32.xlu0 %v1451, 32
        %v5062 = vpop.permute.xlu0 %5061
        %5063 = vrot.lane.b32.xlu0 %v1453, 32
        %v5064 = vpop.permute.xlu0 %5063
        %5065 = vrot.lane.b32.xlu0 %v1455, 32
        %v5066 = vpop.permute.xlu0 %5065
        %5067 = vrot.lane.b32.xlu0 %v1457, 32
        %v5068 = vpop.permute.xlu0 %5067
        %5069 = vrot.lane.b32.xlu0 %v1459, 32
        %v5070 = vpop.permute.xlu0 %5069
        %v5072 = vsel %vm1557, %v5008, 0
        %v5075 = vsel %vm1557, %v5010, 0
        %v5078 = vsel %vm1557, %v5012, 0
        %v5081 = vsel %vm1557, %v5014, 0
        %v5084 = vsel %vm1557, %v5016, 0
        %v5087 = vsel %vm1557, %v5018, 0
        %v5090 = vsel %vm1557, %v5020, 0
        %v5093 = vsel %vm1557, %v5022, 0
        %v5096 = vsel %vm1557, %v5024, 0
        %v5099 = vsel %vm1557, %v5026, 0
        %v5102 = vsel %vm1557, %v5028, 0
        %v5105 = vsel %vm1557, %v5030, 0
        %v5108 = vsel %vm1557, %v5032, 0
        %v5111 = vsel %vm1557, %v5034, 0
        %v5114 = vsel %vm1557, %v5036, 0
        %v5117 = vsel %vm1557, %v5038, 0
        %v5120 = vsel %vm1557, %v5040, 0
        %v5123 = vsel %vm1557, %v5042, 0
        %v5126 = vsel %vm1557, %v5044, 0
        %v5129 = vsel %vm1557, %v5046, 0
        %v5132 = vsel %vm1557, %v5048, 0
        %v5135 = vsel %vm1557, %v5050, 0
        %v5138 = vsel %vm1557, %v5052, 0
        %v5141 = vsel %vm1557, %v5054, 0
        %v5144 = vsel %vm1557, %v5056, 0
        %v5147 = vsel %vm1557, %v5058, 0
        %v5150 = vsel %vm1557, %v5060, 0
        %v5153 = vsel %vm1557, %v5062, 0
        %v5156 = vsel %vm1557, %v5064, 0
        %v5159 = vsel %vm1557, %v5066, 0
        %v5162 = vsel %vm1557, %v5068, 0
        %v5165 = vsel %vm1557, %v5070, 0
        %5167 = vmatprep.subr.bf16.mxu0 0
        %5168 = vmatpush1.bf16.xpose.msra.mxu0 %v5120
        %5169 = vmatprep.subr.bf16.mxu0 0
        %5170 = vmatpush1.bf16.xpose.msra.mxu0 %v5123
        %5171 = vmatprep.subr.bf16.mxu0 0
        %5172 = vmatpush1.bf16.xpose.msra.mxu0 %v5126
        %5173 = vmatprep.subr.bf16.mxu0 0
        %5174 = vmatpush1.bf16.xpose.msra.mxu0 %v5129
        %5175 = vmatprep.subr.bf16.mxu0 0
        %5176 = vmatpush1.bf16.xpose.msra.mxu0 %v5132
        %5177 = vmatprep.subr.bf16.mxu0 0
        %5178 = vmatpush1.bf16.xpose.msra.mxu0 %v5135
        %5179 = vmatprep.subr.bf16.mxu0 0
        %5180 = vmatpush1.bf16.xpose.msra.mxu0 %v5138
        %5181 = vmatprep.subr.bf16.mxu0 0
        %5182 = vmatpush1.bf16.xpose.msra.mxu0 %v5141
        %5183 = vmatprep.subr.bf16.mxu0 0
        %5184 = vmatpush1.bf16.xpose.msra.mxu0 %v5144
        %5185 = vmatprep.subr.bf16.mxu0 0
        %5186 = vmatpush1.bf16.xpose.msra.mxu0 %v5147
        %5187 = vmatprep.subr.bf16.mxu0 0
        %5188 = vmatpush1.bf16.xpose.msra.mxu0 %v5150
        %5189 = vmatprep.subr.bf16.mxu0 0
        %5190 = vmatpush1.bf16.xpose.msra.mxu0 %v5153
        %5191 = vmatprep.subr.bf16.mxu0 0
        %5192 = vmatpush1.bf16.xpose.msra.mxu0 %v5156
        %5193 = vmatprep.subr.bf16.mxu0 0
        %5194 = vmatpush1.bf16.xpose.msra.mxu0 %v5159
        %5195 = vmatprep.subr.bf16.mxu0 0
        %5196 = vmatpush1.bf16.xpose.msra.mxu0 %v5162
        %5197 = vmatprep.subr.bf16.mxu0 0
        %5198 = vmatpush1.bf16.xpose.msra.mxu0 %v5165
        %5199 = vmatprep.mubr.bf16.mxu0 0
        %5200 = vmatmul.mubr.bf16.gmra.mrb[0].mxu0 %v5072
        %v5201 = vpop.f32.mrb[0].mxu0
        %v5202 = vadd.f32 %v4943, %v5201
        %v5203 = vpop.f32.mrb[0].mxu0
        %v5204 = vadd.f32 %v4944, %v5203
        %v5205 = vpop.f32.mrb[0].mxu0
        %v5206 = vadd.f32 %v4945, %v5205
        %v5207 = vpop.f32.mrb[0].mxu0
        %v5208 = vadd.f32 %v4946, %v5207
        %5209 = vmatprep.mubr.bf16.mxu0 0
        %5210 = vmatmul.mubr.bf16.gmra.mrb[0].mxu0 %v5075
        %v5211 = vpop.f32.mrb[0].mxu0
        %v5212 = vadd.f32 %v4947, %v5211
        %v5213 = vpop.f32.mrb[0].mxu0
        %v5214 = vadd.f32 %v4948, %v5213
        %v5215 = vpop.f32.mrb[0].mxu0
        %v5216 = vadd.f32 %v4949, %v5215
        %v5217 = vpop.f32.mrb[0].mxu0
        %v5218 = vadd.f32 %v4950, %v5217
        %5219 = vmatprep.mubr.bf16.mxu0 0
        %5220 = vmatmul.mubr.bf16.gmra.mrb[0].mxu0 %v5078
        %v5221 = vpop.f32.mrb[0].mxu0
        %v5222 = vadd.f32 %v4951, %v5221
        %v5223 = vpop.f32.mrb[0].mxu0
        %v5224 = vadd.f32 %v4952, %v5223
        %v5225 = vpop.f32.mrb[0].mxu0
        %v5226 = vadd.f32 %v4953, %v5225
        %v5227 = vpop.f32.mrb[0].mxu0
        %v5228 = vadd.f32 %v4954, %v5227
        %5229 = vmatprep.mubr.bf16.mxu0 0
        %5230 = vmatmul.mubr.bf16.gmra.mrb[0].mxu0 %v5081
        %v5231 = vpop.f32.mrb[0].mxu0
        %v5232 = vadd.f32 %v4955, %v5231
        %v5233 = vpop.f32.mrb[0].mxu0
        %v5234 = vadd.f32 %v4956, %v5233
        %v5235 = vpop.f32.mrb[0].mxu0
        %v5236 = vadd.f32 %v4957, %v5235
        %v5237 = vpop.f32.mrb[0].mxu0
        %v5238 = vadd.f32 %v4958, %v5237
        %5239 = vmatprep.mubr.bf16.mxu0 0
        %5240 = vmatmul.mubr.bf16.gmra.mrb[0].mxu0 %v5084
        %v5241 = vpop.f32.mrb[0].mxu0
        %v5242 = vadd.f32 %v4959, %v5241
        %v5243 = vpop.f32.mrb[0].mxu0
        %v5244 = vadd.f32 %v4960, %v5243
        %v5245 = vpop.f32.mrb[0].mxu0
        %v5246 = vadd.f32 %v4961, %v5245
        %v5247 = vpop.f32.mrb[0].mxu0
        %v5248 = vadd.f32 %v4962, %v5247
        %5249 = vmatprep.mubr.bf16.mxu0 0
        %5250 = vmatmul.mubr.bf16.gmra.mrb[0].mxu0 %v5087
        %v5251 = vpop.f32.mrb[0].mxu0
        %v5252 = vadd.f32 %v4963, %v5251
        %v5253 = vpop.f32.mrb[0].mxu0
        %v5254 = vadd.f32 %v4964, %v5253
        %v5255 = vpop.f32.mrb[0].mxu0
        %v5256 = vadd.f32 %v4965, %v5255
        %v5257 = vpop.f32.mrb[0].mxu0
        %v5258 = vadd.f32 %v4966, %v5257
        %5259 = vmatprep.mubr.bf16.mxu0 0
        %5260 = vmatmul.mubr.bf16.gmra.mrb[0].mxu0 %v5090
        %v5261 = vpop.f32.mrb[0].mxu0
        %v5262 = vadd.f32 %v4967, %v5261
        %v5263 = vpop.f32.mrb[0].mxu0
        %v5264 = vadd.f32 %v4968, %v5263
        %v5265 = vpop.f32.mrb[0].mxu0
        %v5266 = vadd.f32 %v4969, %v5265
        %v5267 = vpop.f32.mrb[0].mxu0
        %v5268 = vadd.f32 %v4970, %v5267
        %5269 = vmatprep.mubr.bf16.mxu0 0
        %5270 = vmatmul.mubr.bf16.gmra.mrb[0].mxu0 %v5093
        %v5271 = vpop.f32.mrb[0].mxu0
        %v5272 = vadd.f32 %v4971, %v5271
        %v5273 = vpop.f32.mrb[0].mxu0
        %v5274 = vadd.f32 %v4972, %v5273
        %v5275 = vpop.f32.mrb[0].mxu0
        %v5276 = vadd.f32 %v4973, %v5275
        %v5277 = vpop.f32.mrb[0].mxu0
        %v5278 = vadd.f32 %v4974, %v5277
        %5279 = vmatprep.mubr.bf16.mxu0 0
        %5280 = vmatmul.mubr.bf16.gmra.mrb[0].mxu0 %v5096
        %v5281 = vpop.f32.mrb[0].mxu0
        %v5282 = vadd.f32 %v4975, %v5281
        %v5283 = vpop.f32.mrb[0].mxu0
        %v5284 = vadd.f32 %v4976, %v5283
        %v5285 = vpop.f32.mrb[0].mxu0
        %v5286 = vadd.f32 %v4977, %v5285
        %v5287 = vpop.f32.mrb[0].mxu0
        %v5288 = vadd.f32 %v4978, %v5287
        %5289 = vmatprep.mubr.bf16.mxu0 0
        %5290 = vmatmul.mubr.bf16.gmra.mrb[0].mxu0 %v5099
        %v5291 = vpop.f32.mrb[0].mxu0
        %v5292 = vadd.f32 %v4979, %v5291
        %v5293 = vpop.f32.mrb[0].mxu0
        %v5294 = vadd.f32 %v4980, %v5293
        %v5295 = vpop.f32.mrb[0].mxu0
        %v5296 = vadd.f32 %v4981, %v5295
        %v5297 = vpop.f32.mrb[0].mxu0
        %v5298 = vadd.f32 %v4982, %v5297
        %5299 = vmatprep.mubr.bf16.mxu0 0
        %5300 = vmatmul.mubr.bf16.gmra.mrb[0].mxu0 %v5102
        %v5301 = vpop.f32.mrb[0].mxu0
        %v5302 = vadd.f32 %v4983, %v5301
        %v5303 = vpop.f32.mrb[0].mxu0
        %v5304 = vadd.f32 %v4984, %v5303
        %v5305 = vpop.f32.mrb[0].mxu0
        %v5306 = vadd.f32 %v4985, %v5305
        %v5307 = vpop.f32.mrb[0].mxu0
        %v5308 = vadd.f32 %v4986, %v5307
        %5309 = vmatprep.mubr.bf16.mxu0 0
        %5310 = vmatmul.mubr.bf16.gmra.mrb[0].mxu0 %v5105
        %v5311 = vpop.f32.mrb[0].mxu0
        %v5312 = vadd.f32 %v4987, %v5311
        %v5313 = vpop.f32.mrb[0].mxu0
        %v5314 = vadd.f32 %v4988, %v5313
        %v5315 = vpop.f32.mrb[0].mxu0
        %v5316 = vadd.f32 %v4989, %v5315
        %v5317 = vpop.f32.mrb[0].mxu0
        %v5318 = vadd.f32 %v4990, %v5317
        %5319 = vmatprep.mubr.bf16.mxu0 0
        %5320 = vmatmul.mubr.bf16.gmra.mrb[0].mxu0 %v5108
        %v5321 = vpop.f32.mrb[0].mxu0
        %v5322 = vadd.f32 %v4991, %v5321
        %v5323 = vpop.f32.mrb[0].mxu0
        %v5324 = vadd.f32 %v4992, %v5323
        %v5325 = vpop.f32.mrb[0].mxu0
        %v5326 = vadd.f32 %v4993, %v5325
        %v5327 = vpop.f32.mrb[0].mxu0
        %v5328 = vadd.f32 %v4994, %v5327
        %5329 = vmatprep.mubr.bf16.mxu0 0
        %5330 = vmatmul.mubr.bf16.gmra.mrb[0].mxu0 %v5111
        %v5331 = vpop.f32.mrb[0].mxu0
        %v5332 = vadd.f32 %v4995, %v5331
        %v5333 = vpop.f32.mrb[0].mxu0
        %v5334 = vadd.f32 %v4996, %v5333
        %v5335 = vpop.f32.mrb[0].mxu0
        %v5336 = vadd.f32 %v4997, %v5335
        %v5337 = vpop.f32.mrb[0].mxu0
        %v5338 = vadd.f32 %v4998, %v5337
        %5339 = vmatprep.mubr.bf16.mxu0 0
        %5340 = vmatmul.mubr.bf16.gmra.mrb[0].mxu0 %v5114
        %v5341 = vpop.f32.mrb[0].mxu0
        %v5342 = vadd.f32 %v4999, %v5341
        %v5343 = vpop.f32.mrb[0].mxu0
        %v5344 = vadd.f32 %v5000, %v5343
        %v5345 = vpop.f32.mrb[0].mxu0
        %v5346 = vadd.f32 %v5001, %v5345
        %v5347 = vpop.f32.mrb[0].mxu0
        %v5348 = vadd.f32 %v5002, %v5347
        %5349 = vmatprep.mubr.bf16.mxu0 0
        %5350 = vmatmul.mubr.bf16.gmra.mrb[0].mxu0 %v5117
        %v5351 = vpop.f32.mrb[0].mxu0
        %v5352 = vadd.f32 %v5003, %v5351
        %v5353 = vpop.f32.mrb[0].mxu0
        %v5354 = vadd.f32 %v5004, %v5353
        %v5355 = vpop.f32.mrb[0].mxu0
        %v5356 = vadd.f32 %v5005, %v5355
        %v5357 = vpop.f32.mrb[0].mxu0
        %v5358 = vadd.f32 %v5006, %v5357
        %5359 = vdwg.mxu0
        %v5360 = vmax.f32 %v5202, %v5204
        %5361 = vmax.xlane.f32.xlu0 %v5360
        %v5362 = vpop.xlane.xlu0 %5361
        %v5363 = vmax.f32 %v5206, %v5208
        %5364 = vmax.xlane.f32.xlu0 %v5363
        %v5365 = vpop.xlane.xlu0 %5364
        %v5366 = vmax.f32 %v5212, %v5214
        %5367 = vmax.xlane.f32.xlu0 %v5366
        %v5368 = vpop.xlane.xlu0 %5367
        %v5369 = vmax.f32 %v5216, %v5218
        %5370 = vmax.xlane.f32.xlu0 %v5369
        %v5371 = vpop.xlane.xlu0 %5370
        %v5372 = vmax.f32 %v5222, %v5224
        %5373 = vmax.xlane.f32.xlu0 %v5372
        %v5374 = vpop.xlane.xlu0 %5373
        %v5375 = vmax.f32 %v5226, %v5228
        %5376 = vmax.xlane.f32.xlu0 %v5375
        %v5377 = vpop.xlane.xlu0 %5376
        %v5378 = vmax.f32 %v5232, %v5234
        %5379 = vmax.xlane.f32.xlu0 %v5378
        %v5380 = vpop.xlane.xlu0 %5379
        %v5381 = vmax.f32 %v5236, %v5238
        %5382 = vmax.xlane.f32.xlu0 %v5381
        %v5383 = vpop.xlane.xlu0 %5382
        %v5384 = vmax.f32 %v5242, %v5244
        %5385 = vmax.xlane.f32.xlu0 %v5384
        %v5386 = vpop.xlane.xlu0 %5385
        %v5387 = vmax.f32 %v5246, %v5248
        %5388 = vmax.xlane.f32.xlu0 %v5387
        %v5389 = vpop.xlane.xlu0 %5388
        %v5390 = vmax.f32 %v5252, %v5254
        %5391 = vmax.xlane.f32.xlu0 %v5390
        %v5392 = vpop.xlane.xlu0 %5391
        %v5393 = vmax.f32 %v5256, %v5258
        %5394 = vmax.xlane.f32.xlu0 %v5393
        %v5395 = vpop.xlane.xlu0 %5394
        %v5396 = vmax.f32 %v5262, %v5264
        %5397 = vmax.xlane.f32.xlu0 %v5396
        %v5398 = vpop.xlane.xlu0 %5397
        %v5399 = vmax.f32 %v5266, %v5268
        %5400 = vmax.xlane.f32.xlu0 %v5399
        %v5401 = vpop.xlane.xlu0 %5400
        %v5402 = vmax.f32 %v5272, %v5274
        %5403 = vmax.xlane.f32.xlu0 %v5402
        %v5404 = vpop.xlane.xlu0 %5403
        %v5405 = vmax.f32 %v5276, %v5278
        %5406 = vmax.xlane.f32.xlu0 %v5405
        %v5407 = vpop.xlane.xlu0 %5406
        %v5408 = vmax.f32 %v5282, %v5284
        %5409 = vmax.xlane.f32.xlu0 %v5408
        %v5410 = vpop.xlane.xlu0 %5409
        %v5411 = vmax.f32 %v5286, %v5288
        %5412 = vmax.xlane.f32.xlu0 %v5411
        %v5413 = vpop.xlane.xlu0 %5412
        %v5414 = vmax.f32 %v5292, %v5294
        %5415 = vmax.xlane.f32.xlu0 %v5414
        %v5416 = vpop.xlane.xlu0 %5415
        %v5417 = vmax.f32 %v5296, %v5298
        %5418 = vmax.xlane.f32.xlu0 %v5417
        %v5419 = vpop.xlane.xlu0 %5418
        %v5420 = vmax.f32 %v5302, %v5304
        %5421 = vmax.xlane.f32.xlu0 %v5420
        %v5422 = vpop.xlane.xlu0 %5421
        %v5423 = vmax.f32 %v5306, %v5308
        %5424 = vmax.xlane.f32.xlu0 %v5423
        %v5425 = vpop.xlane.xlu0 %5424
        %v5426 = vmax.f32 %v5312, %v5314
        %5427 = vmax.xlane.f32.xlu0 %v5426
        %v5428 = vpop.xlane.xlu0 %5427
        %v5429 = vmax.f32 %v5316, %v5318
        %5430 = vmax.xlane.f32.xlu0 %v5429
        %v5431 = vpop.xlane.xlu0 %5430
        %v5432 = vmax.f32 %v5322, %v5324
        %5433 = vmax.xlane.f32.xlu0 %v5432
        %v5434 = vpop.xlane.xlu0 %5433
        %v5435 = vmax.f32 %v5326, %v5328
        %5436 = vmax.xlane.f32.xlu0 %v5435
        %v5437 = vpop.xlane.xlu0 %5436
        %v5438 = vmax.f32 %v5332, %v5334
        %5439 = vmax.xlane.f32.xlu0 %v5438
        %v5440 = vpop.xlane.xlu0 %5439
        %v5441 = vmax.f32 %v5336, %v5338
        %5442 = vmax.xlane.f32.xlu0 %v5441
        %v5443 = vpop.xlane.xlu0 %5442
        %v5444 = vmax.f32 %v5342, %v5344
        %5445 = vmax.xlane.f32.xlu0 %v5444
        %v5446 = vpop.xlane.xlu0 %5445
        %v5447 = vmax.f32 %v5346, %v5348
        %5448 = vmax.xlane.f32.xlu0 %v5447
        %v5449 = vpop.xlane.xlu0 %5448
        %v5450 = vmax.f32 %v5352, %v5354
        %5451 = vmax.xlane.f32.xlu0 %v5450
        %v5452 = vpop.xlane.xlu0 %5451
        %v5453 = vmax.f32 %v5356, %v5358
        %5454 = vmax.xlane.f32.xlu0 %v5453
        %v5455 = vpop.xlane.xlu0 %5454
        %v5456 = vsub.f32 %v5202, %v5362
        %v5457 = vsub.f32 %v5204, %v5362
        %v5458 = vsub.f32 %v5206, %v5365
        %v5459 = vsub.f32 %v5208, %v5365
        %v5460 = vsub.f32 %v5212, %v5368
        %v5461 = vsub.f32 %v5214, %v5368
        %v5462 = vsub.f32 %v5216, %v5371
        %v5463 = vsub.f32 %v5218, %v5371
        %v5464 = vsub.f32 %v5222, %v5374
        %v5465 = vsub.f32 %v5224, %v5374
        %v5466 = vsub.f32 %v5226, %v5377
        %v5467 = vsub.f32 %v5228, %v5377
        %v5468 = vsub.f32 %v5232, %v5380
        %v5469 = vsub.f32 %v5234, %v5380
        %v5470 = vsub.f32 %v5236, %v5383
        %v5471 = vsub.f32 %v5238, %v5383
        %v5472 = vsub.f32 %v5242, %v5386
        %v5473 = vsub.f32 %v5244, %v5386
        %v5474 = vsub.f32 %v5246, %v5389
        %v5475 = vsub.f32 %v5248, %v5389
        %v5476 = vsub.f32 %v5252, %v5392
        %v5477 = vsub.f32 %v5254, %v5392
        %v5478 = vsub.f32 %v5256, %v5395
        %v5479 = vsub.f32 %v5258, %v5395
        %v5480 = vsub.f32 %v5262, %v5398
        %v5481 = vsub.f32 %v5264, %v5398
        %v5482 = vsub.f32 %v5266, %v5401
        %v5483 = vsub.f32 %v5268, %v5401
        %v5484 = vsub.f32 %v5272, %v5404
        %v5485 = vsub.f32 %v5274, %v5404
        %v5486 = vsub.f32 %v5276, %v5407
        %v5487 = vsub.f32 %v5278, %v5407
        %v5488 = vsub.f32 %v5282, %v5410
        %v5489 = vsub.f32 %v5284, %v5410
        %v5490 = vsub.f32 %v5286, %v5413
        %v5491 = vsub.f32 %v5288, %v5413
        %v5492 = vsub.f32 %v5292, %v5416
        %v5493 = vsub.f32 %v5294, %v5416
        %v5494 = vsub.f32 %v5296, %v5419
        %v5495 = vsub.f32 %v5298, %v5419
        %v5496 = vsub.f32 %v5302, %v5422
        %v5497 = vsub.f32 %v5304, %v5422
        %v5498 = vsub.f32 %v5306, %v5425
        %v5499 = vsub.f32 %v5308, %v5425
        %v5500 = vsub.f32 %v5312, %v5428
        %v5501 = vsub.f32 %v5314, %v5428
        %v5502 = vsub.f32 %v5316, %v5431
        %v5503 = vsub.f32 %v5318, %v5431
        %v5504 = vsub.f32 %v5322, %v5434
        %v5505 = vsub.f32 %v5324, %v5434
        %v5506 = vsub.f32 %v5326, %v5437
        %v5507 = vsub.f32 %v5328, %v5437
        %v5508 = vsub.f32 %v5332, %v5440
        %v5509 = vsub.f32 %v5334, %v5440
        %v5510 = vsub.f32 %v5336, %v5443
        %v5511 = vsub.f32 %v5338, %v5443
        %v5512 = vsub.f32 %v5342, %v5446
        %v5513 = vsub.f32 %v5344, %v5446
        %v5514 = vsub.f32 %v5346, %v5449
        %v5515 = vsub.f32 %v5348, %v5449
        %v5516 = vsub.f32 %v5352, %v5452
        %v5517 = vsub.f32 %v5354, %v5452
        %v5518 = vsub.f32 %v5356, %v5455
        %v5519 = vsub.f32 %v5358, %v5455
        %v5520 = vmul.f32 %v5456, 1.442695
        %v5521 = vpow.pop %v5520
        %v5522 = vmul.f32 %v5457, 1.442695
        %v5523 = vpow.pop %v5522
        %v5524 = vmul.f32 %v5458, 1.442695
        %v5525 = vpow.pop %v5524
        %v5526 = vmul.f32 %v5459, 1.442695
        %v5527 = vpow.pop %v5526
        %v5528 = vmul.f32 %v5460, 1.442695
        %v5529 = vpow.pop %v5528
        %v5530 = vmul.f32 %v5461, 1.442695
        %v5531 = vpow.pop %v5530
        %v5532 = vmul.f32 %v5462, 1.442695
        %v5533 = vpow.pop %v5532
        %v5534 = vmul.f32 %v5463, 1.442695
        %v5535 = vpow.pop %v5534
        %v5536 = vmul.f32 %v5464, 1.442695
        %v5537 = vpow.pop %v5536
        %v5538 = vmul.f32 %v5465, 1.442695
        %v5539 = vpow.pop %v5538
        %v5540 = vmul.f32 %v5466, 1.442695
        %v5541 = vpow.pop %v5540
        %v5542 = vmul.f32 %v5467, 1.442695
        %v5543 = vpow.pop %v5542
        %v5544 = vmul.f32 %v5468, 1.442695
        %v5545 = vpow.pop %v5544
        %v5546 = vmul.f32 %v5469, 1.442695
        %v5547 = vpow.pop %v5546
        %v5548 = vmul.f32 %v5470, 1.442695
        %v5549 = vpow.pop %v5548
        %v5550 = vmul.f32 %v5471, 1.442695
        %v5551 = vpow.pop %v5550
        %v5552 = vmul.f32 %v5472, 1.442695
        %v5553 = vpow.pop %v5552
        %v5554 = vmul.f32 %v5473, 1.442695
        %v5555 = vpow.pop %v5554
        %v5556 = vmul.f32 %v5474, 1.442695
        %v5557 = vpow.pop %v5556
        %v5558 = vmul.f32 %v5475, 1.442695
        %v5559 = vpow.pop %v5558
        %v5560 = vmul.f32 %v5476, 1.442695
        %v5561 = vpow.pop %v5560
        %v5562 = vmul.f32 %v5477, 1.442695
        %v5563 = vpow.pop %v5562
        %v5564 = vmul.f32 %v5478, 1.442695
        %v5565 = vpow.pop %v5564
        %v5566 = vmul.f32 %v5479, 1.442695
        %v5567 = vpow.pop %v5566
        %v5568 = vmul.f32 %v5480, 1.442695
        %v5569 = vpow.pop %v5568
        %v5570 = vmul.f32 %v5481, 1.442695
        %v5571 = vpow.pop %v5570
        %v5572 = vmul.f32 %v5482, 1.442695
        %v5573 = vpow.pop %v5572
        %v5574 = vmul.f32 %v5483, 1.442695
        %v5575 = vpow.pop %v5574
        %v5576 = vmul.f32 %v5484, 1.442695
        %v5577 = vpow.pop %v5576
        %v5578 = vmul.f32 %v5485, 1.442695
        %v5579 = vpow.pop %v5578
        %v5580 = vmul.f32 %v5486, 1.442695
        %v5581 = vpow.pop %v5580
        %v5582 = vmul.f32 %v5487, 1.442695
        %v5583 = vpow.pop %v5582
        %v5584 = vmul.f32 %v5488, 1.442695
        %v5585 = vpow.pop %v5584
        %v5586 = vmul.f32 %v5489, 1.442695
        %v5587 = vpow.pop %v5586
        %v5588 = vmul.f32 %v5490, 1.442695
        %v5589 = vpow.pop %v5588
        %v5590 = vmul.f32 %v5491, 1.442695
        %v5591 = vpow.pop %v5590
        %v5592 = vmul.f32 %v5492, 1.442695
        %v5593 = vpow.pop %v5592
        %v5594 = vmul.f32 %v5493, 1.442695
        %v5595 = vpow.pop %v5594
        %v5596 = vmul.f32 %v5494, 1.442695
        %v5597 = vpow.pop %v5596
        %v5598 = vmul.f32 %v5495, 1.442695
        %v5599 = vpow.pop %v5598
        %v5600 = vmul.f32 %v5496, 1.442695
        %v5601 = vpow.pop %v5600
        %v5602 = vmul.f32 %v5497, 1.442695
        %v5603 = vpow.pop %v5602
        %v5604 = vmul.f32 %v5498, 1.442695
        %v5605 = vpow.pop %v5604
        %v5606 = vmul.f32 %v5499, 1.442695
        %v5607 = vpow.pop %v5606
        %v5608 = vmul.f32 %v5500, 1.442695
        %v5609 = vpow.pop %v5608
        %v5610 = vmul.f32 %v5501, 1.442695
        %v5611 = vpow.pop %v5610
        %v5612 = vmul.f32 %v5502, 1.442695
        %v5613 = vpow.pop %v5612
        %v5614 = vmul.f32 %v5503, 1.442695
        %v5615 = vpow.pop %v5614
        %v5616 = vmul.f32 %v5504, 1.442695
        %v5617 = vpow.pop %v5616
        %v5618 = vmul.f32 %v5505, 1.442695
        %v5619 = vpow.pop %v5618
        %v5620 = vmul.f32 %v5506, 1.442695
        %v5621 = vpow.pop %v5620
        %v5622 = vmul.f32 %v5507, 1.442695
        %v5623 = vpow.pop %v5622
        %v5624 = vmul.f32 %v5508, 1.442695
        %v5625 = vpow.pop %v5624
        %v5626 = vmul.f32 %v5509, 1.442695
        %v5627 = vpow.pop %v5626
        %v5628 = vmul.f32 %v5510, 1.442695
        %v5629 = vpow.pop %v5628
        %v5630 = vmul.f32 %v5511, 1.442695
        %v5631 = vpow.pop %v5630
        %v5632 = vmul.f32 %v5512, 1.442695
        %v5633 = vpow.pop %v5632
        %v5634 = vmul.f32 %v5513, 1.442695
        %v5635 = vpow.pop %v5634
        %v5636 = vmul.f32 %v5514, 1.442695
        %v5637 = vpow.pop %v5636
        %v5638 = vmul.f32 %v5515, 1.442695
        %v5639 = vpow.pop %v5638
        %v5640 = vmul.f32 %v5516, 1.442695
        %v5641 = vpow.pop %v5640
        %v5642 = vmul.f32 %v5517, 1.442695
        %v5643 = vpow.pop %v5642
        %v5644 = vmul.f32 %v5518, 1.442695
        %v5645 = vpow.pop %v5644
        %v5646 = vmul.f32 %v5519, 1.442695
        %v5647 = vpow.pop %v5646
        %v5648 = vadd.f32 %v5521, %v5523
        %5649 = vadd.xlane.f32.xlu0 %v5648
        %v5650 = vpop.xlane.xlu0 %5649
        %v5651 = vadd.f32 %v5525, %v5527
        %5652 = vadd.xlane.f32.xlu0 %v5651
        %v5653 = vpop.xlane.xlu0 %5652
        %v5654 = vadd.f32 %v5529, %v5531
        %5655 = vadd.xlane.f32.xlu0 %v5654
        %v5656 = vpop.xlane.xlu0 %5655
        %v5657 = vadd.f32 %v5533, %v5535
        %5658 = vadd.xlane.f32.xlu0 %v5657
        %v5659 = vpop.xlane.xlu0 %5658
        %v5660 = vadd.f32 %v5537, %v5539
        %5661 = vadd.xlane.f32.xlu0 %v5660
        %v5662 = vpop.xlane.xlu0 %5661
        %v5663 = vadd.f32 %v5541, %v5543
        %5664 = vadd.xlane.f32.xlu0 %v5663
        %v5665 = vpop.xlane.xlu0 %5664
        %v5666 = vadd.f32 %v5545, %v5547
        %5667 = vadd.xlane.f32.xlu0 %v5666
        %v5668 = vpop.xlane.xlu0 %5667
        %v5669 = vadd.f32 %v5549, %v5551
        %5670 = vadd.xlane.f32.xlu0 %v5669
        %v5671 = vpop.xlane.xlu0 %5670
        %v5672 = vadd.f32 %v5553, %v5555
        %5673 = vadd.xlane.f32.xlu0 %v5672
        %v5674 = vpop.xlane.xlu0 %5673
        %v5675 = vadd.f32 %v5557, %v5559
        %5676 = vadd.xlane.f32.xlu0 %v5675
        %v5677 = vpop.xlane.xlu0 %5676
        %v5678 = vadd.f32 %v5561, %v5563
        %5679 = vadd.xlane.f32.xlu0 %v5678
        %v5680 = vpop.xlane.xlu0 %5679
        %v5681 = vadd.f32 %v5565, %v5567
        %5682 = vadd.xlane.f32.xlu0 %v5681
        %v5683 = vpop.xlane.xlu0 %5682
        %v5684 = vadd.f32 %v5569, %v5571
        %5685 = vadd.xlane.f32.xlu0 %v5684
        %v5686 = vpop.xlane.xlu0 %5685
        %v5687 = vadd.f32 %v5573, %v5575
        %5688 = vadd.xlane.f32.xlu0 %v5687
        %v5689 = vpop.xlane.xlu0 %5688
        %v5690 = vadd.f32 %v5577, %v5579
        %5691 = vadd.xlane.f32.xlu0 %v5690
        %v5692 = vpop.xlane.xlu0 %5691
        %v5693 = vadd.f32 %v5581, %v5583
        %5694 = vadd.xlane.f32.xlu0 %v5693
        %v5695 = vpop.xlane.xlu0 %5694
        %v5696 = vadd.f32 %v5585, %v5587
        %5697 = vadd.xlane.f32.xlu0 %v5696
        %v5698 = vpop.xlane.xlu0 %5697
        %v5699 = vadd.f32 %v5589, %v5591
        %5700 = vadd.xlane.f32.xlu0 %v5699
        %v5701 = vpop.xlane.xlu0 %5700
        %v5702 = vadd.f32 %v5593, %v5595
        %5703 = vadd.xlane.f32.xlu0 %v5702
        %v5704 = vpop.xlane.xlu0 %5703
        %v5705 = vadd.f32 %v5597, %v5599
        %5706 = vadd.xlane.f32.xlu0 %v5705
        %v5707 = vpop.xlane.xlu0 %5706
        %v5708 = vadd.f32 %v5601, %v5603
        %5709 = vadd.xlane.f32.xlu0 %v5708
        %v5710 = vpop.xlane.xlu0 %5709
        %v5711 = vadd.f32 %v5605, %v5607
        %5712 = vadd.xlane.f32.xlu0 %v5711
        %v5713 = vpop.xlane.xlu0 %5712
        %v5714 = vadd.f32 %v5609, %v5611
        %5715 = vadd.xlane.f32.xlu0 %v5714
        %v5716 = vpop.xlane.xlu0 %5715
        %v5717 = vadd.f32 %v5613, %v5615
        %5718 = vadd.xlane.f32.xlu0 %v5717
        %v5719 = vpop.xlane.xlu0 %5718
        %v5720 = vadd.f32 %v5617, %v5619
        %5721 = vadd.xlane.f32.xlu0 %v5720
        %v5722 = vpop.xlane.xlu0 %5721
        %v5723 = vadd.f32 %v5621, %v5623
        %5724 = vadd.xlane.f32.xlu0 %v5723
        %v5725 = vpop.xlane.xlu0 %5724
        %v5726 = vadd.f32 %v5625, %v5627
        %5727 = vadd.xlane.f32.xlu0 %v5726
        %v5728 = vpop.xlane.xlu0 %5727
        %v5729 = vadd.f32 %v5629, %v5631
        %5730 = vadd.xlane.f32.xlu0 %v5729
        %v5731 = vpop.xlane.xlu0 %5730
        %v5732 = vadd.f32 %v5633, %v5635
        %5733 = vadd.xlane.f32.xlu0 %v5732
        %v5734 = vpop.xlane.xlu0 %5733
        %v5735 = vadd.f32 %v5637, %v5639
        %5736 = vadd.xlane.f32.xlu0 %v5735
        %v5737 = vpop.xlane.xlu0 %5736
        %v5738 = vadd.f32 %v5641, %v5643
        %5739 = vadd.xlane.f32.xlu0 %v5738
        %v5740 = vpop.xlane.xlu0 %5739
        %v5741 = vadd.f32 %v5645, %v5647
        %5742 = vadd.xlane.f32.xlu0 %v5741
        %v5743 = vpop.xlane.xlu0 %5742
        %v5744 = vrcp.pop %v5650
        %v5745 = vrcp.pop %v5653
        %v5746 = vrcp.pop %v5656
        %v5747 = vrcp.pop %v5659
        %v5748 = vrcp.pop %v5662
        %v5749 = vrcp.pop %v5665
        %v5750 = vrcp.pop %v5668
        %v5751 = vrcp.pop %v5671
        %v5752 = vrcp.pop %v5674
        %v5753 = vrcp.pop %v5677
        %v5754 = vrcp.pop %v5680
        %v5755 = vrcp.pop %v5683
        %v5756 = vrcp.pop %v5686
        %v5757 = vrcp.pop %v5689
        %v5758 = vrcp.pop %v5692
        %v5759 = vrcp.pop %v5695
        %v5760 = vrcp.pop %v5698
        %v5761 = vrcp.pop %v5701
        %v5762 = vrcp.pop %v5704
        %v5763 = vrcp.pop %v5707
        %v5764 = vrcp.pop %v5710
        %v5765 = vrcp.pop %v5713
        %v5766 = vrcp.pop %v5716
        %v5767 = vrcp.pop %v5719
        %v5768 = vrcp.pop %v5722
        %v5769 = vrcp.pop %v5725
        %v5770 = vrcp.pop %v5728
        %v5771 = vrcp.pop %v5731
        %v5772 = vrcp.pop %v5734
        %v5773 = vrcp.pop %v5737
        %v5774 = vrcp.pop %v5740
        %v5775 = vrcp.pop %v5743
        %v5776 = vmul.f32 %v5521, %v5744
        %v5777 = vmul.f32 %v5523, %v5744
        %v5778 = vmul.f32 %v5525, %v5745
        %v5779 = vmul.f32 %v5527, %v5745
        %v5780 = vmul.f32 %v5529, %v5746
        %v5781 = vmul.f32 %v5531, %v5746
        %v5782 = vmul.f32 %v5533, %v5747
        %v5783 = vmul.f32 %v5535, %v5747
        %v5784 = vmul.f32 %v5537, %v5748
        %v5785 = vmul.f32 %v5539, %v5748
        %v5786 = vmul.f32 %v5541, %v5749
        %v5787 = vmul.f32 %v5543, %v5749
        %v5788 = vmul.f32 %v5545, %v5750
        %v5789 = vmul.f32 %v5547, %v5750
        %v5790 = vmul.f32 %v5549, %v5751
        %v5791 = vmul.f32 %v5551, %v5751
        %v5792 = vmul.f32 %v5553, %v5752
        %v5793 = vmul.f32 %v5555, %v5752
        %v5794 = vmul.f32 %v5557, %v5753
        %v5795 = vmul.f32 %v5559, %v5753
        %v5796 = vmul.f32 %v5561, %v5754
        %v5797 = vmul.f32 %v5563, %v5754
        %v5798 = vmul.f32 %v5565, %v5755
        %v5799 = vmul.f32 %v5567, %v5755
        %v5800 = vmul.f32 %v5569, %v5756
        %v5801 = vmul.f32 %v5571, %v5756
        %v5802 = vmul.f32 %v5573, %v5757
        %v5803 = vmul.f32 %v5575, %v5757
        %v5804 = vmul.f32 %v5577, %v5758
        %v5805 = vmul.f32 %v5579, %v5758
        %v5806 = vmul.f32 %v5581, %v5759
        %v5807 = vmul.f32 %v5583, %v5759
        %v5808 = vmul.f32 %v5585, %v5760
        %v5809 = vmul.f32 %v5587, %v5760
        %v5810 = vmul.f32 %v5589, %v5761
        %v5811 = vmul.f32 %v5591, %v5761
        %v5812 = vmul.f32 %v5593, %v5762
        %v5813 = vmul.f32 %v5595, %v5762
        %v5814 = vmul.f32 %v5597, %v5763
        %v5815 = vmul.f32 %v5599, %v5763
        %v5816 = vmul.f32 %v5601, %v5764
        %v5817 = vmul.f32 %v5603, %v5764
        %v5818 = vmul.f32 %v5605, %v5765
        %v5819 = vmul.f32 %v5607, %v5765
        %v5820 = vmul.f32 %v5609, %v5766
        %v5821 = vmul.f32 %v5611, %v5766
        %v5822 = vmul.f32 %v5613, %v5767
        %v5823 = vmul.f32 %v5615, %v5767
        %v5824 = vmul.f32 %v5617, %v5768
        %v5825 = vmul.f32 %v5619, %v5768
        %v5826 = vmul.f32 %v5621, %v5769
        %v5827 = vmul.f32 %v5623, %v5769
        %v5828 = vmul.f32 %v5625, %v5770
        %v5829 = vmul.f32 %v5627, %v5770
        %v5830 = vmul.f32 %v5629, %v5771
        %v5831 = vmul.f32 %v5631, %v5771
        %v5832 = vmul.f32 %v5633, %v5772
        %v5833 = vmul.f32 %v5635, %v5772
        %v5834 = vmul.f32 %v5637, %v5773
        %v5835 = vmul.f32 %v5639, %v5773
        %v5836 = vmul.f32 %v5641, %v5774
        %v5837 = vmul.f32 %v5643, %v5774
        %v5838 = vmul.f32 %v5645, %v5775
        %v5839 = vmul.f32 %v5647, %v5775
        %v5840 = vpack.c.bf16 %v5778, %v5776
        %v5841 = vpack.c.bf16 %v5779, %v5777
        %v5842 = vpack.c.bf16 %v5782, %v5780
        %v5843 = vpack.c.bf16 %v5783, %v5781
        %v5844 = vpack.c.bf16 %v5786, %v5784
        %v5845 = vpack.c.bf16 %v5787, %v5785
        %v5846 = vpack.c.bf16 %v5790, %v5788
        %v5847 = vpack.c.bf16 %v5791, %v5789
        %v5848 = vpack.c.bf16 %v5794, %v5792
        %v5849 = vpack.c.bf16 %v5795, %v5793
        %v5850 = vpack.c.bf16 %v5798, %v5796
        %v5851 = vpack.c.bf16 %v5799, %v5797
        %v5852 = vpack.c.bf16 %v5802, %v5800
        %v5853 = vpack.c.bf16 %v5803, %v5801
        %v5854 = vpack.c.bf16 %v5806, %v5804
        %v5855 = vpack.c.bf16 %v5807, %v5805
        %v5856 = vpack.c.bf16 %v5810, %v5808
        %v5857 = vpack.c.bf16 %v5811, %v5809
        %v5858 = vpack.c.bf16 %v5814, %v5812
        %v5859 = vpack.c.bf16 %v5815, %v5813
        %v5860 = vpack.c.bf16 %v5818, %v5816
        %v5861 = vpack.c.bf16 %v5819, %v5817
        %v5862 = vpack.c.bf16 %v5822, %v5820
        %v5863 = vpack.c.bf16 %v5823, %v5821
        %v5864 = vpack.c.bf16 %v5826, %v5824
        %v5865 = vpack.c.bf16 %v5827, %v5825
        %v5866 = vpack.c.bf16 %v5830, %v5828
        %v5867 = vpack.c.bf16 %v5831, %v5829
        %v5868 = vpack.c.bf16 %v5834, %v5832
        %v5869 = vpack.c.bf16 %v5835, %v5833
        %v5870 = vpack.c.bf16 %v5838, %v5836
        %v5871 = vpack.c.bf16 %v5839, %v5837
        %5872 = vrot.lane.b32.xlu0 %v1430, 32
        %v5873 = vpop.permute.xlu0 %5872
        %5874 = vrot.lane.b32.xlu0 %v1432, 32
        %v5875 = vpop.permute.xlu0 %5874
        %5876 = vrot.lane.b32.xlu0 %v1434, 32
        %v5877 = vpop.permute.xlu0 %5876
        %5878 = vrot.lane.b32.xlu0 %v1436, 32
        %v5879 = vpop.permute.xlu0 %5878
        %5880 = vrot.lane.b32.xlu0 %v1438, 32
        %v5881 = vpop.permute.xlu0 %5880
        %5882 = vrot.lane.b32.xlu0 %v1440, 32
        %v5883 = vpop.permute.xlu0 %5882
        %5884 = vrot.lane.b32.xlu0 %v1442, 32
        %v5885 = vpop.permute.xlu0 %5884
        %5886 = vrot.lane.b32.xlu0 %v1444, 32
        %v5887 = vpop.permute.xlu0 %5886
        %5888 = vrot.lane.b32.xlu0 %v1446, 32
        %v5889 = vpop.permute.xlu0 %5888
        %5890 = vrot.lane.b32.xlu0 %v1448, 32
        %v5891 = vpop.permute.xlu0 %5890
        %5892 = vrot.lane.b32.xlu0 %v1450, 32
        %v5893 = vpop.permute.xlu0 %5892
        %5894 = vrot.lane.b32.xlu0 %v1452, 32
        %v5895 = vpop.permute.xlu0 %5894
        %5896 = vrot.lane.b32.xlu0 %v1454, 32
        %v5897 = vpop.permute.xlu0 %5896
        %5898 = vrot.lane.b32.xlu0 %v1456, 32
        %v5899 = vpop.permute.xlu0 %5898
        %5900 = vrot.lane.b32.xlu0 %v1458, 32
        %v5901 = vpop.permute.xlu0 %5900
        %5902 = vrot.lane.b32.xlu0 %v1460, 32
        %v5903 = vpop.permute.xlu0 %5902
        %5920 = vmatprep.subr.bf16.mxu0 0
        %5921 = vmatpush1.bf16.msra.mxu0 %v5873
        %5922 = vmatprep.subr.bf16.mxu0 0
        %5923 = vmatpush1.bf16.msra.mxu0 %v5875
        %5924 = vmatprep.subr.bf16.mxu0 0
        %5925 = vmatpush1.bf16.msra.mxu0 %v5877
        %5926 = vmatprep.subr.bf16.mxu0 0
        %5927 = vmatpush1.bf16.msra.mxu0 %v5879
        %5928 = vmatprep.subr.bf16.mxu0 0
        %5929 = vmatpush1.bf16.msra.mxu0 %v5881
        %5930 = vmatprep.subr.bf16.mxu0 0
        %5931 = vmatpush1.bf16.msra.mxu0 %v5883
        %5932 = vmatprep.subr.bf16.mxu0 0
        %5933 = vmatpush1.bf16.msra.mxu0 %v5885
        %5934 = vmatprep.subr.bf16.mxu0 0
        %5935 = vmatpush1.bf16.msra.mxu0 %v5887
        %5936 = vmatprep.subr.bf16.mxu0 0
        %5937 = vmatpush1.bf16.msra.mxu0 %v5889
        %5938 = vmatprep.subr.bf16.mxu0 0
        %5939 = vmatpush1.bf16.msra.mxu0 %v5891
        %5940 = vmatprep.subr.bf16.mxu0 0
        %5941 = vmatpush1.bf16.msra.mxu0 %v5893
        %5942 = vmatprep.subr.bf16.mxu0 0
        %5943 = vmatpush1.bf16.msra.mxu0 %v5895
        %5944 = vmatprep.subr.bf16.mxu0 0
        %5945 = vmatpush1.bf16.msra.mxu0 %v5897
        %5946 = vmatprep.subr.bf16.mxu0 0
        %5947 = vmatpush1.bf16.msra.mxu0 %v5899
        %5948 = vmatprep.subr.bf16.mxu0 0
        %5949 = vmatpush1.bf16.msra.mxu0 %v5901
        %5950 = vmatprep.subr.bf16.mxu0 0
        %5951 = vmatpush1.bf16.msra.mxu0 %v5903
        %5952 = vmatprep.mubr.bf16.mxu0 %v5841
        %5953 = vmatmul.mubr.bf16.gmra.mrb[0].mxu0 %v5840
        %v5954 = vpop.f32.mrb[0].mxu0
        %v5955 = vadd.f32 0.0, %v5954
        %v5956 = vpop.f32.mrb[0].mxu0
        %v5957 = vpop.f32.mrb[0].mxu0
        %v5958 = vadd.f32 0.0, %v5957
        %v5959 = vpop.f32.mrb[0].mxu0
        %5960 = vmatprep.mubr.bf16.mxu0 %v5843
        %5961 = vmatmul.mubr.bf16.gmra.mrb[0].mxu0 %v5842
        %v5962 = vpop.f32.mrb[0].mxu0
        %v5963 = vadd.f32 0.0, %v5962
        %v5964 = vpop.f32.mrb[0].mxu0
        %v5965 = vpop.f32.mrb[0].mxu0
        %v5966 = vadd.f32 0.0, %v5965
        %v5967 = vpop.f32.mrb[0].mxu0
        %5968 = vmatprep.mubr.bf16.mxu0 %v5845
        %5969 = vmatmul.mubr.bf16.gmra.mrb[0].mxu0 %v5844
        %v5970 = vpop.f32.mrb[0].mxu0
        %v5971 = vadd.f32 0.0, %v5970
        %v5972 = vpop.f32.mrb[0].mxu0
        %v5973 = vpop.f32.mrb[0].mxu0
        %v5974 = vadd.f32 0.0, %v5973
        %v5975 = vpop.f32.mrb[0].mxu0
        %5976 = vmatprep.mubr.bf16.mxu0 %v5847
        %5977 = vmatmul.mubr.bf16.gmra.mrb[0].mxu0 %v5846
        %v5978 = vpop.f32.mrb[0].mxu0
        %v5979 = vadd.f32 0.0, %v5978
        %v5980 = vpop.f32.mrb[0].mxu0
        %v5981 = vpop.f32.mrb[0].mxu0
        %v5982 = vadd.f32 0.0, %v5981
        %v5983 = vpop.f32.mrb[0].mxu0
        %5984 = vmatprep.mubr.bf16.mxu0 %v5849
        %5985 = vmatmul.mubr.bf16.gmra.mrb[0].mxu0 %v5848
        %v5986 = vpop.f32.mrb[0].mxu0
        %v5987 = vadd.f32 0.0, %v5986
        %v5988 = vpop.f32.mrb[0].mxu0
        %v5989 = vpop.f32.mrb[0].mxu0
        %v5990 = vadd.f32 0.0, %v5989
        %v5991 = vpop.f32.mrb[0].mxu0
        %5992 = vmatprep.mubr.bf16.mxu0 %v5851
        %5993 = vmatmul.mubr.bf16.gmra.mrb[0].mxu0 %v5850
        %v5994 = vpop.f32.mrb[0].mxu0
        %v5995 = vadd.f32 0.0, %v5994
        %v5996 = vpop.f32.mrb[0].mxu0
        %v5997 = vpop.f32.mrb[0].mxu0
        %v5998 = vadd.f32 0.0, %v5997
        %v5999 = vpop.f32.mrb[0].mxu0
        %6000 = vmatprep.mubr.bf16.mxu0 %v5853
        %6001 = vmatmul.mubr.bf16.gmra.mrb[0].mxu0 %v5852
        %v6002 = vpop.f32.mrb[0].mxu0
        %v6003 = vadd.f32 0.0, %v6002
        %v6004 = vpop.f32.mrb[0].mxu0
        %v6005 = vpop.f32.mrb[0].mxu0
        %v6006 = vadd.f32 0.0, %v6005
        %v6007 = vpop.f32.mrb[0].mxu0
        %6008 = vmatprep.mubr.bf16.mxu0 %v5855
        %6009 = vmatmul.mubr.bf16.gmra.mrb[0].mxu0 %v5854
        %v6010 = vpop.f32.mrb[0].mxu0
        %v6011 = vadd.f32 0.0, %v6010
        %v6012 = vpop.f32.mrb[0].mxu0
        %v6013 = vpop.f32.mrb[0].mxu0
        %v6014 = vadd.f32 0.0, %v6013
        %v6015 = vpop.f32.mrb[0].mxu0
        %6016 = vmatprep.mubr.bf16.mxu0 %v5857
        %6017 = vmatmul.mubr.bf16.gmra.mrb[0].mxu0 %v5856
        %v6018 = vpop.f32.mrb[0].mxu0
        %v6019 = vadd.f32 0.0, %v6018
        %v6020 = vpop.f32.mrb[0].mxu0
        %v6021 = vpop.f32.mrb[0].mxu0
        %v6022 = vadd.f32 0.0, %v6021
        %v6023 = vpop.f32.mrb[0].mxu0
        %6024 = vmatprep.mubr.bf16.mxu0 %v5859
        %6025 = vmatmul.mubr.bf16.gmra.mrb[0].mxu0 %v5858
        %v6026 = vpop.f32.mrb[0].mxu0
        %v6027 = vadd.f32 0.0, %v6026
        %v6028 = vpop.f32.mrb[0].mxu0
        %v6029 = vpop.f32.mrb[0].mxu0
        %v6030 = vadd.f32 0.0, %v6029
        %v6031 = vpop.f32.mrb[0].mxu0
        %6032 = vmatprep.mubr.bf16.mxu0 %v5861
        %6033 = vmatmul.mubr.bf16.gmra.mrb[0].mxu0 %v5860
        %v6034 = vpop.f32.mrb[0].mxu0
        %v6035 = vadd.f32 0.0, %v6034
        %v6036 = vpop.f32.mrb[0].mxu0
        %v6037 = vpop.f32.mrb[0].mxu0
        %v6038 = vadd.f32 0.0, %v6037
        %v6039 = vpop.f32.mrb[0].mxu0
        %6040 = vmatprep.mubr.bf16.mxu0 %v5863
        %6041 = vmatmul.mubr.bf16.gmra.mrb[0].mxu0 %v5862
        %v6042 = vpop.f32.mrb[0].mxu0
        %v6043 = vadd.f32 0.0, %v6042
        %v6044 = vpop.f32.mrb[0].mxu0
        %v6045 = vpop.f32.mrb[0].mxu0
        %v6046 = vadd.f32 0.0, %v6045
        %v6047 = vpop.f32.mrb[0].mxu0
        %6048 = vmatprep.mubr.bf16.mxu0 %v5865
        %6049 = vmatmul.mubr.bf16.gmra.mrb[0].mxu0 %v5864
        %v6050 = vpop.f32.mrb[0].mxu0
        %v6051 = vadd.f32 0.0, %v6050
        %v6052 = vpop.f32.mrb[0].mxu0
        %v6053 = vpop.f32.mrb[0].mxu0
        %v6054 = vadd.f32 0.0, %v6053
        %v6055 = vpop.f32.mrb[0].mxu0
        %6056 = vmatprep.mubr.bf16.mxu0 %v5867
        %6057 = vmatmul.mubr.bf16.gmra.mrb[0].mxu0 %v5866
        %v6058 = vpop.f32.mrb[0].mxu0
        %v6059 = vadd.f32 0.0, %v6058
        %v6060 = vpop.f32.mrb[0].mxu0
        %v6061 = vpop.f32.mrb[0].mxu0
        %v6062 = vadd.f32 0.0, %v6061
        %v6063 = vpop.f32.mrb[0].mxu0
        %6064 = vmatprep.mubr.bf16.mxu0 %v5869
        %6065 = vmatmul.mubr.bf16.gmra.mrb[0].mxu0 %v5868
        %v6066 = vpop.f32.mrb[0].mxu0
        %v6067 = vadd.f32 0.0, %v6066
        %v6068 = vpop.f32.mrb[0].mxu0
        %v6069 = vpop.f32.mrb[0].mxu0
        %v6070 = vadd.f32 0.0, %v6069
        %v6071 = vpop.f32.mrb[0].mxu0
        %6072 = vmatprep.mubr.bf16.mxu0 %v5871
        %6073 = vmatmul.mubr.bf16.gmra.mrb[0].mxu0 %v5870
        %v6074 = vpop.f32.mrb[0].mxu0
        %v6075 = vadd.f32 0.0, %v6074
        %v6076 = vpop.f32.mrb[0].mxu0
        %v6077 = vpop.f32.mrb[0].mxu0
        %v6078 = vadd.f32 0.0, %v6077
        %v6079 = vpop.f32.mrb[0].mxu0
        %6080 = vdwg.mxu0
        %6113 = vrot.lane.b32.xlu0 %v3613, 32
        %v6114 = vpop.permute.xlu0 %6113
        %6115 = vrot.lane.b32.xlu0 %v3616, 32
        %v6116 = vpop.permute.xlu0 %6115
        %6117 = vrot.lane.b32.xlu0 %v3621, 32
        %v6118 = vpop.permute.xlu0 %6117
        %6119 = vrot.lane.b32.xlu0 %v3624, 32
        %v6120 = vpop.permute.xlu0 %6119
        %6121 = vrot.lane.b32.xlu0 %v3629, 32
        %v6122 = vpop.permute.xlu0 %6121
        %6123 = vrot.lane.b32.xlu0 %v3632, 32
        %v6124 = vpop.permute.xlu0 %6123
        %6125 = vrot.lane.b32.xlu0 %v3637, 32
        %v6126 = vpop.permute.xlu0 %6125
        %6127 = vrot.lane.b32.xlu0 %v3640, 32
        %v6128 = vpop.permute.xlu0 %6127
        %6129 = vrot.lane.b32.xlu0 %v3645, 32
        %v6130 = vpop.permute.xlu0 %6129
        %6131 = vrot.lane.b32.xlu0 %v3648, 32
        %v6132 = vpop.permute.xlu0 %6131
        %6133 = vrot.lane.b32.xlu0 %v3653, 32
        %v6134 = vpop.permute.xlu0 %6133
        %6135 = vrot.lane.b32.xlu0 %v3656, 32
        %v6136 = vpop.permute.xlu0 %6135
        %6137 = vrot.lane.b32.xlu0 %v3661, 32
        %v6138 = vpop.permute.xlu0 %6137
        %6139 = vrot.lane.b32.xlu0 %v3664, 32
        %v6140 = vpop.permute.xlu0 %6139
        %6141 = vrot.lane.b32.xlu0 %v3669, 32
        %v6142 = vpop.permute.xlu0 %6141
        %6143 = vrot.lane.b32.xlu0 %v3672, 32
        %v6144 = vpop.permute.xlu0 %6143
        %6145 = vrot.lane.b32.xlu0 %v3677, 32
        %v6146 = vpop.permute.xlu0 %6145
        %6147 = vrot.lane.b32.xlu0 %v3680, 32
        %v6148 = vpop.permute.xlu0 %6147
        %6149 = vrot.lane.b32.xlu0 %v3685, 32
        %v6150 = vpop.permute.xlu0 %6149
        %6151 = vrot.lane.b32.xlu0 %v3688, 32
        %v6152 = vpop.permute.xlu0 %6151
        %6153 = vrot.lane.b32.xlu0 %v3693, 32
        %v6154 = vpop.permute.xlu0 %6153
        %6155 = vrot.lane.b32.xlu0 %v3696, 32
        %v6156 = vpop.permute.xlu0 %6155
        %6157 = vrot.lane.b32.xlu0 %v3701, 32
        %v6158 = vpop.permute.xlu0 %6157
        %6159 = vrot.lane.b32.xlu0 %v3704, 32
        %v6160 = vpop.permute.xlu0 %6159
        %6161 = vrot.lane.b32.xlu0 %v3709, 32
        %v6162 = vpop.permute.xlu0 %6161
        %6163 = vrot.lane.b32.xlu0 %v3712, 32
        %v6164 = vpop.permute.xlu0 %6163
        %6165 = vrot.lane.b32.xlu0 %v3717, 32
        %v6166 = vpop.permute.xlu0 %6165
        %6167 = vrot.lane.b32.xlu0 %v3720, 32
        %v6168 = vpop.permute.xlu0 %6167
        %6169 = vrot.lane.b32.xlu0 %v3725, 32
        %v6170 = vpop.permute.xlu0 %6169
        %6171 = vrot.lane.b32.xlu0 %v3728, 32
        %v6172 = vpop.permute.xlu0 %6171
        %6173 = vrot.lane.b32.xlu0 %v3733, 32
        %v6174 = vpop.permute.xlu0 %6173
        %6175 = vrot.lane.b32.xlu0 %v3736, 32
        %v6176 = vpop.permute.xlu0 %6175
        %6241 = vrot.lane.b32.xlu0 %v4784, 64
        %v6242 = vpop.permute.xlu0 %6241
        %6243 = vrot.lane.b32.xlu0 %v4787, 64
        %v6244 = vpop.permute.xlu0 %6243
        %6245 = vrot.lane.b32.xlu0 %v4792, 64
        %v6246 = vpop.permute.xlu0 %6245
        %6247 = vrot.lane.b32.xlu0 %v4795, 64
        %v6248 = vpop.permute.xlu0 %6247
        %6249 = vrot.lane.b32.xlu0 %v4800, 64
        %v6250 = vpop.permute.xlu0 %6249
        %6251 = vrot.lane.b32.xlu0 %v4803, 64
        %v6252 = vpop.permute.xlu0 %6251
        %6253 = vrot.lane.b32.xlu0 %v4808, 64
        %v6254 = vpop.permute.xlu0 %6253
        %6255 = vrot.lane.b32.xlu0 %v4811, 64
        %v6256 = vpop.permute.xlu0 %6255
        %6257 = vrot.lane.b32.xlu0 %v4816, 64
        %v6258 = vpop.permute.xlu0 %6257
        %6259 = vrot.lane.b32.xlu0 %v4819, 64
        %v6260 = vpop.permute.xlu0 %6259
        %6261 = vrot.lane.b32.xlu0 %v4824, 64
        %v6262 = vpop.permute.xlu0 %6261
        %6263 = vrot.lane.b32.xlu0 %v4827, 64
        %v6264 = vpop.permute.xlu0 %6263
        %6265 = vrot.lane.b32.xlu0 %v4832, 64
        %v6266 = vpop.permute.xlu0 %6265
        %6267 = vrot.lane.b32.xlu0 %v4835, 64
        %v6268 = vpop.permute.xlu0 %6267
        %6269 = vrot.lane.b32.xlu0 %v4840, 64
        %v6270 = vpop.permute.xlu0 %6269
        %6271 = vrot.lane.b32.xlu0 %v4843, 64
        %v6272 = vpop.permute.xlu0 %6271
        %6273 = vrot.lane.b32.xlu0 %v4848, 64
        %v6274 = vpop.permute.xlu0 %6273
        %6275 = vrot.lane.b32.xlu0 %v4851, 64
        %v6276 = vpop.permute.xlu0 %6275
        %6277 = vrot.lane.b32.xlu0 %v4856, 64
        %v6278 = vpop.permute.xlu0 %6277
        %6279 = vrot.lane.b32.xlu0 %v4859, 64
        %v6280 = vpop.permute.xlu0 %6279
        %6281 = vrot.lane.b32.xlu0 %v4864, 64
        %v6282 = vpop.permute.xlu0 %6281
        %6283 = vrot.lane.b32.xlu0 %v4867, 64
        %v6284 = vpop.permute.xlu0 %6283
        %6285 = vrot.lane.b32.xlu0 %v4872, 64
        %v6286 = vpop.permute.xlu0 %6285
        %6287 = vrot.lane.b32.xlu0 %v4875, 64
        %v6288 = vpop.permute.xlu0 %6287
        %6289 = vrot.lane.b32.xlu0 %v4880, 64
        %v6290 = vpop.permute.xlu0 %6289
        %6291 = vrot.lane.b32.xlu0 %v4883, 64
        %v6292 = vpop.permute.xlu0 %6291
        %6293 = vrot.lane.b32.xlu0 %v4888, 64
        %v6294 = vpop.permute.xlu0 %6293
        %6295 = vrot.lane.b32.xlu0 %v4891, 64
        %v6296 = vpop.permute.xlu0 %6295
        %6297 = vrot.lane.b32.xlu0 %v4896, 64
        %v6298 = vpop.permute.xlu0 %6297
        %6299 = vrot.lane.b32.xlu0 %v4899, 64
        %v6300 = vpop.permute.xlu0 %6299
        %6301 = vrot.lane.b32.xlu0 %v4904, 64
        %v6302 = vpop.permute.xlu0 %6301
        %6303 = vrot.lane.b32.xlu0 %v4907, 64
        %v6304 = vpop.permute.xlu0 %6303
        %6369 = vrot.lane.b32.xlu0 %v5955, 96
        %v6370 = vpop.permute.xlu0 %6369
        %6371 = vrot.lane.b32.xlu0 %v5958, 96
        %v6372 = vpop.permute.xlu0 %6371
        %6373 = vrot.lane.b32.xlu0 %v5963, 96
        %v6374 = vpop.permute.xlu0 %6373
        %6375 = vrot.lane.b32.xlu0 %v5966, 96
        %v6376 = vpop.permute.xlu0 %6375
        %6377 = vrot.lane.b32.xlu0 %v5971, 96
        %v6378 = vpop.permute.xlu0 %6377
        %6379 = vrot.lane.b32.xlu0 %v5974, 96
        %v6380 = vpop.permute.xlu0 %6379
        %6381 = vrot.lane.b32.xlu0 %v5979, 96
        %v6382 = vpop.permute.xlu0 %6381
        %6383 = vrot.lane.b32.xlu0 %v5982, 96
        %v6384 = vpop.permute.xlu0 %6383
        %6385 = vrot.lane.b32.xlu0 %v5987, 96
        %v6386 = vpop.permute.xlu0 %6385
        %6387 = vrot.lane.b32.xlu0 %v5990, 96
        %v6388 = vpop.permute.xlu0 %6387
        %6389 = vrot.lane.b32.xlu0 %v5995, 96
        %v6390 = vpop.permute.xlu0 %6389
        %6391 = vrot.lane.b32.xlu0 %v5998, 96
        %v6392 = vpop.permute.xlu0 %6391
        %6393 = vrot.lane.b32.xlu0 %v6003, 96
        %v6394 = vpop.permute.xlu0 %6393
        %6395 = vrot.lane.b32.xlu0 %v6006, 96
        %v6396 = vpop.permute.xlu0 %6395
        %6397 = vrot.lane.b32.xlu0 %v6011, 96
        %v6398 = vpop.permute.xlu0 %6397
        %6399 = vrot.lane.b32.xlu0 %v6014, 96
        %v6400 = vpop.permute.xlu0 %6399
        %6401 = vrot.lane.b32.xlu0 %v6019, 96
        %v6402 = vpop.permute.xlu0 %6401
        %6403 = vrot.lane.b32.xlu0 %v6022, 96
        %v6404 = vpop.permute.xlu0 %6403
        %6405 = vrot.lane.b32.xlu0 %v6027, 96
        %v6406 = vpop.permute.xlu0 %6405
        %6407 = vrot.lane.b32.xlu0 %v6030, 96
        %v6408 = vpop.permute.xlu0 %6407
        %6409 = vrot.lane.b32.xlu0 %v6035, 96
        %v6410 = vpop.permute.xlu0 %6409
        %6411 = vrot.lane.b32.xlu0 %v6038, 96
        %v6412 = vpop.permute.xlu0 %6411
        %6413 = vrot.lane.b32.xlu0 %v6043, 96
        %v6414 = vpop.permute.xlu0 %6413
        %6415 = vrot.lane.b32.xlu0 %v6046, 96
        %v6416 = vpop.permute.xlu0 %6415
        %6417 = vrot.lane.b32.xlu0 %v6051, 96
        %v6418 = vpop.permute.xlu0 %6417
        %6419 = vrot.lane.b32.xlu0 %v6054, 96
        %v6420 = vpop.permute.xlu0 %6419
        %6421 = vrot.lane.b32.xlu0 %v6059, 96
        %v6422 = vpop.permute.xlu0 %6421
        %6423 = vrot.lane.b32.xlu0 %v6062, 96
        %v6424 = vpop.permute.xlu0 %6423
        %6425 = vrot.lane.b32.xlu0 %v6067, 96
        %v6426 = vpop.permute.xlu0 %6425
        %6427 = vrot.lane.b32.xlu0 %v6070, 96
        %v6428 = vpop.permute.xlu0 %6427
        %6429 = vrot.lane.b32.xlu0 %v6075, 96
        %v6430 = vpop.permute.xlu0 %6429
        %6431 = vrot.lane.b32.xlu0 %v6078, 96
        %v6432 = vpop.permute.xlu0 %6431
        %v6465 = vsel %vm1557, %v2394, %v6114
        %v6466 = vsel %vm1557, %v2397, %v6116
        %v6467 = vsel %vm1557, %v2402, %v6118
        %v6468 = vsel %vm1557, %v2405, %v6120
        %v6469 = vsel %vm1557, %v2410, %v6122
        %v6470 = vsel %vm1557, %v2413, %v6124
        %v6471 = vsel %vm1557, %v2418, %v6126
        %v6472 = vsel %vm1557, %v2421, %v6128
        %v6473 = vsel %vm1557, %v2426, %v6130
        %v6474 = vsel %vm1557, %v2429, %v6132
        %v6475 = vsel %vm1557, %v2434, %v6134
        %v6476 = vsel %vm1557, %v2437, %v6136
        %v6477 = vsel %vm1557, %v2442, %v6138
        %v6478 = vsel %vm1557, %v2445, %v6140
        %v6479 = vsel %vm1557, %v2450, %v6142
        %v6480 = vsel %vm1557, %v2453, %v6144
        %v6481 = vsel %vm1557, %v2458, %v6146
        %v6482 = vsel %vm1557, %v2461, %v6148
        %v6483 = vsel %vm1557, %v2466, %v6150
        %v6484 = vsel %vm1557, %v2469, %v6152
        %v6485 = vsel %vm1557, %v2474, %v6154
        %v6486 = vsel %vm1557, %v2477, %v6156
        %v6487 = vsel %vm1557, %v2482, %v6158
        %v6488 = vsel %vm1557, %v2485, %v6160
        %v6489 = vsel %vm1557, %v2490, %v6162
        %v6490 = vsel %vm1557, %v2493, %v6164
        %v6491 = vsel %vm1557, %v2498, %v6166
        %v6492 = vsel %vm1557, %v2501, %v6168
        %v6493 = vsel %vm1557, %v2506, %v6170
        %v6494 = vsel %vm1557, %v2509, %v6172
        %v6495 = vsel %vm1557, %v2514, %v6174
        %v6496 = vsel %vm1557, %v2517, %v6176
        %vm6497 = vcmask 523264
        %v6498 = vsel %vm6497, %v6465, %v6242
        %v6499 = vsel %vm6497, %v6466, %v6244
        %v6500 = vsel %vm6497, %v6467, %v6246
        %v6501 = vsel %vm6497, %v6468, %v6248
        %v6502 = vsel %vm6497, %v6469, %v6250
        %v6503 = vsel %vm6497, %v6470, %v6252
        %v6504 = vsel %vm6497, %v6471, %v6254
        %v6505 = vsel %vm6497, %v6472, %v6256
        %v6506 = vsel %vm6497, %v6473, %v6258
        %v6507 = vsel %vm6497, %v6474, %v6260
        %v6508 = vsel %vm6497, %v6475, %v6262
        %v6509 = vsel %vm6497, %v6476, %v6264
        %v6510 = vsel %vm6497, %v6477, %v6266
        %v6511 = vsel %vm6497, %v6478, %v6268
        %v6512 = vsel %vm6497, %v6479, %v6270
        %v6513 = vsel %vm6497, %v6480, %v6272
        %v6514 = vsel %vm6497, %v6481, %v6274
        %v6515 = vsel %vm6497, %v6482, %v6276
        %v6516 = vsel %vm6497, %v6483, %v6278
        %v6517 = vsel %vm6497, %v6484, %v6280
        %v6518 = vsel %vm6497, %v6485, %v6282
        %v6519 = vsel %vm6497, %v6486, %v6284
        %v6520 = vsel %vm6497, %v6487, %v6286
        %v6521 = vsel %vm6497, %v6488, %v6288
        %v6522 = vsel %vm6497, %v6489, %v6290
        %v6523 = vsel %vm6497, %v6490, %v6292
        %v6524 = vsel %vm6497, %v6491, %v6294
        %v6525 = vsel %vm6497, %v6492, %v6296
        %v6526 = vsel %vm6497, %v6493, %v6298
        %v6527 = vsel %vm6497, %v6494, %v6300
        %v6528 = vsel %vm6497, %v6495, %v6302
        %v6529 = vsel %vm6497, %v6496, %v6304
        %vm6530 = vcmask 785408
        %v6531 = vsel %vm6530, %v6498, %v6370
        %v6532 = vsel %vm6530, %v6499, %v6372
        %v6533 = vsel %vm6530, %v6500, %v6374
        %v6534 = vsel %vm6530, %v6501, %v6376
        %v6535 = vsel %vm6530, %v6502, %v6378
        %v6536 = vsel %vm6530, %v6503, %v6380
        %v6537 = vsel %vm6530, %v6504, %v6382
        %v6538 = vsel %vm6530, %v6505, %v6384
        %v6539 = vsel %vm6530, %v6506, %v6386
        %v6540 = vsel %vm6530, %v6507, %v6388
        %v6541 = vsel %vm6530, %v6508, %v6390
        %v6542 = vsel %vm6530, %v6509, %v6392
        %v6543 = vsel %vm6530, %v6510, %v6394
        %v6544 = vsel %vm6530, %v6511, %v6396
        %v6545 = vsel %vm6530, %v6512, %v6398
        %v6546 = vsel %vm6530, %v6513, %v6400
        %v6547 = vsel %vm6530, %v6514, %v6402
        %v6548 = vsel %vm6530, %v6515, %v6404
        %v6549 = vsel %vm6530, %v6516, %v6406
        %v6550 = vsel %vm6530, %v6517, %v6408
        %v6551 = vsel %vm6530, %v6518, %v6410
        %v6552 = vsel %vm6530, %v6519, %v6412
        %v6553 = vsel %vm6530, %v6520, %v6414
        %v6554 = vsel %vm6530, %v6521, %v6416
        %v6555 = vsel %vm6530, %v6522, %v6418
        %v6556 = vsel %vm6530, %v6523, %v6420
        %v6557 = vsel %vm6530, %v6524, %v6422
        %v6558 = vsel %vm6530, %v6525, %v6424
        %v6559 = vsel %vm6530, %v6526, %v6426
        %v6560 = vsel %vm6530, %v6527, %v6428
        %v6561 = vsel %vm6530, %v6528, %v6430
        %v6562 = vsel %vm6530, %v6529, %v6432
        %v6563 = vpack.c.bf16 %v6532, %v6531
        %v6564 = vpack.c.bf16 %v6534, %v6533
        %v6565 = vpack.c.bf16 %v6536, %v6535
        %v6566 = vpack.c.bf16 %v6538, %v6537
        %v6567 = vpack.c.bf16 %v6540, %v6539
        %v6568 = vpack.c.bf16 %v6542, %v6541
        %v6569 = vpack.c.bf16 %v6544, %v6543
        %v6570 = vpack.c.bf16 %v6546, %v6545
        %v6571 = vpack.c.bf16 %v6548, %v6547
        %v6572 = vpack.c.bf16 %v6550, %v6549
        %v6573 = vpack.c.bf16 %v6552, %v6551
        %v6574 = vpack.c.bf16 %v6554, %v6553
        %v6575 = vpack.c.bf16 %v6556, %v6555
        %v6576 = vpack.c.bf16 %v6558, %v6557
        %v6577 = vpack.c.bf16 %v6560, %v6559
        %v6578 = vpack.c.bf16 %v6562, %v6561
        %v6579 = vld [vmem:[#allocation10] sm:$0xf]
        %v6580 = vld [vmem:[#allocation10 + $0x4] sm:$0xf]
        %v6581 = vld [vmem:[#allocation10 + $0x8] sm:$0xf]
        %v6582 = vld [vmem:[#allocation10 + $0xc] sm:$0xf]
        %v6583 = vld [vmem:[#allocation10 + $0x10] sm:$0xf]
        %v6584 = vld [vmem:[#allocation10 + $0x14] sm:$0xf]
        %v6585 = vld [vmem:[#allocation10 + $0x18] sm:$0xf]
        %v6586 = vld [vmem:[#allocation10 + $0x1c] sm:$0xf]
        %v6587 = vld [vmem:[#allocation10 + $0x20] sm:$0xf]
        %v6588 = vld [vmem:[#allocation10 + $0x24] sm:$0xf]
        %v6589 = vld [vmem:[#allocation10 + $0x28] sm:$0xf]
        %v6590 = vld [vmem:[#allocation10 + $0x2c] sm:$0xf]
        %v6591 = vld [vmem:[#allocation10 + $0x30] sm:$0xf]
        %v6592 = vld [vmem:[#allocation10 + $0x34] sm:$0xf]
        %v6593 = vld [vmem:[#allocation10 + $0x38] sm:$0xf]
        %v6594 = vld [vmem:[#allocation10 + $0x3c] sm:$0xf]
        %v6611 = vunpack.c.l.b16 %v6579
        %v6612 = vunpack.c.l.b16 %v6580
        %v6613 = vunpack.c.l.b16 %v6581
        %v6614 = vunpack.c.l.b16 %v6582
        %v6615 = vunpack.c.l.b16 %v6583
        %v6616 = vunpack.c.l.b16 %v6584
        %v6617 = vunpack.c.l.b16 %v6585
        %v6618 = vunpack.c.l.b16 %v6586
        %v6619 = vunpack.c.l.b16 %v6587
        %v6620 = vunpack.c.l.b16 %v6588
        %v6621 = vunpack.c.l.b16 %v6589
        %v6622 = vunpack.c.l.b16 %v6590
        %v6623 = vunpack.c.l.b16 %v6591
        %v6624 = vunpack.c.l.b16 %v6592
        %v6625 = vunpack.c.l.b16 %v6593
        %v6626 = vunpack.c.l.b16 %v6594
        %v6627 = vpack.c.b16 %v6612, %v6611
        %v6628 = vpack.c.b16 %v6614, %v6613
        %v6629 = vpack.c.b16 %v6616, %v6615
        %v6630 = vpack.c.b16 %v6618, %v6617
        %v6631 = vpack.c.b16 %v6620, %v6619
        %v6632 = vpack.c.b16 %v6622, %v6621
        %v6633 = vpack.c.b16 %v6624, %v6623
        %v6634 = vpack.c.b16 %v6626, %v6625
        %6643 = vmatprep.subr.bf16.mxu0 0
        %6644 = vmatpush1.bf16.msra.mxu0 %v6627
        %6645 = vmatprep.subr.bf16.mxu0 0
        %6646 = vmatpush1.bf16.msra.mxu0 %v6628
        %6647 = vmatprep.subr.bf16.mxu0 0
        %6648 = vmatpush1.bf16.msra.mxu0 %v6629
        %6649 = vmatprep.subr.bf16.mxu0 0
        %6650 = vmatpush1.bf16.msra.mxu0 %v6630
        %6651 = vmatprep.subr.bf16.mxu0 0
        %6652 = vmatpush1.bf16.msra.mxu0 %v6631
        %6653 = vmatprep.subr.bf16.mxu0 0
        %6654 = vmatpush1.bf16.msra.mxu0 %v6632
        %6655 = vmatprep.subr.bf16.mxu0 0
        %6656 = vmatpush1.bf16.msra.mxu0 %v6633
        %6657 = vmatprep.subr.bf16.mxu0 0
        %6658 = vmatpush1.bf16.msra.mxu0 %v6634
        %6659 = vmatprep.subr.bf16.mxu0 0
        %6660 = vmatpush1.bf16.msra.mxu0 0
        %6661 = vmatprep.subr.bf16.mxu0 0
        %6662 = vmatpush1.bf16.msra.mxu0 0
        %6663 = vmatprep.subr.bf16.mxu0 0
        %6664 = vmatpush1.bf16.msra.mxu0 0
        %6665 = vmatprep.subr.bf16.mxu0 0
        %6666 = vmatpush1.bf16.msra.mxu0 0
        %6667 = vmatprep.subr.bf16.mxu0 0
        %6668 = vmatpush1.bf16.msra.mxu0 0
        %6669 = vmatprep.subr.bf16.mxu0 0
        %6670 = vmatpush1.bf16.msra.mxu0 0
        %6671 = vmatprep.subr.bf16.mxu0 0
        %6672 = vmatpush1.bf16.msra.mxu0 0
        %6673 = vmatprep.subr.bf16.mxu0 0
        %6674 = vmatpush1.bf16.msra.mxu0 0
        %6675 = vmatprep.mubr.bf16.mxu0 0
        %6676 = vmatmul.mubr.bf16.gmra.mrb[0].mxu0 %v6563
        %v6677 = vpop.f32.mrb[0].mxu0
        %v6678 = vadd.f32 0.0, %v6677
        %v6679 = vpop.f32.mrb[0].mxu0
        %v6680 = vpop.f32.mrb[0].mxu0
        %v6681 = vadd.f32 0.0, %v6680
        %v6682 = vpop.f32.mrb[0].mxu0
        %6683 = vmatprep.mubr.bf16.mxu0 0
        %6684 = vmatmul.mubr.bf16.gmra.mrb[0].mxu0 %v6564
        %v6685 = vpop.f32.mrb[0].mxu0
        %v6686 = vadd.f32 0.0, %v6685
        %v6687 = vpop.f32.mrb[0].mxu0
        %v6688 = vpop.f32.mrb[0].mxu0
        %v6689 = vadd.f32 0.0, %v6688
        %v6690 = vpop.f32.mrb[0].mxu0
        %6691 = vmatprep.mubr.bf16.mxu0 0
        %6692 = vmatmul.mubr.bf16.gmra.mrb[0].mxu0 %v6565
        %v6693 = vpop.f32.mrb[0].mxu0
        %v6694 = vadd.f32 0.0, %v6693
        %v6695 = vpop.f32.mrb[0].mxu0
        %v6696 = vpop.f32.mrb[0].mxu0
        %v6697 = vadd.f32 0.0, %v6696
        %v6698 = vpop.f32.mrb[0].mxu0
        %6699 = vmatprep.mubr.bf16.mxu0 0
        %6700 = vmatmul.mubr.bf16.gmra.mrb[0].mxu0 %v6566
        %v6701 = vpop.f32.mrb[0].mxu0
        %v6702 = vadd.f32 0.0, %v6701
        %v6703 = vpop.f32.mrb[0].mxu0
        %v6704 = vpop.f32.mrb[0].mxu0
        %v6705 = vadd.f32 0.0, %v6704
        %v6706 = vpop.f32.mrb[0].mxu0
        %6707 = vmatprep.mubr.bf16.mxu0 0
        %6708 = vmatmul.mubr.bf16.gmra.mrb[0].mxu0 %v6567
        %v6709 = vpop.f32.mrb[0].mxu0
        %v6710 = vadd.f32 0.0, %v6709
        %v6711 = vpop.f32.mrb[0].mxu0
        %v6712 = vpop.f32.mrb[0].mxu0
        %v6713 = vadd.f32 0.0, %v6712
        %v6714 = vpop.f32.mrb[0].mxu0
        %6715 = vmatprep.mubr.bf16.mxu0 0
        %6716 = vmatmul.mubr.bf16.gmra.mrb[0].mxu0 %v6568
        %v6717 = vpop.f32.mrb[0].mxu0
        %v6718 = vadd.f32 0.0, %v6717
        %v6719 = vpop.f32.mrb[0].mxu0
        %v6720 = vpop.f32.mrb[0].mxu0
        %v6721 = vadd.f32 0.0, %v6720
        %v6722 = vpop.f32.mrb[0].mxu0
        %6723 = vmatprep.mubr.bf16.mxu0 0
        %6724 = vmatmul.mubr.bf16.gmra.mrb[0].mxu0 %v6569
        %v6725 = vpop.f32.mrb[0].mxu0
        %v6726 = vadd.f32 0.0, %v6725
        %v6727 = vpop.f32.mrb[0].mxu0
        %v6728 = vpop.f32.mrb[0].mxu0
        %v6729 = vadd.f32 0.0, %v6728
        %v6730 = vpop.f32.mrb[0].mxu0
        %6731 = vmatprep.mubr.bf16.mxu0 0
        %6732 = vmatmul.mubr.bf16.gmra.mrb[0].mxu0 %v6570
        %v6733 = vpop.f32.mrb[0].mxu0
        %v6734 = vadd.f32 0.0, %v6733
        %v6735 = vpop.f32.mrb[0].mxu0
        %v6736 = vpop.f32.mrb[0].mxu0
        %v6737 = vadd.f32 0.0, %v6736
        %v6738 = vpop.f32.mrb[0].mxu0
        %6739 = vmatprep.mubr.bf16.mxu0 0
        %6740 = vmatmul.mubr.bf16.gmra.mrb[0].mxu0 %v6571
        %v6741 = vpop.f32.mrb[0].mxu0
        %v6742 = vadd.f32 0.0, %v6741
        %v6743 = vpop.f32.mrb[0].mxu0
        %v6744 = vpop.f32.mrb[0].mxu0
        %v6745 = vadd.f32 0.0, %v6744
        %v6746 = vpop.f32.mrb[0].mxu0
        %6747 = vmatprep.mubr.bf16.mxu0 0
        %6748 = vmatmul.mubr.bf16.gmra.mrb[0].mxu0 %v6572
        %v6749 = vpop.f32.mrb[0].mxu0
        %v6750 = vadd.f32 0.0, %v6749
        %v6751 = vpop.f32.mrb[0].mxu0
        %v6752 = vpop.f32.mrb[0].mxu0
        %v6753 = vadd.f32 0.0, %v6752
        %v6754 = vpop.f32.mrb[0].mxu0
        %6755 = vmatprep.mubr.bf16.mxu0 0
        %6756 = vmatmul.mubr.bf16.gmra.mrb[0].mxu0 %v6573
        %v6757 = vpop.f32.mrb[0].mxu0
        %v6758 = vadd.f32 0.0, %v6757
        %v6759 = vpop.f32.mrb[0].mxu0
        %v6760 = vpop.f32.mrb[0].mxu0
        %v6761 = vadd.f32 0.0, %v6760
        %v6762 = vpop.f32.mrb[0].mxu0
        %6763 = vmatprep.mubr.bf16.mxu0 0
        %6764 = vmatmul.mubr.bf16.gmra.mrb[0].mxu0 %v6574
        %v6765 = vpop.f32.mrb[0].mxu0
        %v6766 = vadd.f32 0.0, %v6765
        %v6767 = vpop.f32.mrb[0].mxu0
        %v6768 = vpop.f32.mrb[0].mxu0
        %v6769 = vadd.f32 0.0, %v6768
        %v6770 = vpop.f32.mrb[0].mxu0
        %6771 = vmatprep.mubr.bf16.mxu0 0
        %6772 = vmatmul.mubr.bf16.gmra.mrb[0].mxu0 %v6575
        %v6773 = vpop.f32.mrb[0].mxu0
        %v6774 = vadd.f32 0.0, %v6773
        %v6775 = vpop.f32.mrb[0].mxu0
        %v6776 = vpop.f32.mrb[0].mxu0
        %v6777 = vadd.f32 0.0, %v6776
        %v6778 = vpop.f32.mrb[0].mxu0
        %6779 = vmatprep.mubr.bf16.mxu0 0
        %6780 = vmatmul.mubr.bf16.gmra.mrb[0].mxu0 %v6576
        %v6781 = vpop.f32.mrb[0].mxu0
        %v6782 = vadd.f32 0.0, %v6781
        %v6783 = vpop.f32.mrb[0].mxu0
        %v6784 = vpop.f32.mrb[0].mxu0
        %v6785 = vadd.f32 0.0, %v6784
        %v6786 = vpop.f32.mrb[0].mxu0
        %6787 = vmatprep.mubr.bf16.mxu0 0
        %6788 = vmatmul.mubr.bf16.gmra.mrb[0].mxu0 %v6577
        %v6789 = vpop.f32.mrb[0].mxu0
        %v6790 = vadd.f32 0.0, %v6789
        %v6791 = vpop.f32.mrb[0].mxu0
        %v6792 = vpop.f32.mrb[0].mxu0
        %v6793 = vadd.f32 0.0, %v6792
        %v6794 = vpop.f32.mrb[0].mxu0
        %6795 = vmatprep.mubr.bf16.mxu0 0
        %6796 = vmatmul.mubr.bf16.gmra.mrb[0].mxu0 %v6578
        %v6797 = vpop.f32.mrb[0].mxu0
        %v6798 = vadd.f32 0.0, %v6797
        %v6799 = vpop.f32.mrb[0].mxu0
        %v6800 = vpop.f32.mrb[0].mxu0
        %v6801 = vadd.f32 0.0, %v6800
        %v6802 = vpop.f32.mrb[0].mxu0
        %6803 = vdwg.mxu0
        %s6804 = scalar_lea.vmem %s306, %s1167 [#allocation4]
        %v6805 = vld [vmem:[%s6804] sm:$0xff]
        %v6806 = vld [vmem:[%s6804 + $0x8] sm:$0xff]
        %v6807 = vld [vmem:[%s6804 + $0x10] sm:$0xff]
        %v6808 = vld [vmem:[%s6804 + $0x18] sm:$0xff]
        %v6809 = vld [vmem:[%s6804 + $0x20] sm:$0xff]
        %v6810 = vld [vmem:[%s6804 + $0x28] sm:$0xff]
        %v6811 = vld [vmem:[%s6804 + $0x30] sm:$0xff]
        %v6812 = vld [vmem:[%s6804 + $0x38] sm:$0xff]
        %v6813 = vld [vmem:[%s6804 + $0x40] sm:$0xff]
        %v6814 = vld [vmem:[%s6804 + $0x48] sm:$0xff]
        %v6815 = vld [vmem:[%s6804 + $0x50] sm:$0xff]
        %v6816 = vld [vmem:[%s6804 + $0x58] sm:$0xff]
        %v6817 = vld [vmem:[%s6804 + $0x60] sm:$0xff]
        %v6818 = vld [vmem:[%s6804 + $0x68] sm:$0xff]
        %v6819 = vld [vmem:[%s6804 + $0x70] sm:$0xff]
        %v6820 = vld [vmem:[%s6804 + $0x78] sm:$0xff]
        %v6821 = vld [vmem:[%s6804 + $0x80] sm:$0xff]
        %v6822 = vld [vmem:[%s6804 + $0x88] sm:$0xff]
        %v6823 = vld [vmem:[%s6804 + $0x90] sm:$0xff]
        %v6824 = vld [vmem:[%s6804 + $0x98] sm:$0xff]
        %v6825 = vld [vmem:[%s6804 + $0xa0] sm:$0xff]
        %v6826 = vld [vmem:[%s6804 + $0xa8] sm:$0xff]
        %v6827 = vld [vmem:[%s6804 + $0xb0] sm:$0xff]
        %v6828 = vld [vmem:[%s6804 + $0xb8] sm:$0xff]
        %v6829 = vld [vmem:[%s6804 + $0xc0] sm:$0xff]
        %v6830 = vld [vmem:[%s6804 + $0xc8] sm:$0xff]
        %v6831 = vld [vmem:[%s6804 + $0xd0] sm:$0xff]
        %v6832 = vld [vmem:[%s6804 + $0xd8] sm:$0xff]
        %v6833 = vld [vmem:[%s6804 + $0xe0] sm:$0xff]
        %v6834 = vld [vmem:[%s6804 + $0xe8] sm:$0xff]
        %v6835 = vld [vmem:[%s6804 + $0xf0] sm:$0xff]
        %v6836 = vld [vmem:[%s6804 + $0xf8] sm:$0xff]
        %v6837 = vadd.f32 %v6805, %v6678
        %v6838 = vadd.f32 %v6806, %v6681
        %v6839 = vadd.f32 %v6807, %v6686
        %v6840 = vadd.f32 %v6808, %v6689
        %v6841 = vadd.f32 %v6809, %v6694
        %v6842 = vadd.f32 %v6810, %v6697
        %v6843 = vadd.f32 %v6811, %v6702
        %v6844 = vadd.f32 %v6812, %v6705
        %v6845 = vadd.f32 %v6813, %v6710
        %v6846 = vadd.f32 %v6814, %v6713
        %v6847 = vadd.f32 %v6815, %v6718
        %v6848 = vadd.f32 %v6816, %v6721
        %v6849 = vadd.f32 %v6817, %v6726
        %v6850 = vadd.f32 %v6818, %v6729
        %v6851 = vadd.f32 %v6819, %v6734
        %v6852 = vadd.f32 %v6820, %v6737
        %v6853 = vadd.f32 %v6821, %v6742
        %v6854 = vadd.f32 %v6822, %v6745
        %v6855 = vadd.f32 %v6823, %v6750
        %v6856 = vadd.f32 %v6824, %v6753
        %v6857 = vadd.f32 %v6825, %v6758
        %v6858 = vadd.f32 %v6826, %v6761
        %v6859 = vadd.f32 %v6827, %v6766
        %v6860 = vadd.f32 %v6828, %v6769
        %v6861 = vadd.f32 %v6829, %v6774
        %v6862 = vadd.f32 %v6830, %v6777
        %v6863 = vadd.f32 %v6831, %v6782
        %v6864 = vadd.f32 %v6832, %v6785
        %v6865 = vadd.f32 %v6833, %v6790
        %v6866 = vadd.f32 %v6834, %v6793
        %v6867 = vadd.f32 %v6835, %v6798
        %v6868 = vadd.f32 %v6836, %v6801
        %6869 = vst [vmem:[%s350] sm:$0xff] %v6837
        %6870 = vst [vmem:[%s350 + $0x8] sm:$0xff] %v6838
        %6871 = vst [vmem:[%s350 + $0x10] sm:$0xff] %v6839
        %6872 = vst [vmem:[%s350 + $0x18] sm:$0xff] %v6840
        %6873 = vst [vmem:[%s350 + $0x20] sm:$0xff] %v6841
        %6874 = vst [vmem:[%s350 + $0x28] sm:$0xff] %v6842
        %6875 = vst [vmem:[%s350 + $0x30] sm:$0xff] %v6843
        %6876 = vst [vmem:[%s350 + $0x38] sm:$0xff] %v6844
        %6877 = vst [vmem:[%s350 + $0x40] sm:$0xff] %v6845
        %6878 = vst [vmem:[%s350 + $0x48] sm:$0xff] %v6846
        %6879 = vst [vmem:[%s350 + $0x50] sm:$0xff] %v6847
        %6880 = vst [vmem:[%s350 + $0x58] sm:$0xff] %v6848
        %6881 = vst [vmem:[%s350 + $0x60] sm:$0xff] %v6849
        %6882 = vst [vmem:[%s350 + $0x68] sm:$0xff] %v6850
        %6883 = vst [vmem:[%s350 + $0x70] sm:$0xff] %v6851
        %6884 = vst [vmem:[%s350 + $0x78] sm:$0xff] %v6852
        %6885 = vst [vmem:[%s350 + $0x80] sm:$0xff] %v6853
        %6886 = vst [vmem:[%s350 + $0x88] sm:$0xff] %v6854
        %6887 = vst [vmem:[%s350 + $0x90] sm:$0xff] %v6855
        %6888 = vst [vmem:[%s350 + $0x98] sm:$0xff] %v6856
        %6889 = vst [vmem:[%s350 + $0xa0] sm:$0xff] %v6857
        %6890 = vst [vmem:[%s350 + $0xa8] sm:$0xff] %v6858
        %6891 = vst [vmem:[%s350 + $0xb0] sm:$0xff] %v6859
        %6892 = vst [vmem:[%s350 + $0xb8] sm:$0xff] %v6860
        %6893 = vst [vmem:[%s350 + $0xc0] sm:$0xff] %v6861
        %6894 = vst [vmem:[%s350 + $0xc8] sm:$0xff] %v6862
        %6895 = vst [vmem:[%s350 + $0xd0] sm:$0xff] %v6863
        %6896 = vst [vmem:[%s350 + $0xd8] sm:$0xff] %v6864
        %6897 = vst [vmem:[%s350 + $0xe0] sm:$0xff] %v6865
        %6898 = vst [vmem:[%s350 + $0xe8] sm:$0xff] %v6866
        %6899 = vst [vmem:[%s350 + $0xf0] sm:$0xff] %v6867
        %6900 = vst [vmem:[%s350 + $0xf8] sm:$0xff] %v6868
        %s6901 = sand.u32 %s183, 1
        %s6902 = scalar_lea.sflag [#allocation6], %s6901
        %s6903 = sand.u32 %s183, 1
        %s6904 = smul.addr %s6903, 256
        %s6905 = scalar_lea.vmem [#allocation13], %s6904
        // Predicated region
        $region69: #{tpu_custom_call.1} parent=43 // pred_check
          %p6906 = pneg %p193
        $region70: #{tpu_custom_call.1} parent=43 // pred_check_branch
          %6908 = sbr.rel (%p6906) target = $region72
        $region71: #{tpu_custom_call.1} parent=43 // pred_region
          %s6909 = smul.u32 32, %s30
          %s6911 = ssub.s32 4096, 4096
          %6912 = vsyncadd %s6902, %s6911
          %s6913 = smul.addr %s29, 32
          %s6914 = sadd.s32 %s6909, %s6913
          %s6915 = smul.addr %s6914, 128
          %s6916 = scalar_lea.hbm %s6, %s6915
          %s6917 = sshll.u32 %s6905, 4
          %s6918 = int_to_ptr.vmem [resolvable:$true] %s6917
          %6923 = dma.vmem_to_hbm [thread:$0]  %s6918, 4096, %s6916, %s6902, 128, 128, 8
        $region72: #{tpu_custom_call.1} parent=43 // pred_fallthru
          _
      $region44: #{tpu_custom_call.1} parent=5 // pred_fallthru
        _
      %p6924 = scmp.le.s32.totalorder 2, %s20
      // Predicated region
      $region73: #{tpu_custom_call.1} parent=5 // pred_check
        %p6925 = pneg %p6924
      $region74: #{tpu_custom_call.1} parent=5 // pred_check_branch
        %6927 = sbr.rel (%p6925) target = $region76
      $region75: #{tpu_custom_call.1} parent=5 // pred_region
        %s6928 = ssub.s32 %s20, 2
        // Predicated region
        $region77: #{tpu_custom_call.1} parent=75 // pred_check
          %p6929 = pneg %p199
        $region78: #{tpu_custom_call.1} parent=75 // pred_check_branch
          %6931 = sbr.rel (%p6929) target = $region80
        $region79: #{tpu_custom_call.1} parent=75 // pred_region
          %s6932 = sand.u32 %s184, 1
          %s6933 = scalar_lea.sflag [#allocation6], %s6932
          %s6934 = sand.u32 %s184, 1
          %s6935 = smul.addr %s6934, 256
          %s6936 = scalar_lea.vmem [#allocation13], %s6935
          %6937 = dma.done %s6933, 4096
        $region80: #{tpu_custom_call.1} parent=75 // pred_fallthru
          _
      $region76: #{tpu_custom_call.1} parent=5 // pred_fallthru
        _
    $region6: #{tpu_custom_call.1} parent=1 // loop_footer
      %s24 = sadd.s32 1, %s20
    $region7: #{tpu_custom_call.1} parent=1 // loop_footer_branch
      %19 = sbr.rel target = $region3
    $region8: #{tpu_custom_call.1} parent=1 // loop_exit
      _
    %6938 = vsyncpa [#allocation5], 1
    %s6939 = scalar_lea.sflag [#allocation5], 1
    %6940 = vsyncpa %s6939, 1
    %6941 = vsyncpa [#allocation8], 1
    %6942 = vsyncpa [#allocation11], 1
    %6943 = vsyncpa [#allocation6], 1
    %s6944 = scalar_lea.sflag [#allocation6], 1
    %6945 = vsyncpa %s6944, 1

</llo_original>
